<compile_context>
chip_gen: v7x
topology: tpu7x:2x2x1
jax: 0.10.0
libtpu: 0.0.40
codegen_flags: <defaults>
</compile_context>

<pallas_src>
import math
from functools import partial

import jax
import jax.numpy as jnp
from jax.experimental import pallas as pl
from jax.experimental.pallas import tpu as pltpu
from jax.scipy.special import logsumexp

EPS = 1e-10
HIDDEN = 500            # logical hidden width of the PyTorch module
HPAD = 512              # zero-padded hidden width (lane-aligned)
LANE = 128
VMEM_LIMIT = 48 * 1024 * 1024   # < v7x's 64 MiB physical; plenty of slack on v5e/v6e
W_DTYPE = jnp.bfloat16
# Set to jnp.bfloat16 to halve the recon HBM writeback (v5e lever; then keep the
# row tile a multiple of 16).  Default f32 preserves reference output precision.
RECON_DTYPE = jnp.float32


def _round_up(v, m):
    return ((v + m - 1) // m) * m


# ----------------------------------------------------------------------------
# Row tiling: single grid step for small/medium M (splitting 8-row tiles across
# megacore TCs is pure per-step overhead on 1-TC v5e/v6e and a net loss on v7x);
# 256-row tiles only when M is large enough to amortize the 256-deep MXU pushes.
# ----------------------------------------------------------------------------
def _row_tiles(M):
    Mp = _round_up(max(M, 8), 8)
    if Mp <= 256:
        return Mp, Mp
    return _round_up(Mp, 256), 256


def _row_spec(tm, cols):
    return pl.BlockSpec((tm, cols), lambda i: (i, 0))


def _weight_spec(shape):
    """BlockSpec for a VMEM-resident weight (constant index map).
    Single-buffer it when supported so the weight set is not double-buffered."""
    idx = lambda i: (0,) * len(shape)
    if hasattr(pl, "Buffered"):
        try:
            return pl.BlockSpec(shape, idx, pipeline_mode=pl.Buffered(1))
        except TypeError:
            pass  # older BlockSpec without pipeline_mode
    return pl.BlockSpec(shape, idx)


# ----------------------------------------------------------------------------
# Pallas kernel 1: fully fused sample_psi (both the K-repeat and J-repeat row
# blocks at once) + the z_logvar MLP.  All weights resident in VMEM, all
# intermediate activations stay in vregs/VMEM; one row tile per grid step.
# The concat(noise, x, h) first layers are realised as split weight blocks
# (cat(a,b) @ W == a @ Wa + b @ Wb).
# ----------------------------------------------------------------------------
def _psi_zlogvar_kernel(x_ref, e3_ref, e2_ref, e1_ref,
                        w3e, w3x, b30, w31, b31, w32, b32,
                        w2h, w2e, w2x, b20, w21, b21, w22, b22,
                        w1h, w1e, w1x, b10, w11, b11, w12, b12,
                        wmu, bmu,
                        wz0, bz0, wz1, bz1, wz2, bz2,
                        psi_ref, zlv_ref):
    xb = x_ref[...].astype(W_DTYPE)

    def mm(a, w_ref):
        return jnp.dot(a.astype(W_DTYPE), w_ref[...],
                       preferred_element_type=jnp.float32)

    # hiddel_l3: Linear(cat(e3,x)->500) ReLU, Linear(500,500) ReLU, Linear(500,nd0) ReLU
    e3 = e3_ref[...]
    h = jnp.maximum(mm(e3, w3e) + mm(xb, w3x) + b30[...], 0.0)
    h = jnp.maximum(mm(h, w31) + b31[...], 0.0)
    h3 = jnp.maximum(mm(h, w32) + b32[...], 0.0)

    # hiddel_l2: Linear(cat(h3,e2,x)->500) ReLU, Linear(500,500) ReLU, Linear(500,nd1) ReLU
    e2 = e2_ref[...]
    h = jnp.maximum(mm(h3, w2h) + mm(e2, w2e) + mm(xb, w2x) + b20[...], 0.0)
    h = jnp.maximum(mm(h, w21) + b21[...], 0.0)
    h2 = jnp.maximum(mm(h, w22) + b22[...], 0.0)

    # hiddel_l1: Linear(cat(h2,e1,x)->500) ReLU, Linear(500,500) ReLU, Linear(500,500) ReLU
    e1 = e1_ref[...]
    h = jnp.maximum(mm(h2, w1h) + mm(e1, w1e) + mm(xb, w1x) + b10[...], 0.0)
    h = jnp.maximum(mm(h, w11) + b11[...], 0.0)
    h = jnp.maximum(mm(h, w12) + b12[...], 0.0)

    # mu (no activation) -- lane-dense (tm, ZPAD) slab
    psi_ref[...] = (mm(h, wmu) + bmu[...]).astype(psi_ref.dtype)

    # z_logvar MLP folded in (consumes the same x rows; weights already resident)
    g = jnp.maximum(mm(xb, wz0) + bz0[...], 0.0)
    g = jnp.maximum(mm(g, wz1) + bz1[...], 0.0)
    zlv_ref[...] = (mm(g, wz2) + bz2[...]).astype(zlv_ref.dtype)


def psi_and_zlogvar(params, noise_key, x_rows, in_dim, z_dim, noise_dim):
    """x_rows: (M, in_dim) f32 rows = concat(B*K iw rows, B*J star rows)."""
    M = x_rows.shape[0]
    Mp, tm = _row_tiles(M)
    in_pad = _round_up(in_dim, LANE)
    z_pad = _round_up(z_dim, LANE)
    nd_pad = [_round_up(n, LANE) for n in noise_dim]

    xp = jnp.pad(x_rows, ((0, Mp - M), (0, in_pad - in_dim)))
    # TODO(synk): on hardware the noise could be generated in-kernel with the
    # TPU PRNG; it is drawn host-side because pltpu.prng_* has no interpret/CPU
    # lowering.  Extra padded columns hit zero weight rows -> no effect.
    k3, k2, k1 = jax.random.split(noise_key, 3)
    e3 = jax.random.bernoulli(k3, 0.5, (Mp, nd_pad[0])).astype(jnp.float32)
    e2 = jax.random.bernoulli(k2, 0.5, (Mp, nd_pad[1])).astype(jnp.float32)
    e1 = jax.random.bernoulli(k1, 0.5, (Mp, nd_pad[2])).astype(jnp.float32)

    l3, l2, l1, mu = params["l3"], params["l2"], params["l1"], params["mu"]
    weights = [l3["w_e"], l3["w_x"], l3["b0"], l3["w1"], l3["b1"], l3["w2"], l3["b2"],
               l2["w_h"], l2["w_e"], l2["w_x"], l2["b0"], l2["w1"], l2["b1"], l2["w2"], l2["b2"],
               l1["w_h"], l1["w_e"], l1["w_x"], l1["b0"], l1["w1"], l1["b1"], l1["w2"], l1["b2"],
               mu["w"], mu["b"]]
    for (w, b) in params["z_logvar"]:
        weights += [w, b]

    in_specs = [_row_spec(tm, in_pad),
                _row_spec(tm, nd_pad[0]),
                _row_spec(tm, nd_pad[1]),
                _row_spec(tm, nd_pad[2])]
    in_specs += [_weight_spec(w.shape) for w in weights]

    psi, zlv = pl.pallas_call(
        _psi_zlogvar_kernel,
        out_shape=(jax.ShapeDtypeStruct((Mp, z_pad), jnp.float32),
                   jax.ShapeDtypeStruct((Mp, z_pad), jnp.float32)),
        grid=(Mp // tm,),
        in_specs=in_specs,
        out_specs=(_row_spec(tm, z_pad), _row_spec(tm, z_pad)),
        compiler_params=pltpu.CompilerParams(
            dimension_semantics=("parallel",),
            vmem_limit_bytes=VMEM_LIMIT),
    )(xp, e3, e2, e1, *weights)
    return psi[:M, :z_dim], zlv[:M, :z_dim]


# ----------------------------------------------------------------------------
# Pallas kernel 2: fused decoder MLP + Bernoulli head.
# Computes logits, reconstruct = sigmoid(logits), and the reference per-row
# log-likelihood sum_f x*log(p+EPS) + (1-x)*log(1-p+EPS), with the lane padding
# masked out.  LL is written as a lane-dense (tm, 128) slab.
# ----------------------------------------------------------------------------
def _decoder_bern_kernel(in_dim, z_ref, x_ref, w0, b0, w1, b1, w2, b2, w3, b3,
                         recon_ref, ll_ref):
    def mm(a, w_ref):
        return jnp.dot(a.astype(W_DTYPE), w_ref[...],
                       preferred_element_type=jnp.float32)

    h = jnp.maximum(mm(z_ref[...], w0) + b0[...], 0.0)
    h = jnp.maximum(mm(h, w1) + b1[...], 0.0)
    h = jnp.maximum(mm(h, w2) + b2[...], 0.0)
    logits = mm(h, w3) + b3[...]

    x = x_ref[...]
    recon = jax.nn.sigmoid(logits)
    recon_ref[...] = recon.astype(recon_ref.dtype)

    term = x * jnp.log(recon + EPS) + (1.0 - x) * jnp.log(1.0 - recon + EPS)
    col = jax.lax.broadcasted_iota(jnp.int32, term.shape, 1)
    ll = jnp.sum(jnp.where(col < in_dim, term, 0.0), axis=-1, keepdims=True)
    ll_ref[...] = jnp.broadcast_to(ll, ll_ref.shape)


def decoder_bernoulli(params, z_rows, x_rows, in_dim, z_dim):
    M = z_rows.shape[0]
    Mp, tm = _row_tiles(M)
    in_pad = _round_up(in_dim, LANE)
    z_pad = _round_up(z_dim, LANE)
    zp = jnp.pad(z_rows, ((0, Mp - M), (0, z_pad - z_dim)))
    xp = jnp.pad(x_rows, ((0, Mp - M), (0, in_pad - in_dim)))

    weights = []
    for (w, b) in params["decoder"]:
        weights += [w, b]

    in_specs = [_row_spec(tm, z_pad), _row_spec(tm, in_pad)]
    in_specs += [_weight_spec(w.shape) for w in weights]

    recon, ll = pl.pallas_call(
        partial(_decoder_bern_kernel, in_dim),
        out_shape=(jax.ShapeDtypeStruct((Mp, in_pad), RECON_DTYPE),
                   jax.ShapeDtypeStruct((Mp, 128), jnp.float32)),
        grid=(Mp // tm,),
        in_specs=in_specs,
        out_specs=(_row_spec(tm, in_pad), _row_spec(tm, 128)),
        compiler_params=pltpu.CompilerParams(
            dimension_semantics=("parallel",),
            vmem_limit_bytes=VMEM_LIMIT),
    )(zp, xp, *weights)
    return recon[:M, :in_dim].astype(jnp.float32), ll[:M, 0]


# ----------------------------------------------------------------------------
# Parameter init: PyTorch nn.Linear default U(-1/sqrt(fan_in), 1/sqrt(fan_in))
# on the logical shapes, then zero-padded to lane-aligned tiles (500 -> 512,
# feature dims -> multiples of 128).  Weights bf16, biases f32.
# ----------------------------------------------------------------------------
def _uniform_linear(key, fan_in, fan_out):
    kw, kb = jax.random.split(key)
    bound = 1.0 / math.sqrt(fan_in)
    w = jax.random.uniform(kw, (fan_in, fan_out), jnp.float32, -bound, bound)
    b = jax.random.uniform(kb, (1, fan_out), jnp.float32, -bound, bound)
    return w, b


def _pad_w(w, rows, cols):
    return jnp.pad(w, ((0, rows - w.shape[0]), (0, cols - w.shape[1]))).astype(W_DTYPE)


def _pad_b(b, cols):
    return jnp.pad(b, ((0, 0), (0, cols - b.shape[1])))   # bias stays f32


def init_sivae_params(key, in_dim, z_dim, noise_dim):
    nd0, nd1, nd2 = noise_dim
    in_pad = _round_up(in_dim, LANE)
    z_pad = _round_up(z_dim, LANE)
    np0, np1, np2 = (_round_up(n, LANE) for n in noise_dim)
    H, HP = HIDDEN, HPAD
    keys = iter(jax.random.split(key, 20))
    p = {}

    # hiddel_l3: input = cat(e3, x)
    w, b = _uniform_linear(next(keys), nd0 + in_dim, H)
    l3 = dict(w_e=_pad_w(w[:nd0], np0, HP), w_x=_pad_w(w[nd0:], in_pad, HP),
              b0=_pad_b(b, HP))
    w, b = _uniform_linear(next(keys), H, H)
    l3["w1"], l3["b1"] = _pad_w(w, HP, HP), _pad_b(b, HP)
    w, b = _uniform_linear(next(keys), H, nd0)
    l3["w2"], l3["b2"] = _pad_w(w, HP, np0), _pad_b(b, np0)
    p["l3"] = l3

    # hiddel_l2: input = cat(h3, e2, x)
    w, b = _uniform_linear(next(keys), nd0 + nd1 + in_dim, H)
    l2 = dict(w_h=_pad_w(w[:nd0], np0, HP), w_e=_pad_w(w[nd0:nd0 + nd1], np1, HP),
              w_x=_pad_w(w[nd0 + nd1:], in_pad, HP), b0=_pad_b(b, HP))
    w, b = _uniform_linear(next(keys), H, H)
    l2["w1"], l2["b1"] = _pad_w(w, HP, HP), _pad_b(b, HP)
    w, b = _uniform_linear(next(keys), H, nd1)
    l2["w2"], l2["b2"] = _pad_w(w, HP, np1), _pad_b(b, np1)
    p["l2"] = l2

    # hiddel_l1: input = cat(h2, e1, x)
    w, b = _uniform_linear(next(keys), nd1 + nd2 + in_dim, H)
    l1 = dict(w_h=_pad_w(w[:nd1], np1, HP), w_e=_pad_w(w[nd1:nd1 + nd2], np2, HP),
              w_x=_pad_w(w[nd1 + nd2:], in_pad, HP), b0=_pad_b(b, HP))
    w, b = _uniform_linear(next(keys), H, H)
    l1["w1"], l1["b1"] = _pad_w(w, HP, HP), _pad_b(b, HP)
    w, b = _uniform_linear(next(keys), H, H)
    l1["w2"], l1["b2"] = _pad_w(w, HP, HP), _pad_b(b, HP)
    p["l1"] = l1

    w, b = _uniform_linear(next(keys), H, z_dim)
    p["mu"] = dict(w=_pad_w(w, HP, z_pad), b=_pad_b(b, z_pad))

    zl = []
    w, b = _uniform_linear(next(keys), in_dim, H)
    zl.append((_pad_w(w, in_pad, HP), _pad_b(b, HP)))
    w, b = _uniform_linear(next(keys), H, H)
    zl.append((_pad_w(w, HP, HP), _pad_b(b, HP)))
    w, b = _uniform_linear(next(keys), H, z_dim)
    zl.append((_pad_w(w, HP, z_pad), _pad_b(b, z_pad)))
    p["z_logvar"] = zl

    dec = []
    w, b = _uniform_linear(next(keys), z_dim, H)
    dec.append((_pad_w(w, z_pad, HP), _pad_b(b, HP)))
    w, b = _uniform_linear(next(keys), H, H)
    dec.append((_pad_w(w, HP, HP), _pad_b(b, HP)))
    w, b = _uniform_linear(next(keys), H, H)
    dec.append((_pad_w(w, HP, HP), _pad_b(b, HP)))
    w, b = _uniform_linear(next(keys), H, in_dim)
    dec.append((_pad_w(w, HP, in_pad), _pad_b(b, in_pad)))
    p["decoder"] = dec
    return p


# ----------------------------------------------------------------------------
# SIVAE forward (glue in JAX; all matmul / transcendental / reduction hot paths
# live in the TWO fused Pallas kernels above).
# ----------------------------------------------------------------------------
def sivae_forward(params, key, inputs, warm_up, J, K, noise_dim, z_dim):
    B, in_dim = inputs.shape
    k_noise, k_eps = jax.random.split(key, 2)

    x_iw_flat = jnp.repeat(inputs[:, None, :], K, axis=1).reshape(B * K, in_dim)
    x_star_flat = jnp.repeat(inputs[:, None, :], J, axis=1).reshape(B * J, in_dim)
    x_all = jnp.concatenate([x_iw_flat, x_star_flat], axis=0)      # (B*(K+J), in)

    # One fused call covers both sample_psi passes AND z_logvar: the weight set
    # is streamed from HBM exactly once.
    psi_all, zlv_all = psi_and_zlogvar(params, k_noise, x_all, in_dim, z_dim,
                                       noise_dim)
    psi_iw = psi_all[:B * K].reshape(B, K, z_dim)
    psi_star_rows = psi_all[B * K:].reshape(B, J, z_dim)
    z_logv_iw = zlv_all[:B * K].reshape(B, K, z_dim)   # == z_logvar(inputs) repeated K

    sigma_iw1 = jnp.exp(z_logv_iw / 2)
    sigma_iw2 = jnp.repeat(sigma_iw1[:, :, None, :], J + 1, axis=2)    # (B,K,J+1,z)

    # Faithful to the PyTorch code: reparameterize(mu=psi_iw, logvar=sigma_iw1),
    # i.e. the std is exp(0.5 * sigma_iw1) even though sigma_iw1 is already a std.
    eps = jax.random.normal(k_eps, sigma_iw1.shape, jnp.float32)
    z_sample_iw = psi_iw + eps * jnp.exp(0.5 * sigma_iw1)              # (B,K,z)
    z_sample_exp = jnp.repeat(z_sample_iw[:, :, None, :], J + 1, axis=2)

    psi_star_ = jnp.repeat(psi_star_rows[:, None, :, :], K, axis=1)    # (B,K,J,z)
    psi_star = jnp.concatenate([psi_star_, psi_iw[:, :, None, :]], axis=2)

    ker = jnp.exp(-0.5 * jnp.sum((z_sample_exp - psi_star) ** 2
                                 / (sigma_iw2 + EPS) ** 2, axis=3))
    log_H_iw = (jnp.log(jnp.exp(jnp.mean(ker, axis=2)))
                - 0.5 * logsumexp(z_logv_iw, axis=2))
    log_prior_iw = -0.5 * jnp.sum(z_sample_iw ** 2, axis=2)

    recon_rows, ll_rows = decoder_bernoulli(
        params, z_sample_iw.reshape(B * K, z_dim), x_iw_flat, in_dim, z_dim)
    # TODO(synk): like the original PyTorch module, the decoder-logits
    # `.repeat(1, K, 1)` broadcast makes the forward well-defined only for K == 1.
    reconstruct_iw = jnp.tile(recon_rows.reshape(B, K, in_dim), (1, K, 1))
    log_lik_iw = ll_rows.reshape(B, K)

    loss_iw = (-logsumexp(log_lik_iw + (log_prior_iw - log_H_iw) * warm_up, axis=1)
               + jnp.log(jnp.float32(K)))
    return reconstruct_iw, log_lik_iw, loss_iw.mean()


if __name__ == "__main__":
    key = jax.random.PRNGKey(0)
    B, in_dim, z_dim = 4, 32, 16
    noise_dim = (24, 16, 8)
    J, K = 4, 1        # K=1 is the only K for which the original forward is well-defined
    warm_up = 1.0

    k_param, k_data, k_fwd = jax.random.split(key, 3)
    params = init_sivae_params(k_param, in_dim, z_dim, noise_dim)
    inputs = jax.random.bernoulli(k_data, 0.5, (B, in_dim)).astype(jnp.float32)

    recon, log_lik, loss = sivae_forward(params, k_fwd, inputs, warm_up, J, K,
                                         noise_dim, z_dim)
    jax.block_until_ready((recon, log_lik, loss))
    assert recon.shape == (B, K * K, in_dim)
    assert log_lik.shape == (B, K)
    assert loss.shape == ()
    assert bool(jnp.all(jnp.isfinite(recon))) and bool(jnp.isfinite(loss))
    print("KERNEL_OK")
</pallas_src>

<mosaic_0001>
module attributes {stable_mosaic.version = 11 : i64} {
  func.func @_psi_zlogvar_kernel(%arg0: i32, %arg1: memref<24x128xf32, #tpu.memory_space<vmem>>, %arg2: memref<24x128xf32, #tpu.memory_space<vmem>>, %arg3: memref<24x128xf32, #tpu.memory_space<vmem>>, %arg4: memref<24x128xf32, #tpu.memory_space<vmem>>, %arg5: memref<128x512xbf16, #tpu.memory_space<vmem>>, %arg6: memref<128x512xbf16, #tpu.memory_space<vmem>>, %arg7: memref<1x512xf32, #tpu.memory_space<vmem>>, %arg8: memref<512x512xbf16, #tpu.memory_space<vmem>>, %arg9: memref<1x512xf32, #tpu.memory_space<vmem>>, %arg10: memref<512x128xbf16, #tpu.memory_space<vmem>>, %arg11: memref<1x128xf32, #tpu.memory_space<vmem>>, %arg12: memref<128x512xbf16, #tpu.memory_space<vmem>>, %arg13: memref<128x512xbf16, #tpu.memory_space<vmem>>, %arg14: memref<128x512xbf16, #tpu.memory_space<vmem>>, %arg15: memref<1x512xf32, #tpu.memory_space<vmem>>, %arg16: memref<512x512xbf16, #tpu.memory_space<vmem>>, %arg17: memref<1x512xf32, #tpu.memory_space<vmem>>, %arg18: memref<512x128xbf16, #tpu.memory_space<vmem>>, %arg19: memref<1x128xf32, #tpu.memory_space<vmem>>, %arg20: memref<128x512xbf16, #tpu.memory_space<vmem>>, %arg21: memref<128x512xbf16, #tpu.memory_space<vmem>>, %arg22: memref<128x512xbf16, #tpu.memory_space<vmem>>, %arg23: memref<1x512xf32, #tpu.memory_space<vmem>>, %arg24: memref<512x512xbf16, #tpu.memory_space<vmem>>, %arg25: memref<1x512xf32, #tpu.memory_space<vmem>>, %arg26: memref<512x512xbf16, #tpu.memory_space<vmem>>, %arg27: memref<1x512xf32, #tpu.memory_space<vmem>>, %arg28: memref<512x128xbf16, #tpu.memory_space<vmem>>, %arg29: memref<1x128xf32, #tpu.memory_space<vmem>>, %arg30: memref<128x512xbf16, #tpu.memory_space<vmem>>, %arg31: memref<1x512xf32, #tpu.memory_space<vmem>>, %arg32: memref<512x512xbf16, #tpu.memory_space<vmem>>, %arg33: memref<1x512xf32, #tpu.memory_space<vmem>>, %arg34: memref<512x128xbf16, #tpu.memory_space<vmem>>, %arg35: memref<1x128xf32, #tpu.memory_space<vmem>>, %arg36: memref<24x128xf32, #tpu.memory_space<vmem>>, %arg37: memref<24x128xf32, #tpu.memory_space<vmem>>) attributes {dimension_semantics = [#tpu.dimension_semantics<parallel>], iteration_bounds = array<i64: 1>, scalar_prefetch = 0 : i64, scratch_operands = 0 : i64, tpu.core_type = #tpu.core_type<tc>, window_params = [{transform_indices = @transform_0, window_bounds = array<i64: 24, 128>}, {transform_indices = @transform_1, window_bounds = array<i64: 24, 128>}, {transform_indices = @transform_2, window_bounds = array<i64: 24, 128>}, {transform_indices = @transform_3, window_bounds = array<i64: 24, 128>}, {pipeline_mode = #tpu.pipeline_mode<synchronous>, transform_indices = @transform_4, window_bounds = array<i64: 128, 512>}, {pipeline_mode = #tpu.pipeline_mode<synchronous>, transform_indices = @transform_5, window_bounds = array<i64: 128, 512>}, {pipeline_mode = #tpu.pipeline_mode<synchronous>, transform_indices = @transform_6, window_bounds = array<i64: 1, 512>}, {pipeline_mode = #tpu.pipeline_mode<synchronous>, transform_indices = @transform_7, window_bounds = array<i64: 512, 512>}, {pipeline_mode = #tpu.pipeline_mode<synchronous>, transform_indices = @transform_8, window_bounds = array<i64: 1, 512>}, {pipeline_mode = #tpu.pipeline_mode<synchronous>, transform_indices = @transform_9, window_bounds = array<i64: 512, 128>}, {pipeline_mode = #tpu.pipeline_mode<synchronous>, transform_indices = @transform_10, window_bounds = array<i64: 1, 128>}, {pipeline_mode = #tpu.pipeline_mode<synchronous>, transform_indices = @transform_11, window_bounds = array<i64: 128, 512>}, {pipeline_mode = #tpu.pipeline_mode<synchronous>, transform_indices = @transform_12, window_bounds = array<i64: 128, 512>}, {pipeline_mode = #tpu.pipeline_mode<synchronous>, transform_indices = @transform_13, window_bounds = array<i64: 128, 512>}, {pipeline_mode = #tpu.pipeline_mode<synchronous>, transform_indices = @transform_14, window_bounds = array<i64: 1, 512>}, {pipeline_mode = #tpu.pipeline_mode<synchronous>, transform_indices = @transform_15, window_bounds = array<i64: 512, 512>}, {pipeline_mode = #tpu.pipeline_mode<synchronous>, transform_indices = @transform_16, window_bounds = array<i64: 1, 512>}, {pipeline_mode = #tpu.pipeline_mode<synchronous>, transform_indices = @transform_17, window_bounds = array<i64: 512, 128>}, {pipeline_mode = #tpu.pipeline_mode<synchronous>, transform_indices = @transform_18, window_bounds = array<i64: 1, 128>}, {pipeline_mode = #tpu.pipeline_mode<synchronous>, transform_indices = @transform_19, window_bounds = array<i64: 128, 512>}, {pipeline_mode = #tpu.pipeline_mode<synchronous>, transform_indices = @transform_20, window_bounds = array<i64: 128, 512>}, {pipeline_mode = #tpu.pipeline_mode<synchronous>, transform_indices = @transform_21, window_bounds = array<i64: 128, 512>}, {pipeline_mode = #tpu.pipeline_mode<synchronous>, transform_indices = @transform_22, window_bounds = array<i64: 1, 512>}, {pipeline_mode = #tpu.pipeline_mode<synchronous>, transform_indices = @transform_23, window_bounds = array<i64: 512, 512>}, {pipeline_mode = #tpu.pipeline_mode<synchronous>, transform_indices = @transform_24, window_bounds = array<i64: 1, 512>}, {pipeline_mode = #tpu.pipeline_mode<synchronous>, transform_indices = @transform_25, window_bounds = array<i64: 512, 512>}, {pipeline_mode = #tpu.pipeline_mode<synchronous>, transform_indices = @transform_26, window_bounds = array<i64: 1, 512>}, {pipeline_mode = #tpu.pipeline_mode<synchronous>, transform_indices = @transform_27, window_bounds = array<i64: 512, 128>}, {pipeline_mode = #tpu.pipeline_mode<synchronous>, transform_indices = @transform_28, window_bounds = array<i64: 1, 128>}, {pipeline_mode = #tpu.pipeline_mode<synchronous>, transform_indices = @transform_29, window_bounds = array<i64: 128, 512>}, {pipeline_mode = #tpu.pipeline_mode<synchronous>, transform_indices = @transform_30, window_bounds = array<i64: 1, 512>}, {pipeline_mode = #tpu.pipeline_mode<synchronous>, transform_indices = @transform_31, window_bounds = array<i64: 512, 512>}, {pipeline_mode = #tpu.pipeline_mode<synchronous>, transform_indices = @transform_32, window_bounds = array<i64: 1, 512>}, {pipeline_mode = #tpu.pipeline_mode<synchronous>, transform_indices = @transform_33, window_bounds = array<i64: 512, 128>}, {pipeline_mode = #tpu.pipeline_mode<synchronous>, transform_indices = @transform_34, window_bounds = array<i64: 1, 128>}, {transform_indices = @transform_35, window_bounds = array<i64: 24, 128>}, {transform_indices = @transform_36, window_bounds = array<i64: 24, 128>}]} {
    %c0 = arith.constant 0 : index
    %c0_0 = arith.constant 0 : index
    %0 = vector.load %arg1[%c0, %c0_0] : memref<24x128xf32, #tpu.memory_space<vmem>>, vector<24x128xf32>
    %1 = arith.truncf %0 : vector<24x128xf32> to vector<24x128xbf16>
    %c0_1 = arith.constant 0 : index
    %c0_2 = arith.constant 0 : index
    %2 = vector.load %arg2[%c0_1, %c0_2] : memref<24x128xf32, #tpu.memory_space<vmem>>, vector<24x128xf32>
    %3 = arith.truncf %2 : vector<24x128xf32> to vector<24x128xbf16>
    %c0_3 = arith.constant 0 : index
    %c0_4 = arith.constant 0 : index
    %4 = vector.load %arg5[%c0_3, %c0_4] : memref<128x512xbf16, #tpu.memory_space<vmem>>, vector<128x512xbf16>
    %cst = arith.constant dense<0.000000e+00> : vector<24x512xf32>
    %5 = tpu.matmul %3, %4, %cst {dimension_numbers = #tpu.dot_dimension_numbers<[1], [0], [0], [1], [0, 0, 1, 1], [], []>} : vector<24x128xbf16>, vector<128x512xbf16>, vector<24x512xf32> -> vector<24x512xf32>
    %c0_5 = arith.constant 0 : index
    %c0_6 = arith.constant 0 : index
    %6 = vector.load %arg6[%c0_5, %c0_6] : memref<128x512xbf16, #tpu.memory_space<vmem>>, vector<128x512xbf16>
    %cst_7 = arith.constant dense<0.000000e+00> : vector<24x512xf32>
    %7 = tpu.matmul %1, %6, %cst_7 {dimension_numbers = #tpu.dot_dimension_numbers<[1], [0], [0], [1], [0, 0, 1, 1], [], []>} : vector<24x128xbf16>, vector<128x512xbf16>, vector<24x512xf32> -> vector<24x512xf32>
    %8 = arith.addf %5, %7 : vector<24x512xf32>
    %c0_8 = arith.constant 0 : index
    %c0_9 = arith.constant 0 : index
    %9 = vector.load %arg7[%c0_8, %c0_9] : memref<1x512xf32, #tpu.memory_space<vmem>>, vector<1x512xf32>
    %10 = vector.broadcast %9 : vector<1x512xf32> to vector<24x512xf32>
    %11 = arith.addf %8, %10 : vector<24x512xf32>
    %cst_10 = arith.constant 0.000000e+00 : f32
    %12 = vector.broadcast %cst_10 : f32 to vector<24x512xf32>
    %13 = arith.maximumf %11, %12 : vector<24x512xf32>
    %14 = arith.truncf %13 : vector<24x512xf32> to vector<24x512xbf16>
    %c0_11 = arith.constant 0 : index
    %c0_12 = arith.constant 0 : index
    %15 = vector.load %arg8[%c0_11, %c0_12] : memref<512x512xbf16, #tpu.memory_space<vmem>>, vector<512x512xbf16>
    %cst_13 = arith.constant dense<0.000000e+00> : vector<24x512xf32>
    %16 = tpu.matmul %14, %15, %cst_13 {dimension_numbers = #tpu.dot_dimension_numbers<[1], [0], [0], [1], [0, 0, 1, 1], [], []>} : vector<24x512xbf16>, vector<512x512xbf16>, vector<24x512xf32> -> vector<24x512xf32>
    %c0_14 = arith.constant 0 : index
    %c0_15 = arith.constant 0 : index
    %17 = vector.load %arg9[%c0_14, %c0_15] : memref<1x512xf32, #tpu.memory_space<vmem>>, vector<1x512xf32>
    %18 = vector.broadcast %17 : vector<1x512xf32> to vector<24x512xf32>
    %19 = arith.addf %16, %18 : vector<24x512xf32>
    %cst_16 = arith.constant 0.000000e+00 : f32
    %20 = vector.broadcast %cst_16 : f32 to vector<24x512xf32>
    %21 = arith.maximumf %19, %20 : vector<24x512xf32>
    %22 = arith.truncf %21 : vector<24x512xf32> to vector<24x512xbf16>
    %c0_17 = arith.constant 0 : index
    %c0_18 = arith.constant 0 : index
    %23 = vector.load %arg10[%c0_17, %c0_18] : memref<512x128xbf16, #tpu.memory_space<vmem>>, vector<512x128xbf16>
    %cst_19 = arith.constant dense<0.000000e+00> : vector<24x128xf32>
    %24 = tpu.matmul %22, %23, %cst_19 {dimension_numbers = #tpu.dot_dimension_numbers<[1], [0], [0], [1], [0, 0, 1, 1], [], []>} : vector<24x512xbf16>, vector<512x128xbf16>, vector<24x128xf32> -> vector<24x128xf32>
    %c0_20 = arith.constant 0 : index
    %c0_21 = arith.constant 0 : index
    %25 = vector.load %arg11[%c0_20, %c0_21] : memref<1x128xf32, #tpu.memory_space<vmem>>, vector<1x128xf32>
    %26 = vector.broadcast %25 : vector<1x128xf32> to vector<24x128xf32>
    %27 = arith.addf %24, %26 : vector<24x128xf32>
    %cst_22 = arith.constant 0.000000e+00 : f32
    %28 = vector.broadcast %cst_22 : f32 to vector<24x128xf32>
    %29 = arith.maximumf %27, %28 : vector<24x128xf32>
    %c0_23 = arith.constant 0 : index
    %c0_24 = arith.constant 0 : index
    %30 = vector.load %arg3[%c0_23, %c0_24] : memref<24x128xf32, #tpu.memory_space<vmem>>, vector<24x128xf32>
    %31 = arith.truncf %29 : vector<24x128xf32> to vector<24x128xbf16>
    %c0_25 = arith.constant 0 : index
    %c0_26 = arith.constant 0 : index
    %32 = vector.load %arg12[%c0_25, %c0_26] : memref<128x512xbf16, #tpu.memory_space<vmem>>, vector<128x512xbf16>
    %cst_27 = arith.constant dense<0.000000e+00> : vector<24x512xf32>
    %33 = tpu.matmul %31, %32, %cst_27 {dimension_numbers = #tpu.dot_dimension_numbers<[1], [0], [0], [1], [0, 0, 1, 1], [], []>} : vector<24x128xbf16>, vector<128x512xbf16>, vector<24x512xf32> -> vector<24x512xf32>
    %34 = arith.truncf %30 : vector<24x128xf32> to vector<24x128xbf16>
    %c0_28 = arith.constant 0 : index
    %c0_29 = arith.constant 0 : index
    %35 = vector.load %arg13[%c0_28, %c0_29] : memref<128x512xbf16, #tpu.memory_space<vmem>>, vector<128x512xbf16>
    %cst_30 = arith.constant dense<0.000000e+00> : vector<24x512xf32>
    %36 = tpu.matmul %34, %35, %cst_30 {dimension_numbers = #tpu.dot_dimension_numbers<[1], [0], [0], [1], [0, 0, 1, 1], [], []>} : vector<24x128xbf16>, vector<128x512xbf16>, vector<24x512xf32> -> vector<24x512xf32>
    %37 = arith.addf %33, %36 : vector<24x512xf32>
    %c0_31 = arith.constant 0 : index
    %c0_32 = arith.constant 0 : index
    %38 = vector.load %arg14[%c0_31, %c0_32] : memref<128x512xbf16, #tpu.memory_space<vmem>>, vector<128x512xbf16>
    %cst_33 = arith.constant dense<0.000000e+00> : vector<24x512xf32>
    %39 = tpu.matmul %1, %38, %cst_33 {dimension_numbers = #tpu.dot_dimension_numbers<[1], [0], [0], [1], [0, 0, 1, 1], [], []>} : vector<24x128xbf16>, vector<128x512xbf16>, vector<24x512xf32> -> vector<24x512xf32>
    %40 = arith.addf %37, %39 : vector<24x512xf32>
    %c0_34 = arith.constant 0 : index
    %c0_35 = arith.constant 0 : index
    %41 = vector.load %arg15[%c0_34, %c0_35] : memref<1x512xf32, #tpu.memory_space<vmem>>, vector<1x512xf32>
    %42 = vector.broadcast %41 : vector<1x512xf32> to vector<24x512xf32>
    %43 = arith.addf %40, %42 : vector<24x512xf32>
    %cst_36 = arith.constant 0.000000e+00 : f32
    %44 = vector.broadcast %cst_36 : f32 to vector<24x512xf32>
    %45 = arith.maximumf %43, %44 : vector<24x512xf32>
    %46 = arith.truncf %45 : vector<24x512xf32> to vector<24x512xbf16>
    %c0_37 = arith.constant 0 : index
    %c0_38 = arith.constant 0 : index
    %47 = vector.load %arg16[%c0_37, %c0_38] : memref<512x512xbf16, #tpu.memory_space<vmem>>, vector<512x512xbf16>
    %cst_39 = arith.constant dense<0.000000e+00> : vector<24x512xf32>
    %48 = tpu.matmul %46, %47, %cst_39 {dimension_numbers = #tpu.dot_dimension_numbers<[1], [0], [0], [1], [0, 0, 1, 1], [], []>} : vector<24x512xbf16>, vector<512x512xbf16>, vector<24x512xf32> -> vector<24x512xf32>
    %c0_40 = arith.constant 0 : index
    %c0_41 = arith.constant 0 : index
    %49 = vector.load %arg17[%c0_40, %c0_41] : memref<1x512xf32, #tpu.memory_space<vmem>>, vector<1x512xf32>
    %50 = vector.broadcast %49 : vector<1x512xf32> to vector<24x512xf32>
    %51 = arith.addf %48, %50 : vector<24x512xf32>
    %cst_42 = arith.constant 0.000000e+00 : f32
    %52 = vector.broadcast %cst_42 : f32 to vector<24x512xf32>
    %53 = arith.maximumf %51, %52 : vector<24x512xf32>
    %54 = arith.truncf %53 : vector<24x512xf32> to vector<24x512xbf16>
    %c0_43 = arith.constant 0 : index
    %c0_44 = arith.constant 0 : index
    %55 = vector.load %arg18[%c0_43, %c0_44] : memref<512x128xbf16, #tpu.memory_space<vmem>>, vector<512x128xbf16>
    %cst_45 = arith.constant dense<0.000000e+00> : vector<24x128xf32>
    %56 = tpu.matmul %54, %55, %cst_45 {dimension_numbers = #tpu.dot_dimension_numbers<[1], [0], [0], [1], [0, 0, 1, 1], [], []>} : vector<24x512xbf16>, vector<512x128xbf16>, vector<24x128xf32> -> vector<24x128xf32>
    %c0_46 = arith.constant 0 : index
    %c0_47 = arith.constant 0 : index
    %57 = vector.load %arg19[%c0_46, %c0_47] : memref<1x128xf32, #tpu.memory_space<vmem>>, vector<1x128xf32>
    %58 = vector.broadcast %57 : vector<1x128xf32> to vector<24x128xf32>
    %59 = arith.addf %56, %58 : vector<24x128xf32>
    %cst_48 = arith.constant 0.000000e+00 : f32
    %60 = vector.broadcast %cst_48 : f32 to vector<24x128xf32>
    %61 = arith.maximumf %59, %60 : vector<24x128xf32>
    %c0_49 = arith.constant 0 : index
    %c0_50 = arith.constant 0 : index
    %62 = vector.load %arg4[%c0_49, %c0_50] : memref<24x128xf32, #tpu.memory_space<vmem>>, vector<24x128xf32>
    %63 = arith.truncf %61 : vector<24x128xf32> to vector<24x128xbf16>
    %c0_51 = arith.constant 0 : index
    %c0_52 = arith.constant 0 : index
    %64 = vector.load %arg20[%c0_51, %c0_52] : memref<128x512xbf16, #tpu.memory_space<vmem>>, vector<128x512xbf16>
    %cst_53 = arith.constant dense<0.000000e+00> : vector<24x512xf32>
    %65 = tpu.matmul %63, %64, %cst_53 {dimension_numbers = #tpu.dot_dimension_numbers<[1], [0], [0], [1], [0, 0, 1, 1], [], []>} : vector<24x128xbf16>, vector<128x512xbf16>, vector<24x512xf32> -> vector<24x512xf32>
    %66 = arith.truncf %62 : vector<24x128xf32> to vector<24x128xbf16>
    %c0_54 = arith.constant 0 : index
    %c0_55 = arith.constant 0 : index
    %67 = vector.load %arg21[%c0_54, %c0_55] : memref<128x512xbf16, #tpu.memory_space<vmem>>, vector<128x512xbf16>
    %cst_56 = arith.constant dense<0.000000e+00> : vector<24x512xf32>
    %68 = tpu.matmul %66, %67, %cst_56 {dimension_numbers = #tpu.dot_dimension_numbers<[1], [0], [0], [1], [0, 0, 1, 1], [], []>} : vector<24x128xbf16>, vector<128x512xbf16>, vector<24x512xf32> -> vector<24x512xf32>
    %69 = arith.addf %65, %68 : vector<24x512xf32>
    %c0_57 = arith.constant 0 : index
    %c0_58 = arith.constant 0 : index
    %70 = vector.load %arg22[%c0_57, %c0_58] : memref<128x512xbf16, #tpu.memory_space<vmem>>, vector<128x512xbf16>
    %cst_59 = arith.constant dense<0.000000e+00> : vector<24x512xf32>
    %71 = tpu.matmul %1, %70, %cst_59 {dimension_numbers = #tpu.dot_dimension_numbers<[1], [0], [0], [1], [0, 0, 1, 1], [], []>} : vector<24x128xbf16>, vector<128x512xbf16>, vector<24x512xf32> -> vector<24x512xf32>
    %72 = arith.addf %69, %71 : vector<24x512xf32>
    %c0_60 = arith.constant 0 : index
    %c0_61 = arith.constant 0 : index
    %73 = vector.load %arg23[%c0_60, %c0_61] : memref<1x512xf32, #tpu.memory_space<vmem>>, vector<1x512xf32>
    %74 = vector.broadcast %73 : vector<1x512xf32> to vector<24x512xf32>
    %75 = arith.addf %72, %74 : vector<24x512xf32>
    %cst_62 = arith.constant 0.000000e+00 : f32
    %76 = vector.broadcast %cst_62 : f32 to vector<24x512xf32>
    %77 = arith.maximumf %75, %76 : vector<24x512xf32>
    %78 = arith.truncf %77 : vector<24x512xf32> to vector<24x512xbf16>
    %c0_63 = arith.constant 0 : index
    %c0_64 = arith.constant 0 : index
    %79 = vector.load %arg24[%c0_63, %c0_64] : memref<512x512xbf16, #tpu.memory_space<vmem>>, vector<512x512xbf16>
    %cst_65 = arith.constant dense<0.000000e+00> : vector<24x512xf32>
    %80 = tpu.matmul %78, %79, %cst_65 {dimension_numbers = #tpu.dot_dimension_numbers<[1], [0], [0], [1], [0, 0, 1, 1], [], []>} : vector<24x512xbf16>, vector<512x512xbf16>, vector<24x512xf32> -> vector<24x512xf32>
    %c0_66 = arith.constant 0 : index
    %c0_67 = arith.constant 0 : index
    %81 = vector.load %arg25[%c0_66, %c0_67] : memref<1x512xf32, #tpu.memory_space<vmem>>, vector<1x512xf32>
    %82 = vector.broadcast %81 : vector<1x512xf32> to vector<24x512xf32>
    %83 = arith.addf %80, %82 : vector<24x512xf32>
    %cst_68 = arith.constant 0.000000e+00 : f32
    %84 = vector.broadcast %cst_68 : f32 to vector<24x512xf32>
    %85 = arith.maximumf %83, %84 : vector<24x512xf32>
    %86 = arith.truncf %85 : vector<24x512xf32> to vector<24x512xbf16>
    %c0_69 = arith.constant 0 : index
    %c0_70 = arith.constant 0 : index
    %87 = vector.load %arg26[%c0_69, %c0_70] : memref<512x512xbf16, #tpu.memory_space<vmem>>, vector<512x512xbf16>
    %cst_71 = arith.constant dense<0.000000e+00> : vector<24x512xf32>
    %88 = tpu.matmul %86, %87, %cst_71 {dimension_numbers = #tpu.dot_dimension_numbers<[1], [0], [0], [1], [0, 0, 1, 1], [], []>} : vector<24x512xbf16>, vector<512x512xbf16>, vector<24x512xf32> -> vector<24x512xf32>
    %c0_72 = arith.constant 0 : index
    %c0_73 = arith.constant 0 : index
    %89 = vector.load %arg27[%c0_72, %c0_73] : memref<1x512xf32, #tpu.memory_space<vmem>>, vector<1x512xf32>
    %90 = vector.broadcast %89 : vector<1x512xf32> to vector<24x512xf32>
    %91 = arith.addf %88, %90 : vector<24x512xf32>
    %cst_74 = arith.constant 0.000000e+00 : f32
    %92 = vector.broadcast %cst_74 : f32 to vector<24x512xf32>
    %93 = arith.maximumf %91, %92 : vector<24x512xf32>
    %94 = arith.truncf %93 : vector<24x512xf32> to vector<24x512xbf16>
    %c0_75 = arith.constant 0 : index
    %c0_76 = arith.constant 0 : index
    %95 = vector.load %arg28[%c0_75, %c0_76] : memref<512x128xbf16, #tpu.memory_space<vmem>>, vector<512x128xbf16>
    %cst_77 = arith.constant dense<0.000000e+00> : vector<24x128xf32>
    %96 = tpu.matmul %94, %95, %cst_77 {dimension_numbers = #tpu.dot_dimension_numbers<[1], [0], [0], [1], [0, 0, 1, 1], [], []>} : vector<24x512xbf16>, vector<512x128xbf16>, vector<24x128xf32> -> vector<24x128xf32>
    %c0_78 = arith.constant 0 : index
    %c0_79 = arith.constant 0 : index
    %97 = vector.load %arg29[%c0_78, %c0_79] : memref<1x128xf32, #tpu.memory_space<vmem>>, vector<1x128xf32>
    %98 = vector.broadcast %97 : vector<1x128xf32> to vector<24x128xf32>
    %99 = arith.addf %96, %98 : vector<24x128xf32>
    %c0_80 = arith.constant 0 : index
    %c0_81 = arith.constant 0 : index
    %100 = vector.load %arg36[%c0_80, %c0_81] : memref<24x128xf32, #tpu.memory_space<vmem>>, vector<24x128xf32>
    tpu.vector_store %arg36[%c0_80, %c0_81], %99 {strides = array<i32>} : memref<24x128xf32, #tpu.memory_space<vmem>>, vector<24x128xf32>,
    %c0_82 = arith.constant 0 : index
    %c0_83 = arith.constant 0 : index
    %101 = vector.load %arg30[%c0_82, %c0_83] : memref<128x512xbf16, #tpu.memory_space<vmem>>, vector<128x512xbf16>
    %cst_84 = arith.constant dense<0.000000e+00> : vector<24x512xf32>
    %102 = tpu.matmul %1, %101, %cst_84 {dimension_numbers = #tpu.dot_dimension_numbers<[1], [0], [0], [1], [0, 0, 1, 1], [], []>} : vector<24x128xbf16>, vector<128x512xbf16>, vector<24x512xf32> -> vector<24x512xf32>
    %c0_85 = arith.constant 0 : index
    %c0_86 = arith.constant 0 : index
    %103 = vector.load %arg31[%c0_85, %c0_86] : memref<1x512xf32, #tpu.memory_space<vmem>>, vector<1x512xf32>
    %104 = vector.broadcast %103 : vector<1x512xf32> to vector<24x512xf32>
    %105 = arith.addf %102, %104 : vector<24x512xf32>
    %cst_87 = arith.constant 0.000000e+00 : f32
    %106 = vector.broadcast %cst_87 : f32 to vector<24x512xf32>
    %107 = arith.maximumf %105, %106 : vector<24x512xf32>
    %108 = arith.truncf %107 : vector<24x512xf32> to vector<24x512xbf16>
    %c0_88 = arith.constant 0 : index
    %c0_89 = arith.constant 0 : index
    %109 = vector.load %arg32[%c0_88, %c0_89] : memref<512x512xbf16, #tpu.memory_space<vmem>>, vector<512x512xbf16>
    %cst_90 = arith.constant dense<0.000000e+00> : vector<24x512xf32>
    %110 = tpu.matmul %108, %109, %cst_90 {dimension_numbers = #tpu.dot_dimension_numbers<[1], [0], [0], [1], [0, 0, 1, 1], [], []>} : vector<24x512xbf16>, vector<512x512xbf16>, vector<24x512xf32> -> vector<24x512xf32>
    %c0_91 = arith.constant 0 : index
    %c0_92 = arith.constant 0 : index
    %111 = vector.load %arg33[%c0_91, %c0_92] : memref<1x512xf32, #tpu.memory_space<vmem>>, vector<1x512xf32>
    %112 = vector.broadcast %111 : vector<1x512xf32> to vector<24x512xf32>
    %113 = arith.addf %110, %112 : vector<24x512xf32>
    %cst_93 = arith.constant 0.000000e+00 : f32
    %114 = vector.broadcast %cst_93 : f32 to vector<24x512xf32>
    %115 = arith.maximumf %113, %114 : vector<24x512xf32>
    %116 = arith.truncf %115 : vector<24x512xf32> to vector<24x512xbf16>
    %c0_94 = arith.constant 0 : index
    %c0_95 = arith.constant 0 : index
    %117 = vector.load %arg34[%c0_94, %c0_95] : memref<512x128xbf16, #tpu.memory_space<vmem>>, vector<512x128xbf16>
    %cst_96 = arith.constant dense<0.000000e+00> : vector<24x128xf32>
    %118 = tpu.matmul %116, %117, %cst_96 {dimension_numbers = #tpu.dot_dimension_numbers<[1], [0], [0], [1], [0, 0, 1, 1], [], []>} : vector<24x512xbf16>, vector<512x128xbf16>, vector<24x128xf32> -> vector<24x128xf32>
    %c0_97 = arith.constant 0 : index
    %c0_98 = arith.constant 0 : index
    %119 = vector.load %arg35[%c0_97, %c0_98] : memref<1x128xf32, #tpu.memory_space<vmem>>, vector<1x128xf32>
    %120 = vector.broadcast %119 : vector<1x128xf32> to vector<24x128xf32>
    %121 = arith.addf %118, %120 : vector<24x128xf32>
    %c0_99 = arith.constant 0 : index
    %c0_100 = arith.constant 0 : index
    %122 = vector.load %arg37[%c0_99, %c0_100] : memref<24x128xf32, #tpu.memory_space<vmem>>, vector<24x128xf32>
    tpu.vector_store %arg37[%c0_99, %c0_100], %121 {strides = array<i32>} : memref<24x128xf32, #tpu.memory_space<vmem>>, vector<24x128xf32>,
    return
  }
  func.func @transform_0(%arg0: i32) -> (i32, i32) {
    %c0_i32 = arith.constant 0 : i32
    %c0_i32_0 = arith.constant 0 : i32
    return %arg0, %c0_i32 : i32, i32
  }
  func.func @transform_1(%arg0: i32) -> (i32, i32) {
    %c0_i32 = arith.constant 0 : i32
    %c0_i32_0 = arith.constant 0 : i32
    return %arg0, %c0_i32 : i32, i32
  }
  func.func @transform_2(%arg0: i32) -> (i32, i32) {
    %c0_i32 = arith.constant 0 : i32
    %c0_i32_0 = arith.constant 0 : i32
    return %arg0, %c0_i32 : i32, i32
  }
  func.func @transform_3(%arg0: i32) -> (i32, i32) {
    %c0_i32 = arith.constant 0 : i32
    %c0_i32_0 = arith.constant 0 : i32
    return %arg0, %c0_i32 : i32, i32
  }
  func.func @transform_4(%arg0: i32) -> (i32, i32) {
    %c0_i32 = arith.constant 0 : i32
    %c0_i32_0 = arith.constant 0 : i32
    %c0_i32_1 = arith.constant 0 : i32
    return %c0_i32, %c0_i32_0 : i32, i32
  }
  func.func @transform_5(%arg0: i32) -> (i32, i32) {
    %c0_i32 = arith.constant 0 : i32
    %c0_i32_0 = arith.constant 0 : i32
    %c0_i32_1 = arith.constant 0 : i32
    return %c0_i32, %c0_i32_0 : i32, i32
  }
  func.func @transform_6(%arg0: i32) -> (i32, i32) {
    %c0_i32 = arith.constant 0 : i32
    %c0_i32_0 = arith.constant 0 : i32
    %c0_i32_1 = arith.constant 0 : i32
    return %c0_i32, %c0_i32_0 : i32, i32
  }
  func.func @transform_7(%arg0: i32) -> (i32, i32) {
    %c0_i32 = arith.constant 0 : i32
    %c0_i32_0 = arith.constant 0 : i32
    %c0_i32_1 = arith.constant 0 : i32
    return %c0_i32, %c0_i32_0 : i32, i32
  }
  func.func @transform_8(%arg0: i32) -> (i32, i32) {
    %c0_i32 = arith.constant 0 : i32
    %c0_i32_0 = arith.constant 0 : i32
    %c0_i32_1 = arith.constant 0 : i32
    return %c0_i32, %c0_i32_0 : i32, i32
  }
  func.func @transform_9(%arg0: i32) -> (i32, i32) {
    %c0_i32 = arith.constant 0 : i32
    %c0_i32_0 = arith.constant 0 : i32
    %c0_i32_1 = arith.constant 0 : i32
    return %c0_i32, %c0_i32_0 : i32, i32
  }
  func.func @transform_10(%arg0: i32) -> (i32, i32) {
    %c0_i32 = arith.constant 0 : i32
    %c0_i32_0 = arith.constant 0 : i32
    %c0_i32_1 = arith.constant 0 : i32
    return %c0_i32, %c0_i32_0 : i32, i32
  }
  func.func @transform_11(%arg0: i32) -> (i32, i32) {
    %c0_i32 = arith.constant 0 : i32
    %c0_i32_0 = arith.constant 0 : i32
    %c0_i32_1 = arith.constant 0 : i32
    return %c0_i32, %c0_i32_0 : i32, i32
  }
  func.func @transform_12(%arg0: i32) -> (i32, i32) {
    %c0_i32 = arith.constant 0 : i32
    %c0_i32_0 = arith.constant 0 : i32
    %c0_i32_1 = arith.constant 0 : i32
    return %c0_i32, %c0_i32_0 : i32, i32
  }
  func.func @transform_13(%arg0: i32) -> (i32, i32) {
    %c0_i32 = arith.constant 0 : i32
    %c0_i32_0 = arith.constant 0 : i32
    %c0_i32_1 = arith.constant 0 : i32
    return %c0_i32, %c0_i32_0 : i32, i32
  }
  func.func @transform_14(%arg0: i32) -> (i32, i32) {
    %c0_i32 = arith.constant 0 : i32
    %c0_i32_0 = arith.constant 0 : i32
    %c0_i32_1 = arith.constant 0 : i32
    return %c0_i32, %c0_i32_0 : i32, i32
  }
  func.func @transform_15(%arg0: i32) -> (i32, i32) {
    %c0_i32 = arith.constant 0 : i32
    %c0_i32_0 = arith.constant 0 : i32
    %c0_i32_1 = arith.constant 0 : i32
    return %c0_i32, %c0_i32_0 : i32, i32
  }
  func.func @transform_16(%arg0: i32) -> (i32, i32) {
    %c0_i32 = arith.constant 0 : i32
    %c0_i32_0 = arith.constant 0 : i32
    %c0_i32_1 = arith.constant 0 : i32
    return %c0_i32, %c0_i32_0 : i32, i32
  }
  func.func @transform_17(%arg0: i32) -> (i32, i32) {
    %c0_i32 = arith.constant 0 : i32
    %c0_i32_0 = arith.constant 0 : i32
    %c0_i32_1 = arith.constant 0 : i32
    return %c0_i32, %c0_i32_0 : i32, i32
  }
  func.func @transform_18(%arg0: i32) -> (i32, i32) {
    %c0_i32 = arith.constant 0 : i32
    %c0_i32_0 = arith.constant 0 : i32
    %c0_i32_1 = arith.constant 0 : i32
    return %c0_i32, %c0_i32_0 : i32, i32
  }
  func.func @transform_19(%arg0: i32) -> (i32, i32) {
    %c0_i32 = arith.constant 0 : i32
    %c0_i32_0 = arith.constant 0 : i32
    %c0_i32_1 = arith.constant 0 : i32
    return %c0_i32, %c0_i32_0 : i32, i32
  }
  func.func @transform_20(%arg0: i32) -> (i32, i32) {
    %c0_i32 = arith.constant 0 : i32
    %c0_i32_0 = arith.constant 0 : i32
    %c0_i32_1 = arith.constant 0 : i32
    return %c0_i32, %c0_i32_0 : i32, i32
  }
  func.func @transform_21(%arg0: i32) -> (i32, i32) {
    %c0_i32 = arith.constant 0 : i32
    %c0_i32_0 = arith.constant 0 : i32
    %c0_i32_1 = arith.constant 0 : i32
    return %c0_i32, %c0_i32_0 : i32, i32
  }
  func.func @transform_22(%arg0: i32) -> (i32, i32) {
    %c0_i32 = arith.constant 0 : i32
    %c0_i32_0 = arith.constant 0 : i32
    %c0_i32_1 = arith.constant 0 : i32
    return %c0_i32, %c0_i32_0 : i32, i32
  }
  func.func @transform_23(%arg0: i32) -> (i32, i32) {
    %c0_i32 = arith.constant 0 : i32
    %c0_i32_0 = arith.constant 0 : i32
    %c0_i32_1 = arith.constant 0 : i32
    return %c0_i32, %c0_i32_0 : i32, i32
  }
  func.func @transform_24(%arg0: i32) -> (i32, i32) {
    %c0_i32 = arith.constant 0 : i32
    %c0_i32_0 = arith.constant 0 : i32
    %c0_i32_1 = arith.constant 0 : i32
    return %c0_i32, %c0_i32_0 : i32, i32
  }
  func.func @transform_25(%arg0: i32) -> (i32, i32) {
    %c0_i32 = arith.constant 0 : i32
    %c0_i32_0 = arith.constant 0 : i32
    %c0_i32_1 = arith.constant 0 : i32
    return %c0_i32, %c0_i32_0 : i32, i32
  }
  func.func @transform_26(%arg0: i32) -> (i32, i32) {
    %c0_i32 = arith.constant 0 : i32
    %c0_i32_0 = arith.constant 0 : i32
    %c0_i32_1 = arith.constant 0 : i32
    return %c0_i32, %c0_i32_0 : i32, i32
  }
  func.func @transform_27(%arg0: i32) -> (i32, i32) {
    %c0_i32 = arith.constant 0 : i32
    %c0_i32_0 = arith.constant 0 : i32
    %c0_i32_1 = arith.constant 0 : i32
    return %c0_i32, %c0_i32_0 : i32, i32
  }
  func.func @transform_28(%arg0: i32) -> (i32, i32) {
    %c0_i32 = arith.constant 0 : i32
    %c0_i32_0 = arith.constant 0 : i32
    %c0_i32_1 = arith.constant 0 : i32
    return %c0_i32, %c0_i32_0 : i32, i32
  }
  func.func @transform_29(%arg0: i32) -> (i32, i32) {
    %c0_i32 = arith.constant 0 : i32
    %c0_i32_0 = arith.constant 0 : i32
    %c0_i32_1 = arith.constant 0 : i32
    return %c0_i32, %c0_i32_0 : i32, i32
  }
  func.func @transform_30(%arg0: i32) -> (i32, i32) {
    %c0_i32 = arith.constant 0 : i32
    %c0_i32_0 = arith.constant 0 : i32
    %c0_i32_1 = arith.constant 0 : i32
    return %c0_i32, %c0_i32_0 : i32, i32
  }
  func.func @transform_31(%arg0: i32) -> (i32, i32) {
    %c0_i32 = arith.constant 0 : i32
    %c0_i32_0 = arith.constant 0 : i32
    %c0_i32_1 = arith.constant 0 : i32
    return %c0_i32, %c0_i32_0 : i32, i32
  }
  func.func @transform_32(%arg0: i32) -> (i32, i32) {
    %c0_i32 = arith.constant 0 : i32
    %c0_i32_0 = arith.constant 0 : i32
    %c0_i32_1 = arith.constant 0 : i32
    return %c0_i32, %c0_i32_0 : i32, i32
  }
  func.func @transform_33(%arg0: i32) -> (i32, i32) {
    %c0_i32 = arith.constant 0 : i32
    %c0_i32_0 = arith.constant 0 : i32
    %c0_i32_1 = arith.constant 0 : i32
    return %c0_i32, %c0_i32_0 : i32, i32
  }
  func.func @transform_34(%arg0: i32) -> (i32, i32) {
    %c0_i32 = arith.constant 0 : i32
    %c0_i32_0 = arith.constant 0 : i32
    %c0_i32_1 = arith.constant 0 : i32
    return %c0_i32, %c0_i32_0 : i32, i32
  }
  func.func @transform_35(%arg0: i32) -> (i32, i32) {
    %c0_i32 = arith.constant 0 : i32
    %c0_i32_0 = arith.constant 0 : i32
    return %arg0, %c0_i32 : i32, i32
  }
  func.func @transform_36(%arg0: i32) -> (i32, i32) {
    %c0_i32 = arith.constant 0 : i32
    %c0_i32_0 = arith.constant 0 : i32
    return %arg0, %c0_i32 : i32, i32
  }
}

</mosaic_0001>

<llo_original>
// kernel: tpu_custom_call.1
$region0: #{tpu_custom_call.1}
  #allocation0 [shape = 'u32[]', space=smem, size = 0x4, offset = 0x4, fixed_abs, tag = 'smem constant byte address 0x4 - core index']
  #allocation1 [shape = 'u32[144,128]{1,0:T(1,128)}', space=vmem, size = 0x12000, scoped, tag = 'internal scratch']
  %s0 = inlined_call_operand.smem [shape: u32[37], index: -1, kind: input, shape index: {}]
  %s1 = sld [smem:[%s0]]
  %s2 = scalar_lea.smem %s0, 1
  %s3 = sld [smem:[%s2]]
  %s4 = scalar_lea.smem %s0, 2
  %s5 = sld [smem:[%s4]]
  %s6 = scalar_lea.smem %s0, 3
  %s7 = sld [smem:[%s6]]
  %s8 = scalar_lea.smem %s0, 4
  %s9 = sld [smem:[%s8]]
  %s10 = scalar_lea.smem %s0, 5
  %s11 = sld [smem:[%s10]]
  %s12 = scalar_lea.smem %s0, 6
  %s13 = sld [smem:[%s12]]
  %s14 = scalar_lea.smem %s0, 7
  %s15 = sld [smem:[%s14]]
  %s16 = scalar_lea.smem %s0, 8
  %s17 = sld [smem:[%s16]]
  %s18 = scalar_lea.smem %s0, 9
  %s19 = sld [smem:[%s18]]
  %s20 = scalar_lea.smem %s0, 10
  %s21 = sld [smem:[%s20]]
  %s22 = scalar_lea.smem %s0, 11
  %s23 = sld [smem:[%s22]]
  %s24 = scalar_lea.smem %s0, 12
  %s25 = sld [smem:[%s24]]
  %s26 = scalar_lea.smem %s0, 13
  %s27 = sld [smem:[%s26]]
  %s28 = scalar_lea.smem %s0, 14
  %s29 = sld [smem:[%s28]]
  %s30 = scalar_lea.smem %s0, 15
  %s31 = sld [smem:[%s30]]
  %s32 = scalar_lea.smem %s0, 16
  %s33 = sld [smem:[%s32]]
  %s34 = scalar_lea.smem %s0, 17
  %s35 = sld [smem:[%s34]]
  %s36 = scalar_lea.smem %s0, 18
  %s37 = sld [smem:[%s36]]
  %s38 = scalar_lea.smem %s0, 19
  %s39 = sld [smem:[%s38]]
  %s40 = scalar_lea.smem %s0, 20
  %s41 = sld [smem:[%s40]]
  %s42 = scalar_lea.smem %s0, 21
  %s43 = sld [smem:[%s42]]
  %s44 = scalar_lea.smem %s0, 22
  %s45 = sld [smem:[%s44]]
  %s46 = scalar_lea.smem %s0, 23
  %s47 = sld [smem:[%s46]]
  %s48 = scalar_lea.smem %s0, 24
  %s49 = sld [smem:[%s48]]
  %s50 = scalar_lea.smem %s0, 25
  %s51 = sld [smem:[%s50]]
  %s52 = scalar_lea.smem %s0, 26
  %s53 = sld [smem:[%s52]]
  %s54 = scalar_lea.smem %s0, 27
  %s55 = sld [smem:[%s54]]
  %s56 = scalar_lea.smem %s0, 28
  %s57 = sld [smem:[%s56]]
  %s58 = scalar_lea.smem %s0, 29
  %s59 = sld [smem:[%s58]]
  %s60 = scalar_lea.smem %s0, 30
  %s61 = sld [smem:[%s60]]
  %s62 = scalar_lea.smem %s0, 31
  %s63 = sld [smem:[%s62]]
  %s64 = scalar_lea.smem %s0, 32
  %s65 = sld [smem:[%s64]]
  %s66 = scalar_lea.smem %s0, 33
  %s67 = sld [smem:[%s66]]
  %s68 = scalar_lea.smem %s0, 34
  %s69 = sld [smem:[%s68]]
  %s70 = scalar_lea.smem %s0, 35
  %s71 = sld [smem:[%s70]]
  %s72 = scalar_lea.smem %s0, 36
  %s73 = sld [smem:[%s72]]
  %74 = xla_tuple %s71, %s73
  %s75 = sld [smem:[#allocation0]]
  $region246: #{tpu_custom_call.1} parent=0
    _
  %s77 = ssub.s32 1, %s75
  %s78 = scalar_select 0, %s77, %s75
  $region1: #{tpu_custom_call.1} parent=0
    #allocation2 [shape = 'u8[12288]{0}', space=vmem, size = 0x3000, scoped, tag = 'input window, operand 0, single buffered']
    #allocation3 [shape = 's32[1]{0}', space=sflag, size = 0x4, scoped, tag = 'scoped memory for tpu_custom_call.1']
    #allocation4 [shape = 's32[1]{0}', space=sflag, size = 0x4, scoped, tag = 'scoped memory for tpu_custom_call.1']
    #allocation5 [shape = 'u8[12288]{0}', space=vmem, size = 0x3000, scoped, tag = 'input window, operand 1, single buffered']
    #allocation6 [shape = 's32[1]{0}', space=sflag, size = 0x4, scoped, tag = 'scoped memory for tpu_custom_call.1']
    #allocation7 [shape = 'u8[12288]{0}', space=vmem, size = 0x3000, scoped, tag = 'input window, operand 2, single buffered']
    #allocation8 [shape = 'u8[12288]{0}', space=vmem, size = 0x3000, scoped, tag = 'input window, operand 3, single buffered']
    #allocation9 [shape = 's32[1]{0}', space=sflag, size = 0x4, scoped, tag = 'scoped memory for tpu_custom_call.1']
    #allocation10 [shape = 'u8[131072]{0}', space=vmem, size = 0x20000, scoped, tag = 'input window, operand 4, single buffered']
    #allocation11 [shape = 'u8[131072]{0}', space=vmem, size = 0x20000, scoped, tag = 'input window, operand 5, single buffered']
    #allocation12 [shape = 's32[1]{0}', space=sflag, size = 0x4, scoped, tag = 'scoped memory for tpu_custom_call.1']
    #allocation13 [shape = 'u8[524288]{0}', space=vmem, size = 0x80000, scoped, tag = 'input window, operand 7, single buffered']
    #allocation14 [shape = 'u8[131072]{0}', space=vmem, size = 0x20000, scoped, tag = 'input window, operand 9, single buffered']
    #allocation15 [shape = 's32[1]{0}', space=sflag, size = 0x4, scoped, tag = 'scoped memory for tpu_custom_call.1']
    #allocation16 [shape = 'u8[131072]{0}', space=vmem, size = 0x20000, scoped, tag = 'input window, operand 11, single buffered']
    #allocation17 [shape = 'u8[131072]{0}', space=vmem, size = 0x20000, scoped, tag = 'input window, operand 12, single buffered']
    #allocation18 [shape = 's32[1]{0}', space=sflag, size = 0x4, scoped, tag = 'scoped memory for tpu_custom_call.1']
    #allocation19 [shape = 'u8[131072]{0}', space=vmem, size = 0x20000, scoped, tag = 'input window, operand 13, single buffered']
    #allocation20 [shape = 'u8[524288]{0}', space=vmem, size = 0x80000, scoped, tag = 'input window, operand 15, single buffered']
    #allocation21 [shape = 's32[1]{0}', space=sflag, size = 0x4, scoped, tag = 'scoped memory for tpu_custom_call.1']
    #allocation22 [shape = 'u8[131072]{0}', space=vmem, size = 0x20000, scoped, tag = 'input window, operand 17, single buffered']
    #allocation23 [shape = 'u8[131072]{0}', space=vmem, size = 0x20000, scoped, tag = 'input window, operand 19, single buffered']
    #allocation24 [shape = 's32[1]{0}', space=sflag, size = 0x4, scoped, tag = 'scoped memory for tpu_custom_call.1']
    #allocation25 [shape = 'u8[131072]{0}', space=vmem, size = 0x20000, scoped, tag = 'input window, operand 20, single buffered']
    #allocation26 [shape = 'u8[131072]{0}', space=vmem, size = 0x20000, scoped, tag = 'input window, operand 21, single buffered']
    #allocation27 [shape = 's32[1]{0}', space=sflag, size = 0x4, scoped, tag = 'scoped memory for tpu_custom_call.1']
    #allocation28 [shape = 'u8[524288]{0}', space=vmem, size = 0x80000, scoped, tag = 'input window, operand 23, single buffered']
    #allocation29 [shape = 'u8[524288]{0}', space=vmem, size = 0x80000, scoped, tag = 'input window, operand 25, single buffered']
    #allocation30 [shape = 's32[1]{0}', space=sflag, size = 0x4, scoped, tag = 'scoped memory for tpu_custom_call.1']
    #allocation31 [shape = 'u8[131072]{0}', space=vmem, size = 0x20000, scoped, tag = 'input window, operand 27, single buffered']
    #allocation32 [shape = 'u8[131072]{0}', space=vmem, size = 0x20000, scoped, tag = 'input window, operand 29, single buffered']
    #allocation33 [shape = 's32[1]{0}', space=sflag, size = 0x4, scoped, tag = 'scoped memory for tpu_custom_call.1']
    #allocation34 [shape = 'u8[524288]{0}', space=vmem, size = 0x80000, scoped, tag = 'input window, operand 31, single buffered']
    #allocation35 [shape = 'u8[131072]{0}', space=vmem, size = 0x20000, scoped, tag = 'input window, operand 33, single buffered']
    #allocation36 [shape = 's32[1]{0}', space=sflag, size = 0x4, scoped, tag = 'scoped memory for tpu_custom_call.1']
    #allocation37 [shape = 'u8[12288]{0}', space=vmem, size = 0x3000, scoped, tag = 'output window, operand 0, single buffered']
    #allocation38 [shape = 'u8[12288]{0}', space=vmem, size = 0x3000, scoped, tag = 'output window, operand 1, single buffered']
    #allocation39 [shape = 's32[1]{0}', space=sflag, size = 0x4, scoped, tag = 'scoped memory for tpu_custom_call.1']
    %79 = vsyncpa [#allocation3], 0
    %80 = vsyncpa [#allocation6], 0
    %81 = vsyncpa [#allocation9], 0
    %82 = vsyncpa [#allocation12], 0
    %83 = vsyncpa [#allocation15], 0
    %84 = vsyncpa [#allocation18], 0
    %85 = vsyncpa [#allocation21], 0
    %86 = vsyncpa [#allocation24], 0
    %87 = vsyncpa [#allocation27], 0
    %88 = vsyncpa [#allocation30], 0
    %89 = vsyncpa [#allocation33], 0
    %90 = vsyncpa [#allocation36], 0
    %91 = vsyncpa [#allocation4], 0
    %92 = vsyncpa [#allocation39], 0
    // Predicated region
    $region2: #{tpu_custom_call.1} parent=1 // pred_check
      _
    $region3: #{tpu_custom_call.1} parent=1 // pred_check_branch
      %94 = sbr.rel (0) target = $region5
    $region4: #{tpu_custom_call.1} parent=1 // pred_region
      %s96 = ssub.s32 384, 384
      %97 = vsyncadd [#allocation3], %s96
      %s98 = sshll.u32 [#allocation2], 4
      %s99 = int_to_ptr.vmem [resolvable:$true] %s98
      %104 = dma.hbm_to_vmem [thread:$0]  %s1, 384, %s99, [#allocation3], 128, 128, 8
    $region5: #{tpu_custom_call.1} parent=1 // pred_fallthru
      _
    // Predicated region
    $region6: #{tpu_custom_call.1} parent=1 // pred_check
      _
    $region7: #{tpu_custom_call.1} parent=1 // pred_check_branch
      %106 = sbr.rel (0) target = $region9
    $region8: #{tpu_custom_call.1} parent=1 // pred_region
      %s108 = ssub.s32 384, 384
      %109 = vsyncadd [#allocation6], %s108
      %s110 = sshll.u32 [#allocation5], 4
      %s111 = int_to_ptr.vmem [resolvable:$true] %s110
      %116 = dma.hbm_to_vmem [thread:$0]  %s3, 384, %s111, [#allocation6], 128, 128, 8
    $region9: #{tpu_custom_call.1} parent=1 // pred_fallthru
      _
    // Predicated region
    $region10: #{tpu_custom_call.1} parent=1 // pred_check
      _
    $region11: #{tpu_custom_call.1} parent=1 // pred_check_branch
      %118 = sbr.rel (0) target = $region13
    $region12: #{tpu_custom_call.1} parent=1 // pred_region
      %s120 = ssub.s32 384, 384
      %121 = vsyncadd [#allocation6], %s120
      %s122 = sshll.u32 [#allocation7], 4
      %s123 = int_to_ptr.vmem [resolvable:$true] %s122
      %128 = dma.hbm_to_vmem [thread:$0]  %s5, 384, %s123, [#allocation6], 128, 128, 8
    $region13: #{tpu_custom_call.1} parent=1 // pred_fallthru
      _
    // Predicated region
    $region14: #{tpu_custom_call.1} parent=1 // pred_check
      _
    $region15: #{tpu_custom_call.1} parent=1 // pred_check_branch
      %130 = sbr.rel (0) target = $region17
    $region16: #{tpu_custom_call.1} parent=1 // pred_region
      %s132 = ssub.s32 384, 384
      %133 = vsyncadd [#allocation9], %s132
      %s134 = sshll.u32 [#allocation8], 4
      %s135 = int_to_ptr.vmem [resolvable:$true] %s134
      %140 = dma.hbm_to_vmem [thread:$0]  %s7, 384, %s135, [#allocation9], 128, 128, 8
    $region17: #{tpu_custom_call.1} parent=1 // pred_fallthru
      _
    // Predicated region
    $region18: #{tpu_custom_call.1} parent=1 // pred_check
      _
    $region19: #{tpu_custom_call.1} parent=1 // pred_check_branch
      %142 = sbr.rel (0) target = $region21
    $region20: #{tpu_custom_call.1} parent=1 // pred_region
      %s144 = ssub.s32 4096, 4096
      %145 = vsyncadd [#allocation9], %s144
      %s146 = sshll.u32 [#allocation10], 4
      %s147 = int_to_ptr.vmem [resolvable:$true] %s146
      %152 = dma.hbm_to_vmem [thread:$0]  %s9, 4096, %s147, [#allocation9], 256, 256, 16
    $region21: #{tpu_custom_call.1} parent=1 // pred_fallthru
      _
    // Predicated region
    $region22: #{tpu_custom_call.1} parent=1 // pred_check
      _
    $region23: #{tpu_custom_call.1} parent=1 // pred_check_branch
      %154 = sbr.rel (0) target = $region25
    $region24: #{tpu_custom_call.1} parent=1 // pred_region
      %s156 = ssub.s32 4096, 4096
      %157 = vsyncadd [#allocation12], %s156
      %s158 = sshll.u32 [#allocation11], 4
      %s159 = int_to_ptr.vmem [resolvable:$true] %s158
      %164 = dma.hbm_to_vmem [thread:$0]  %s11, 4096, %s159, [#allocation12], 256, 256, 16
    $region25: #{tpu_custom_call.1} parent=1 // pred_fallthru
      _
    // Predicated region
    $region26: #{tpu_custom_call.1} parent=1 // pred_check
      _
    $region27: #{tpu_custom_call.1} parent=1 // pred_check_branch
      %166 = sbr.rel (0) target = $region29
    $region28: #{tpu_custom_call.1} parent=1 // pred_region
      _
    $region29: #{tpu_custom_call.1} parent=1 // pred_fallthru
      _
    // Predicated region
    $region30: #{tpu_custom_call.1} parent=1 // pred_check
      _
    $region31: #{tpu_custom_call.1} parent=1 // pred_check_branch
      %168 = sbr.rel (0) target = $region33
    $region32: #{tpu_custom_call.1} parent=1 // pred_region
      %s170 = ssub.s32 16384, 16384
      %171 = vsyncadd [#allocation12], %s170
      %s172 = sshll.u32 [#allocation13], 4
      %s173 = int_to_ptr.vmem [resolvable:$true] %s172
      %178 = dma.hbm_to_vmem [thread:$0]  %s15, 16384, %s173, [#allocation12], 256, 256, 16
    $region33: #{tpu_custom_call.1} parent=1 // pred_fallthru
      _
    // Predicated region
    $region34: #{tpu_custom_call.1} parent=1 // pred_check
      _
    $region35: #{tpu_custom_call.1} parent=1 // pred_check_branch
      %180 = sbr.rel (0) target = $region37
    $region36: #{tpu_custom_call.1} parent=1 // pred_region
      _
    $region37: #{tpu_custom_call.1} parent=1 // pred_fallthru
      _
    // Predicated region
    $region38: #{tpu_custom_call.1} parent=1 // pred_check
      _
    $region39: #{tpu_custom_call.1} parent=1 // pred_check_branch
      %182 = sbr.rel (0) target = $region41
    $region40: #{tpu_custom_call.1} parent=1 // pred_region
      %s184 = ssub.s32 4096, 4096
      %185 = vsyncadd [#allocation15], %s184
      %s186 = sshll.u32 [#allocation14], 4
      %s187 = int_to_ptr.vmem [resolvable:$true] %s186
      %192 = dma.hbm_to_vmem [thread:$0]  %s19, 4096, %s187, [#allocation15], 64, 64, 4
    $region41: #{tpu_custom_call.1} parent=1 // pred_fallthru
      _
    // Predicated region
    $region42: #{tpu_custom_call.1} parent=1 // pred_check
      _
    $region43: #{tpu_custom_call.1} parent=1 // pred_check_branch
      %194 = sbr.rel (0) target = $region45
    $region44: #{tpu_custom_call.1} parent=1 // pred_region
      _
    $region45: #{tpu_custom_call.1} parent=1 // pred_fallthru
      _
    // Predicated region
    $region46: #{tpu_custom_call.1} parent=1 // pred_check
      _
    $region47: #{tpu_custom_call.1} parent=1 // pred_check_branch
      %196 = sbr.rel (0) target = $region49
    $region48: #{tpu_custom_call.1} parent=1 // pred_region
      %s198 = ssub.s32 4096, 4096
      %199 = vsyncadd [#allocation15], %s198
      %s200 = sshll.u32 [#allocation16], 4
      %s201 = int_to_ptr.vmem [resolvable:$true] %s200
      %206 = dma.hbm_to_vmem [thread:$0]  %s23, 4096, %s201, [#allocation15], 256, 256, 16
    $region49: #{tpu_custom_call.1} parent=1 // pred_fallthru
      _
    // Predicated region
    $region50: #{tpu_custom_call.1} parent=1 // pred_check
      _
    $region51: #{tpu_custom_call.1} parent=1 // pred_check_branch
      %208 = sbr.rel (0) target = $region53
    $region52: #{tpu_custom_call.1} parent=1 // pred_region
      %s210 = ssub.s32 4096, 4096
      %211 = vsyncadd [#allocation18], %s210
      %s212 = sshll.u32 [#allocation17], 4
      %s213 = int_to_ptr.vmem [resolvable:$true] %s212
      %218 = dma.hbm_to_vmem [thread:$0]  %s25, 4096, %s213, [#allocation18], 256, 256, 16
    $region53: #{tpu_custom_call.1} parent=1 // pred_fallthru
      _
    // Predicated region
    $region54: #{tpu_custom_call.1} parent=1 // pred_check
      _
    $region55: #{tpu_custom_call.1} parent=1 // pred_check_branch
      %220 = sbr.rel (0) target = $region57
    $region56: #{tpu_custom_call.1} parent=1 // pred_region
      %s222 = ssub.s32 4096, 4096
      %223 = vsyncadd [#allocation18], %s222
      %s224 = sshll.u32 [#allocation19], 4
      %s225 = int_to_ptr.vmem [resolvable:$true] %s224
      %230 = dma.hbm_to_vmem [thread:$0]  %s27, 4096, %s225, [#allocation18], 256, 256, 16
    $region57: #{tpu_custom_call.1} parent=1 // pred_fallthru
      _
    // Predicated region
    $region58: #{tpu_custom_call.1} parent=1 // pred_check
      _
    $region59: #{tpu_custom_call.1} parent=1 // pred_check_branch
      %232 = sbr.rel (0) target = $region61
    $region60: #{tpu_custom_call.1} parent=1 // pred_region
      _
    $region61: #{tpu_custom_call.1} parent=1 // pred_fallthru
      _
    // Predicated region
    $region62: #{tpu_custom_call.1} parent=1 // pred_check
      _
    $region63: #{tpu_custom_call.1} parent=1 // pred_check_branch
      %234 = sbr.rel (0) target = $region65
    $region64: #{tpu_custom_call.1} parent=1 // pred_region
      %s236 = ssub.s32 16384, 16384
      %237 = vsyncadd [#allocation21], %s236
      %s238 = sshll.u32 [#allocation20], 4
      %s239 = int_to_ptr.vmem [resolvable:$true] %s238
      %244 = dma.hbm_to_vmem [thread:$0]  %s31, 16384, %s239, [#allocation21], 256, 256, 16
    $region65: #{tpu_custom_call.1} parent=1 // pred_fallthru
      _
    // Predicated region
    $region66: #{tpu_custom_call.1} parent=1 // pred_check
      _
    $region67: #{tpu_custom_call.1} parent=1 // pred_check_branch
      %246 = sbr.rel (0) target = $region69
    $region68: #{tpu_custom_call.1} parent=1 // pred_region
      _
    $region69: #{tpu_custom_call.1} parent=1 // pred_fallthru
      _
    // Predicated region
    $region70: #{tpu_custom_call.1} parent=1 // pred_check
      _
    $region71: #{tpu_custom_call.1} parent=1 // pred_check_branch
      %248 = sbr.rel (0) target = $region73
    $region72: #{tpu_custom_call.1} parent=1 // pred_region
      %s250 = ssub.s32 4096, 4096
      %251 = vsyncadd [#allocation21], %s250
      %s252 = sshll.u32 [#allocation22], 4
      %s253 = int_to_ptr.vmem [resolvable:$true] %s252
      %258 = dma.hbm_to_vmem [thread:$0]  %s35, 4096, %s253, [#allocation21], 64, 64, 4
    $region73: #{tpu_custom_call.1} parent=1 // pred_fallthru
      _
    // Predicated region
    $region74: #{tpu_custom_call.1} parent=1 // pred_check
      _
    $region75: #{tpu_custom_call.1} parent=1 // pred_check_branch
      %260 = sbr.rel (0) target = $region77
    $region76: #{tpu_custom_call.1} parent=1 // pred_region
      _
    $region77: #{tpu_custom_call.1} parent=1 // pred_fallthru
      _
    // Predicated region
    $region78: #{tpu_custom_call.1} parent=1 // pred_check
      _
    $region79: #{tpu_custom_call.1} parent=1 // pred_check_branch
      %262 = sbr.rel (0) target = $region81
    $region80: #{tpu_custom_call.1} parent=1 // pred_region
      %s264 = ssub.s32 4096, 4096
      %265 = vsyncadd [#allocation24], %s264
      %s266 = sshll.u32 [#allocation23], 4
      %s267 = int_to_ptr.vmem [resolvable:$true] %s266
      %272 = dma.hbm_to_vmem [thread:$0]  %s39, 4096, %s267, [#allocation24], 256, 256, 16
    $region81: #{tpu_custom_call.1} parent=1 // pred_fallthru
      _
    // Predicated region
    $region82: #{tpu_custom_call.1} parent=1 // pred_check
      _
    $region83: #{tpu_custom_call.1} parent=1 // pred_check_branch
      %274 = sbr.rel (0) target = $region85
    $region84: #{tpu_custom_call.1} parent=1 // pred_region
      %s276 = ssub.s32 4096, 4096
      %277 = vsyncadd [#allocation24], %s276
      %s278 = sshll.u32 [#allocation25], 4
      %s279 = int_to_ptr.vmem [resolvable:$true] %s278
      %284 = dma.hbm_to_vmem [thread:$0]  %s41, 4096, %s279, [#allocation24], 256, 256, 16
    $region85: #{tpu_custom_call.1} parent=1 // pred_fallthru
      _
    // Predicated region
    $region86: #{tpu_custom_call.1} parent=1 // pred_check
      _
    $region87: #{tpu_custom_call.1} parent=1 // pred_check_branch
      %286 = sbr.rel (0) target = $region89
    $region88: #{tpu_custom_call.1} parent=1 // pred_region
      %s288 = ssub.s32 4096, 4096
      %289 = vsyncadd [#allocation27], %s288
      %s290 = sshll.u32 [#allocation26], 4
      %s291 = int_to_ptr.vmem [resolvable:$true] %s290
      %296 = dma.hbm_to_vmem [thread:$0]  %s43, 4096, %s291, [#allocation27], 256, 256, 16
    $region89: #{tpu_custom_call.1} parent=1 // pred_fallthru
      _
    // Predicated region
    $region90: #{tpu_custom_call.1} parent=1 // pred_check
      _
    $region91: #{tpu_custom_call.1} parent=1 // pred_check_branch
      %298 = sbr.rel (0) target = $region93
    $region92: #{tpu_custom_call.1} parent=1 // pred_region
      _
    $region93: #{tpu_custom_call.1} parent=1 // pred_fallthru
      _
    // Predicated region
    $region94: #{tpu_custom_call.1} parent=1 // pred_check
      _
    $region95: #{tpu_custom_call.1} parent=1 // pred_check_branch
      %300 = sbr.rel (0) target = $region97
    $region96: #{tpu_custom_call.1} parent=1 // pred_region
      %s302 = ssub.s32 16384, 16384
      %303 = vsyncadd [#allocation27], %s302
      %s304 = sshll.u32 [#allocation28], 4
      %s305 = int_to_ptr.vmem [resolvable:$true] %s304
      %310 = dma.hbm_to_vmem [thread:$0]  %s47, 16384, %s305, [#allocation27], 256, 256, 16
    $region97: #{tpu_custom_call.1} parent=1 // pred_fallthru
      _
    // Predicated region
    $region98: #{tpu_custom_call.1} parent=1 // pred_check
      _
    $region99: #{tpu_custom_call.1} parent=1 // pred_check_branch
      %312 = sbr.rel (0) target = $region101
    $region100: #{tpu_custom_call.1} parent=1 // pred_region
      _
    $region101: #{tpu_custom_call.1} parent=1 // pred_fallthru
      _
    // Predicated region
    $region102: #{tpu_custom_call.1} parent=1 // pred_check
      _
    $region103: #{tpu_custom_call.1} parent=1 // pred_check_branch
      %314 = sbr.rel (0) target = $region105
    $region104: #{tpu_custom_call.1} parent=1 // pred_region
      %s316 = ssub.s32 16384, 16384
      %317 = vsyncadd [#allocation30], %s316
      %s318 = sshll.u32 [#allocation29], 4
      %s319 = int_to_ptr.vmem [resolvable:$true] %s318
      %324 = dma.hbm_to_vmem [thread:$0]  %s51, 16384, %s319, [#allocation30], 256, 256, 16
    $region105: #{tpu_custom_call.1} parent=1 // pred_fallthru
      _
    // Predicated region
    $region106: #{tpu_custom_call.1} parent=1 // pred_check
      _
    $region107: #{tpu_custom_call.1} parent=1 // pred_check_branch
      %326 = sbr.rel (0) target = $region109
    $region108: #{tpu_custom_call.1} parent=1 // pred_region
      _
    $region109: #{tpu_custom_call.1} parent=1 // pred_fallthru
      _
    // Predicated region
    $region110: #{tpu_custom_call.1} parent=1 // pred_check
      _
    $region111: #{tpu_custom_call.1} parent=1 // pred_check_branch
      %328 = sbr.rel (0) target = $region113
    $region112: #{tpu_custom_call.1} parent=1 // pred_region
      %s330 = ssub.s32 4096, 4096
      %331 = vsyncadd [#allocation30], %s330
      %s332 = sshll.u32 [#allocation31], 4
      %s333 = int_to_ptr.vmem [resolvable:$true] %s332
      %338 = dma.hbm_to_vmem [thread:$0]  %s55, 4096, %s333, [#allocation30], 64, 64, 4
    $region113: #{tpu_custom_call.1} parent=1 // pred_fallthru
      _
    // Predicated region
    $region114: #{tpu_custom_call.1} parent=1 // pred_check
      _
    $region115: #{tpu_custom_call.1} parent=1 // pred_check_branch
      %340 = sbr.rel (0) target = $region117
    $region116: #{tpu_custom_call.1} parent=1 // pred_region
      _
    $region117: #{tpu_custom_call.1} parent=1 // pred_fallthru
      _
    // Predicated region
    $region118: #{tpu_custom_call.1} parent=1 // pred_check
      _
    $region119: #{tpu_custom_call.1} parent=1 // pred_check_branch
      %342 = sbr.rel (0) target = $region121
    $region120: #{tpu_custom_call.1} parent=1 // pred_region
      %s344 = ssub.s32 4096, 4096
      %345 = vsyncadd [#allocation33], %s344
      %s346 = sshll.u32 [#allocation32], 4
      %s347 = int_to_ptr.vmem [resolvable:$true] %s346
      %352 = dma.hbm_to_vmem [thread:$0]  %s59, 4096, %s347, [#allocation33], 256, 256, 16
    $region121: #{tpu_custom_call.1} parent=1 // pred_fallthru
      _
    // Predicated region
    $region122: #{tpu_custom_call.1} parent=1 // pred_check
      _
    $region123: #{tpu_custom_call.1} parent=1 // pred_check_branch
      %354 = sbr.rel (0) target = $region125
    $region124: #{tpu_custom_call.1} parent=1 // pred_region
      _
    $region125: #{tpu_custom_call.1} parent=1 // pred_fallthru
      _
    // Predicated region
    $region126: #{tpu_custom_call.1} parent=1 // pred_check
      _
    $region127: #{tpu_custom_call.1} parent=1 // pred_check_branch
      %356 = sbr.rel (0) target = $region129
    $region128: #{tpu_custom_call.1} parent=1 // pred_region
      %s358 = ssub.s32 16384, 16384
      %359 = vsyncadd [#allocation33], %s358
      %s360 = sshll.u32 [#allocation34], 4
      %s361 = int_to_ptr.vmem [resolvable:$true] %s360
      %366 = dma.hbm_to_vmem [thread:$0]  %s63, 16384, %s361, [#allocation33], 256, 256, 16
    $region129: #{tpu_custom_call.1} parent=1 // pred_fallthru
      _
    // Predicated region
    $region130: #{tpu_custom_call.1} parent=1 // pred_check
      _
    $region131: #{tpu_custom_call.1} parent=1 // pred_check_branch
      %368 = sbr.rel (0) target = $region133
    $region132: #{tpu_custom_call.1} parent=1 // pred_region
      _
    $region133: #{tpu_custom_call.1} parent=1 // pred_fallthru
      _
    // Predicated region
    $region134: #{tpu_custom_call.1} parent=1 // pred_check
      _
    $region135: #{tpu_custom_call.1} parent=1 // pred_check_branch
      %370 = sbr.rel (0) target = $region137
    $region136: #{tpu_custom_call.1} parent=1 // pred_region
      %s372 = ssub.s32 4096, 4096
      %373 = vsyncadd [#allocation36], %s372
      %s374 = sshll.u32 [#allocation35], 4
      %s375 = int_to_ptr.vmem [resolvable:$true] %s374
      %380 = dma.hbm_to_vmem [thread:$0]  %s67, 4096, %s375, [#allocation36], 64, 64, 4
    $region137: #{tpu_custom_call.1} parent=1 // pred_fallthru
      _
    // Predicated region
    $region138: #{tpu_custom_call.1} parent=1 // pred_check
      _
    $region139: #{tpu_custom_call.1} parent=1 // pred_check_branch
      %382 = sbr.rel (0) target = $region141
    $region140: #{tpu_custom_call.1} parent=1 // pred_region
      _
    $region141: #{tpu_custom_call.1} parent=1 // pred_fallthru
      _
    // Predicated region
    $region142: #{tpu_custom_call.1} parent=1 // pred_check
      _
    $region143: #{tpu_custom_call.1} parent=1 // pred_check_branch
      %384 = sbr.rel (0) target = $region145
    $region144: #{tpu_custom_call.1} parent=1 // pred_region
      %385 = dma.done [#allocation3], 384
    $region145: #{tpu_custom_call.1} parent=1 // pred_fallthru
      _
    // Predicated region
    $region146: #{tpu_custom_call.1} parent=1 // pred_check
      _
    $region147: #{tpu_custom_call.1} parent=1 // pred_check_branch
      %387 = sbr.rel (0) target = $region149
    $region148: #{tpu_custom_call.1} parent=1 // pred_region
      %388 = dma.done [#allocation6], 384
    $region149: #{tpu_custom_call.1} parent=1 // pred_fallthru
      _
    // Predicated region
    $region150: #{tpu_custom_call.1} parent=1 // pred_check
      _
    $region151: #{tpu_custom_call.1} parent=1 // pred_check_branch
      %390 = sbr.rel (0) target = $region153
    $region152: #{tpu_custom_call.1} parent=1 // pred_region
      %391 = dma.done [#allocation6], 384
    $region153: #{tpu_custom_call.1} parent=1 // pred_fallthru
      _
    // Predicated region
    $region154: #{tpu_custom_call.1} parent=1 // pred_check
      _
    $region155: #{tpu_custom_call.1} parent=1 // pred_check_branch
      %393 = sbr.rel (0) target = $region157
    $region156: #{tpu_custom_call.1} parent=1 // pred_region
      %394 = dma.done [#allocation9], 384
    $region157: #{tpu_custom_call.1} parent=1 // pred_fallthru
      _
    // Predicated region
    $region158: #{tpu_custom_call.1} parent=1 // pred_check
      _
    $region159: #{tpu_custom_call.1} parent=1 // pred_check_branch
      %396 = sbr.rel (0) target = $region161
    $region160: #{tpu_custom_call.1} parent=1 // pred_region
      %397 = dma.done [#allocation9], 4096
    $region161: #{tpu_custom_call.1} parent=1 // pred_fallthru
      _
    // Predicated region
    $region162: #{tpu_custom_call.1} parent=1 // pred_check
      _
    $region163: #{tpu_custom_call.1} parent=1 // pred_check_branch
      %399 = sbr.rel (0) target = $region165
    $region164: #{tpu_custom_call.1} parent=1 // pred_region
      %400 = dma.done [#allocation12], 4096
    $region165: #{tpu_custom_call.1} parent=1 // pred_fallthru
      _
    // Predicated region
    $region166: #{tpu_custom_call.1} parent=1 // pred_check
      _
    $region167: #{tpu_custom_call.1} parent=1 // pred_check_branch
      %402 = sbr.rel (0) target = $region169
    $region168: #{tpu_custom_call.1} parent=1 // pred_region
      %403 = dma.done [#allocation12], 16384
    $region169: #{tpu_custom_call.1} parent=1 // pred_fallthru
      _
    // Predicated region
    $region170: #{tpu_custom_call.1} parent=1 // pred_check
      _
    $region171: #{tpu_custom_call.1} parent=1 // pred_check_branch
      %405 = sbr.rel (0) target = $region173
    $region172: #{tpu_custom_call.1} parent=1 // pred_region
      %406 = dma.done [#allocation15], 4096
    $region173: #{tpu_custom_call.1} parent=1 // pred_fallthru
      _
    // Predicated region
    $region174: #{tpu_custom_call.1} parent=1 // pred_check
      _
    $region175: #{tpu_custom_call.1} parent=1 // pred_check_branch
      %408 = sbr.rel (0) target = $region177
    $region176: #{tpu_custom_call.1} parent=1 // pred_region
      %409 = dma.done [#allocation15], 4096
    $region177: #{tpu_custom_call.1} parent=1 // pred_fallthru
      _
    // Predicated region
    $region178: #{tpu_custom_call.1} parent=1 // pred_check
      _
    $region179: #{tpu_custom_call.1} parent=1 // pred_check_branch
      %411 = sbr.rel (0) target = $region181
    $region180: #{tpu_custom_call.1} parent=1 // pred_region
      %412 = dma.done [#allocation18], 4096
    $region181: #{tpu_custom_call.1} parent=1 // pred_fallthru
      _
    // Predicated region
    $region182: #{tpu_custom_call.1} parent=1 // pred_check
      _
    $region183: #{tpu_custom_call.1} parent=1 // pred_check_branch
      %414 = sbr.rel (0) target = $region185
    $region184: #{tpu_custom_call.1} parent=1 // pred_region
      %415 = dma.done [#allocation18], 4096
    $region185: #{tpu_custom_call.1} parent=1 // pred_fallthru
      _
    // Predicated region
    $region186: #{tpu_custom_call.1} parent=1 // pred_check
      _
    $region187: #{tpu_custom_call.1} parent=1 // pred_check_branch
      %417 = sbr.rel (0) target = $region189
    $region188: #{tpu_custom_call.1} parent=1 // pred_region
      %418 = dma.done [#allocation21], 16384
    $region189: #{tpu_custom_call.1} parent=1 // pred_fallthru
      _
    // Predicated region
    $region190: #{tpu_custom_call.1} parent=1 // pred_check
      _
    $region191: #{tpu_custom_call.1} parent=1 // pred_check_branch
      %420 = sbr.rel (0) target = $region193
    $region192: #{tpu_custom_call.1} parent=1 // pred_region
      %421 = dma.done [#allocation21], 4096
    $region193: #{tpu_custom_call.1} parent=1 // pred_fallthru
      _
    // Predicated region
    $region194: #{tpu_custom_call.1} parent=1 // pred_check
      _
    $region195: #{tpu_custom_call.1} parent=1 // pred_check_branch
      %423 = sbr.rel (0) target = $region197
    $region196: #{tpu_custom_call.1} parent=1 // pred_region
      %424 = dma.done [#allocation24], 4096
    $region197: #{tpu_custom_call.1} parent=1 // pred_fallthru
      _
    // Predicated region
    $region198: #{tpu_custom_call.1} parent=1 // pred_check
      _
    $region199: #{tpu_custom_call.1} parent=1 // pred_check_branch
      %426 = sbr.rel (0) target = $region201
    $region200: #{tpu_custom_call.1} parent=1 // pred_region
      %427 = dma.done [#allocation24], 4096
    $region201: #{tpu_custom_call.1} parent=1 // pred_fallthru
      _
    // Predicated region
    $region202: #{tpu_custom_call.1} parent=1 // pred_check
      _
    $region203: #{tpu_custom_call.1} parent=1 // pred_check_branch
      %429 = sbr.rel (0) target = $region205
    $region204: #{tpu_custom_call.1} parent=1 // pred_region
      %430 = dma.done [#allocation27], 4096
    $region205: #{tpu_custom_call.1} parent=1 // pred_fallthru
      _
    // Predicated region
    $region206: #{tpu_custom_call.1} parent=1 // pred_check
      _
    $region207: #{tpu_custom_call.1} parent=1 // pred_check_branch
      %432 = sbr.rel (0) target = $region209
    $region208: #{tpu_custom_call.1} parent=1 // pred_region
      %433 = dma.done [#allocation27], 16384
    $region209: #{tpu_custom_call.1} parent=1 // pred_fallthru
      _
    // Predicated region
    $region210: #{tpu_custom_call.1} parent=1 // pred_check
      _
    $region211: #{tpu_custom_call.1} parent=1 // pred_check_branch
      %435 = sbr.rel (0) target = $region213
    $region212: #{tpu_custom_call.1} parent=1 // pred_region
      %436 = dma.done [#allocation30], 16384
    $region213: #{tpu_custom_call.1} parent=1 // pred_fallthru
      _
    // Predicated region
    $region214: #{tpu_custom_call.1} parent=1 // pred_check
      _
    $region215: #{tpu_custom_call.1} parent=1 // pred_check_branch
      %438 = sbr.rel (0) target = $region217
    $region216: #{tpu_custom_call.1} parent=1 // pred_region
      %439 = dma.done [#allocation30], 4096
    $region217: #{tpu_custom_call.1} parent=1 // pred_fallthru
      _
    // Predicated region
    $region218: #{tpu_custom_call.1} parent=1 // pred_check
      _
    $region219: #{tpu_custom_call.1} parent=1 // pred_check_branch
      %441 = sbr.rel (0) target = $region221
    $region220: #{tpu_custom_call.1} parent=1 // pred_region
      %442 = dma.done [#allocation33], 4096
    $region221: #{tpu_custom_call.1} parent=1 // pred_fallthru
      _
    // Predicated region
    $region222: #{tpu_custom_call.1} parent=1 // pred_check
      _
    $region223: #{tpu_custom_call.1} parent=1 // pred_check_branch
      %444 = sbr.rel (0) target = $region225
    $region224: #{tpu_custom_call.1} parent=1 // pred_region
      %445 = dma.done [#allocation33], 16384
    $region225: #{tpu_custom_call.1} parent=1 // pred_fallthru
      _
    // Predicated region
    $region226: #{tpu_custom_call.1} parent=1 // pred_check
      _
    $region227: #{tpu_custom_call.1} parent=1 // pred_check_branch
      %447 = sbr.rel (0) target = $region229
    $region228: #{tpu_custom_call.1} parent=1 // pred_region
      %448 = dma.done [#allocation36], 4096
    $region229: #{tpu_custom_call.1} parent=1 // pred_fallthru
      _
    %v450 = vld [vmem:[#allocation2] sm:$0xff]
    %v451 = vld [vmem:[#allocation2 + $0x8] sm:$0xff]
    %v452 = vld [vmem:[#allocation2 + $0x10] sm:$0xff]
    %v453 = vpack.c.bf16 %v451, %v450
    %v454 = vpack.c.bf16 %v452, %v452
    %v455 = vld [vmem:[#allocation5] sm:$0xff]
    %v456 = vld [vmem:[#allocation5 + $0x8] sm:$0xff]
    %v457 = vld [vmem:[#allocation5 + $0x10] sm:$0xff]
    %v458 = vpack.c.bf16 %v456, %v455
    %v459 = vpack.c.bf16 %v457, %v457
    %v460 = vld [vmem:[#allocation10] sm:$0xff]
    %v461 = vld [vmem:[#allocation10 + $0x8] sm:$0xff]
    %v462 = vld [vmem:[#allocation10 + $0x10] sm:$0xff]
    %v463 = vld [vmem:[#allocation10 + $0x18] sm:$0xff]
    %v464 = vld [vmem:[#allocation10 + $0x20] sm:$0xff]
    %v465 = vld [vmem:[#allocation10 + $0x28] sm:$0xff]
    %v466 = vld [vmem:[#allocation10 + $0x30] sm:$0xff]
    %v467 = vld [vmem:[#allocation10 + $0x38] sm:$0xff]
    %v468 = vld [vmem:[#allocation10 + $0x40] sm:$0xff]
    %v469 = vld [vmem:[#allocation10 + $0x48] sm:$0xff]
    %v470 = vld [vmem:[#allocation10 + $0x50] sm:$0xff]
    %v471 = vld [vmem:[#allocation10 + $0x58] sm:$0xff]
    %v472 = vld [vmem:[#allocation10 + $0x60] sm:$0xff]
    %v473 = vld [vmem:[#allocation10 + $0x68] sm:$0xff]
    %v474 = vld [vmem:[#allocation10 + $0x70] sm:$0xff]
    %v475 = vld [vmem:[#allocation10 + $0x78] sm:$0xff]
    %v476 = vld [vmem:[#allocation10 + $0x80] sm:$0xff]
    %v477 = vld [vmem:[#allocation10 + $0x88] sm:$0xff]
    %v478 = vld [vmem:[#allocation10 + $0x90] sm:$0xff]
    %v479 = vld [vmem:[#allocation10 + $0x98] sm:$0xff]
    %v480 = vld [vmem:[#allocation10 + $0xa0] sm:$0xff]
    %v481 = vld [vmem:[#allocation10 + $0xa8] sm:$0xff]
    %v482 = vld [vmem:[#allocation10 + $0xb0] sm:$0xff]
    %v483 = vld [vmem:[#allocation10 + $0xb8] sm:$0xff]
    %v484 = vld [vmem:[#allocation10 + $0xc0] sm:$0xff]
    %v485 = vld [vmem:[#allocation10 + $0xc8] sm:$0xff]
    %v486 = vld [vmem:[#allocation10 + $0xd0] sm:$0xff]
    %v487 = vld [vmem:[#allocation10 + $0xd8] sm:$0xff]
    %v488 = vld [vmem:[#allocation10 + $0xe0] sm:$0xff]
    %v489 = vld [vmem:[#allocation10 + $0xe8] sm:$0xff]
    %v490 = vld [vmem:[#allocation10 + $0xf0] sm:$0xff]
    %v491 = vld [vmem:[#allocation10 + $0xf8] sm:$0xff]
    %v492 = vld [vmem:[#allocation11] sm:$0xff]
    %v493 = vld [vmem:[#allocation11 + $0x8] sm:$0xff]
    %v494 = vld [vmem:[#allocation11 + $0x10] sm:$0xff]
    %v495 = vld [vmem:[#allocation11 + $0x18] sm:$0xff]
    %v496 = vld [vmem:[#allocation11 + $0x20] sm:$0xff]
    %v497 = vld [vmem:[#allocation11 + $0x28] sm:$0xff]
    %v498 = vld [vmem:[#allocation11 + $0x30] sm:$0xff]
    %v499 = vld [vmem:[#allocation11 + $0x38] sm:$0xff]
    %v500 = vld [vmem:[#allocation11 + $0x40] sm:$0xff]
    %v501 = vld [vmem:[#allocation11 + $0x48] sm:$0xff]
    %v502 = vld [vmem:[#allocation11 + $0x50] sm:$0xff]
    %v503 = vld [vmem:[#allocation11 + $0x58] sm:$0xff]
    %v504 = vld [vmem:[#allocation11 + $0x60] sm:$0xff]
    %v505 = vld [vmem:[#allocation11 + $0x68] sm:$0xff]
    %v506 = vld [vmem:[#allocation11 + $0x70] sm:$0xff]
    %v507 = vld [vmem:[#allocation11 + $0x78] sm:$0xff]
    %v508 = vld [vmem:[#allocation11 + $0x80] sm:$0xff]
    %v509 = vld [vmem:[#allocation11 + $0x88] sm:$0xff]
    %v510 = vld [vmem:[#allocation11 + $0x90] sm:$0xff]
    %v511 = vld [vmem:[#allocation11 + $0x98] sm:$0xff]
    %v512 = vld [vmem:[#allocation11 + $0xa0] sm:$0xff]
    %v513 = vld [vmem:[#allocation11 + $0xa8] sm:$0xff]
    %v514 = vld [vmem:[#allocation11 + $0xb0] sm:$0xff]
    %v515 = vld [vmem:[#allocation11 + $0xb8] sm:$0xff]
    %v516 = vld [vmem:[#allocation11 + $0xc0] sm:$0xff]
    %v517 = vld [vmem:[#allocation11 + $0xc8] sm:$0xff]
    %v518 = vld [vmem:[#allocation11 + $0xd0] sm:$0xff]
    %v519 = vld [vmem:[#allocation11 + $0xd8] sm:$0xff]
    %v520 = vld [vmem:[#allocation11 + $0xe0] sm:$0xff]
    %v521 = vld [vmem:[#allocation11 + $0xe8] sm:$0xff]
    %v522 = vld [vmem:[#allocation11 + $0xf0] sm:$0xff]
    %v523 = vld [vmem:[#allocation11 + $0xf8] sm:$0xff]
    %v556 = vunpack.c.l.b16 %v492
    %v557 = vunpack.c.h.b16 %v492
    %v558 = vunpack.c.l.b16 %v493
    %v559 = vunpack.c.h.b16 %v493
    %v560 = vunpack.c.l.b16 %v494
    %v561 = vunpack.c.h.b16 %v494
    %v562 = vunpack.c.l.b16 %v495
    %v563 = vunpack.c.h.b16 %v495
    %v564 = vunpack.c.l.b16 %v496
    %v565 = vunpack.c.h.b16 %v496
    %v566 = vunpack.c.l.b16 %v497
    %v567 = vunpack.c.h.b16 %v497
    %v568 = vunpack.c.l.b16 %v498
    %v569 = vunpack.c.h.b16 %v498
    %v570 = vunpack.c.l.b16 %v499
    %v571 = vunpack.c.h.b16 %v499
    %v572 = vunpack.c.l.b16 %v500
    %v573 = vunpack.c.h.b16 %v500
    %v574 = vunpack.c.l.b16 %v501
    %v575 = vunpack.c.h.b16 %v501
    %v576 = vunpack.c.l.b16 %v502
    %v577 = vunpack.c.h.b16 %v502
    %v578 = vunpack.c.l.b16 %v503
    %v579 = vunpack.c.h.b16 %v503
    %v580 = vunpack.c.l.b16 %v504
    %v581 = vunpack.c.h.b16 %v504
    %v582 = vunpack.c.l.b16 %v505
    %v583 = vunpack.c.h.b16 %v505
    %v584 = vunpack.c.l.b16 %v506
    %v585 = vunpack.c.h.b16 %v506
    %v586 = vunpack.c.l.b16 %v507
    %v587 = vunpack.c.h.b16 %v507
    %v588 = vunpack.c.l.b16 %v508
    %v589 = vunpack.c.h.b16 %v508
    %v590 = vunpack.c.l.b16 %v509
    %v591 = vunpack.c.h.b16 %v509
    %v592 = vunpack.c.l.b16 %v510
    %v593 = vunpack.c.h.b16 %v510
    %v594 = vunpack.c.l.b16 %v511
    %v595 = vunpack.c.h.b16 %v511
    %v596 = vunpack.c.l.b16 %v512
    %v597 = vunpack.c.h.b16 %v512
    %v598 = vunpack.c.l.b16 %v513
    %v599 = vunpack.c.h.b16 %v513
    %v600 = vunpack.c.l.b16 %v514
    %v601 = vunpack.c.h.b16 %v514
    %v602 = vunpack.c.l.b16 %v515
    %v603 = vunpack.c.h.b16 %v515
    %v604 = vunpack.c.l.b16 %v516
    %v605 = vunpack.c.h.b16 %v516
    %v606 = vunpack.c.l.b16 %v517
    %v607 = vunpack.c.h.b16 %v517
    %v608 = vunpack.c.l.b16 %v518
    %v609 = vunpack.c.h.b16 %v518
    %v610 = vunpack.c.l.b16 %v519
    %v611 = vunpack.c.h.b16 %v519
    %v612 = vunpack.c.l.b16 %v520
    %v613 = vunpack.c.h.b16 %v520
    %v614 = vunpack.c.l.b16 %v521
    %v615 = vunpack.c.h.b16 %v521
    %v616 = vunpack.c.l.b16 %v522
    %v617 = vunpack.c.h.b16 %v522
    %v618 = vunpack.c.l.b16 %v523
    %v619 = vunpack.c.h.b16 %v523
    %v620 = vpack.c.b16 %v560, %v556
    %v621 = vpack.c.b16 %v561, %v557
    %v622 = vpack.c.b16 %v562, %v558
    %v623 = vpack.c.b16 %v563, %v559
    %v624 = vpack.c.b16 %v568, %v564
    %v625 = vpack.c.b16 %v569, %v565
    %v626 = vpack.c.b16 %v570, %v566
    %v627 = vpack.c.b16 %v571, %v567
    %v628 = vpack.c.b16 %v576, %v572
    %v629 = vpack.c.b16 %v577, %v573
    %v630 = vpack.c.b16 %v578, %v574
    %v631 = vpack.c.b16 %v579, %v575
    %v632 = vpack.c.b16 %v584, %v580
    %v633 = vpack.c.b16 %v585, %v581
    %v634 = vpack.c.b16 %v586, %v582
    %v635 = vpack.c.b16 %v587, %v583
    %v636 = vpack.c.b16 %v592, %v588
    %v637 = vpack.c.b16 %v593, %v589
    %v638 = vpack.c.b16 %v594, %v590
    %v639 = vpack.c.b16 %v595, %v591
    %v640 = vpack.c.b16 %v600, %v596
    %v641 = vpack.c.b16 %v601, %v597
    %v642 = vpack.c.b16 %v602, %v598
    %v643 = vpack.c.b16 %v603, %v599
    %v644 = vpack.c.b16 %v608, %v604
    %v645 = vpack.c.b16 %v609, %v605
    %v646 = vpack.c.b16 %v610, %v606
    %v647 = vpack.c.b16 %v611, %v607
    %v648 = vpack.c.b16 %v616, %v612
    %v649 = vpack.c.b16 %v617, %v613
    %v650 = vpack.c.b16 %v618, %v614
    %v651 = vpack.c.b16 %v619, %v615
    %684 = vmatprep.subr.bf16.mxu0 %v621
    %685 = vmatpush1.bf16.msra.mxu0 %v620
    %686 = vmatprep.subr.bf16.mxu0 %v625
    %687 = vmatpush1.bf16.msra.mxu0 %v624
    %688 = vmatprep.subr.bf16.mxu0 %v629
    %689 = vmatpush1.bf16.msra.mxu0 %v628
    %690 = vmatprep.subr.bf16.mxu0 %v633
    %691 = vmatpush1.bf16.msra.mxu0 %v632
    %692 = vmatprep.subr.bf16.mxu0 %v637
    %693 = vmatpush1.bf16.msra.mxu0 %v636
    %694 = vmatprep.subr.bf16.mxu0 %v641
    %695 = vmatpush1.bf16.msra.mxu0 %v640
    %696 = vmatprep.subr.bf16.mxu0 %v645
    %697 = vmatpush1.bf16.msra.mxu0 %v644
    %698 = vmatprep.subr.bf16.mxu0 %v649
    %699 = vmatpush1.bf16.msra.mxu0 %v648
    %700 = vmatprep.subr.bf16.mxu0 0
    %701 = vmatpush1.bf16.msra.mxu0 0
    %702 = vmatprep.subr.bf16.mxu0 0
    %703 = vmatpush1.bf16.msra.mxu0 0
    %704 = vmatprep.subr.bf16.mxu0 0
    %705 = vmatpush1.bf16.msra.mxu0 0
    %706 = vmatprep.subr.bf16.mxu0 0
    %707 = vmatpush1.bf16.msra.mxu0 0
    %708 = vmatprep.subr.bf16.mxu0 0
    %709 = vmatpush1.bf16.msra.mxu0 0
    %710 = vmatprep.subr.bf16.mxu0 0
    %711 = vmatpush1.bf16.msra.mxu0 0
    %712 = vmatprep.subr.bf16.mxu0 0
    %713 = vmatpush1.bf16.msra.mxu0 0
    %714 = vmatprep.subr.bf16.mxu0 0
    %715 = vmatpush1.bf16.msra.mxu0 0
    %716 = vmatprep.mubr.bf16.mxu0 0
    %717 = vmatmul.mubr.bf16.gmra.mrb[0].mxu0 %v453
    %v718 = vpop.f32.mrb[0].mxu0
    %v719 = vadd.f32 0.0, %v718
    %v720 = vpop.f32.mrb[0].mxu0
    %v721 = vadd.f32 0.0, %v720
    %v722 = vpop.f32.mrb[0].mxu0
    %v723 = vadd.f32 0.0, %v722
    %v724 = vpop.f32.mrb[0].mxu0
    %v725 = vadd.f32 0.0, %v724
    %726 = vmatprep.mubr.bf16.mxu0 0
    %727 = vmatmul.mubr.bf16.gmra.mrb[0].mxu0 %v454
    %v728 = vpop.f32.mrb[0].mxu0
    %v729 = vadd.f32 0.0, %v728
    %v730 = vpop.f32.mrb[0].mxu0
    %v731 = vadd.f32 0.0, %v730
    %v732 = vpop.f32.mrb[0].mxu0
    %v733 = vpop.f32.mrb[0].mxu0
    %734 = vdwg.mxu0
    %735 = vmatprep.subr.bf16.mxu0 %v623
    %736 = vmatpush1.bf16.msra.mxu0 %v622
    %737 = vmatprep.subr.bf16.mxu0 %v627
    %738 = vmatpush1.bf16.msra.mxu0 %v626
    %739 = vmatprep.subr.bf16.mxu0 %v631
    %740 = vmatpush1.bf16.msra.mxu0 %v630
    %741 = vmatprep.subr.bf16.mxu0 %v635
    %742 = vmatpush1.bf16.msra.mxu0 %v634
    %743 = vmatprep.subr.bf16.mxu0 %v639
    %744 = vmatpush1.bf16.msra.mxu0 %v638
    %745 = vmatprep.subr.bf16.mxu0 %v643
    %746 = vmatpush1.bf16.msra.mxu0 %v642
    %747 = vmatprep.subr.bf16.mxu0 %v647
    %748 = vmatpush1.bf16.msra.mxu0 %v646
    %749 = vmatprep.subr.bf16.mxu0 %v651
    %750 = vmatpush1.bf16.msra.mxu0 %v650
    %751 = vmatprep.subr.bf16.mxu0 0
    %752 = vmatpush1.bf16.msra.mxu0 0
    %753 = vmatprep.subr.bf16.mxu0 0
    %754 = vmatpush1.bf16.msra.mxu0 0
    %755 = vmatprep.subr.bf16.mxu0 0
    %756 = vmatpush1.bf16.msra.mxu0 0
    %757 = vmatprep.subr.bf16.mxu0 0
    %758 = vmatpush1.bf16.msra.mxu0 0
    %759 = vmatprep.subr.bf16.mxu0 0
    %760 = vmatpush1.bf16.msra.mxu0 0
    %761 = vmatprep.subr.bf16.mxu0 0
    %762 = vmatpush1.bf16.msra.mxu0 0
    %763 = vmatprep.subr.bf16.mxu0 0
    %764 = vmatpush1.bf16.msra.mxu0 0
    %765 = vmatprep.subr.bf16.mxu0 0
    %766 = vmatpush1.bf16.msra.mxu0 0
    %767 = vmatprep.mubr.bf16.mxu0 0
    %768 = vmatmul.mubr.bf16.gmra.mrb[0].mxu0 %v453
    %v769 = vpop.f32.mrb[0].mxu0
    %v770 = vadd.f32 0.0, %v769
    %v771 = vpop.f32.mrb[0].mxu0
    %v772 = vadd.f32 0.0, %v771
    %v773 = vpop.f32.mrb[0].mxu0
    %v774 = vadd.f32 0.0, %v773
    %v775 = vpop.f32.mrb[0].mxu0
    %v776 = vadd.f32 0.0, %v775
    %777 = vmatprep.mubr.bf16.mxu0 0
    %778 = vmatmul.mubr.bf16.gmra.mrb[0].mxu0 %v454
    %v779 = vpop.f32.mrb[0].mxu0
    %v780 = vadd.f32 0.0, %v779
    %v781 = vpop.f32.mrb[0].mxu0
    %v782 = vadd.f32 0.0, %v781
    %v783 = vpop.f32.mrb[0].mxu0
    %v784 = vpop.f32.mrb[0].mxu0
    %785 = vdwg.mxu0
    %v818 = vunpack.c.l.b16 %v460
    %v819 = vunpack.c.h.b16 %v460
    %v820 = vunpack.c.l.b16 %v461
    %v821 = vunpack.c.h.b16 %v461
    %v822 = vunpack.c.l.b16 %v462
    %v823 = vunpack.c.h.b16 %v462
    %v824 = vunpack.c.l.b16 %v463
    %v825 = vunpack.c.h.b16 %v463
    %v826 = vunpack.c.l.b16 %v464
    %v827 = vunpack.c.h.b16 %v464
    %v828 = vunpack.c.l.b16 %v465
    %v829 = vunpack.c.h.b16 %v465
    %v830 = vunpack.c.l.b16 %v466
    %v831 = vunpack.c.h.b16 %v466
    %v832 = vunpack.c.l.b16 %v467
    %v833 = vunpack.c.h.b16 %v467
    %v834 = vunpack.c.l.b16 %v468
    %v835 = vunpack.c.h.b16 %v468
    %v836 = vunpack.c.l.b16 %v469
    %v837 = vunpack.c.h.b16 %v469
    %v838 = vunpack.c.l.b16 %v470
    %v839 = vunpack.c.h.b16 %v470
    %v840 = vunpack.c.l.b16 %v471
    %v841 = vunpack.c.h.b16 %v471
    %v842 = vunpack.c.l.b16 %v472
    %v843 = vunpack.c.h.b16 %v472
    %v844 = vunpack.c.l.b16 %v473
    %v845 = vunpack.c.h.b16 %v473
    %v846 = vunpack.c.l.b16 %v474
    %v847 = vunpack.c.h.b16 %v474
    %v848 = vunpack.c.l.b16 %v475
    %v849 = vunpack.c.h.b16 %v475
    %v850 = vunpack.c.l.b16 %v476
    %v851 = vunpack.c.h.b16 %v476
    %v852 = vunpack.c.l.b16 %v477
    %v853 = vunpack.c.h.b16 %v477
    %v854 = vunpack.c.l.b16 %v478
    %v855 = vunpack.c.h.b16 %v478
    %v856 = vunpack.c.l.b16 %v479
    %v857 = vunpack.c.h.b16 %v479
    %v858 = vunpack.c.l.b16 %v480
    %v859 = vunpack.c.h.b16 %v480
    %v860 = vunpack.c.l.b16 %v481
    %v861 = vunpack.c.h.b16 %v481
    %v862 = vunpack.c.l.b16 %v482
    %v863 = vunpack.c.h.b16 %v482
    %v864 = vunpack.c.l.b16 %v483
    %v865 = vunpack.c.h.b16 %v483
    %v866 = vunpack.c.l.b16 %v484
    %v867 = vunpack.c.h.b16 %v484
    %v868 = vunpack.c.l.b16 %v485
    %v869 = vunpack.c.h.b16 %v485
    %v870 = vunpack.c.l.b16 %v486
    %v871 = vunpack.c.h.b16 %v486
    %v872 = vunpack.c.l.b16 %v487
    %v873 = vunpack.c.h.b16 %v487
    %v874 = vunpack.c.l.b16 %v488
    %v875 = vunpack.c.h.b16 %v488
    %v876 = vunpack.c.l.b16 %v489
    %v877 = vunpack.c.h.b16 %v489
    %v878 = vunpack.c.l.b16 %v490
    %v879 = vunpack.c.h.b16 %v490
    %v880 = vunpack.c.l.b16 %v491
    %v881 = vunpack.c.h.b16 %v491
    %v882 = vpack.c.b16 %v822, %v818
    %v883 = vpack.c.b16 %v823, %v819
    %v884 = vpack.c.b16 %v824, %v820
    %v885 = vpack.c.b16 %v825, %v821
    %v886 = vpack.c.b16 %v830, %v826
    %v887 = vpack.c.b16 %v831, %v827
    %v888 = vpack.c.b16 %v832, %v828
    %v889 = vpack.c.b16 %v833, %v829
    %v890 = vpack.c.b16 %v838, %v834
    %v891 = vpack.c.b16 %v839, %v835
    %v892 = vpack.c.b16 %v840, %v836
    %v893 = vpack.c.b16 %v841, %v837
    %v894 = vpack.c.b16 %v846, %v842
    %v895 = vpack.c.b16 %v847, %v843
    %v896 = vpack.c.b16 %v848, %v844
    %v897 = vpack.c.b16 %v849, %v845
    %v898 = vpack.c.b16 %v854, %v850
    %v899 = vpack.c.b16 %v855, %v851
    %v900 = vpack.c.b16 %v856, %v852
    %v901 = vpack.c.b16 %v857, %v853
    %v902 = vpack.c.b16 %v862, %v858
    %v903 = vpack.c.b16 %v863, %v859
    %v904 = vpack.c.b16 %v864, %v860
    %v905 = vpack.c.b16 %v865, %v861
    %v906 = vpack.c.b16 %v870, %v866
    %v907 = vpack.c.b16 %v871, %v867
    %v908 = vpack.c.b16 %v872, %v868
    %v909 = vpack.c.b16 %v873, %v869
    %v910 = vpack.c.b16 %v878, %v874
    %v911 = vpack.c.b16 %v879, %v875
    %v912 = vpack.c.b16 %v880, %v876
    %v913 = vpack.c.b16 %v881, %v877
    %946 = vmatprep.subr.bf16.mxu0 %v883
    %947 = vmatpush1.bf16.msra.mxu0 %v882
    %948 = vmatprep.subr.bf16.mxu0 %v887
    %949 = vmatpush1.bf16.msra.mxu0 %v886
    %950 = vmatprep.subr.bf16.mxu0 %v891
    %951 = vmatpush1.bf16.msra.mxu0 %v890
    %952 = vmatprep.subr.bf16.mxu0 %v895
    %953 = vmatpush1.bf16.msra.mxu0 %v894
    %954 = vmatprep.subr.bf16.mxu0 %v899
    %955 = vmatpush1.bf16.msra.mxu0 %v898
    %956 = vmatprep.subr.bf16.mxu0 %v903
    %957 = vmatpush1.bf16.msra.mxu0 %v902
    %958 = vmatprep.subr.bf16.mxu0 %v907
    %959 = vmatpush1.bf16.msra.mxu0 %v906
    %960 = vmatprep.subr.bf16.mxu0 %v911
    %961 = vmatpush1.bf16.msra.mxu0 %v910
    %962 = vmatprep.subr.bf16.mxu0 0
    %963 = vmatpush1.bf16.msra.mxu0 0
    %964 = vmatprep.subr.bf16.mxu0 0
    %965 = vmatpush1.bf16.msra.mxu0 0
    %966 = vmatprep.subr.bf16.mxu0 0
    %967 = vmatpush1.bf16.msra.mxu0 0
    %968 = vmatprep.subr.bf16.mxu0 0
    %969 = vmatpush1.bf16.msra.mxu0 0
    %970 = vmatprep.subr.bf16.mxu0 0
    %971 = vmatpush1.bf16.msra.mxu0 0
    %972 = vmatprep.subr.bf16.mxu0 0
    %973 = vmatpush1.bf16.msra.mxu0 0
    %974 = vmatprep.subr.bf16.mxu0 0
    %975 = vmatpush1.bf16.msra.mxu0 0
    %976 = vmatprep.subr.bf16.mxu0 0
    %977 = vmatpush1.bf16.msra.mxu0 0
    %978 = vmatprep.mubr.bf16.mxu0 0
    %979 = vmatmul.mubr.bf16.gmra.mrb[0].mxu0 %v458
    %v980 = vpop.f32.mrb[0].mxu0
    %v981 = vadd.f32 %v719, %v980
    %v982 = vpop.f32.mrb[0].mxu0
    %v983 = vadd.f32 %v721, %v982
    %v984 = vpop.f32.mrb[0].mxu0
    %v985 = vadd.f32 %v723, %v984
    %v986 = vpop.f32.mrb[0].mxu0
    %v987 = vadd.f32 %v725, %v986
    %988 = vmatprep.mubr.bf16.mxu0 0
    %989 = vmatmul.mubr.bf16.gmra.mrb[0].mxu0 %v459
    %v990 = vpop.f32.mrb[0].mxu0
    %v991 = vadd.f32 %v729, %v990
    %v992 = vpop.f32.mrb[0].mxu0
    %v993 = vadd.f32 %v731, %v992
    %v994 = vpop.f32.mrb[0].mxu0
    %v995 = vpop.f32.mrb[0].mxu0
    %996 = vdwg.mxu0
    %997 = vmatprep.subr.bf16.mxu0 %v885
    %998 = vmatpush1.bf16.msra.mxu0 %v884
    %999 = vmatprep.subr.bf16.mxu0 %v889
    %1000 = vmatpush1.bf16.msra.mxu0 %v888
    %1001 = vmatprep.subr.bf16.mxu0 %v893
    %1002 = vmatpush1.bf16.msra.mxu0 %v892
    %1003 = vmatprep.subr.bf16.mxu0 %v897
    %1004 = vmatpush1.bf16.msra.mxu0 %v896
    %1005 = vmatprep.subr.bf16.mxu0 %v901
    %1006 = vmatpush1.bf16.msra.mxu0 %v900
    %1007 = vmatprep.subr.bf16.mxu0 %v905
    %1008 = vmatpush1.bf16.msra.mxu0 %v904
    %1009 = vmatprep.subr.bf16.mxu0 %v909
    %1010 = vmatpush1.bf16.msra.mxu0 %v908
    %1011 = vmatprep.subr.bf16.mxu0 %v913
    %1012 = vmatpush1.bf16.msra.mxu0 %v912
    %1013 = vmatprep.subr.bf16.mxu0 0
    %1014 = vmatpush1.bf16.msra.mxu0 0
    %1015 = vmatprep.subr.bf16.mxu0 0
    %1016 = vmatpush1.bf16.msra.mxu0 0
    %1017 = vmatprep.subr.bf16.mxu0 0
    %1018 = vmatpush1.bf16.msra.mxu0 0
    %1019 = vmatprep.subr.bf16.mxu0 0
    %1020 = vmatpush1.bf16.msra.mxu0 0
    %1021 = vmatprep.subr.bf16.mxu0 0
    %1022 = vmatpush1.bf16.msra.mxu0 0
    %1023 = vmatprep.subr.bf16.mxu0 0
    %1024 = vmatpush1.bf16.msra.mxu0 0
    %1025 = vmatprep.subr.bf16.mxu0 0
    %1026 = vmatpush1.bf16.msra.mxu0 0
    %1027 = vmatprep.subr.bf16.mxu0 0
    %1028 = vmatpush1.bf16.msra.mxu0 0
    %1029 = vmatprep.mubr.bf16.mxu0 0
    %1030 = vmatmul.mubr.bf16.gmra.mrb[0].mxu0 %v458
    %v1031 = vpop.f32.mrb[0].mxu0
    %v1032 = vadd.f32 %v770, %v1031
    %v1033 = vpop.f32.mrb[0].mxu0
    %v1034 = vadd.f32 %v772, %v1033
    %v1035 = vpop.f32.mrb[0].mxu0
    %v1036 = vadd.f32 %v774, %v1035
    %v1037 = vpop.f32.mrb[0].mxu0
    %v1038 = vadd.f32 %v776, %v1037
    %1039 = vmatprep.mubr.bf16.mxu0 0
    %1040 = vmatmul.mubr.bf16.gmra.mrb[0].mxu0 %v459
    %v1041 = vpop.f32.mrb[0].mxu0
    %v1042 = vadd.f32 %v780, %v1041
    %v1043 = vpop.f32.mrb[0].mxu0
    %v1044 = vadd.f32 %v782, %v1043
    %v1045 = vpop.f32.mrb[0].mxu0
    %v1046 = vpop.f32.mrb[0].mxu0
    %1047 = vdwg.mxu0
    %v1048 = vld [vmem:[%s13] sm:$0xf]
    %v1050 = vlaneseq
    %v1051 = vshrl.u32 %v1050, 7
    %v1052 = vsub.s32 0, %v1051
    %v1053 = vrot.slane %v1048, %v1052
    %v1054 = vlaneseq
    %v1055 = vshrl.u32 %v1054, 7
    %v1056 = vsub.s32 1, %v1055
    %v1057 = vrot.slane %v1048, %v1056
    %v1058 = vlaneseq
    %v1059 = vshrl.u32 %v1058, 7
    %v1060 = vsub.s32 2, %v1059
    %v1061 = vrot.slane %v1048, %v1060
    %v1062 = vlaneseq
    %v1063 = vshrl.u32 %v1062, 7
    %v1064 = vsub.s32 3, %v1063
    %v1065 = vrot.slane %v1048, %v1064
    %v1070 = vadd.f32 %v981, %v1053
    %v1071 = vadd.f32 %v983, %v1057
    %v1072 = vadd.f32 %v1032, %v1061
    %v1073 = vadd.f32 %v1034, %v1065
    %v1074 = vadd.f32 %v985, %v1053
    %v1075 = vadd.f32 %v987, %v1057
    %v1076 = vadd.f32 %v1036, %v1061
    %v1077 = vadd.f32 %v1038, %v1065
    %v1078 = vadd.f32 %v991, %v1053
    %v1079 = vadd.f32 %v993, %v1057
    %v1080 = vadd.f32 %v1042, %v1061
    %v1081 = vadd.f32 %v1044, %v1065
    %v1082 = vmax.f32 %v1070, 0.0
    %v1083 = vmax.f32 %v1071, 0.0
    %v1084 = vmax.f32 %v1072, 0.0
    %v1085 = vmax.f32 %v1073, 0.0
    %v1086 = vmax.f32 %v1074, 0.0
    %v1087 = vmax.f32 %v1075, 0.0
    %v1088 = vmax.f32 %v1076, 0.0
    %v1089 = vmax.f32 %v1077, 0.0
    %v1090 = vmax.f32 %v1078, 0.0
    %v1091 = vmax.f32 %v1079, 0.0
    %v1092 = vmax.f32 %v1080, 0.0
    %v1093 = vmax.f32 %v1081, 0.0
    %v1094 = vpack.c.bf16 %v1086, %v1082
    %v1095 = vpack.c.bf16 %v1087, %v1083
    %v1096 = vpack.c.bf16 %v1088, %v1084
    %v1097 = vpack.c.bf16 %v1089, %v1085
    %v1098 = vpack.c.bf16 %v1090, %v1090
    %v1099 = vpack.c.bf16 %v1091, %v1091
    %v1100 = vpack.c.bf16 %v1092, %v1092
    %v1101 = vpack.c.bf16 %v1093, %v1093
    %v1102 = vld [vmem:[#allocation13] sm:$0xff]
    %v1103 = vld [vmem:[#allocation13 + $0x8] sm:$0xff]
    %v1104 = vld [vmem:[#allocation13 + $0x10] sm:$0xff]
    %v1105 = vld [vmem:[#allocation13 + $0x18] sm:$0xff]
    %v1106 = vld [vmem:[#allocation13 + $0x20] sm:$0xff]
    %v1107 = vld [vmem:[#allocation13 + $0x28] sm:$0xff]
    %v1108 = vld [vmem:[#allocation13 + $0x30] sm:$0xff]
    %v1109 = vld [vmem:[#allocation13 + $0x38] sm:$0xff]
    %v1110 = vld [vmem:[#allocation13 + $0x40] sm:$0xff]
    %v1111 = vld [vmem:[#allocation13 + $0x48] sm:$0xff]
    %v1112 = vld [vmem:[#allocation13 + $0x50] sm:$0xff]
    %v1113 = vld [vmem:[#allocation13 + $0x58] sm:$0xff]
    %v1114 = vld [vmem:[#allocation13 + $0x60] sm:$0xff]
    %v1115 = vld [vmem:[#allocation13 + $0x68] sm:$0xff]
    %v1116 = vld [vmem:[#allocation13 + $0x70] sm:$0xff]
    %v1117 = vld [vmem:[#allocation13 + $0x78] sm:$0xff]
    %v1118 = vld [vmem:[#allocation13 + $0x80] sm:$0xff]
    %v1119 = vld [vmem:[#allocation13 + $0x88] sm:$0xff]
    %v1120 = vld [vmem:[#allocation13 + $0x90] sm:$0xff]
    %v1121 = vld [vmem:[#allocation13 + $0x98] sm:$0xff]
    %v1122 = vld [vmem:[#allocation13 + $0xa0] sm:$0xff]
    %v1123 = vld [vmem:[#allocation13 + $0xa8] sm:$0xff]
    %v1124 = vld [vmem:[#allocation13 + $0xb0] sm:$0xff]
    %v1125 = vld [vmem:[#allocation13 + $0xb8] sm:$0xff]
    %v1126 = vld [vmem:[#allocation13 + $0xc0] sm:$0xff]
    %v1127 = vld [vmem:[#allocation13 + $0xc8] sm:$0xff]
    %v1128 = vld [vmem:[#allocation13 + $0xd0] sm:$0xff]
    %v1129 = vld [vmem:[#allocation13 + $0xd8] sm:$0xff]
    %v1130 = vld [vmem:[#allocation13 + $0xe0] sm:$0xff]
    %v1131 = vld [vmem:[#allocation13 + $0xe8] sm:$0xff]
    %v1132 = vld [vmem:[#allocation13 + $0xf0] sm:$0xff]
    %v1133 = vld [vmem:[#allocation13 + $0xf8] sm:$0xff]
    %v1134 = vld [vmem:[#allocation13 + $0x100] sm:$0xff]
    %v1135 = vld [vmem:[#allocation13 + $0x108] sm:$0xff]
    %v1136 = vld [vmem:[#allocation13 + $0x110] sm:$0xff]
    %v1137 = vld [vmem:[#allocation13 + $0x118] sm:$0xff]
    %v1138 = vld [vmem:[#allocation13 + $0x120] sm:$0xff]
    %v1139 = vld [vmem:[#allocation13 + $0x128] sm:$0xff]
    %v1140 = vld [vmem:[#allocation13 + $0x130] sm:$0xff]
    %v1141 = vld [vmem:[#allocation13 + $0x138] sm:$0xff]
    %v1142 = vld [vmem:[#allocation13 + $0x140] sm:$0xff]
    %v1143 = vld [vmem:[#allocation13 + $0x148] sm:$0xff]
    %v1144 = vld [vmem:[#allocation13 + $0x150] sm:$0xff]
    %v1145 = vld [vmem:[#allocation13 + $0x158] sm:$0xff]
    %v1146 = vld [vmem:[#allocation13 + $0x160] sm:$0xff]
    %v1147 = vld [vmem:[#allocation13 + $0x168] sm:$0xff]
    %v1148 = vld [vmem:[#allocation13 + $0x170] sm:$0xff]
    %v1149 = vld [vmem:[#allocation13 + $0x178] sm:$0xff]
    %v1150 = vld [vmem:[#allocation13 + $0x180] sm:$0xff]
    %v1151 = vld [vmem:[#allocation13 + $0x188] sm:$0xff]
    %v1152 = vld [vmem:[#allocation13 + $0x190] sm:$0xff]
    %v1153 = vld [vmem:[#allocation13 + $0x198] sm:$0xff]
    %v1154 = vld [vmem:[#allocation13 + $0x1a0] sm:$0xff]
    %v1155 = vld [vmem:[#allocation13 + $0x1a8] sm:$0xff]
    %v1156 = vld [vmem:[#allocation13 + $0x1b0] sm:$0xff]
    %v1157 = vld [vmem:[#allocation13 + $0x1b8] sm:$0xff]
    %v1158 = vld [vmem:[#allocation13 + $0x1c0] sm:$0xff]
    %v1159 = vld [vmem:[#allocation13 + $0x1c8] sm:$0xff]
    %v1160 = vld [vmem:[#allocation13 + $0x1d0] sm:$0xff]
    %v1161 = vld [vmem:[#allocation13 + $0x1d8] sm:$0xff]
    %v1162 = vld [vmem:[#allocation13 + $0x1e0] sm:$0xff]
    %v1163 = vld [vmem:[#allocation13 + $0x1e8] sm:$0xff]
    %v1164 = vld [vmem:[#allocation13 + $0x1f0] sm:$0xff]
    %v1165 = vld [vmem:[#allocation13 + $0x1f8] sm:$0xff]
    %v1166 = vld [vmem:[#allocation13 + $0x200] sm:$0xff]
    %v1167 = vld [vmem:[#allocation13 + $0x208] sm:$0xff]
    %v1168 = vld [vmem:[#allocation13 + $0x210] sm:$0xff]
    %v1169 = vld [vmem:[#allocation13 + $0x218] sm:$0xff]
    %v1170 = vld [vmem:[#allocation13 + $0x220] sm:$0xff]
    %v1171 = vld [vmem:[#allocation13 + $0x228] sm:$0xff]
    %v1172 = vld [vmem:[#allocation13 + $0x230] sm:$0xff]
    %v1173 = vld [vmem:[#allocation13 + $0x238] sm:$0xff]
    %v1174 = vld [vmem:[#allocation13 + $0x240] sm:$0xff]
    %v1175 = vld [vmem:[#allocation13 + $0x248] sm:$0xff]
    %v1176 = vld [vmem:[#allocation13 + $0x250] sm:$0xff]
    %v1177 = vld [vmem:[#allocation13 + $0x258] sm:$0xff]
    %v1178 = vld [vmem:[#allocation13 + $0x260] sm:$0xff]
    %v1179 = vld [vmem:[#allocation13 + $0x268] sm:$0xff]
    %v1180 = vld [vmem:[#allocation13 + $0x270] sm:$0xff]
    %v1181 = vld [vmem:[#allocation13 + $0x278] sm:$0xff]
    %v1182 = vld [vmem:[#allocation13 + $0x280] sm:$0xff]
    %v1183 = vld [vmem:[#allocation13 + $0x288] sm:$0xff]
    %v1184 = vld [vmem:[#allocation13 + $0x290] sm:$0xff]
    %v1185 = vld [vmem:[#allocation13 + $0x298] sm:$0xff]
    %v1186 = vld [vmem:[#allocation13 + $0x2a0] sm:$0xff]
    %v1187 = vld [vmem:[#allocation13 + $0x2a8] sm:$0xff]
    %v1188 = vld [vmem:[#allocation13 + $0x2b0] sm:$0xff]
    %v1189 = vld [vmem:[#allocation13 + $0x2b8] sm:$0xff]
    %v1190 = vld [vmem:[#allocation13 + $0x2c0] sm:$0xff]
    %v1191 = vld [vmem:[#allocation13 + $0x2c8] sm:$0xff]
    %v1192 = vld [vmem:[#allocation13 + $0x2d0] sm:$0xff]
    %v1193 = vld [vmem:[#allocation13 + $0x2d8] sm:$0xff]
    %v1194 = vld [vmem:[#allocation13 + $0x2e0] sm:$0xff]
    %v1195 = vld [vmem:[#allocation13 + $0x2e8] sm:$0xff]
    %v1196 = vld [vmem:[#allocation13 + $0x2f0] sm:$0xff]
    %v1197 = vld [vmem:[#allocation13 + $0x2f8] sm:$0xff]
    %v1198 = vld [vmem:[#allocation13 + $0x300] sm:$0xff]
    %v1199 = vld [vmem:[#allocation13 + $0x308] sm:$0xff]
    %v1200 = vld [vmem:[#allocation13 + $0x310] sm:$0xff]
    %v1201 = vld [vmem:[#allocation13 + $0x318] sm:$0xff]
    %v1202 = vld [vmem:[#allocation13 + $0x320] sm:$0xff]
    %v1203 = vld [vmem:[#allocation13 + $0x328] sm:$0xff]
    %v1204 = vld [vmem:[#allocation13 + $0x330] sm:$0xff]
    %v1205 = vld [vmem:[#allocation13 + $0x338] sm:$0xff]
    %v1206 = vld [vmem:[#allocation13 + $0x340] sm:$0xff]
    %v1207 = vld [vmem:[#allocation13 + $0x348] sm:$0xff]
    %v1208 = vld [vmem:[#allocation13 + $0x350] sm:$0xff]
    %v1209 = vld [vmem:[#allocation13 + $0x358] sm:$0xff]
    %v1210 = vld [vmem:[#allocation13 + $0x360] sm:$0xff]
    %v1211 = vld [vmem:[#allocation13 + $0x368] sm:$0xff]
    %v1212 = vld [vmem:[#allocation13 + $0x370] sm:$0xff]
    %v1213 = vld [vmem:[#allocation13 + $0x378] sm:$0xff]
    %v1214 = vld [vmem:[#allocation13 + $0x380] sm:$0xff]
    %v1215 = vld [vmem:[#allocation13 + $0x388] sm:$0xff]
    %v1216 = vld [vmem:[#allocation13 + $0x390] sm:$0xff]
    %v1217 = vld [vmem:[#allocation13 + $0x398] sm:$0xff]
    %v1218 = vld [vmem:[#allocation13 + $0x3a0] sm:$0xff]
    %v1219 = vld [vmem:[#allocation13 + $0x3a8] sm:$0xff]
    %v1220 = vld [vmem:[#allocation13 + $0x3b0] sm:$0xff]
    %v1221 = vld [vmem:[#allocation13 + $0x3b8] sm:$0xff]
    %v1222 = vld [vmem:[#allocation13 + $0x3c0] sm:$0xff]
    %v1223 = vld [vmem:[#allocation13 + $0x3c8] sm:$0xff]
    %v1224 = vld [vmem:[#allocation13 + $0x3d0] sm:$0xff]
    %v1225 = vld [vmem:[#allocation13 + $0x3d8] sm:$0xff]
    %v1226 = vld [vmem:[#allocation13 + $0x3e0] sm:$0xff]
    %v1227 = vld [vmem:[#allocation13 + $0x3e8] sm:$0xff]
    %v1228 = vld [vmem:[#allocation13 + $0x3f0] sm:$0xff]
    %v1229 = vld [vmem:[#allocation13 + $0x3f8] sm:$0xff]
    %v1230 = vld [vmem:[%s17] sm:$0xf]
    %v1232 = vlaneseq
    %v1233 = vshrl.u32 %v1232, 7
    %v1234 = vsub.s32 0, %v1233
    %v1235 = vrot.slane %v1230, %v1234
    %v1236 = vlaneseq
    %v1237 = vshrl.u32 %v1236, 7
    %v1238 = vsub.s32 1, %v1237
    %v1239 = vrot.slane %v1230, %v1238
    %v1240 = vlaneseq
    %v1241 = vshrl.u32 %v1240, 7
    %v1242 = vsub.s32 2, %v1241
    %v1243 = vrot.slane %v1230, %v1242
    %v1244 = vlaneseq
    %v1245 = vshrl.u32 %v1244, 7
    %v1246 = vsub.s32 3, %v1245
    %v1247 = vrot.slane %v1230, %v1246
    %v1380 = vunpack.c.l.b16 %v1102
    %v1381 = vunpack.c.h.b16 %v1102
    %v1382 = vunpack.c.l.b16 %v1103
    %v1383 = vunpack.c.h.b16 %v1103
    %v1384 = vunpack.c.l.b16 %v1104
    %v1385 = vunpack.c.h.b16 %v1104
    %v1386 = vunpack.c.l.b16 %v1105
    %v1387 = vunpack.c.h.b16 %v1105
    %v1388 = vunpack.c.l.b16 %v1106
    %v1389 = vunpack.c.h.b16 %v1106
    %v1390 = vunpack.c.l.b16 %v1107
    %v1391 = vunpack.c.h.b16 %v1107
    %v1392 = vunpack.c.l.b16 %v1108
    %v1393 = vunpack.c.h.b16 %v1108
    %v1394 = vunpack.c.l.b16 %v1109
    %v1395 = vunpack.c.h.b16 %v1109
    %v1396 = vunpack.c.l.b16 %v1110
    %v1397 = vunpack.c.h.b16 %v1110
    %v1398 = vunpack.c.l.b16 %v1111
    %v1399 = vunpack.c.h.b16 %v1111
    %v1400 = vunpack.c.l.b16 %v1112
    %v1401 = vunpack.c.h.b16 %v1112
    %v1402 = vunpack.c.l.b16 %v1113
    %v1403 = vunpack.c.h.b16 %v1113
    %v1404 = vunpack.c.l.b16 %v1114
    %v1405 = vunpack.c.h.b16 %v1114
    %v1406 = vunpack.c.l.b16 %v1115
    %v1407 = vunpack.c.h.b16 %v1115
    %v1408 = vunpack.c.l.b16 %v1116
    %v1409 = vunpack.c.h.b16 %v1116
    %v1410 = vunpack.c.l.b16 %v1117
    %v1411 = vunpack.c.h.b16 %v1117
    %v1412 = vunpack.c.l.b16 %v1118
    %v1413 = vunpack.c.h.b16 %v1118
    %v1414 = vunpack.c.l.b16 %v1119
    %v1415 = vunpack.c.h.b16 %v1119
    %v1416 = vunpack.c.l.b16 %v1120
    %v1417 = vunpack.c.h.b16 %v1120
    %v1418 = vunpack.c.l.b16 %v1121
    %v1419 = vunpack.c.h.b16 %v1121
    %v1420 = vunpack.c.l.b16 %v1122
    %v1421 = vunpack.c.h.b16 %v1122
    %v1422 = vunpack.c.l.b16 %v1123
    %v1423 = vunpack.c.h.b16 %v1123
    %v1424 = vunpack.c.l.b16 %v1124
    %v1425 = vunpack.c.h.b16 %v1124
    %v1426 = vunpack.c.l.b16 %v1125
    %v1427 = vunpack.c.h.b16 %v1125
    %v1428 = vunpack.c.l.b16 %v1126
    %v1429 = vunpack.c.h.b16 %v1126
    %v1430 = vunpack.c.l.b16 %v1127
    %v1431 = vunpack.c.h.b16 %v1127
    %v1432 = vunpack.c.l.b16 %v1128
    %v1433 = vunpack.c.h.b16 %v1128
    %v1434 = vunpack.c.l.b16 %v1129
    %v1435 = vunpack.c.h.b16 %v1129
    %v1436 = vunpack.c.l.b16 %v1130
    %v1437 = vunpack.c.h.b16 %v1130
    %v1438 = vunpack.c.l.b16 %v1131
    %v1439 = vunpack.c.h.b16 %v1131
    %v1440 = vunpack.c.l.b16 %v1132
    %v1441 = vunpack.c.h.b16 %v1132
    %v1442 = vunpack.c.l.b16 %v1133
    %v1443 = vunpack.c.h.b16 %v1133
    %v1444 = vunpack.c.l.b16 %v1134
    %v1445 = vunpack.c.h.b16 %v1134
    %v1446 = vunpack.c.l.b16 %v1135
    %v1447 = vunpack.c.h.b16 %v1135
    %v1448 = vunpack.c.l.b16 %v1136
    %v1449 = vunpack.c.h.b16 %v1136
    %v1450 = vunpack.c.l.b16 %v1137
    %v1451 = vunpack.c.h.b16 %v1137
    %v1452 = vunpack.c.l.b16 %v1138
    %v1453 = vunpack.c.h.b16 %v1138
    %v1454 = vunpack.c.l.b16 %v1139
    %v1455 = vunpack.c.h.b16 %v1139
    %v1456 = vunpack.c.l.b16 %v1140
    %v1457 = vunpack.c.h.b16 %v1140
    %v1458 = vunpack.c.l.b16 %v1141
    %v1459 = vunpack.c.h.b16 %v1141
    %v1460 = vunpack.c.l.b16 %v1142
    %v1461 = vunpack.c.h.b16 %v1142
    %v1462 = vunpack.c.l.b16 %v1143
    %v1463 = vunpack.c.h.b16 %v1143
    %v1464 = vunpack.c.l.b16 %v1144
    %v1465 = vunpack.c.h.b16 %v1144
    %v1466 = vunpack.c.l.b16 %v1145
    %v1467 = vunpack.c.h.b16 %v1145
    %v1468 = vunpack.c.l.b16 %v1146
    %v1469 = vunpack.c.h.b16 %v1146
    %v1470 = vunpack.c.l.b16 %v1147
    %v1471 = vunpack.c.h.b16 %v1147
    %v1472 = vunpack.c.l.b16 %v1148
    %v1473 = vunpack.c.h.b16 %v1148
    %v1474 = vunpack.c.l.b16 %v1149
    %v1475 = vunpack.c.h.b16 %v1149
    %v1476 = vunpack.c.l.b16 %v1150
    %v1477 = vunpack.c.h.b16 %v1150
    %v1478 = vunpack.c.l.b16 %v1151
    %v1479 = vunpack.c.h.b16 %v1151
    %v1480 = vunpack.c.l.b16 %v1152
    %v1481 = vunpack.c.h.b16 %v1152
    %v1482 = vunpack.c.l.b16 %v1153
    %v1483 = vunpack.c.h.b16 %v1153
    %v1484 = vunpack.c.l.b16 %v1154
    %v1485 = vunpack.c.h.b16 %v1154
    %v1486 = vunpack.c.l.b16 %v1155
    %v1487 = vunpack.c.h.b16 %v1155
    %v1488 = vunpack.c.l.b16 %v1156
    %v1489 = vunpack.c.h.b16 %v1156
    %v1490 = vunpack.c.l.b16 %v1157
    %v1491 = vunpack.c.h.b16 %v1157
    %v1492 = vunpack.c.l.b16 %v1158
    %v1493 = vunpack.c.h.b16 %v1158
    %v1494 = vunpack.c.l.b16 %v1159
    %v1495 = vunpack.c.h.b16 %v1159
    %v1496 = vunpack.c.l.b16 %v1160
    %v1497 = vunpack.c.h.b16 %v1160
    %v1498 = vunpack.c.l.b16 %v1161
    %v1499 = vunpack.c.h.b16 %v1161
    %v1500 = vunpack.c.l.b16 %v1162
    %v1501 = vunpack.c.h.b16 %v1162
    %v1502 = vunpack.c.l.b16 %v1163
    %v1503 = vunpack.c.h.b16 %v1163
    %v1504 = vunpack.c.l.b16 %v1164
    %v1505 = vunpack.c.h.b16 %v1164
    %v1506 = vunpack.c.l.b16 %v1165
    %v1507 = vunpack.c.h.b16 %v1165
    %v1508 = vunpack.c.l.b16 %v1166
    %v1509 = vunpack.c.h.b16 %v1166
    %v1510 = vunpack.c.l.b16 %v1167
    %v1511 = vunpack.c.h.b16 %v1167
    %v1512 = vunpack.c.l.b16 %v1168
    %v1513 = vunpack.c.h.b16 %v1168
    %v1514 = vunpack.c.l.b16 %v1169
    %v1515 = vunpack.c.h.b16 %v1169
    %v1516 = vunpack.c.l.b16 %v1170
    %v1517 = vunpack.c.h.b16 %v1170
    %v1518 = vunpack.c.l.b16 %v1171
    %v1519 = vunpack.c.h.b16 %v1171
    %v1520 = vunpack.c.l.b16 %v1172
    %v1521 = vunpack.c.h.b16 %v1172
    %v1522 = vunpack.c.l.b16 %v1173
    %v1523 = vunpack.c.h.b16 %v1173
    %v1524 = vunpack.c.l.b16 %v1174
    %v1525 = vunpack.c.h.b16 %v1174
    %v1526 = vunpack.c.l.b16 %v1175
    %v1527 = vunpack.c.h.b16 %v1175
    %v1528 = vunpack.c.l.b16 %v1176
    %v1529 = vunpack.c.h.b16 %v1176
    %v1530 = vunpack.c.l.b16 %v1177
    %v1531 = vunpack.c.h.b16 %v1177
    %v1532 = vunpack.c.l.b16 %v1178
    %v1533 = vunpack.c.h.b16 %v1178
    %v1534 = vunpack.c.l.b16 %v1179
    %v1535 = vunpack.c.h.b16 %v1179
    %v1536 = vunpack.c.l.b16 %v1180
    %v1537 = vunpack.c.h.b16 %v1180
    %v1538 = vunpack.c.l.b16 %v1181
    %v1539 = vunpack.c.h.b16 %v1181
    %v1540 = vunpack.c.l.b16 %v1182
    %v1541 = vunpack.c.h.b16 %v1182
    %v1542 = vunpack.c.l.b16 %v1183
    %v1543 = vunpack.c.h.b16 %v1183
    %v1544 = vunpack.c.l.b16 %v1184
    %v1545 = vunpack.c.h.b16 %v1184
    %v1546 = vunpack.c.l.b16 %v1185
    %v1547 = vunpack.c.h.b16 %v1185
    %v1548 = vunpack.c.l.b16 %v1186
    %v1549 = vunpack.c.h.b16 %v1186
    %v1550 = vunpack.c.l.b16 %v1187
    %v1551 = vunpack.c.h.b16 %v1187
    %v1552 = vunpack.c.l.b16 %v1188
    %v1553 = vunpack.c.h.b16 %v1188
    %v1554 = vunpack.c.l.b16 %v1189
    %v1555 = vunpack.c.h.b16 %v1189
    %v1556 = vunpack.c.l.b16 %v1190
    %v1557 = vunpack.c.h.b16 %v1190
    %v1558 = vunpack.c.l.b16 %v1191
    %v1559 = vunpack.c.h.b16 %v1191
    %v1560 = vunpack.c.l.b16 %v1192
    %v1561 = vunpack.c.h.b16 %v1192
    %v1562 = vunpack.c.l.b16 %v1193
    %v1563 = vunpack.c.h.b16 %v1193
    %v1564 = vunpack.c.l.b16 %v1194
    %v1565 = vunpack.c.h.b16 %v1194
    %v1566 = vunpack.c.l.b16 %v1195
    %v1567 = vunpack.c.h.b16 %v1195
    %v1568 = vunpack.c.l.b16 %v1196
    %v1569 = vunpack.c.h.b16 %v1196
    %v1570 = vunpack.c.l.b16 %v1197
    %v1571 = vunpack.c.h.b16 %v1197
    %v1572 = vunpack.c.l.b16 %v1198
    %v1573 = vunpack.c.h.b16 %v1198
    %v1574 = vunpack.c.l.b16 %v1199
    %v1575 = vunpack.c.h.b16 %v1199
    %v1576 = vunpack.c.l.b16 %v1200
    %v1577 = vunpack.c.h.b16 %v1200
    %v1578 = vunpack.c.l.b16 %v1201
    %v1579 = vunpack.c.h.b16 %v1201
    %v1580 = vunpack.c.l.b16 %v1202
    %v1581 = vunpack.c.h.b16 %v1202
    %v1582 = vunpack.c.l.b16 %v1203
    %v1583 = vunpack.c.h.b16 %v1203
    %v1584 = vunpack.c.l.b16 %v1204
    %v1585 = vunpack.c.h.b16 %v1204
    %v1586 = vunpack.c.l.b16 %v1205
    %v1587 = vunpack.c.h.b16 %v1205
    %v1588 = vunpack.c.l.b16 %v1206
    %v1589 = vunpack.c.h.b16 %v1206
    %v1590 = vunpack.c.l.b16 %v1207
    %v1591 = vunpack.c.h.b16 %v1207
    %v1592 = vunpack.c.l.b16 %v1208
    %v1593 = vunpack.c.h.b16 %v1208
    %v1594 = vunpack.c.l.b16 %v1209
    %v1595 = vunpack.c.h.b16 %v1209
    %v1596 = vunpack.c.l.b16 %v1210
    %v1597 = vunpack.c.h.b16 %v1210
    %v1598 = vunpack.c.l.b16 %v1211
    %v1599 = vunpack.c.h.b16 %v1211
    %v1600 = vunpack.c.l.b16 %v1212
    %v1601 = vunpack.c.h.b16 %v1212
    %v1602 = vunpack.c.l.b16 %v1213
    %v1603 = vunpack.c.h.b16 %v1213
    %v1604 = vunpack.c.l.b16 %v1214
    %v1605 = vunpack.c.h.b16 %v1214
    %v1606 = vunpack.c.l.b16 %v1215
    %v1607 = vunpack.c.h.b16 %v1215
    %v1608 = vunpack.c.l.b16 %v1216
    %v1609 = vunpack.c.h.b16 %v1216
    %v1610 = vunpack.c.l.b16 %v1217
    %v1611 = vunpack.c.h.b16 %v1217
    %v1612 = vunpack.c.l.b16 %v1218
    %v1613 = vunpack.c.h.b16 %v1218
    %v1614 = vunpack.c.l.b16 %v1219
    %v1615 = vunpack.c.h.b16 %v1219
    %v1616 = vunpack.c.l.b16 %v1220
    %v1617 = vunpack.c.h.b16 %v1220
    %v1618 = vunpack.c.l.b16 %v1221
    %v1619 = vunpack.c.h.b16 %v1221
    %v1620 = vunpack.c.l.b16 %v1222
    %v1621 = vunpack.c.h.b16 %v1222
    %v1622 = vunpack.c.l.b16 %v1223
    %v1623 = vunpack.c.h.b16 %v1223
    %v1624 = vunpack.c.l.b16 %v1224
    %v1625 = vunpack.c.h.b16 %v1224
    %v1626 = vunpack.c.l.b16 %v1225
    %v1627 = vunpack.c.h.b16 %v1225
    %v1628 = vunpack.c.l.b16 %v1226
    %v1629 = vunpack.c.h.b16 %v1226
    %v1630 = vunpack.c.l.b16 %v1227
    %v1631 = vunpack.c.h.b16 %v1227
    %v1632 = vunpack.c.l.b16 %v1228
    %v1633 = vunpack.c.h.b16 %v1228
    %v1634 = vunpack.c.l.b16 %v1229
    %v1635 = vunpack.c.h.b16 %v1229
    %v1636 = vpack.c.b16 %v1384, %v1380
    %v1637 = vpack.c.b16 %v1385, %v1381
    %v1638 = vpack.c.b16 %v1386, %v1382
    %v1639 = vpack.c.b16 %v1387, %v1383
    %v1640 = vpack.c.b16 %v1392, %v1388
    %v1641 = vpack.c.b16 %v1393, %v1389
    %v1642 = vpack.c.b16 %v1394, %v1390
    %v1643 = vpack.c.b16 %v1395, %v1391
    %v1644 = vpack.c.b16 %v1400, %v1396
    %v1645 = vpack.c.b16 %v1401, %v1397
    %v1646 = vpack.c.b16 %v1402, %v1398
    %v1647 = vpack.c.b16 %v1403, %v1399
    %v1648 = vpack.c.b16 %v1408, %v1404
    %v1649 = vpack.c.b16 %v1409, %v1405
    %v1650 = vpack.c.b16 %v1410, %v1406
    %v1651 = vpack.c.b16 %v1411, %v1407
    %v1652 = vpack.c.b16 %v1416, %v1412
    %v1653 = vpack.c.b16 %v1417, %v1413
    %v1654 = vpack.c.b16 %v1418, %v1414
    %v1655 = vpack.c.b16 %v1419, %v1415
    %v1656 = vpack.c.b16 %v1424, %v1420
    %v1657 = vpack.c.b16 %v1425, %v1421
    %v1658 = vpack.c.b16 %v1426, %v1422
    %v1659 = vpack.c.b16 %v1427, %v1423
    %v1660 = vpack.c.b16 %v1432, %v1428
    %v1661 = vpack.c.b16 %v1433, %v1429
    %v1662 = vpack.c.b16 %v1434, %v1430
    %v1663 = vpack.c.b16 %v1435, %v1431
    %v1664 = vpack.c.b16 %v1440, %v1436
    %v1665 = vpack.c.b16 %v1441, %v1437
    %v1666 = vpack.c.b16 %v1442, %v1438
    %v1667 = vpack.c.b16 %v1443, %v1439
    %v1668 = vpack.c.b16 %v1448, %v1444
    %v1669 = vpack.c.b16 %v1449, %v1445
    %v1670 = vpack.c.b16 %v1450, %v1446
    %v1671 = vpack.c.b16 %v1451, %v1447
    %v1672 = vpack.c.b16 %v1456, %v1452
    %v1673 = vpack.c.b16 %v1457, %v1453
    %v1674 = vpack.c.b16 %v1458, %v1454
    %v1675 = vpack.c.b16 %v1459, %v1455
    %v1676 = vpack.c.b16 %v1464, %v1460
    %v1677 = vpack.c.b16 %v1465, %v1461
    %v1678 = vpack.c.b16 %v1466, %v1462
    %v1679 = vpack.c.b16 %v1467, %v1463
    %v1680 = vpack.c.b16 %v1472, %v1468
    %v1681 = vpack.c.b16 %v1473, %v1469
    %v1682 = vpack.c.b16 %v1474, %v1470
    %v1683 = vpack.c.b16 %v1475, %v1471
    %v1684 = vpack.c.b16 %v1480, %v1476
    %v1685 = vpack.c.b16 %v1481, %v1477
    %v1686 = vpack.c.b16 %v1482, %v1478
    %v1687 = vpack.c.b16 %v1483, %v1479
    %v1688 = vpack.c.b16 %v1488, %v1484
    %v1689 = vpack.c.b16 %v1489, %v1485
    %v1690 = vpack.c.b16 %v1490, %v1486
    %v1691 = vpack.c.b16 %v1491, %v1487
    %v1692 = vpack.c.b16 %v1496, %v1492
    %v1693 = vpack.c.b16 %v1497, %v1493
    %v1694 = vpack.c.b16 %v1498, %v1494
    %v1695 = vpack.c.b16 %v1499, %v1495
    %v1696 = vpack.c.b16 %v1504, %v1500
    %v1697 = vpack.c.b16 %v1505, %v1501
    %v1698 = vpack.c.b16 %v1506, %v1502
    %v1699 = vpack.c.b16 %v1507, %v1503
    %v1700 = vpack.c.b16 %v1512, %v1508
    %v1701 = vpack.c.b16 %v1513, %v1509
    %v1702 = vpack.c.b16 %v1514, %v1510
    %v1703 = vpack.c.b16 %v1515, %v1511
    %v1704 = vpack.c.b16 %v1520, %v1516
    %v1705 = vpack.c.b16 %v1521, %v1517
    %v1706 = vpack.c.b16 %v1522, %v1518
    %v1707 = vpack.c.b16 %v1523, %v1519
    %v1708 = vpack.c.b16 %v1528, %v1524
    %v1709 = vpack.c.b16 %v1529, %v1525
    %v1710 = vpack.c.b16 %v1530, %v1526
    %v1711 = vpack.c.b16 %v1531, %v1527
    %v1712 = vpack.c.b16 %v1536, %v1532
    %v1713 = vpack.c.b16 %v1537, %v1533
    %v1714 = vpack.c.b16 %v1538, %v1534
    %v1715 = vpack.c.b16 %v1539, %v1535
    %v1716 = vpack.c.b16 %v1544, %v1540
    %v1717 = vpack.c.b16 %v1545, %v1541
    %v1718 = vpack.c.b16 %v1546, %v1542
    %v1719 = vpack.c.b16 %v1547, %v1543
    %v1720 = vpack.c.b16 %v1552, %v1548
    %v1721 = vpack.c.b16 %v1553, %v1549
    %v1722 = vpack.c.b16 %v1554, %v1550
    %v1723 = vpack.c.b16 %v1555, %v1551
    %v1724 = vpack.c.b16 %v1560, %v1556
    %v1725 = vpack.c.b16 %v1561, %v1557
    %v1726 = vpack.c.b16 %v1562, %v1558
    %v1727 = vpack.c.b16 %v1563, %v1559
    %v1728 = vpack.c.b16 %v1568, %v1564
    %v1729 = vpack.c.b16 %v1569, %v1565
    %v1730 = vpack.c.b16 %v1570, %v1566
    %v1731 = vpack.c.b16 %v1571, %v1567
    %v1732 = vpack.c.b16 %v1576, %v1572
    %v1733 = vpack.c.b16 %v1577, %v1573
    %v1734 = vpack.c.b16 %v1578, %v1574
    %v1735 = vpack.c.b16 %v1579, %v1575
    %v1736 = vpack.c.b16 %v1584, %v1580
    %v1737 = vpack.c.b16 %v1585, %v1581
    %v1738 = vpack.c.b16 %v1586, %v1582
    %v1739 = vpack.c.b16 %v1587, %v1583
    %v1740 = vpack.c.b16 %v1592, %v1588
    %v1741 = vpack.c.b16 %v1593, %v1589
    %v1742 = vpack.c.b16 %v1594, %v1590
    %v1743 = vpack.c.b16 %v1595, %v1591
    %v1744 = vpack.c.b16 %v1600, %v1596
    %v1745 = vpack.c.b16 %v1601, %v1597
    %v1746 = vpack.c.b16 %v1602, %v1598
    %v1747 = vpack.c.b16 %v1603, %v1599
    %v1748 = vpack.c.b16 %v1608, %v1604
    %v1749 = vpack.c.b16 %v1609, %v1605
    %v1750 = vpack.c.b16 %v1610, %v1606
    %v1751 = vpack.c.b16 %v1611, %v1607
    %v1752 = vpack.c.b16 %v1616, %v1612
    %v1753 = vpack.c.b16 %v1617, %v1613
    %v1754 = vpack.c.b16 %v1618, %v1614
    %v1755 = vpack.c.b16 %v1619, %v1615
    %v1756 = vpack.c.b16 %v1624, %v1620
    %v1757 = vpack.c.b16 %v1625, %v1621
    %v1758 = vpack.c.b16 %v1626, %v1622
    %v1759 = vpack.c.b16 %v1627, %v1623
    %v1760 = vpack.c.b16 %v1632, %v1628
    %v1761 = vpack.c.b16 %v1633, %v1629
    %v1762 = vpack.c.b16 %v1634, %v1630
    %v1763 = vpack.c.b16 %v1635, %v1631
    %1892 = vmatprep.subr.bf16.mxu0 %v1637
    %1893 = vmatpush1.bf16.msra.mxu0 %v1636
    %1894 = vmatprep.subr.bf16.mxu0 %v1641
    %1895 = vmatpush1.bf16.msra.mxu0 %v1640
    %1896 = vmatprep.subr.bf16.mxu0 %v1645
    %1897 = vmatpush1.bf16.msra.mxu0 %v1644
    %1898 = vmatprep.subr.bf16.mxu0 %v1649
    %1899 = vmatpush1.bf16.msra.mxu0 %v1648
    %1900 = vmatprep.subr.bf16.mxu0 %v1653
    %1901 = vmatpush1.bf16.msra.mxu0 %v1652
    %1902 = vmatprep.subr.bf16.mxu0 %v1657
    %1903 = vmatpush1.bf16.msra.mxu0 %v1656
    %1904 = vmatprep.subr.bf16.mxu0 %v1661
    %1905 = vmatpush1.bf16.msra.mxu0 %v1660
    %1906 = vmatprep.subr.bf16.mxu0 %v1665
    %1907 = vmatpush1.bf16.msra.mxu0 %v1664
    %1908 = vmatprep.subr.bf16.mxu0 %v1669
    %1909 = vmatpush1.bf16.msra.mxu0 %v1668
    %1910 = vmatprep.subr.bf16.mxu0 %v1673
    %1911 = vmatpush1.bf16.msra.mxu0 %v1672
    %1912 = vmatprep.subr.bf16.mxu0 %v1677
    %1913 = vmatpush1.bf16.msra.mxu0 %v1676
    %1914 = vmatprep.subr.bf16.mxu0 %v1681
    %1915 = vmatpush1.bf16.msra.mxu0 %v1680
    %1916 = vmatprep.subr.bf16.mxu0 %v1685
    %1917 = vmatpush1.bf16.msra.mxu0 %v1684
    %1918 = vmatprep.subr.bf16.mxu0 %v1689
    %1919 = vmatpush1.bf16.msra.mxu0 %v1688
    %1920 = vmatprep.subr.bf16.mxu0 %v1693
    %1921 = vmatpush1.bf16.msra.mxu0 %v1692
    %1922 = vmatprep.subr.bf16.mxu0 %v1697
    %1923 = vmatpush1.bf16.msra.mxu0 %v1696
    %1924 = vmatprep.mubr.bf16.mxu0 %v1095
    %1925 = vmatmul.mubr.bf16.gmra.mrb[0].mxu0 %v1094
    %v1926 = vpop.f32.mrb[0].mxu0
    %v1927 = vadd.f32 %v1235, %v1926
    %v1928 = vpop.f32.mrb[0].mxu0
    %v1929 = vadd.f32 %v1239, %v1928
    %v1930 = vpop.f32.mrb[0].mxu0
    %v1931 = vadd.f32 %v1235, %v1930
    %v1932 = vpop.f32.mrb[0].mxu0
    %v1933 = vadd.f32 %v1239, %v1932
    %1934 = vmatprep.mubr.bf16.mxu0 %v1099
    %1935 = vmatmul.mubr.bf16.gmra.mrb[0].mxu0 %v1098
    %v1936 = vpop.f32.mrb[0].mxu0
    %v1937 = vadd.f32 %v1235, %v1936
    %v1938 = vpop.f32.mrb[0].mxu0
    %v1939 = vadd.f32 %v1239, %v1938
    %v1940 = vpop.f32.mrb[0].mxu0
    %v1941 = vpop.f32.mrb[0].mxu0
    %1942 = vdwg.mxu0
    %1943 = vmatprep.subr.bf16.mxu0 %v1701
    %1944 = vmatpush1.bf16.msra.mxu0 %v1700
    %1945 = vmatprep.subr.bf16.mxu0 %v1705
    %1946 = vmatpush1.bf16.msra.mxu0 %v1704
    %1947 = vmatprep.subr.bf16.mxu0 %v1709
    %1948 = vmatpush1.bf16.msra.mxu0 %v1708
    %1949 = vmatprep.subr.bf16.mxu0 %v1713
    %1950 = vmatpush1.bf16.msra.mxu0 %v1712
    %1951 = vmatprep.subr.bf16.mxu0 %v1717
    %1952 = vmatpush1.bf16.msra.mxu0 %v1716
    %1953 = vmatprep.subr.bf16.mxu0 %v1721
    %1954 = vmatpush1.bf16.msra.mxu0 %v1720
    %1955 = vmatprep.subr.bf16.mxu0 %v1725
    %1956 = vmatpush1.bf16.msra.mxu0 %v1724
    %1957 = vmatprep.subr.bf16.mxu0 %v1729
    %1958 = vmatpush1.bf16.msra.mxu0 %v1728
    %1959 = vmatprep.subr.bf16.mxu0 %v1733
    %1960 = vmatpush1.bf16.msra.mxu0 %v1732
    %1961 = vmatprep.subr.bf16.mxu0 %v1737
    %1962 = vmatpush1.bf16.msra.mxu0 %v1736
    %1963 = vmatprep.subr.bf16.mxu0 %v1741
    %1964 = vmatpush1.bf16.msra.mxu0 %v1740
    %1965 = vmatprep.subr.bf16.mxu0 %v1745
    %1966 = vmatpush1.bf16.msra.mxu0 %v1744
    %1967 = vmatprep.subr.bf16.mxu0 %v1749
    %1968 = vmatpush1.bf16.msra.mxu0 %v1748
    %1969 = vmatprep.subr.bf16.mxu0 %v1753
    %1970 = vmatpush1.bf16.msra.mxu0 %v1752
    %1971 = vmatprep.subr.bf16.mxu0 %v1757
    %1972 = vmatpush1.bf16.msra.mxu0 %v1756
    %1973 = vmatprep.subr.bf16.mxu0 %v1761
    %1974 = vmatpush1.bf16.msra.mxu0 %v1760
    %1975 = vmatprep.mubr.bf16.mxu0 %v1097
    %1976 = vmatmul.mubr.bf16.gmra.mrb[0].mxu0 %v1096
    %v1977 = vpop.f32.mrb[0].mxu0
    %v1978 = vadd.f32 %v1927, %v1977
    %v1979 = vpop.f32.mrb[0].mxu0
    %v1980 = vadd.f32 %v1929, %v1979
    %v1981 = vpop.f32.mrb[0].mxu0
    %v1982 = vadd.f32 %v1931, %v1981
    %v1983 = vpop.f32.mrb[0].mxu0
    %v1984 = vadd.f32 %v1933, %v1983
    %1985 = vmatprep.mubr.bf16.mxu0 %v1101
    %1986 = vmatmul.mubr.bf16.gmra.mrb[0].mxu0 %v1100
    %v1987 = vpop.f32.mrb[0].mxu0
    %v1988 = vadd.f32 %v1937, %v1987
    %v1989 = vpop.f32.mrb[0].mxu0
    %v1990 = vadd.f32 %v1939, %v1989
    %v1991 = vpop.f32.mrb[0].mxu0
    %v1992 = vpop.f32.mrb[0].mxu0
    %1993 = vdwg.mxu0
    %1994 = vmatprep.subr.bf16.mxu0 %v1639
    %1995 = vmatpush1.bf16.msra.mxu0 %v1638
    %1996 = vmatprep.subr.bf16.mxu0 %v1643
    %1997 = vmatpush1.bf16.msra.mxu0 %v1642
    %1998 = vmatprep.subr.bf16.mxu0 %v1647
    %1999 = vmatpush1.bf16.msra.mxu0 %v1646
    %2000 = vmatprep.subr.bf16.mxu0 %v1651
    %2001 = vmatpush1.bf16.msra.mxu0 %v1650
    %2002 = vmatprep.subr.bf16.mxu0 %v1655
    %2003 = vmatpush1.bf16.msra.mxu0 %v1654
    %2004 = vmatprep.subr.bf16.mxu0 %v1659
    %2005 = vmatpush1.bf16.msra.mxu0 %v1658
    %2006 = vmatprep.subr.bf16.mxu0 %v1663
    %2007 = vmatpush1.bf16.msra.mxu0 %v1662
    %2008 = vmatprep.subr.bf16.mxu0 %v1667
    %2009 = vmatpush1.bf16.msra.mxu0 %v1666
    %2010 = vmatprep.subr.bf16.mxu0 %v1671
    %2011 = vmatpush1.bf16.msra.mxu0 %v1670
    %2012 = vmatprep.subr.bf16.mxu0 %v1675
    %2013 = vmatpush1.bf16.msra.mxu0 %v1674
    %2014 = vmatprep.subr.bf16.mxu0 %v1679
    %2015 = vmatpush1.bf16.msra.mxu0 %v1678
    %2016 = vmatprep.subr.bf16.mxu0 %v1683
    %2017 = vmatpush1.bf16.msra.mxu0 %v1682
    %2018 = vmatprep.subr.bf16.mxu0 %v1687
    %2019 = vmatpush1.bf16.msra.mxu0 %v1686
    %2020 = vmatprep.subr.bf16.mxu0 %v1691
    %2021 = vmatpush1.bf16.msra.mxu0 %v1690
    %2022 = vmatprep.subr.bf16.mxu0 %v1695
    %2023 = vmatpush1.bf16.msra.mxu0 %v1694
    %2024 = vmatprep.subr.bf16.mxu0 %v1699
    %2025 = vmatpush1.bf16.msra.mxu0 %v1698
    %2026 = vmatprep.mubr.bf16.mxu0 %v1095
    %2027 = vmatmul.mubr.bf16.gmra.mrb[0].mxu0 %v1094
    %v2028 = vpop.f32.mrb[0].mxu0
    %v2029 = vadd.f32 %v1243, %v2028
    %v2030 = vpop.f32.mrb[0].mxu0
    %v2031 = vadd.f32 %v1247, %v2030
    %v2032 = vpop.f32.mrb[0].mxu0
    %v2033 = vadd.f32 %v1243, %v2032
    %v2034 = vpop.f32.mrb[0].mxu0
    %v2035 = vadd.f32 %v1247, %v2034
    %2036 = vmatprep.mubr.bf16.mxu0 %v1099
    %2037 = vmatmul.mubr.bf16.gmra.mrb[0].mxu0 %v1098
    %v2038 = vpop.f32.mrb[0].mxu0
    %v2039 = vadd.f32 %v1243, %v2038
    %v2040 = vpop.f32.mrb[0].mxu0
    %v2041 = vadd.f32 %v1247, %v2040
    %v2042 = vpop.f32.mrb[0].mxu0
    %v2043 = vpop.f32.mrb[0].mxu0
    %2044 = vdwg.mxu0
    %2045 = vmatprep.subr.bf16.mxu0 %v1703
    %2046 = vmatpush1.bf16.msra.mxu0 %v1702
    %2047 = vmatprep.subr.bf16.mxu0 %v1707
    %2048 = vmatpush1.bf16.msra.mxu0 %v1706
    %2049 = vmatprep.subr.bf16.mxu0 %v1711
    %2050 = vmatpush1.bf16.msra.mxu0 %v1710
    %2051 = vmatprep.subr.bf16.mxu0 %v1715
    %2052 = vmatpush1.bf16.msra.mxu0 %v1714
    %2053 = vmatprep.subr.bf16.mxu0 %v1719
    %2054 = vmatpush1.bf16.msra.mxu0 %v1718
    %2055 = vmatprep.subr.bf16.mxu0 %v1723
    %2056 = vmatpush1.bf16.msra.mxu0 %v1722
    %2057 = vmatprep.subr.bf16.mxu0 %v1727
    %2058 = vmatpush1.bf16.msra.mxu0 %v1726
    %2059 = vmatprep.subr.bf16.mxu0 %v1731
    %2060 = vmatpush1.bf16.msra.mxu0 %v1730
    %2061 = vmatprep.subr.bf16.mxu0 %v1735
    %2062 = vmatpush1.bf16.msra.mxu0 %v1734
    %2063 = vmatprep.subr.bf16.mxu0 %v1739
    %2064 = vmatpush1.bf16.msra.mxu0 %v1738
    %2065 = vmatprep.subr.bf16.mxu0 %v1743
    %2066 = vmatpush1.bf16.msra.mxu0 %v1742
    %2067 = vmatprep.subr.bf16.mxu0 %v1747
    %2068 = vmatpush1.bf16.msra.mxu0 %v1746
    %2069 = vmatprep.subr.bf16.mxu0 %v1751
    %2070 = vmatpush1.bf16.msra.mxu0 %v1750
    %2071 = vmatprep.subr.bf16.mxu0 %v1755
    %2072 = vmatpush1.bf16.msra.mxu0 %v1754
    %2073 = vmatprep.subr.bf16.mxu0 %v1759
    %2074 = vmatpush1.bf16.msra.mxu0 %v1758
    %2075 = vmatprep.subr.bf16.mxu0 %v1763
    %2076 = vmatpush1.bf16.msra.mxu0 %v1762
    %2077 = vmatprep.mubr.bf16.mxu0 %v1097
    %2078 = vmatmul.mubr.bf16.gmra.mrb[0].mxu0 %v1096
    %v2079 = vpop.f32.mrb[0].mxu0
    %v2080 = vadd.f32 %v2029, %v2079
    %v2081 = vpop.f32.mrb[0].mxu0
    %v2082 = vadd.f32 %v2031, %v2081
    %v2083 = vpop.f32.mrb[0].mxu0
    %v2084 = vadd.f32 %v2033, %v2083
    %v2085 = vpop.f32.mrb[0].mxu0
    %v2086 = vadd.f32 %v2035, %v2085
    %2087 = vmatprep.mubr.bf16.mxu0 %v1101
    %2088 = vmatmul.mubr.bf16.gmra.mrb[0].mxu0 %v1100
    %v2089 = vpop.f32.mrb[0].mxu0
    %v2090 = vadd.f32 %v2039, %v2089
    %v2091 = vpop.f32.mrb[0].mxu0
    %v2092 = vadd.f32 %v2041, %v2091
    %v2093 = vpop.f32.mrb[0].mxu0
    %v2094 = vpop.f32.mrb[0].mxu0
    %2095 = vdwg.mxu0
    %v2096 = vmax.f32 %v1978, 0.0
    %v2097 = vmax.f32 %v1980, 0.0
    %v2098 = vmax.f32 %v2080, 0.0
    %v2099 = vmax.f32 %v2082, 0.0
    %v2100 = vmax.f32 %v1982, 0.0
    %v2101 = vmax.f32 %v1984, 0.0
    %v2102 = vmax.f32 %v2084, 0.0
    %v2103 = vmax.f32 %v2086, 0.0
    %v2104 = vmax.f32 %v1988, 0.0
    %v2105 = vmax.f32 %v1990, 0.0
    %v2106 = vmax.f32 %v2090, 0.0
    %v2107 = vmax.f32 %v2092, 0.0
    %v2108 = vpack.c.bf16 %v2100, %v2096
    %v2109 = vpack.c.bf16 %v2101, %v2097
    %v2110 = vpack.c.bf16 %v2102, %v2098
    %v2111 = vpack.c.bf16 %v2103, %v2099
    %v2112 = vpack.c.bf16 %v2104, %v2104
    %v2113 = vpack.c.bf16 %v2105, %v2105
    %v2114 = vpack.c.bf16 %v2106, %v2106
    %v2115 = vpack.c.bf16 %v2107, %v2107
    %v2116 = vld [vmem:[#allocation14] sm:$0xf]
    %v2117 = vld [vmem:[#allocation14 + $0x4] sm:$0xf]
    %v2118 = vld [vmem:[#allocation14 + $0x8] sm:$0xf]
    %v2119 = vld [vmem:[#allocation14 + $0xc] sm:$0xf]
    %v2120 = vld [vmem:[#allocation14 + $0x10] sm:$0xf]
    %v2121 = vld [vmem:[#allocation14 + $0x14] sm:$0xf]
    %v2122 = vld [vmem:[#allocation14 + $0x18] sm:$0xf]
    %v2123 = vld [vmem:[#allocation14 + $0x1c] sm:$0xf]
    %v2124 = vld [vmem:[#allocation14 + $0x20] sm:$0xf]
    %v2125 = vld [vmem:[#allocation14 + $0x24] sm:$0xf]
    %v2126 = vld [vmem:[#allocation14 + $0x28] sm:$0xf]
    %v2127 = vld [vmem:[#allocation14 + $0x2c] sm:$0xf]
    %v2128 = vld [vmem:[#allocation14 + $0x30] sm:$0xf]
    %v2129 = vld [vmem:[#allocation14 + $0x34] sm:$0xf]
    %v2130 = vld [vmem:[#allocation14 + $0x38] sm:$0xf]
    %v2131 = vld [vmem:[#allocation14 + $0x3c] sm:$0xf]
    %v2132 = vld [vmem:[#allocation14 + $0x40] sm:$0xf]
    %v2133 = vld [vmem:[#allocation14 + $0x44] sm:$0xf]
    %v2134 = vld [vmem:[#allocation14 + $0x48] sm:$0xf]
    %v2135 = vld [vmem:[#allocation14 + $0x4c] sm:$0xf]
    %v2136 = vld [vmem:[#allocation14 + $0x50] sm:$0xf]
    %v2137 = vld [vmem:[#allocation14 + $0x54] sm:$0xf]
    %v2138 = vld [vmem:[#allocation14 + $0x58] sm:$0xf]
    %v2139 = vld [vmem:[#allocation14 + $0x5c] sm:$0xf]
    %v2140 = vld [vmem:[#allocation14 + $0x60] sm:$0xf]
    %v2141 = vld [vmem:[#allocation14 + $0x64] sm:$0xf]
    %v2142 = vld [vmem:[#allocation14 + $0x68] sm:$0xf]
    %v2143 = vld [vmem:[#allocation14 + $0x6c] sm:$0xf]
    %v2144 = vld [vmem:[#allocation14 + $0x70] sm:$0xf]
    %v2145 = vld [vmem:[#allocation14 + $0x74] sm:$0xf]
    %v2146 = vld [vmem:[#allocation14 + $0x78] sm:$0xf]
    %v2147 = vld [vmem:[#allocation14 + $0x7c] sm:$0xf]
    %v2148 = vld [vmem:[#allocation14 + $0x80] sm:$0xf]
    %v2149 = vld [vmem:[#allocation14 + $0x84] sm:$0xf]
    %v2150 = vld [vmem:[#allocation14 + $0x88] sm:$0xf]
    %v2151 = vld [vmem:[#allocation14 + $0x8c] sm:$0xf]
    %v2152 = vld [vmem:[#allocation14 + $0x90] sm:$0xf]
    %v2153 = vld [vmem:[#allocation14 + $0x94] sm:$0xf]
    %v2154 = vld [vmem:[#allocation14 + $0x98] sm:$0xf]
    %v2155 = vld [vmem:[#allocation14 + $0x9c] sm:$0xf]
    %v2156 = vld [vmem:[#allocation14 + $0xa0] sm:$0xf]
    %v2157 = vld [vmem:[#allocation14 + $0xa4] sm:$0xf]
    %v2158 = vld [vmem:[#allocation14 + $0xa8] sm:$0xf]
    %v2159 = vld [vmem:[#allocation14 + $0xac] sm:$0xf]
    %v2160 = vld [vmem:[#allocation14 + $0xb0] sm:$0xf]
    %v2161 = vld [vmem:[#allocation14 + $0xb4] sm:$0xf]
    %v2162 = vld [vmem:[#allocation14 + $0xb8] sm:$0xf]
    %v2163 = vld [vmem:[#allocation14 + $0xbc] sm:$0xf]
    %v2164 = vld [vmem:[#allocation14 + $0xc0] sm:$0xf]
    %v2165 = vld [vmem:[#allocation14 + $0xc4] sm:$0xf]
    %v2166 = vld [vmem:[#allocation14 + $0xc8] sm:$0xf]
    %v2167 = vld [vmem:[#allocation14 + $0xcc] sm:$0xf]
    %v2168 = vld [vmem:[#allocation14 + $0xd0] sm:$0xf]
    %v2169 = vld [vmem:[#allocation14 + $0xd4] sm:$0xf]
    %v2170 = vld [vmem:[#allocation14 + $0xd8] sm:$0xf]
    %v2171 = vld [vmem:[#allocation14 + $0xdc] sm:$0xf]
    %v2172 = vld [vmem:[#allocation14 + $0xe0] sm:$0xf]
    %v2173 = vld [vmem:[#allocation14 + $0xe4] sm:$0xf]
    %v2174 = vld [vmem:[#allocation14 + $0xe8] sm:$0xf]
    %v2175 = vld [vmem:[#allocation14 + $0xec] sm:$0xf]
    %v2176 = vld [vmem:[#allocation14 + $0xf0] sm:$0xf]
    %v2177 = vld [vmem:[#allocation14 + $0xf4] sm:$0xf]
    %v2178 = vld [vmem:[#allocation14 + $0xf8] sm:$0xf]
    %v2179 = vld [vmem:[#allocation14 + $0xfc] sm:$0xf]
    %v2180 = vld [vmem:[%s21] sm:$0x1]
    %v2182 = vlaneseq
    %v2183 = vshrl.u32 %v2182, 7
    %v2184 = vsub.s32 0, %v2183
    %v2185 = vrot.slane %v2180, %v2184
    %v2251 = vunpack.c.l.b16 %v2116
    %v2252 = vunpack.c.l.b16 %v2117
    %v2253 = vunpack.c.l.b16 %v2118
    %v2254 = vunpack.c.l.b16 %v2119
    %v2255 = vunpack.c.l.b16 %v2120
    %v2256 = vunpack.c.l.b16 %v2121
    %v2257 = vunpack.c.l.b16 %v2122
    %v2258 = vunpack.c.l.b16 %v2123
    %v2259 = vunpack.c.l.b16 %v2124
    %v2260 = vunpack.c.l.b16 %v2125
    %v2261 = vunpack.c.l.b16 %v2126
    %v2262 = vunpack.c.l.b16 %v2127
    %v2263 = vunpack.c.l.b16 %v2128
    %v2264 = vunpack.c.l.b16 %v2129
    %v2265 = vunpack.c.l.b16 %v2130
    %v2266 = vunpack.c.l.b16 %v2131
    %v2267 = vunpack.c.l.b16 %v2132
    %v2268 = vunpack.c.l.b16 %v2133
    %v2269 = vunpack.c.l.b16 %v2134
    %v2270 = vunpack.c.l.b16 %v2135
    %v2271 = vunpack.c.l.b16 %v2136
    %v2272 = vunpack.c.l.b16 %v2137
    %v2273 = vunpack.c.l.b16 %v2138
    %v2274 = vunpack.c.l.b16 %v2139
    %v2275 = vunpack.c.l.b16 %v2140
    %v2276 = vunpack.c.l.b16 %v2141
    %v2277 = vunpack.c.l.b16 %v2142
    %v2278 = vunpack.c.l.b16 %v2143
    %v2279 = vunpack.c.l.b16 %v2144
    %v2280 = vunpack.c.l.b16 %v2145
    %v2281 = vunpack.c.l.b16 %v2146
    %v2282 = vunpack.c.l.b16 %v2147
    %v2283 = vunpack.c.l.b16 %v2148
    %v2284 = vunpack.c.l.b16 %v2149
    %v2285 = vunpack.c.l.b16 %v2150
    %v2286 = vunpack.c.l.b16 %v2151
    %v2287 = vunpack.c.l.b16 %v2152
    %v2288 = vunpack.c.l.b16 %v2153
    %v2289 = vunpack.c.l.b16 %v2154
    %v2290 = vunpack.c.l.b16 %v2155
    %v2291 = vunpack.c.l.b16 %v2156
    %v2292 = vunpack.c.l.b16 %v2157
    %v2293 = vunpack.c.l.b16 %v2158
    %v2294 = vunpack.c.l.b16 %v2159
    %v2295 = vunpack.c.l.b16 %v2160
    %v2296 = vunpack.c.l.b16 %v2161
    %v2297 = vunpack.c.l.b16 %v2162
    %v2298 = vunpack.c.l.b16 %v2163
    %v2299 = vunpack.c.l.b16 %v2164
    %v2300 = vunpack.c.l.b16 %v2165
    %v2301 = vunpack.c.l.b16 %v2166
    %v2302 = vunpack.c.l.b16 %v2167
    %v2303 = vunpack.c.l.b16 %v2168
    %v2304 = vunpack.c.l.b16 %v2169
    %v2305 = vunpack.c.l.b16 %v2170
    %v2306 = vunpack.c.l.b16 %v2171
    %v2307 = vunpack.c.l.b16 %v2172
    %v2308 = vunpack.c.l.b16 %v2173
    %v2309 = vunpack.c.l.b16 %v2174
    %v2310 = vunpack.c.l.b16 %v2175
    %v2311 = vunpack.c.l.b16 %v2176
    %v2312 = vunpack.c.l.b16 %v2177
    %v2313 = vunpack.c.l.b16 %v2178
    %v2314 = vunpack.c.l.b16 %v2179
    %v2315 = vpack.c.b16 %v2252, %v2251
    %v2316 = vpack.c.b16 %v2254, %v2253
    %v2317 = vpack.c.b16 %v2256, %v2255
    %v2318 = vpack.c.b16 %v2258, %v2257
    %v2319 = vpack.c.b16 %v2260, %v2259
    %v2320 = vpack.c.b16 %v2262, %v2261
    %v2321 = vpack.c.b16 %v2264, %v2263
    %v2322 = vpack.c.b16 %v2266, %v2265
    %v2323 = vpack.c.b16 %v2268, %v2267
    %v2324 = vpack.c.b16 %v2270, %v2269
    %v2325 = vpack.c.b16 %v2272, %v2271
    %v2326 = vpack.c.b16 %v2274, %v2273
    %v2327 = vpack.c.b16 %v2276, %v2275
    %v2328 = vpack.c.b16 %v2278, %v2277
    %v2329 = vpack.c.b16 %v2280, %v2279
    %v2330 = vpack.c.b16 %v2282, %v2281
    %v2331 = vpack.c.b16 %v2284, %v2283
    %v2332 = vpack.c.b16 %v2286, %v2285
    %v2333 = vpack.c.b16 %v2288, %v2287
    %v2334 = vpack.c.b16 %v2290, %v2289
    %v2335 = vpack.c.b16 %v2292, %v2291
    %v2336 = vpack.c.b16 %v2294, %v2293
    %v2337 = vpack.c.b16 %v2296, %v2295
    %v2338 = vpack.c.b16 %v2298, %v2297
    %v2339 = vpack.c.b16 %v2300, %v2299
    %v2340 = vpack.c.b16 %v2302, %v2301
    %v2341 = vpack.c.b16 %v2304, %v2303
    %v2342 = vpack.c.b16 %v2306, %v2305
    %v2343 = vpack.c.b16 %v2308, %v2307
    %v2344 = vpack.c.b16 %v2310, %v2309
    %v2345 = vpack.c.b16 %v2312, %v2311
    %v2346 = vpack.c.b16 %v2314, %v2313
    %2379 = vmatprep.subr.bf16.mxu0 0
    %2380 = vmatpush1.bf16.msra.mxu0 %v2315
    %2381 = vmatprep.subr.bf16.mxu0 0
    %2382 = vmatpush1.bf16.msra.mxu0 %v2316
    %2383 = vmatprep.subr.bf16.mxu0 0
    %2384 = vmatpush1.bf16.msra.mxu0 %v2317
    %2385 = vmatprep.subr.bf16.mxu0 0
    %2386 = vmatpush1.bf16.msra.mxu0 %v2318
    %2387 = vmatprep.subr.bf16.mxu0 0
    %2388 = vmatpush1.bf16.msra.mxu0 %v2319
    %2389 = vmatprep.subr.bf16.mxu0 0
    %2390 = vmatpush1.bf16.msra.mxu0 %v2320
    %2391 = vmatprep.subr.bf16.mxu0 0
    %2392 = vmatpush1.bf16.msra.mxu0 %v2321
    %2393 = vmatprep.subr.bf16.mxu0 0
    %2394 = vmatpush1.bf16.msra.mxu0 %v2322
    %2395 = vmatprep.subr.bf16.mxu0 0
    %2396 = vmatpush1.bf16.msra.mxu0 %v2323
    %2397 = vmatprep.subr.bf16.mxu0 0
    %2398 = vmatpush1.bf16.msra.mxu0 %v2324
    %2399 = vmatprep.subr.bf16.mxu0 0
    %2400 = vmatpush1.bf16.msra.mxu0 %v2325
    %2401 = vmatprep.subr.bf16.mxu0 0
    %2402 = vmatpush1.bf16.msra.mxu0 %v2326
    %2403 = vmatprep.subr.bf16.mxu0 0
    %2404 = vmatpush1.bf16.msra.mxu0 %v2327
    %2405 = vmatprep.subr.bf16.mxu0 0
    %2406 = vmatpush1.bf16.msra.mxu0 %v2328
    %2407 = vmatprep.subr.bf16.mxu0 0
    %2408 = vmatpush1.bf16.msra.mxu0 %v2329
    %2409 = vmatprep.subr.bf16.mxu0 0
    %2410 = vmatpush1.bf16.msra.mxu0 %v2330
    %2411 = vmatprep.mubr.bf16.mxu0 %v2109
    %2412 = vmatmul.mubr.bf16.gmra.mrb[0].mxu0 %v2108
    %v2413 = vpop.f32.mrb[0].mxu0
    %v2414 = vadd.f32 %v2185, %v2413
    %v2415 = vpop.f32.mrb[0].mxu0
    %v2416 = vpop.f32.mrb[0].mxu0
    %v2417 = vadd.f32 %v2185, %v2416
    %v2418 = vpop.f32.mrb[0].mxu0
    %2419 = vmatprep.mubr.bf16.mxu0 %v2113
    %2420 = vmatmul.mubr.bf16.gmra.mrb[0].mxu0 %v2112
    %v2421 = vpop.f32.mrb[0].mxu0
    %v2422 = vadd.f32 %v2185, %v2421
    %v2423 = vpop.f32.mrb[0].mxu0
    %v2424 = vpop.f32.mrb[0].mxu0
    %v2425 = vpop.f32.mrb[0].mxu0
    %2426 = vdwg.mxu0
    %2427 = vmatprep.subr.bf16.mxu0 0
    %2428 = vmatpush1.bf16.msra.mxu0 %v2331
    %2429 = vmatprep.subr.bf16.mxu0 0
    %2430 = vmatpush1.bf16.msra.mxu0 %v2332
    %2431 = vmatprep.subr.bf16.mxu0 0
    %2432 = vmatpush1.bf16.msra.mxu0 %v2333
    %2433 = vmatprep.subr.bf16.mxu0 0
    %2434 = vmatpush1.bf16.msra.mxu0 %v2334
    %2435 = vmatprep.subr.bf16.mxu0 0
    %2436 = vmatpush1.bf16.msra.mxu0 %v2335
    %2437 = vmatprep.subr.bf16.mxu0 0
    %2438 = vmatpush1.bf16.msra.mxu0 %v2336
    %2439 = vmatprep.subr.bf16.mxu0 0
    %2440 = vmatpush1.bf16.msra.mxu0 %v2337
    %2441 = vmatprep.subr.bf16.mxu0 0
    %2442 = vmatpush1.bf16.msra.mxu0 %v2338
    %2443 = vmatprep.subr.bf16.mxu0 0
    %2444 = vmatpush1.bf16.msra.mxu0 %v2339
    %2445 = vmatprep.subr.bf16.mxu0 0
    %2446 = vmatpush1.bf16.msra.mxu0 %v2340
    %2447 = vmatprep.subr.bf16.mxu0 0
    %2448 = vmatpush1.bf16.msra.mxu0 %v2341
    %2449 = vmatprep.subr.bf16.mxu0 0
    %2450 = vmatpush1.bf16.msra.mxu0 %v2342
    %2451 = vmatprep.subr.bf16.mxu0 0
    %2452 = vmatpush1.bf16.msra.mxu0 %v2343
    %2453 = vmatprep.subr.bf16.mxu0 0
    %2454 = vmatpush1.bf16.msra.mxu0 %v2344
    %2455 = vmatprep.subr.bf16.mxu0 0
    %2456 = vmatpush1.bf16.msra.mxu0 %v2345
    %2457 = vmatprep.subr.bf16.mxu0 0
    %2458 = vmatpush1.bf16.msra.mxu0 %v2346
    %2459 = vmatprep.mubr.bf16.mxu0 %v2111
    %2460 = vmatmul.mubr.bf16.gmra.mrb[0].mxu0 %v2110
    %v2461 = vpop.f32.mrb[0].mxu0
    %v2462 = vadd.f32 %v2414, %v2461
    %v2463 = vpop.f32.mrb[0].mxu0
    %v2464 = vpop.f32.mrb[0].mxu0
    %v2465 = vadd.f32 %v2417, %v2464
    %v2466 = vpop.f32.mrb[0].mxu0
    %2467 = vmatprep.mubr.bf16.mxu0 %v2115
    %2468 = vmatmul.mubr.bf16.gmra.mrb[0].mxu0 %v2114
    %v2469 = vpop.f32.mrb[0].mxu0
    %v2470 = vadd.f32 %v2422, %v2469
    %v2471 = vpop.f32.mrb[0].mxu0
    %v2472 = vpop.f32.mrb[0].mxu0
    %v2473 = vpop.f32.mrb[0].mxu0
    %2474 = vdwg.mxu0
    %v2475 = vmax.f32 %v2462, 0.0
    %v2476 = vmax.f32 %v2465, 0.0
    %v2477 = vmax.f32 %v2470, 0.0
    %v2478 = vld [vmem:[#allocation7] sm:$0xff]
    %v2479 = vld [vmem:[#allocation7 + $0x8] sm:$0xff]
    %v2480 = vld [vmem:[#allocation7 + $0x10] sm:$0xff]
    %v2481 = vpack.c.bf16 %v2476, %v2475
    %v2482 = vpack.c.bf16 %v2477, %v2477
    %v2483 = vld [vmem:[#allocation16] sm:$0xff]
    %v2484 = vld [vmem:[#allocation16 + $0x8] sm:$0xff]
    %v2485 = vld [vmem:[#allocation16 + $0x10] sm:$0xff]
    %v2486 = vld [vmem:[#allocation16 + $0x18] sm:$0xff]
    %v2487 = vld [vmem:[#allocation16 + $0x20] sm:$0xff]
    %v2488 = vld [vmem:[#allocation16 + $0x28] sm:$0xff]
    %v2489 = vld [vmem:[#allocation16 + $0x30] sm:$0xff]
    %v2490 = vld [vmem:[#allocation16 + $0x38] sm:$0xff]
    %v2491 = vld [vmem:[#allocation16 + $0x40] sm:$0xff]
    %v2492 = vld [vmem:[#allocation16 + $0x48] sm:$0xff]
    %v2493 = vld [vmem:[#allocation16 + $0x50] sm:$0xff]
    %v2494 = vld [vmem:[#allocation16 + $0x58] sm:$0xff]
    %v2495 = vld [vmem:[#allocation16 + $0x60] sm:$0xff]
    %v2496 = vld [vmem:[#allocation16 + $0x68] sm:$0xff]
    %v2497 = vld [vmem:[#allocation16 + $0x70] sm:$0xff]
    %v2498 = vld [vmem:[#allocation16 + $0x78] sm:$0xff]
    %v2499 = vld [vmem:[#allocation16 + $0x80] sm:$0xff]
    %v2500 = vld [vmem:[#allocation16 + $0x88] sm:$0xff]
    %v2501 = vld [vmem:[#allocation16 + $0x90] sm:$0xff]
    %v2502 = vld [vmem:[#allocation16 + $0x98] sm:$0xff]
    %v2503 = vld [vmem:[#allocation16 + $0xa0] sm:$0xff]
    %v2504 = vld [vmem:[#allocation16 + $0xa8] sm:$0xff]
    %v2505 = vld [vmem:[#allocation16 + $0xb0] sm:$0xff]
    %v2506 = vld [vmem:[#allocation16 + $0xb8] sm:$0xff]
    %v2507 = vld [vmem:[#allocation16 + $0xc0] sm:$0xff]
    %v2508 = vld [vmem:[#allocation16 + $0xc8] sm:$0xff]
    %v2509 = vld [vmem:[#allocation16 + $0xd0] sm:$0xff]
    %v2510 = vld [vmem:[#allocation16 + $0xd8] sm:$0xff]
    %v2511 = vld [vmem:[#allocation16 + $0xe0] sm:$0xff]
    %v2512 = vld [vmem:[#allocation16 + $0xe8] sm:$0xff]
    %v2513 = vld [vmem:[#allocation16 + $0xf0] sm:$0xff]
    %v2514 = vld [vmem:[#allocation16 + $0xf8] sm:$0xff]
    %v2515 = vpack.c.bf16 %v2479, %v2478
    %v2516 = vpack.c.bf16 %v2480, %v2480
    %v2517 = vld [vmem:[#allocation17] sm:$0xff]
    %v2518 = vld [vmem:[#allocation17 + $0x8] sm:$0xff]
    %v2519 = vld [vmem:[#allocation17 + $0x10] sm:$0xff]
    %v2520 = vld [vmem:[#allocation17 + $0x18] sm:$0xff]
    %v2521 = vld [vmem:[#allocation17 + $0x20] sm:$0xff]
    %v2522 = vld [vmem:[#allocation17 + $0x28] sm:$0xff]
    %v2523 = vld [vmem:[#allocation17 + $0x30] sm:$0xff]
    %v2524 = vld [vmem:[#allocation17 + $0x38] sm:$0xff]
    %v2525 = vld [vmem:[#allocation17 + $0x40] sm:$0xff]
    %v2526 = vld [vmem:[#allocation17 + $0x48] sm:$0xff]
    %v2527 = vld [vmem:[#allocation17 + $0x50] sm:$0xff]
    %v2528 = vld [vmem:[#allocation17 + $0x58] sm:$0xff]
    %v2529 = vld [vmem:[#allocation17 + $0x60] sm:$0xff]
    %v2530 = vld [vmem:[#allocation17 + $0x68] sm:$0xff]
    %v2531 = vld [vmem:[#allocation17 + $0x70] sm:$0xff]
    %v2532 = vld [vmem:[#allocation17 + $0x78] sm:$0xff]
    %v2533 = vld [vmem:[#allocation17 + $0x80] sm:$0xff]
    %v2534 = vld [vmem:[#allocation17 + $0x88] sm:$0xff]
    %v2535 = vld [vmem:[#allocation17 + $0x90] sm:$0xff]
    %v2536 = vld [vmem:[#allocation17 + $0x98] sm:$0xff]
    %v2537 = vld [vmem:[#allocation17 + $0xa0] sm:$0xff]
    %v2538 = vld [vmem:[#allocation17 + $0xa8] sm:$0xff]
    %v2539 = vld [vmem:[#allocation17 + $0xb0] sm:$0xff]
    %v2540 = vld [vmem:[#allocation17 + $0xb8] sm:$0xff]
    %v2541 = vld [vmem:[#allocation17 + $0xc0] sm:$0xff]
    %v2542 = vld [vmem:[#allocation17 + $0xc8] sm:$0xff]
    %v2543 = vld [vmem:[#allocation17 + $0xd0] sm:$0xff]
    %v2544 = vld [vmem:[#allocation17 + $0xd8] sm:$0xff]
    %v2545 = vld [vmem:[#allocation17 + $0xe0] sm:$0xff]
    %v2546 = vld [vmem:[#allocation17 + $0xe8] sm:$0xff]
    %v2547 = vld [vmem:[#allocation17 + $0xf0] sm:$0xff]
    %v2548 = vld [vmem:[#allocation17 + $0xf8] sm:$0xff]
    %v2581 = vunpack.c.l.b16 %v2517
    %v2582 = vunpack.c.h.b16 %v2517
    %v2583 = vunpack.c.l.b16 %v2518
    %v2584 = vunpack.c.h.b16 %v2518
    %v2585 = vunpack.c.l.b16 %v2519
    %v2586 = vunpack.c.h.b16 %v2519
    %v2587 = vunpack.c.l.b16 %v2520
    %v2588 = vunpack.c.h.b16 %v2520
    %v2589 = vunpack.c.l.b16 %v2521
    %v2590 = vunpack.c.h.b16 %v2521
    %v2591 = vunpack.c.l.b16 %v2522
    %v2592 = vunpack.c.h.b16 %v2522
    %v2593 = vunpack.c.l.b16 %v2523
    %v2594 = vunpack.c.h.b16 %v2523
    %v2595 = vunpack.c.l.b16 %v2524
    %v2596 = vunpack.c.h.b16 %v2524
    %v2597 = vunpack.c.l.b16 %v2525
    %v2598 = vunpack.c.h.b16 %v2525
    %v2599 = vunpack.c.l.b16 %v2526
    %v2600 = vunpack.c.h.b16 %v2526
    %v2601 = vunpack.c.l.b16 %v2527
    %v2602 = vunpack.c.h.b16 %v2527
    %v2603 = vunpack.c.l.b16 %v2528
    %v2604 = vunpack.c.h.b16 %v2528
    %v2605 = vunpack.c.l.b16 %v2529
    %v2606 = vunpack.c.h.b16 %v2529
    %v2607 = vunpack.c.l.b16 %v2530
    %v2608 = vunpack.c.h.b16 %v2530
    %v2609 = vunpack.c.l.b16 %v2531
    %v2610 = vunpack.c.h.b16 %v2531
    %v2611 = vunpack.c.l.b16 %v2532
    %v2612 = vunpack.c.h.b16 %v2532
    %v2613 = vunpack.c.l.b16 %v2533
    %v2614 = vunpack.c.h.b16 %v2533
    %v2615 = vunpack.c.l.b16 %v2534
    %v2616 = vunpack.c.h.b16 %v2534
    %v2617 = vunpack.c.l.b16 %v2535
    %v2618 = vunpack.c.h.b16 %v2535
    %v2619 = vunpack.c.l.b16 %v2536
    %v2620 = vunpack.c.h.b16 %v2536
    %v2621 = vunpack.c.l.b16 %v2537
    %v2622 = vunpack.c.h.b16 %v2537
    %v2623 = vunpack.c.l.b16 %v2538
    %v2624 = vunpack.c.h.b16 %v2538
    %v2625 = vunpack.c.l.b16 %v2539
    %v2626 = vunpack.c.h.b16 %v2539
    %v2627 = vunpack.c.l.b16 %v2540
    %v2628 = vunpack.c.h.b16 %v2540
    %v2629 = vunpack.c.l.b16 %v2541
    %v2630 = vunpack.c.h.b16 %v2541
    %v2631 = vunpack.c.l.b16 %v2542
    %v2632 = vunpack.c.h.b16 %v2542
    %v2633 = vunpack.c.l.b16 %v2543
    %v2634 = vunpack.c.h.b16 %v2543
    %v2635 = vunpack.c.l.b16 %v2544
    %v2636 = vunpack.c.h.b16 %v2544
    %v2637 = vunpack.c.l.b16 %v2545
    %v2638 = vunpack.c.h.b16 %v2545
    %v2639 = vunpack.c.l.b16 %v2546
    %v2640 = vunpack.c.h.b16 %v2546
    %v2641 = vunpack.c.l.b16 %v2547
    %v2642 = vunpack.c.h.b16 %v2547
    %v2643 = vunpack.c.l.b16 %v2548
    %v2644 = vunpack.c.h.b16 %v2548
    %v2645 = vpack.c.b16 %v2585, %v2581
    %v2646 = vpack.c.b16 %v2586, %v2582
    %v2647 = vpack.c.b16 %v2587, %v2583
    %v2648 = vpack.c.b16 %v2588, %v2584
    %v2649 = vpack.c.b16 %v2593, %v2589
    %v2650 = vpack.c.b16 %v2594, %v2590
    %v2651 = vpack.c.b16 %v2595, %v2591
    %v2652 = vpack.c.b16 %v2596, %v2592
    %v2653 = vpack.c.b16 %v2601, %v2597
    %v2654 = vpack.c.b16 %v2602, %v2598
    %v2655 = vpack.c.b16 %v2603, %v2599
    %v2656 = vpack.c.b16 %v2604, %v2600
    %v2657 = vpack.c.b16 %v2609, %v2605
    %v2658 = vpack.c.b16 %v2610, %v2606
    %v2659 = vpack.c.b16 %v2611, %v2607
    %v2660 = vpack.c.b16 %v2612, %v2608
    %v2661 = vpack.c.b16 %v2617, %v2613
    %v2662 = vpack.c.b16 %v2618, %v2614
    %v2663 = vpack.c.b16 %v2619, %v2615
    %v2664 = vpack.c.b16 %v2620, %v2616
    %v2665 = vpack.c.b16 %v2625, %v2621
    %v2666 = vpack.c.b16 %v2626, %v2622
    %v2667 = vpack.c.b16 %v2627, %v2623
    %v2668 = vpack.c.b16 %v2628, %v2624
    %v2669 = vpack.c.b16 %v2633, %v2629
    %v2670 = vpack.c.b16 %v2634, %v2630
    %v2671 = vpack.c.b16 %v2635, %v2631
    %v2672 = vpack.c.b16 %v2636, %v2632
    %v2673 = vpack.c.b16 %v2641, %v2637
    %v2674 = vpack.c.b16 %v2642, %v2638
    %v2675 = vpack.c.b16 %v2643, %v2639
    %v2676 = vpack.c.b16 %v2644, %v2640
    %2709 = vmatprep.subr.bf16.mxu0 %v2646
    %2710 = vmatpush1.bf16.msra.mxu0 %v2645
    %2711 = vmatprep.subr.bf16.mxu0 %v2650
    %2712 = vmatpush1.bf16.msra.mxu0 %v2649
    %2713 = vmatprep.subr.bf16.mxu0 %v2654
    %2714 = vmatpush1.bf16.msra.mxu0 %v2653
    %2715 = vmatprep.subr.bf16.mxu0 %v2658
    %2716 = vmatpush1.bf16.msra.mxu0 %v2657
    %2717 = vmatprep.subr.bf16.mxu0 %v2662
    %2718 = vmatpush1.bf16.msra.mxu0 %v2661
    %2719 = vmatprep.subr.bf16.mxu0 %v2666
    %2720 = vmatpush1.bf16.msra.mxu0 %v2665
    %2721 = vmatprep.subr.bf16.mxu0 %v2670
    %2722 = vmatpush1.bf16.msra.mxu0 %v2669
    %2723 = vmatprep.subr.bf16.mxu0 %v2674
    %2724 = vmatpush1.bf16.msra.mxu0 %v2673
    %2725 = vmatprep.subr.bf16.mxu0 0
    %2726 = vmatpush1.bf16.msra.mxu0 0
    %2727 = vmatprep.subr.bf16.mxu0 0
    %2728 = vmatpush1.bf16.msra.mxu0 0
    %2729 = vmatprep.subr.bf16.mxu0 0
    %2730 = vmatpush1.bf16.msra.mxu0 0
    %2731 = vmatprep.subr.bf16.mxu0 0
    %2732 = vmatpush1.bf16.msra.mxu0 0
    %2733 = vmatprep.subr.bf16.mxu0 0
    %2734 = vmatpush1.bf16.msra.mxu0 0
    %2735 = vmatprep.subr.bf16.mxu0 0
    %2736 = vmatpush1.bf16.msra.mxu0 0
    %2737 = vmatprep.subr.bf16.mxu0 0
    %2738 = vmatpush1.bf16.msra.mxu0 0
    %2739 = vmatprep.subr.bf16.mxu0 0
    %2740 = vmatpush1.bf16.msra.mxu0 0
    %2741 = vmatprep.mubr.bf16.mxu0 0
    %2742 = vmatmul.mubr.bf16.gmra.mrb[0].mxu0 %v2515
    %v2743 = vpop.f32.mrb[0].mxu0
    %v2744 = vadd.f32 0.0, %v2743
    %v2745 = vpop.f32.mrb[0].mxu0
    %v2746 = vadd.f32 0.0, %v2745
    %v2747 = vpop.f32.mrb[0].mxu0
    %v2748 = vadd.f32 0.0, %v2747
    %v2749 = vpop.f32.mrb[0].mxu0
    %v2750 = vadd.f32 0.0, %v2749
    %2751 = vmatprep.mubr.bf16.mxu0 0
    %2752 = vmatmul.mubr.bf16.gmra.mrb[0].mxu0 %v2516
    %v2753 = vpop.f32.mrb[0].mxu0
    %v2754 = vadd.f32 0.0, %v2753
    %v2755 = vpop.f32.mrb[0].mxu0
    %v2756 = vadd.f32 0.0, %v2755
    %v2757 = vpop.f32.mrb[0].mxu0
    %v2758 = vpop.f32.mrb[0].mxu0
    %2759 = vdwg.mxu0
    %2760 = vmatprep.subr.bf16.mxu0 %v2648
    %2761 = vmatpush1.bf16.msra.mxu0 %v2647
    %2762 = vmatprep.subr.bf16.mxu0 %v2652
    %2763 = vmatpush1.bf16.msra.mxu0 %v2651
    %2764 = vmatprep.subr.bf16.mxu0 %v2656
    %2765 = vmatpush1.bf16.msra.mxu0 %v2655
    %2766 = vmatprep.subr.bf16.mxu0 %v2660
    %2767 = vmatpush1.bf16.msra.mxu0 %v2659
    %2768 = vmatprep.subr.bf16.mxu0 %v2664
    %2769 = vmatpush1.bf16.msra.mxu0 %v2663
    %2770 = vmatprep.subr.bf16.mxu0 %v2668
    %2771 = vmatpush1.bf16.msra.mxu0 %v2667
    %2772 = vmatprep.subr.bf16.mxu0 %v2672
    %2773 = vmatpush1.bf16.msra.mxu0 %v2671
    %2774 = vmatprep.subr.bf16.mxu0 %v2676
    %2775 = vmatpush1.bf16.msra.mxu0 %v2675
    %2776 = vmatprep.subr.bf16.mxu0 0
    %2777 = vmatpush1.bf16.msra.mxu0 0
    %2778 = vmatprep.subr.bf16.mxu0 0
    %2779 = vmatpush1.bf16.msra.mxu0 0
    %2780 = vmatprep.subr.bf16.mxu0 0
    %2781 = vmatpush1.bf16.msra.mxu0 0
    %2782 = vmatprep.subr.bf16.mxu0 0
    %2783 = vmatpush1.bf16.msra.mxu0 0
    %2784 = vmatprep.subr.bf16.mxu0 0
    %2785 = vmatpush1.bf16.msra.mxu0 0
    %2786 = vmatprep.subr.bf16.mxu0 0
    %2787 = vmatpush1.bf16.msra.mxu0 0
    %2788 = vmatprep.subr.bf16.mxu0 0
    %2789 = vmatpush1.bf16.msra.mxu0 0
    %2790 = vmatprep.subr.bf16.mxu0 0
    %2791 = vmatpush1.bf16.msra.mxu0 0
    %2792 = vmatprep.mubr.bf16.mxu0 0
    %2793 = vmatmul.mubr.bf16.gmra.mrb[0].mxu0 %v2515
    %v2794 = vpop.f32.mrb[0].mxu0
    %v2795 = vadd.f32 0.0, %v2794
    %v2796 = vpop.f32.mrb[0].mxu0
    %v2797 = vadd.f32 0.0, %v2796
    %v2798 = vpop.f32.mrb[0].mxu0
    %v2799 = vadd.f32 0.0, %v2798
    %v2800 = vpop.f32.mrb[0].mxu0
    %v2801 = vadd.f32 0.0, %v2800
    %2802 = vmatprep.mubr.bf16.mxu0 0
    %2803 = vmatmul.mubr.bf16.gmra.mrb[0].mxu0 %v2516
    %v2804 = vpop.f32.mrb[0].mxu0
    %v2805 = vadd.f32 0.0, %v2804
    %v2806 = vpop.f32.mrb[0].mxu0
    %v2807 = vadd.f32 0.0, %v2806
    %v2808 = vpop.f32.mrb[0].mxu0
    %v2809 = vpop.f32.mrb[0].mxu0
    %2810 = vdwg.mxu0
    %v2843 = vunpack.c.l.b16 %v2483
    %v2844 = vunpack.c.h.b16 %v2483
    %v2845 = vunpack.c.l.b16 %v2484
    %v2846 = vunpack.c.h.b16 %v2484
    %v2847 = vunpack.c.l.b16 %v2485
    %v2848 = vunpack.c.h.b16 %v2485
    %v2849 = vunpack.c.l.b16 %v2486
    %v2850 = vunpack.c.h.b16 %v2486
    %v2851 = vunpack.c.l.b16 %v2487
    %v2852 = vunpack.c.h.b16 %v2487
    %v2853 = vunpack.c.l.b16 %v2488
    %v2854 = vunpack.c.h.b16 %v2488
    %v2855 = vunpack.c.l.b16 %v2489
    %v2856 = vunpack.c.h.b16 %v2489
    %v2857 = vunpack.c.l.b16 %v2490
    %v2858 = vunpack.c.h.b16 %v2490
    %v2859 = vunpack.c.l.b16 %v2491
    %v2860 = vunpack.c.h.b16 %v2491
    %v2861 = vunpack.c.l.b16 %v2492
    %v2862 = vunpack.c.h.b16 %v2492
    %v2863 = vunpack.c.l.b16 %v2493
    %v2864 = vunpack.c.h.b16 %v2493
    %v2865 = vunpack.c.l.b16 %v2494
    %v2866 = vunpack.c.h.b16 %v2494
    %v2867 = vunpack.c.l.b16 %v2495
    %v2868 = vunpack.c.h.b16 %v2495
    %v2869 = vunpack.c.l.b16 %v2496
    %v2870 = vunpack.c.h.b16 %v2496
    %v2871 = vunpack.c.l.b16 %v2497
    %v2872 = vunpack.c.h.b16 %v2497
    %v2873 = vunpack.c.l.b16 %v2498
    %v2874 = vunpack.c.h.b16 %v2498
    %v2875 = vunpack.c.l.b16 %v2499
    %v2876 = vunpack.c.h.b16 %v2499
    %v2877 = vunpack.c.l.b16 %v2500
    %v2878 = vunpack.c.h.b16 %v2500
    %v2879 = vunpack.c.l.b16 %v2501
    %v2880 = vunpack.c.h.b16 %v2501
    %v2881 = vunpack.c.l.b16 %v2502
    %v2882 = vunpack.c.h.b16 %v2502
    %v2883 = vunpack.c.l.b16 %v2503
    %v2884 = vunpack.c.h.b16 %v2503
    %v2885 = vunpack.c.l.b16 %v2504
    %v2886 = vunpack.c.h.b16 %v2504
    %v2887 = vunpack.c.l.b16 %v2505
    %v2888 = vunpack.c.h.b16 %v2505
    %v2889 = vunpack.c.l.b16 %v2506
    %v2890 = vunpack.c.h.b16 %v2506
    %v2891 = vunpack.c.l.b16 %v2507
    %v2892 = vunpack.c.h.b16 %v2507
    %v2893 = vunpack.c.l.b16 %v2508
    %v2894 = vunpack.c.h.b16 %v2508
    %v2895 = vunpack.c.l.b16 %v2509
    %v2896 = vunpack.c.h.b16 %v2509
    %v2897 = vunpack.c.l.b16 %v2510
    %v2898 = vunpack.c.h.b16 %v2510
    %v2899 = vunpack.c.l.b16 %v2511
    %v2900 = vunpack.c.h.b16 %v2511
    %v2901 = vunpack.c.l.b16 %v2512
    %v2902 = vunpack.c.h.b16 %v2512
    %v2903 = vunpack.c.l.b16 %v2513
    %v2904 = vunpack.c.h.b16 %v2513
    %v2905 = vunpack.c.l.b16 %v2514
    %v2906 = vunpack.c.h.b16 %v2514
    %v2907 = vpack.c.b16 %v2847, %v2843
    %v2908 = vpack.c.b16 %v2848, %v2844
    %v2909 = vpack.c.b16 %v2849, %v2845
    %v2910 = vpack.c.b16 %v2850, %v2846
    %v2911 = vpack.c.b16 %v2855, %v2851
    %v2912 = vpack.c.b16 %v2856, %v2852
    %v2913 = vpack.c.b16 %v2857, %v2853
    %v2914 = vpack.c.b16 %v2858, %v2854
    %v2915 = vpack.c.b16 %v2863, %v2859
    %v2916 = vpack.c.b16 %v2864, %v2860
    %v2917 = vpack.c.b16 %v2865, %v2861
    %v2918 = vpack.c.b16 %v2866, %v2862
    %v2919 = vpack.c.b16 %v2871, %v2867
    %v2920 = vpack.c.b16 %v2872, %v2868
    %v2921 = vpack.c.b16 %v2873, %v2869
    %v2922 = vpack.c.b16 %v2874, %v2870
    %v2923 = vpack.c.b16 %v2879, %v2875
    %v2924 = vpack.c.b16 %v2880, %v2876
    %v2925 = vpack.c.b16 %v2881, %v2877
    %v2926 = vpack.c.b16 %v2882, %v2878
    %v2927 = vpack.c.b16 %v2887, %v2883
    %v2928 = vpack.c.b16 %v2888, %v2884
    %v2929 = vpack.c.b16 %v2889, %v2885
    %v2930 = vpack.c.b16 %v2890, %v2886
    %v2931 = vpack.c.b16 %v2895, %v2891
    %v2932 = vpack.c.b16 %v2896, %v2892
    %v2933 = vpack.c.b16 %v2897, %v2893
    %v2934 = vpack.c.b16 %v2898, %v2894
    %v2935 = vpack.c.b16 %v2903, %v2899
    %v2936 = vpack.c.b16 %v2904, %v2900
    %v2937 = vpack.c.b16 %v2905, %v2901
    %v2938 = vpack.c.b16 %v2906, %v2902
    %2971 = vmatprep.subr.bf16.mxu0 %v2908
    %2972 = vmatpush1.bf16.msra.mxu0 %v2907
    %2973 = vmatprep.subr.bf16.mxu0 %v2912
    %2974 = vmatpush1.bf16.msra.mxu0 %v2911
    %2975 = vmatprep.subr.bf16.mxu0 %v2916
    %2976 = vmatpush1.bf16.msra.mxu0 %v2915
    %2977 = vmatprep.subr.bf16.mxu0 %v2920
    %2978 = vmatpush1.bf16.msra.mxu0 %v2919
    %2979 = vmatprep.subr.bf16.mxu0 %v2924
    %2980 = vmatpush1.bf16.msra.mxu0 %v2923
    %2981 = vmatprep.subr.bf16.mxu0 %v2928
    %2982 = vmatpush1.bf16.msra.mxu0 %v2927
    %2983 = vmatprep.subr.bf16.mxu0 %v2932
    %2984 = vmatpush1.bf16.msra.mxu0 %v2931
    %2985 = vmatprep.subr.bf16.mxu0 %v2936
    %2986 = vmatpush1.bf16.msra.mxu0 %v2935
    %2987 = vmatprep.subr.bf16.mxu0 0
    %2988 = vmatpush1.bf16.msra.mxu0 0
    %2989 = vmatprep.subr.bf16.mxu0 0
    %2990 = vmatpush1.bf16.msra.mxu0 0
    %2991 = vmatprep.subr.bf16.mxu0 0
    %2992 = vmatpush1.bf16.msra.mxu0 0
    %2993 = vmatprep.subr.bf16.mxu0 0
    %2994 = vmatpush1.bf16.msra.mxu0 0
    %2995 = vmatprep.subr.bf16.mxu0 0
    %2996 = vmatpush1.bf16.msra.mxu0 0
    %2997 = vmatprep.subr.bf16.mxu0 0
    %2998 = vmatpush1.bf16.msra.mxu0 0
    %2999 = vmatprep.subr.bf16.mxu0 0
    %3000 = vmatpush1.bf16.msra.mxu0 0
    %3001 = vmatprep.subr.bf16.mxu0 0
    %3002 = vmatpush1.bf16.msra.mxu0 0
    %3003 = vmatprep.mubr.bf16.mxu0 0
    %3004 = vmatmul.mubr.bf16.gmra.mrb[0].mxu0 %v2481
    %v3005 = vpop.f32.mrb[0].mxu0
    %v3006 = vadd.f32 %v2744, %v3005
    %v3007 = vpop.f32.mrb[0].mxu0
    %v3008 = vadd.f32 %v2746, %v3007
    %v3009 = vpop.f32.mrb[0].mxu0
    %v3010 = vadd.f32 %v2748, %v3009
    %v3011 = vpop.f32.mrb[0].mxu0
    %v3012 = vadd.f32 %v2750, %v3011
    %3013 = vmatprep.mubr.bf16.mxu0 0
    %3014 = vmatmul.mubr.bf16.gmra.mrb[0].mxu0 %v2482
    %v3015 = vpop.f32.mrb[0].mxu0
    %v3016 = vadd.f32 %v2754, %v3015
    %v3017 = vpop.f32.mrb[0].mxu0
    %v3018 = vadd.f32 %v2756, %v3017
    %v3019 = vpop.f32.mrb[0].mxu0
    %v3020 = vpop.f32.mrb[0].mxu0
    %3021 = vdwg.mxu0
    %3022 = vmatprep.subr.bf16.mxu0 %v2910
    %3023 = vmatpush1.bf16.msra.mxu0 %v2909
    %3024 = vmatprep.subr.bf16.mxu0 %v2914
    %3025 = vmatpush1.bf16.msra.mxu0 %v2913
    %3026 = vmatprep.subr.bf16.mxu0 %v2918
    %3027 = vmatpush1.bf16.msra.mxu0 %v2917
    %3028 = vmatprep.subr.bf16.mxu0 %v2922
    %3029 = vmatpush1.bf16.msra.mxu0 %v2921
    %3030 = vmatprep.subr.bf16.mxu0 %v2926
    %3031 = vmatpush1.bf16.msra.mxu0 %v2925
    %3032 = vmatprep.subr.bf16.mxu0 %v2930
    %3033 = vmatpush1.bf16.msra.mxu0 %v2929
    %3034 = vmatprep.subr.bf16.mxu0 %v2934
    %3035 = vmatpush1.bf16.msra.mxu0 %v2933
    %3036 = vmatprep.subr.bf16.mxu0 %v2938
    %3037 = vmatpush1.bf16.msra.mxu0 %v2937
    %3038 = vmatprep.subr.bf16.mxu0 0
    %3039 = vmatpush1.bf16.msra.mxu0 0
    %3040 = vmatprep.subr.bf16.mxu0 0
    %3041 = vmatpush1.bf16.msra.mxu0 0
    %3042 = vmatprep.subr.bf16.mxu0 0
    %3043 = vmatpush1.bf16.msra.mxu0 0
    %3044 = vmatprep.subr.bf16.mxu0 0
    %3045 = vmatpush1.bf16.msra.mxu0 0
    %3046 = vmatprep.subr.bf16.mxu0 0
    %3047 = vmatpush1.bf16.msra.mxu0 0
    %3048 = vmatprep.subr.bf16.mxu0 0
    %3049 = vmatpush1.bf16.msra.mxu0 0
    %3050 = vmatprep.subr.bf16.mxu0 0
    %3051 = vmatpush1.bf16.msra.mxu0 0
    %3052 = vmatprep.subr.bf16.mxu0 0
    %3053 = vmatpush1.bf16.msra.mxu0 0
    %3054 = vmatprep.mubr.bf16.mxu0 0
    %3055 = vmatmul.mubr.bf16.gmra.mrb[0].mxu0 %v2481
    %v3056 = vpop.f32.mrb[0].mxu0
    %v3057 = vadd.f32 %v2795, %v3056
    %v3058 = vpop.f32.mrb[0].mxu0
    %v3059 = vadd.f32 %v2797, %v3058
    %v3060 = vpop.f32.mrb[0].mxu0
    %v3061 = vadd.f32 %v2799, %v3060
    %v3062 = vpop.f32.mrb[0].mxu0
    %v3063 = vadd.f32 %v2801, %v3062
    %3064 = vmatprep.mubr.bf16.mxu0 0
    %3065 = vmatmul.mubr.bf16.gmra.mrb[0].mxu0 %v2482
    %v3066 = vpop.f32.mrb[0].mxu0
    %v3067 = vadd.f32 %v2805, %v3066
    %v3068 = vpop.f32.mrb[0].mxu0
    %v3069 = vadd.f32 %v2807, %v3068
    %v3070 = vpop.f32.mrb[0].mxu0
    %v3071 = vpop.f32.mrb[0].mxu0
    %3072 = vdwg.mxu0
    %v3073 = vld [vmem:[#allocation19] sm:$0xff]
    %v3074 = vld [vmem:[#allocation19 + $0x8] sm:$0xff]
    %v3075 = vld [vmem:[#allocation19 + $0x10] sm:$0xff]
    %v3076 = vld [vmem:[#allocation19 + $0x18] sm:$0xff]
    %v3077 = vld [vmem:[#allocation19 + $0x20] sm:$0xff]
    %v3078 = vld [vmem:[#allocation19 + $0x28] sm:$0xff]
    %v3079 = vld [vmem:[#allocation19 + $0x30] sm:$0xff]
    %v3080 = vld [vmem:[#allocation19 + $0x38] sm:$0xff]
    %v3081 = vld [vmem:[#allocation19 + $0x40] sm:$0xff]
    %v3082 = vld [vmem:[#allocation19 + $0x48] sm:$0xff]
    %v3083 = vld [vmem:[#allocation19 + $0x50] sm:$0xff]
    %v3084 = vld [vmem:[#allocation19 + $0x58] sm:$0xff]
    %v3085 = vld [vmem:[#allocation19 + $0x60] sm:$0xff]
    %v3086 = vld [vmem:[#allocation19 + $0x68] sm:$0xff]
    %v3087 = vld [vmem:[#allocation19 + $0x70] sm:$0xff]
    %v3088 = vld [vmem:[#allocation19 + $0x78] sm:$0xff]
    %v3089 = vld [vmem:[#allocation19 + $0x80] sm:$0xff]
    %v3090 = vld [vmem:[#allocation19 + $0x88] sm:$0xff]
    %v3091 = vld [vmem:[#allocation19 + $0x90] sm:$0xff]
    %v3092 = vld [vmem:[#allocation19 + $0x98] sm:$0xff]
    %v3093 = vld [vmem:[#allocation19 + $0xa0] sm:$0xff]
    %v3094 = vld [vmem:[#allocation19 + $0xa8] sm:$0xff]
    %v3095 = vld [vmem:[#allocation19 + $0xb0] sm:$0xff]
    %v3096 = vld [vmem:[#allocation19 + $0xb8] sm:$0xff]
    %v3097 = vld [vmem:[#allocation19 + $0xc0] sm:$0xff]
    %v3098 = vld [vmem:[#allocation19 + $0xc8] sm:$0xff]
    %v3099 = vld [vmem:[#allocation19 + $0xd0] sm:$0xff]
    %v3100 = vld [vmem:[#allocation19 + $0xd8] sm:$0xff]
    %v3101 = vld [vmem:[#allocation19 + $0xe0] sm:$0xff]
    %v3102 = vld [vmem:[#allocation19 + $0xe8] sm:$0xff]
    %v3103 = vld [vmem:[#allocation19 + $0xf0] sm:$0xff]
    %v3104 = vld [vmem:[#allocation19 + $0xf8] sm:$0xff]
    %v3137 = vunpack.c.l.b16 %v3073
    %v3138 = vunpack.c.h.b16 %v3073
    %v3139 = vunpack.c.l.b16 %v3074
    %v3140 = vunpack.c.h.b16 %v3074
    %v3141 = vunpack.c.l.b16 %v3075
    %v3142 = vunpack.c.h.b16 %v3075
    %v3143 = vunpack.c.l.b16 %v3076
    %v3144 = vunpack.c.h.b16 %v3076
    %v3145 = vunpack.c.l.b16 %v3077
    %v3146 = vunpack.c.h.b16 %v3077
    %v3147 = vunpack.c.l.b16 %v3078
    %v3148 = vunpack.c.h.b16 %v3078
    %v3149 = vunpack.c.l.b16 %v3079
    %v3150 = vunpack.c.h.b16 %v3079
    %v3151 = vunpack.c.l.b16 %v3080
    %v3152 = vunpack.c.h.b16 %v3080
    %v3153 = vunpack.c.l.b16 %v3081
    %v3154 = vunpack.c.h.b16 %v3081
    %v3155 = vunpack.c.l.b16 %v3082
    %v3156 = vunpack.c.h.b16 %v3082
    %v3157 = vunpack.c.l.b16 %v3083
    %v3158 = vunpack.c.h.b16 %v3083
    %v3159 = vunpack.c.l.b16 %v3084
    %v3160 = vunpack.c.h.b16 %v3084
    %v3161 = vunpack.c.l.b16 %v3085
    %v3162 = vunpack.c.h.b16 %v3085
    %v3163 = vunpack.c.l.b16 %v3086
    %v3164 = vunpack.c.h.b16 %v3086
    %v3165 = vunpack.c.l.b16 %v3087
    %v3166 = vunpack.c.h.b16 %v3087
    %v3167 = vunpack.c.l.b16 %v3088
    %v3168 = vunpack.c.h.b16 %v3088
    %v3169 = vunpack.c.l.b16 %v3089
    %v3170 = vunpack.c.h.b16 %v3089
    %v3171 = vunpack.c.l.b16 %v3090
    %v3172 = vunpack.c.h.b16 %v3090
    %v3173 = vunpack.c.l.b16 %v3091
    %v3174 = vunpack.c.h.b16 %v3091
    %v3175 = vunpack.c.l.b16 %v3092
    %v3176 = vunpack.c.h.b16 %v3092
    %v3177 = vunpack.c.l.b16 %v3093
    %v3178 = vunpack.c.h.b16 %v3093
    %v3179 = vunpack.c.l.b16 %v3094
    %v3180 = vunpack.c.h.b16 %v3094
    %v3181 = vunpack.c.l.b16 %v3095
    %v3182 = vunpack.c.h.b16 %v3095
    %v3183 = vunpack.c.l.b16 %v3096
    %v3184 = vunpack.c.h.b16 %v3096
    %v3185 = vunpack.c.l.b16 %v3097
    %v3186 = vunpack.c.h.b16 %v3097
    %v3187 = vunpack.c.l.b16 %v3098
    %v3188 = vunpack.c.h.b16 %v3098
    %v3189 = vunpack.c.l.b16 %v3099
    %v3190 = vunpack.c.h.b16 %v3099
    %v3191 = vunpack.c.l.b16 %v3100
    %v3192 = vunpack.c.h.b16 %v3100
    %v3193 = vunpack.c.l.b16 %v3101
    %v3194 = vunpack.c.h.b16 %v3101
    %v3195 = vunpack.c.l.b16 %v3102
    %v3196 = vunpack.c.h.b16 %v3102
    %v3197 = vunpack.c.l.b16 %v3103
    %v3198 = vunpack.c.h.b16 %v3103
    %v3199 = vunpack.c.l.b16 %v3104
    %v3200 = vunpack.c.h.b16 %v3104
    %v3201 = vpack.c.b16 %v3141, %v3137
    %v3202 = vpack.c.b16 %v3142, %v3138
    %v3203 = vpack.c.b16 %v3143, %v3139
    %v3204 = vpack.c.b16 %v3144, %v3140
    %v3205 = vpack.c.b16 %v3149, %v3145
    %v3206 = vpack.c.b16 %v3150, %v3146
    %v3207 = vpack.c.b16 %v3151, %v3147
    %v3208 = vpack.c.b16 %v3152, %v3148
    %v3209 = vpack.c.b16 %v3157, %v3153
    %v3210 = vpack.c.b16 %v3158, %v3154
    %v3211 = vpack.c.b16 %v3159, %v3155
    %v3212 = vpack.c.b16 %v3160, %v3156
    %v3213 = vpack.c.b16 %v3165, %v3161
    %v3214 = vpack.c.b16 %v3166, %v3162
    %v3215 = vpack.c.b16 %v3167, %v3163
    %v3216 = vpack.c.b16 %v3168, %v3164
    %v3217 = vpack.c.b16 %v3173, %v3169
    %v3218 = vpack.c.b16 %v3174, %v3170
    %v3219 = vpack.c.b16 %v3175, %v3171
    %v3220 = vpack.c.b16 %v3176, %v3172
    %v3221 = vpack.c.b16 %v3181, %v3177
    %v3222 = vpack.c.b16 %v3182, %v3178
    %v3223 = vpack.c.b16 %v3183, %v3179
    %v3224 = vpack.c.b16 %v3184, %v3180
    %v3225 = vpack.c.b16 %v3189, %v3185
    %v3226 = vpack.c.b16 %v3190, %v3186
    %v3227 = vpack.c.b16 %v3191, %v3187
    %v3228 = vpack.c.b16 %v3192, %v3188
    %v3229 = vpack.c.b16 %v3197, %v3193
    %v3230 = vpack.c.b16 %v3198, %v3194
    %v3231 = vpack.c.b16 %v3199, %v3195
    %v3232 = vpack.c.b16 %v3200, %v3196
    %3265 = vmatprep.subr.bf16.mxu0 %v3202
    %3266 = vmatpush1.bf16.msra.mxu0 %v3201
    %3267 = vmatprep.subr.bf16.mxu0 %v3206
    %3268 = vmatpush1.bf16.msra.mxu0 %v3205
    %3269 = vmatprep.subr.bf16.mxu0 %v3210
    %3270 = vmatpush1.bf16.msra.mxu0 %v3209
    %3271 = vmatprep.subr.bf16.mxu0 %v3214
    %3272 = vmatpush1.bf16.msra.mxu0 %v3213
    %3273 = vmatprep.subr.bf16.mxu0 %v3218
    %3274 = vmatpush1.bf16.msra.mxu0 %v3217
    %3275 = vmatprep.subr.bf16.mxu0 %v3222
    %3276 = vmatpush1.bf16.msra.mxu0 %v3221
    %3277 = vmatprep.subr.bf16.mxu0 %v3226
    %3278 = vmatpush1.bf16.msra.mxu0 %v3225
    %3279 = vmatprep.subr.bf16.mxu0 %v3230
    %3280 = vmatpush1.bf16.msra.mxu0 %v3229
    %3281 = vmatprep.subr.bf16.mxu0 0
    %3282 = vmatpush1.bf16.msra.mxu0 0
    %3283 = vmatprep.subr.bf16.mxu0 0
    %3284 = vmatpush1.bf16.msra.mxu0 0
    %3285 = vmatprep.subr.bf16.mxu0 0
    %3286 = vmatpush1.bf16.msra.mxu0 0
    %3287 = vmatprep.subr.bf16.mxu0 0
    %3288 = vmatpush1.bf16.msra.mxu0 0
    %3289 = vmatprep.subr.bf16.mxu0 0
    %3290 = vmatpush1.bf16.msra.mxu0 0
    %3291 = vmatprep.subr.bf16.mxu0 0
    %3292 = vmatpush1.bf16.msra.mxu0 0
    %3293 = vmatprep.subr.bf16.mxu0 0
    %3294 = vmatpush1.bf16.msra.mxu0 0
    %3295 = vmatprep.subr.bf16.mxu0 0
    %3296 = vmatpush1.bf16.msra.mxu0 0
    %3297 = vmatprep.mubr.bf16.mxu0 0
    %3298 = vmatmul.mubr.bf16.gmra.mrb[0].mxu0 %v453
    %v3299 = vpop.f32.mrb[0].mxu0
    %v3300 = vadd.f32 0.0, %v3299
    %v3301 = vpop.f32.mrb[0].mxu0
    %v3302 = vadd.f32 0.0, %v3301
    %v3303 = vpop.f32.mrb[0].mxu0
    %v3304 = vadd.f32 0.0, %v3303
    %v3305 = vpop.f32.mrb[0].mxu0
    %v3306 = vadd.f32 0.0, %v3305
    %3307 = vmatprep.mubr.bf16.mxu0 0
    %3308 = vmatmul.mubr.bf16.gmra.mrb[0].mxu0 %v454
    %v3309 = vpop.f32.mrb[0].mxu0
    %v3310 = vadd.f32 0.0, %v3309
    %v3311 = vpop.f32.mrb[0].mxu0
    %v3312 = vadd.f32 0.0, %v3311
    %v3313 = vpop.f32.mrb[0].mxu0
    %v3314 = vpop.f32.mrb[0].mxu0
    %3315 = vdwg.mxu0
    %3316 = vmatprep.subr.bf16.mxu0 %v3204
    %3317 = vmatpush1.bf16.msra.mxu0 %v3203
    %3318 = vmatprep.subr.bf16.mxu0 %v3208
    %3319 = vmatpush1.bf16.msra.mxu0 %v3207
    %3320 = vmatprep.subr.bf16.mxu0 %v3212
    %3321 = vmatpush1.bf16.msra.mxu0 %v3211
    %3322 = vmatprep.subr.bf16.mxu0 %v3216
    %3323 = vmatpush1.bf16.msra.mxu0 %v3215
    %3324 = vmatprep.subr.bf16.mxu0 %v3220
    %3325 = vmatpush1.bf16.msra.mxu0 %v3219
    %3326 = vmatprep.subr.bf16.mxu0 %v3224
    %3327 = vmatpush1.bf16.msra.mxu0 %v3223
    %3328 = vmatprep.subr.bf16.mxu0 %v3228
    %3329 = vmatpush1.bf16.msra.mxu0 %v3227
    %3330 = vmatprep.subr.bf16.mxu0 %v3232
    %3331 = vmatpush1.bf16.msra.mxu0 %v3231
    %3332 = vmatprep.subr.bf16.mxu0 0
    %3333 = vmatpush1.bf16.msra.mxu0 0
    %3334 = vmatprep.subr.bf16.mxu0 0
    %3335 = vmatpush1.bf16.msra.mxu0 0
    %3336 = vmatprep.subr.bf16.mxu0 0
    %3337 = vmatpush1.bf16.msra.mxu0 0
    %3338 = vmatprep.subr.bf16.mxu0 0
    %3339 = vmatpush1.bf16.msra.mxu0 0
    %3340 = vmatprep.subr.bf16.mxu0 0
    %3341 = vmatpush1.bf16.msra.mxu0 0
    %3342 = vmatprep.subr.bf16.mxu0 0
    %3343 = vmatpush1.bf16.msra.mxu0 0
    %3344 = vmatprep.subr.bf16.mxu0 0
    %3345 = vmatpush1.bf16.msra.mxu0 0
    %3346 = vmatprep.subr.bf16.mxu0 0
    %3347 = vmatpush1.bf16.msra.mxu0 0
    %3348 = vmatprep.mubr.bf16.mxu0 0
    %3349 = vmatmul.mubr.bf16.gmra.mrb[0].mxu0 %v453
    %v3350 = vpop.f32.mrb[0].mxu0
    %v3351 = vadd.f32 0.0, %v3350
    %v3352 = vpop.f32.mrb[0].mxu0
    %v3353 = vadd.f32 0.0, %v3352
    %v3354 = vpop.f32.mrb[0].mxu0
    %v3355 = vadd.f32 0.0, %v3354
    %v3356 = vpop.f32.mrb[0].mxu0
    %v3357 = vadd.f32 0.0, %v3356
    %3358 = vmatprep.mubr.bf16.mxu0 0
    %3359 = vmatmul.mubr.bf16.gmra.mrb[0].mxu0 %v454
    %v3360 = vpop.f32.mrb[0].mxu0
    %v3361 = vadd.f32 0.0, %v3360
    %v3362 = vpop.f32.mrb[0].mxu0
    %v3363 = vadd.f32 0.0, %v3362
    %v3364 = vpop.f32.mrb[0].mxu0
    %v3365 = vpop.f32.mrb[0].mxu0
    %3366 = vdwg.mxu0
    %v3367 = vadd.f32 %v3006, %v3300
    %v3368 = vadd.f32 %v3008, %v3302
    %v3369 = vadd.f32 %v3057, %v3351
    %v3370 = vadd.f32 %v3059, %v3353
    %v3371 = vadd.f32 %v3010, %v3304
    %v3372 = vadd.f32 %v3012, %v3306
    %v3373 = vadd.f32 %v3061, %v3355
    %v3374 = vadd.f32 %v3063, %v3357
    %v3375 = vadd.f32 %v3016, %v3310
    %v3376 = vadd.f32 %v3018, %v3312
    %v3377 = vadd.f32 %v3067, %v3361
    %v3378 = vadd.f32 %v3069, %v3363
    %v3379 = vld [vmem:[%s29] sm:$0xf]
    %v3381 = vlaneseq
    %v3382 = vshrl.u32 %v3381, 7
    %v3383 = vsub.s32 0, %v3382
    %v3384 = vrot.slane %v3379, %v3383
    %v3385 = vlaneseq
    %v3386 = vshrl.u32 %v3385, 7
    %v3387 = vsub.s32 1, %v3386
    %v3388 = vrot.slane %v3379, %v3387
    %v3389 = vlaneseq
    %v3390 = vshrl.u32 %v3389, 7
    %v3391 = vsub.s32 2, %v3390
    %v3392 = vrot.slane %v3379, %v3391
    %v3393 = vlaneseq
    %v3394 = vshrl.u32 %v3393, 7
    %v3395 = vsub.s32 3, %v3394
    %v3396 = vrot.slane %v3379, %v3395
    %v3401 = vadd.f32 %v3367, %v3384
    %v3402 = vadd.f32 %v3368, %v3388
    %v3403 = vadd.f32 %v3369, %v3392
    %v3404 = vadd.f32 %v3370, %v3396
    %v3405 = vadd.f32 %v3371, %v3384
    %v3406 = vadd.f32 %v3372, %v3388
    %v3407 = vadd.f32 %v3373, %v3392
    %v3408 = vadd.f32 %v3374, %v3396
    %v3409 = vadd.f32 %v3375, %v3384
    %v3410 = vadd.f32 %v3376, %v3388
    %v3411 = vadd.f32 %v3377, %v3392
    %v3412 = vadd.f32 %v3378, %v3396
    %v3413 = vmax.f32 %v3401, 0.0
    %v3414 = vmax.f32 %v3402, 0.0
    %v3415 = vmax.f32 %v3403, 0.0
    %v3416 = vmax.f32 %v3404, 0.0
    %v3417 = vmax.f32 %v3405, 0.0
    %v3418 = vmax.f32 %v3406, 0.0
    %v3419 = vmax.f32 %v3407, 0.0
    %v3420 = vmax.f32 %v3408, 0.0
    %v3421 = vmax.f32 %v3409, 0.0
    %v3422 = vmax.f32 %v3410, 0.0
    %v3423 = vmax.f32 %v3411, 0.0
    %v3424 = vmax.f32 %v3412, 0.0
    %v3425 = vpack.c.bf16 %v3417, %v3413
    %v3426 = vpack.c.bf16 %v3418, %v3414
    %v3427 = vpack.c.bf16 %v3419, %v3415
    %v3428 = vpack.c.bf16 %v3420, %v3416
    %v3429 = vpack.c.bf16 %v3421, %v3421
    %v3430 = vpack.c.bf16 %v3422, %v3422
    %v3431 = vpack.c.bf16 %v3423, %v3423
    %v3432 = vpack.c.bf16 %v3424, %v3424
    %v3433 = vld [vmem:[#allocation20] sm:$0xff]
    %v3434 = vld [vmem:[#allocation20 + $0x8] sm:$0xff]
    %v3435 = vld [vmem:[#allocation20 + $0x10] sm:$0xff]
    %v3436 = vld [vmem:[#allocation20 + $0x18] sm:$0xff]
    %v3437 = vld [vmem:[#allocation20 + $0x20] sm:$0xff]
    %v3438 = vld [vmem:[#allocation20 + $0x28] sm:$0xff]
    %v3439 = vld [vmem:[#allocation20 + $0x30] sm:$0xff]
    %v3440 = vld [vmem:[#allocation20 + $0x38] sm:$0xff]
    %v3441 = vld [vmem:[#allocation20 + $0x40] sm:$0xff]
    %v3442 = vld [vmem:[#allocation20 + $0x48] sm:$0xff]
    %v3443 = vld [vmem:[#allocation20 + $0x50] sm:$0xff]
    %v3444 = vld [vmem:[#allocation20 + $0x58] sm:$0xff]
    %v3445 = vld [vmem:[#allocation20 + $0x60] sm:$0xff]
    %v3446 = vld [vmem:[#allocation20 + $0x68] sm:$0xff]
    %v3447 = vld [vmem:[#allocation20 + $0x70] sm:$0xff]
    %v3448 = vld [vmem:[#allocation20 + $0x78] sm:$0xff]
    %v3449 = vld [vmem:[#allocation20 + $0x80] sm:$0xff]
    %v3450 = vld [vmem:[#allocation20 + $0x88] sm:$0xff]
    %v3451 = vld [vmem:[#allocation20 + $0x90] sm:$0xff]
    %v3452 = vld [vmem:[#allocation20 + $0x98] sm:$0xff]
    %v3453 = vld [vmem:[#allocation20 + $0xa0] sm:$0xff]
    %v3454 = vld [vmem:[#allocation20 + $0xa8] sm:$0xff]
    %v3455 = vld [vmem:[#allocation20 + $0xb0] sm:$0xff]
    %v3456 = vld [vmem:[#allocation20 + $0xb8] sm:$0xff]
    %v3457 = vld [vmem:[#allocation20 + $0xc0] sm:$0xff]
    %v3458 = vld [vmem:[#allocation20 + $0xc8] sm:$0xff]
    %v3459 = vld [vmem:[#allocation20 + $0xd0] sm:$0xff]
    %v3460 = vld [vmem:[#allocation20 + $0xd8] sm:$0xff]
    %v3461 = vld [vmem:[#allocation20 + $0xe0] sm:$0xff]
    %v3462 = vld [vmem:[#allocation20 + $0xe8] sm:$0xff]
    %v3463 = vld [vmem:[#allocation20 + $0xf0] sm:$0xff]
    %v3464 = vld [vmem:[#allocation20 + $0xf8] sm:$0xff]
    %v3465 = vld [vmem:[#allocation20 + $0x100] sm:$0xff]
    %v3466 = vld [vmem:[#allocation20 + $0x108] sm:$0xff]
    %v3467 = vld [vmem:[#allocation20 + $0x110] sm:$0xff]
    %v3468 = vld [vmem:[#allocation20 + $0x118] sm:$0xff]
    %v3469 = vld [vmem:[#allocation20 + $0x120] sm:$0xff]
    %v3470 = vld [vmem:[#allocation20 + $0x128] sm:$0xff]
    %v3471 = vld [vmem:[#allocation20 + $0x130] sm:$0xff]
    %v3472 = vld [vmem:[#allocation20 + $0x138] sm:$0xff]
    %v3473 = vld [vmem:[#allocation20 + $0x140] sm:$0xff]
    %v3474 = vld [vmem:[#allocation20 + $0x148] sm:$0xff]
    %v3475 = vld [vmem:[#allocation20 + $0x150] sm:$0xff]
    %v3476 = vld [vmem:[#allocation20 + $0x158] sm:$0xff]
    %v3477 = vld [vmem:[#allocation20 + $0x160] sm:$0xff]
    %v3478 = vld [vmem:[#allocation20 + $0x168] sm:$0xff]
    %v3479 = vld [vmem:[#allocation20 + $0x170] sm:$0xff]
    %v3480 = vld [vmem:[#allocation20 + $0x178] sm:$0xff]
    %v3481 = vld [vmem:[#allocation20 + $0x180] sm:$0xff]
    %v3482 = vld [vmem:[#allocation20 + $0x188] sm:$0xff]
    %v3483 = vld [vmem:[#allocation20 + $0x190] sm:$0xff]
    %v3484 = vld [vmem:[#allocation20 + $0x198] sm:$0xff]
    %v3485 = vld [vmem:[#allocation20 + $0x1a0] sm:$0xff]
    %v3486 = vld [vmem:[#allocation20 + $0x1a8] sm:$0xff]
    %v3487 = vld [vmem:[#allocation20 + $0x1b0] sm:$0xff]
    %v3488 = vld [vmem:[#allocation20 + $0x1b8] sm:$0xff]
    %v3489 = vld [vmem:[#allocation20 + $0x1c0] sm:$0xff]
    %v3490 = vld [vmem:[#allocation20 + $0x1c8] sm:$0xff]
    %v3491 = vld [vmem:[#allocation20 + $0x1d0] sm:$0xff]
    %v3492 = vld [vmem:[#allocation20 + $0x1d8] sm:$0xff]
    %v3493 = vld [vmem:[#allocation20 + $0x1e0] sm:$0xff]
    %v3494 = vld [vmem:[#allocation20 + $0x1e8] sm:$0xff]
    %v3495 = vld [vmem:[#allocation20 + $0x1f0] sm:$0xff]
    %v3496 = vld [vmem:[#allocation20 + $0x1f8] sm:$0xff]
    %v3497 = vld [vmem:[#allocation20 + $0x200] sm:$0xff]
    %v3498 = vld [vmem:[#allocation20 + $0x208] sm:$0xff]
    %v3499 = vld [vmem:[#allocation20 + $0x210] sm:$0xff]
    %v3500 = vld [vmem:[#allocation20 + $0x218] sm:$0xff]
    %v3501 = vld [vmem:[#allocation20 + $0x220] sm:$0xff]
    %v3502 = vld [vmem:[#allocation20 + $0x228] sm:$0xff]
    %v3503 = vld [vmem:[#allocation20 + $0x230] sm:$0xff]
    %v3504 = vld [vmem:[#allocation20 + $0x238] sm:$0xff]
    %v3505 = vld [vmem:[#allocation20 + $0x240] sm:$0xff]
    %v3506 = vld [vmem:[#allocation20 + $0x248] sm:$0xff]
    %v3507 = vld [vmem:[#allocation20 + $0x250] sm:$0xff]
    %v3508 = vld [vmem:[#allocation20 + $0x258] sm:$0xff]
    %v3509 = vld [vmem:[#allocation20 + $0x260] sm:$0xff]
    %v3510 = vld [vmem:[#allocation20 + $0x268] sm:$0xff]
    %v3511 = vld [vmem:[#allocation20 + $0x270] sm:$0xff]
    %v3512 = vld [vmem:[#allocation20 + $0x278] sm:$0xff]
    %v3513 = vld [vmem:[#allocation20 + $0x280] sm:$0xff]
    %v3514 = vld [vmem:[#allocation20 + $0x288] sm:$0xff]
    %v3515 = vld [vmem:[#allocation20 + $0x290] sm:$0xff]
    %v3516 = vld [vmem:[#allocation20 + $0x298] sm:$0xff]
    %v3517 = vld [vmem:[#allocation20 + $0x2a0] sm:$0xff]
    %v3518 = vld [vmem:[#allocation20 + $0x2a8] sm:$0xff]
    %v3519 = vld [vmem:[#allocation20 + $0x2b0] sm:$0xff]
    %v3520 = vld [vmem:[#allocation20 + $0x2b8] sm:$0xff]
    %v3521 = vld [vmem:[#allocation20 + $0x2c0] sm:$0xff]
    %v3522 = vld [vmem:[#allocation20 + $0x2c8] sm:$0xff]
    %v3523 = vld [vmem:[#allocation20 + $0x2d0] sm:$0xff]
    %v3524 = vld [vmem:[#allocation20 + $0x2d8] sm:$0xff]
    %v3525 = vld [vmem:[#allocation20 + $0x2e0] sm:$0xff]
    %v3526 = vld [vmem:[#allocation20 + $0x2e8] sm:$0xff]
    %v3527 = vld [vmem:[#allocation20 + $0x2f0] sm:$0xff]
    %v3528 = vld [vmem:[#allocation20 + $0x2f8] sm:$0xff]
    %v3529 = vld [vmem:[#allocation20 + $0x300] sm:$0xff]
    %v3530 = vld [vmem:[#allocation20 + $0x308] sm:$0xff]
    %v3531 = vld [vmem:[#allocation20 + $0x310] sm:$0xff]
    %v3532 = vld [vmem:[#allocation20 + $0x318] sm:$0xff]
    %v3533 = vld [vmem:[#allocation20 + $0x320] sm:$0xff]
    %v3534 = vld [vmem:[#allocation20 + $0x328] sm:$0xff]
    %v3535 = vld [vmem:[#allocation20 + $0x330] sm:$0xff]
    %v3536 = vld [vmem:[#allocation20 + $0x338] sm:$0xff]
    %v3537 = vld [vmem:[#allocation20 + $0x340] sm:$0xff]
    %v3538 = vld [vmem:[#allocation20 + $0x348] sm:$0xff]
    %v3539 = vld [vmem:[#allocation20 + $0x350] sm:$0xff]
    %v3540 = vld [vmem:[#allocation20 + $0x358] sm:$0xff]
    %v3541 = vld [vmem:[#allocation20 + $0x360] sm:$0xff]
    %v3542 = vld [vmem:[#allocation20 + $0x368] sm:$0xff]
    %v3543 = vld [vmem:[#allocation20 + $0x370] sm:$0xff]
    %v3544 = vld [vmem:[#allocation20 + $0x378] sm:$0xff]
    %v3545 = vld [vmem:[#allocation20 + $0x380] sm:$0xff]
    %v3546 = vld [vmem:[#allocation20 + $0x388] sm:$0xff]
    %v3547 = vld [vmem:[#allocation20 + $0x390] sm:$0xff]
    %v3548 = vld [vmem:[#allocation20 + $0x398] sm:$0xff]
    %v3549 = vld [vmem:[#allocation20 + $0x3a0] sm:$0xff]
    %v3550 = vld [vmem:[#allocation20 + $0x3a8] sm:$0xff]
    %v3551 = vld [vmem:[#allocation20 + $0x3b0] sm:$0xff]
    %v3552 = vld [vmem:[#allocation20 + $0x3b8] sm:$0xff]
    %v3553 = vld [vmem:[#allocation20 + $0x3c0] sm:$0xff]
    %v3554 = vld [vmem:[#allocation20 + $0x3c8] sm:$0xff]
    %v3555 = vld [vmem:[#allocation20 + $0x3d0] sm:$0xff]
    %v3556 = vld [vmem:[#allocation20 + $0x3d8] sm:$0xff]
    %v3557 = vld [vmem:[#allocation20 + $0x3e0] sm:$0xff]
    %v3558 = vld [vmem:[#allocation20 + $0x3e8] sm:$0xff]
    %v3559 = vld [vmem:[#allocation20 + $0x3f0] sm:$0xff]
    %v3560 = vld [vmem:[#allocation20 + $0x3f8] sm:$0xff]
    %v3561 = vld [vmem:[%s33] sm:$0xf]
    %v3563 = vlaneseq
    %v3564 = vshrl.u32 %v3563, 7
    %v3565 = vsub.s32 0, %v3564
    %v3566 = vrot.slane %v3561, %v3565
    %v3567 = vlaneseq
    %v3568 = vshrl.u32 %v3567, 7
    %v3569 = vsub.s32 1, %v3568
    %v3570 = vrot.slane %v3561, %v3569
    %v3571 = vlaneseq
    %v3572 = vshrl.u32 %v3571, 7
    %v3573 = vsub.s32 2, %v3572
    %v3574 = vrot.slane %v3561, %v3573
    %v3575 = vlaneseq
    %v3576 = vshrl.u32 %v3575, 7
    %v3577 = vsub.s32 3, %v3576
    %v3578 = vrot.slane %v3561, %v3577
    %v3711 = vunpack.c.l.b16 %v3433
    %v3712 = vunpack.c.h.b16 %v3433
    %v3713 = vunpack.c.l.b16 %v3434
    %v3714 = vunpack.c.h.b16 %v3434
    %v3715 = vunpack.c.l.b16 %v3435
    %v3716 = vunpack.c.h.b16 %v3435
    %v3717 = vunpack.c.l.b16 %v3436
    %v3718 = vunpack.c.h.b16 %v3436
    %v3719 = vunpack.c.l.b16 %v3437
    %v3720 = vunpack.c.h.b16 %v3437
    %v3721 = vunpack.c.l.b16 %v3438
    %v3722 = vunpack.c.h.b16 %v3438
    %v3723 = vunpack.c.l.b16 %v3439
    %v3724 = vunpack.c.h.b16 %v3439
    %v3725 = vunpack.c.l.b16 %v3440
    %v3726 = vunpack.c.h.b16 %v3440
    %v3727 = vunpack.c.l.b16 %v3441
    %v3728 = vunpack.c.h.b16 %v3441
    %v3729 = vunpack.c.l.b16 %v3442
    %v3730 = vunpack.c.h.b16 %v3442
    %v3731 = vunpack.c.l.b16 %v3443
    %v3732 = vunpack.c.h.b16 %v3443
    %v3733 = vunpack.c.l.b16 %v3444
    %v3734 = vunpack.c.h.b16 %v3444
    %v3735 = vunpack.c.l.b16 %v3445
    %v3736 = vunpack.c.h.b16 %v3445
    %v3737 = vunpack.c.l.b16 %v3446
    %v3738 = vunpack.c.h.b16 %v3446
    %v3739 = vunpack.c.l.b16 %v3447
    %v3740 = vunpack.c.h.b16 %v3447
    %v3741 = vunpack.c.l.b16 %v3448
    %v3742 = vunpack.c.h.b16 %v3448
    %v3743 = vunpack.c.l.b16 %v3449
    %v3744 = vunpack.c.h.b16 %v3449
    %v3745 = vunpack.c.l.b16 %v3450
    %v3746 = vunpack.c.h.b16 %v3450
    %v3747 = vunpack.c.l.b16 %v3451
    %v3748 = vunpack.c.h.b16 %v3451
    %v3749 = vunpack.c.l.b16 %v3452
    %v3750 = vunpack.c.h.b16 %v3452
    %v3751 = vunpack.c.l.b16 %v3453
    %v3752 = vunpack.c.h.b16 %v3453
    %v3753 = vunpack.c.l.b16 %v3454
    %v3754 = vunpack.c.h.b16 %v3454
    %v3755 = vunpack.c.l.b16 %v3455
    %v3756 = vunpack.c.h.b16 %v3455
    %v3757 = vunpack.c.l.b16 %v3456
    %v3758 = vunpack.c.h.b16 %v3456
    %v3759 = vunpack.c.l.b16 %v3457
    %v3760 = vunpack.c.h.b16 %v3457
    %v3761 = vunpack.c.l.b16 %v3458
    %v3762 = vunpack.c.h.b16 %v3458
    %v3763 = vunpack.c.l.b16 %v3459
    %v3764 = vunpack.c.h.b16 %v3459
    %v3765 = vunpack.c.l.b16 %v3460
    %v3766 = vunpack.c.h.b16 %v3460
    %v3767 = vunpack.c.l.b16 %v3461
    %v3768 = vunpack.c.h.b16 %v3461
    %v3769 = vunpack.c.l.b16 %v3462
    %v3770 = vunpack.c.h.b16 %v3462
    %v3771 = vunpack.c.l.b16 %v3463
    %v3772 = vunpack.c.h.b16 %v3463
    %v3773 = vunpack.c.l.b16 %v3464
    %v3774 = vunpack.c.h.b16 %v3464
    %v3775 = vunpack.c.l.b16 %v3465
    %v3776 = vunpack.c.h.b16 %v3465
    %v3777 = vunpack.c.l.b16 %v3466
    %v3778 = vunpack.c.h.b16 %v3466
    %v3779 = vunpack.c.l.b16 %v3467
    %v3780 = vunpack.c.h.b16 %v3467
    %v3781 = vunpack.c.l.b16 %v3468
    %v3782 = vunpack.c.h.b16 %v3468
    %v3783 = vunpack.c.l.b16 %v3469
    %v3784 = vunpack.c.h.b16 %v3469
    %v3785 = vunpack.c.l.b16 %v3470
    %v3786 = vunpack.c.h.b16 %v3470
    %v3787 = vunpack.c.l.b16 %v3471
    %v3788 = vunpack.c.h.b16 %v3471
    %v3789 = vunpack.c.l.b16 %v3472
    %v3790 = vunpack.c.h.b16 %v3472
    %v3791 = vunpack.c.l.b16 %v3473
    %v3792 = vunpack.c.h.b16 %v3473
    %v3793 = vunpack.c.l.b16 %v3474
    %v3794 = vunpack.c.h.b16 %v3474
    %v3795 = vunpack.c.l.b16 %v3475
    %v3796 = vunpack.c.h.b16 %v3475
    %v3797 = vunpack.c.l.b16 %v3476
    %v3798 = vunpack.c.h.b16 %v3476
    %v3799 = vunpack.c.l.b16 %v3477
    %v3800 = vunpack.c.h.b16 %v3477
    %v3801 = vunpack.c.l.b16 %v3478
    %v3802 = vunpack.c.h.b16 %v3478
    %v3803 = vunpack.c.l.b16 %v3479
    %v3804 = vunpack.c.h.b16 %v3479
    %v3805 = vunpack.c.l.b16 %v3480
    %v3806 = vunpack.c.h.b16 %v3480
    %v3807 = vunpack.c.l.b16 %v3481
    %v3808 = vunpack.c.h.b16 %v3481
    %v3809 = vunpack.c.l.b16 %v3482
    %v3810 = vunpack.c.h.b16 %v3482
    %v3811 = vunpack.c.l.b16 %v3483
    %v3812 = vunpack.c.h.b16 %v3483
    %v3813 = vunpack.c.l.b16 %v3484
    %v3814 = vunpack.c.h.b16 %v3484
    %v3815 = vunpack.c.l.b16 %v3485
    %v3816 = vunpack.c.h.b16 %v3485
    %v3817 = vunpack.c.l.b16 %v3486
    %v3818 = vunpack.c.h.b16 %v3486
    %v3819 = vunpack.c.l.b16 %v3487
    %v3820 = vunpack.c.h.b16 %v3487
    %v3821 = vunpack.c.l.b16 %v3488
    %v3822 = vunpack.c.h.b16 %v3488
    %v3823 = vunpack.c.l.b16 %v3489
    %v3824 = vunpack.c.h.b16 %v3489
    %v3825 = vunpack.c.l.b16 %v3490
    %v3826 = vunpack.c.h.b16 %v3490
    %v3827 = vunpack.c.l.b16 %v3491
    %v3828 = vunpack.c.h.b16 %v3491
    %v3829 = vunpack.c.l.b16 %v3492
    %v3830 = vunpack.c.h.b16 %v3492
    %v3831 = vunpack.c.l.b16 %v3493
    %v3832 = vunpack.c.h.b16 %v3493
    %v3833 = vunpack.c.l.b16 %v3494
    %v3834 = vunpack.c.h.b16 %v3494
    %v3835 = vunpack.c.l.b16 %v3495
    %v3836 = vunpack.c.h.b16 %v3495
    %v3837 = vunpack.c.l.b16 %v3496
    %v3838 = vunpack.c.h.b16 %v3496
    %v3839 = vunpack.c.l.b16 %v3497
    %v3840 = vunpack.c.h.b16 %v3497
    %v3841 = vunpack.c.l.b16 %v3498
    %v3842 = vunpack.c.h.b16 %v3498
    %v3843 = vunpack.c.l.b16 %v3499
    %v3844 = vunpack.c.h.b16 %v3499
    %v3845 = vunpack.c.l.b16 %v3500
    %v3846 = vunpack.c.h.b16 %v3500
    %v3847 = vunpack.c.l.b16 %v3501
    %v3848 = vunpack.c.h.b16 %v3501
    %v3849 = vunpack.c.l.b16 %v3502
    %v3850 = vunpack.c.h.b16 %v3502
    %v3851 = vunpack.c.l.b16 %v3503
    %v3852 = vunpack.c.h.b16 %v3503
    %v3853 = vunpack.c.l.b16 %v3504
    %v3854 = vunpack.c.h.b16 %v3504
    %v3855 = vunpack.c.l.b16 %v3505
    %v3856 = vunpack.c.h.b16 %v3505
    %v3857 = vunpack.c.l.b16 %v3506
    %v3858 = vunpack.c.h.b16 %v3506
    %v3859 = vunpack.c.l.b16 %v3507
    %v3860 = vunpack.c.h.b16 %v3507
    %v3861 = vunpack.c.l.b16 %v3508
    %v3862 = vunpack.c.h.b16 %v3508
    %v3863 = vunpack.c.l.b16 %v3509
    %v3864 = vunpack.c.h.b16 %v3509
    %v3865 = vunpack.c.l.b16 %v3510
    %v3866 = vunpack.c.h.b16 %v3510
    %v3867 = vunpack.c.l.b16 %v3511
    %v3868 = vunpack.c.h.b16 %v3511
    %v3869 = vunpack.c.l.b16 %v3512
    %v3870 = vunpack.c.h.b16 %v3512
    %v3871 = vunpack.c.l.b16 %v3513
    %v3872 = vunpack.c.h.b16 %v3513
    %v3873 = vunpack.c.l.b16 %v3514
    %v3874 = vunpack.c.h.b16 %v3514
    %v3875 = vunpack.c.l.b16 %v3515
    %v3876 = vunpack.c.h.b16 %v3515
    %v3877 = vunpack.c.l.b16 %v3516
    %v3878 = vunpack.c.h.b16 %v3516
    %v3879 = vunpack.c.l.b16 %v3517
    %v3880 = vunpack.c.h.b16 %v3517
    %v3881 = vunpack.c.l.b16 %v3518
    %v3882 = vunpack.c.h.b16 %v3518
    %v3883 = vunpack.c.l.b16 %v3519
    %v3884 = vunpack.c.h.b16 %v3519
    %v3885 = vunpack.c.l.b16 %v3520
    %v3886 = vunpack.c.h.b16 %v3520
    %v3887 = vunpack.c.l.b16 %v3521
    %v3888 = vunpack.c.h.b16 %v3521
    %v3889 = vunpack.c.l.b16 %v3522
    %v3890 = vunpack.c.h.b16 %v3522
    %v3891 = vunpack.c.l.b16 %v3523
    %v3892 = vunpack.c.h.b16 %v3523
    %v3893 = vunpack.c.l.b16 %v3524
    %v3894 = vunpack.c.h.b16 %v3524
    %v3895 = vunpack.c.l.b16 %v3525
    %v3896 = vunpack.c.h.b16 %v3525
    %v3897 = vunpack.c.l.b16 %v3526
    %v3898 = vunpack.c.h.b16 %v3526
    %v3899 = vunpack.c.l.b16 %v3527
    %v3900 = vunpack.c.h.b16 %v3527
    %v3901 = vunpack.c.l.b16 %v3528
    %v3902 = vunpack.c.h.b16 %v3528
    %v3903 = vunpack.c.l.b16 %v3529
    %v3904 = vunpack.c.h.b16 %v3529
    %v3905 = vunpack.c.l.b16 %v3530
    %v3906 = vunpack.c.h.b16 %v3530
    %v3907 = vunpack.c.l.b16 %v3531
    %v3908 = vunpack.c.h.b16 %v3531
    %v3909 = vunpack.c.l.b16 %v3532
    %v3910 = vunpack.c.h.b16 %v3532
    %v3911 = vunpack.c.l.b16 %v3533
    %v3912 = vunpack.c.h.b16 %v3533
    %v3913 = vunpack.c.l.b16 %v3534
    %v3914 = vunpack.c.h.b16 %v3534
    %v3915 = vunpack.c.l.b16 %v3535
    %v3916 = vunpack.c.h.b16 %v3535
    %v3917 = vunpack.c.l.b16 %v3536
    %v3918 = vunpack.c.h.b16 %v3536
    %v3919 = vunpack.c.l.b16 %v3537
    %v3920 = vunpack.c.h.b16 %v3537
    %v3921 = vunpack.c.l.b16 %v3538
    %v3922 = vunpack.c.h.b16 %v3538
    %v3923 = vunpack.c.l.b16 %v3539
    %v3924 = vunpack.c.h.b16 %v3539
    %v3925 = vunpack.c.l.b16 %v3540
    %v3926 = vunpack.c.h.b16 %v3540
    %v3927 = vunpack.c.l.b16 %v3541
    %v3928 = vunpack.c.h.b16 %v3541
    %v3929 = vunpack.c.l.b16 %v3542
    %v3930 = vunpack.c.h.b16 %v3542
    %v3931 = vunpack.c.l.b16 %v3543
    %v3932 = vunpack.c.h.b16 %v3543
    %v3933 = vunpack.c.l.b16 %v3544
    %v3934 = vunpack.c.h.b16 %v3544
    %v3935 = vunpack.c.l.b16 %v3545
    %v3936 = vunpack.c.h.b16 %v3545
    %v3937 = vunpack.c.l.b16 %v3546
    %v3938 = vunpack.c.h.b16 %v3546
    %v3939 = vunpack.c.l.b16 %v3547
    %v3940 = vunpack.c.h.b16 %v3547
    %v3941 = vunpack.c.l.b16 %v3548
    %v3942 = vunpack.c.h.b16 %v3548
    %v3943 = vunpack.c.l.b16 %v3549
    %v3944 = vunpack.c.h.b16 %v3549
    %v3945 = vunpack.c.l.b16 %v3550
    %v3946 = vunpack.c.h.b16 %v3550
    %v3947 = vunpack.c.l.b16 %v3551
    %v3948 = vunpack.c.h.b16 %v3551
    %v3949 = vunpack.c.l.b16 %v3552
    %v3950 = vunpack.c.h.b16 %v3552
    %v3951 = vunpack.c.l.b16 %v3553
    %v3952 = vunpack.c.h.b16 %v3553
    %v3953 = vunpack.c.l.b16 %v3554
    %v3954 = vunpack.c.h.b16 %v3554
    %v3955 = vunpack.c.l.b16 %v3555
    %v3956 = vunpack.c.h.b16 %v3555
    %v3957 = vunpack.c.l.b16 %v3556
    %v3958 = vunpack.c.h.b16 %v3556
    %v3959 = vunpack.c.l.b16 %v3557
    %v3960 = vunpack.c.h.b16 %v3557
    %v3961 = vunpack.c.l.b16 %v3558
    %v3962 = vunpack.c.h.b16 %v3558
    %v3963 = vunpack.c.l.b16 %v3559
    %v3964 = vunpack.c.h.b16 %v3559
    %v3965 = vunpack.c.l.b16 %v3560
    %v3966 = vunpack.c.h.b16 %v3560
    %v3967 = vpack.c.b16 %v3715, %v3711
    %v3968 = vpack.c.b16 %v3716, %v3712
    %v3969 = vpack.c.b16 %v3717, %v3713
    %v3970 = vpack.c.b16 %v3718, %v3714
    %v3971 = vpack.c.b16 %v3723, %v3719
    %v3972 = vpack.c.b16 %v3724, %v3720
    %v3973 = vpack.c.b16 %v3725, %v3721
    %v3974 = vpack.c.b16 %v3726, %v3722
    %v3975 = vpack.c.b16 %v3731, %v3727
    %v3976 = vpack.c.b16 %v3732, %v3728
    %v3977 = vpack.c.b16 %v3733, %v3729
    %v3978 = vpack.c.b16 %v3734, %v3730
    %v3979 = vpack.c.b16 %v3739, %v3735
    %v3980 = vpack.c.b16 %v3740, %v3736
    %v3981 = vpack.c.b16 %v3741, %v3737
    %v3982 = vpack.c.b16 %v3742, %v3738
    %v3983 = vpack.c.b16 %v3747, %v3743
    %v3984 = vpack.c.b16 %v3748, %v3744
    %v3985 = vpack.c.b16 %v3749, %v3745
    %v3986 = vpack.c.b16 %v3750, %v3746
    %v3987 = vpack.c.b16 %v3755, %v3751
    %v3988 = vpack.c.b16 %v3756, %v3752
    %v3989 = vpack.c.b16 %v3757, %v3753
    %v3990 = vpack.c.b16 %v3758, %v3754
    %v3991 = vpack.c.b16 %v3763, %v3759
    %v3992 = vpack.c.b16 %v3764, %v3760
    %v3993 = vpack.c.b16 %v3765, %v3761
    %v3994 = vpack.c.b16 %v3766, %v3762
    %v3995 = vpack.c.b16 %v3771, %v3767
    %v3996 = vpack.c.b16 %v3772, %v3768
    %v3997 = vpack.c.b16 %v3773, %v3769
    %v3998 = vpack.c.b16 %v3774, %v3770
    %v3999 = vpack.c.b16 %v3779, %v3775
    %v4000 = vpack.c.b16 %v3780, %v3776
    %v4001 = vpack.c.b16 %v3781, %v3777
    %v4002 = vpack.c.b16 %v3782, %v3778
    %v4003 = vpack.c.b16 %v3787, %v3783
    %v4004 = vpack.c.b16 %v3788, %v3784
    %v4005 = vpack.c.b16 %v3789, %v3785
    %v4006 = vpack.c.b16 %v3790, %v3786
    %v4007 = vpack.c.b16 %v3795, %v3791
    %v4008 = vpack.c.b16 %v3796, %v3792
    %v4009 = vpack.c.b16 %v3797, %v3793
    %v4010 = vpack.c.b16 %v3798, %v3794
    %v4011 = vpack.c.b16 %v3803, %v3799
    %v4012 = vpack.c.b16 %v3804, %v3800
    %v4013 = vpack.c.b16 %v3805, %v3801
    %v4014 = vpack.c.b16 %v3806, %v3802
    %v4015 = vpack.c.b16 %v3811, %v3807
    %v4016 = vpack.c.b16 %v3812, %v3808
    %v4017 = vpack.c.b16 %v3813, %v3809
    %v4018 = vpack.c.b16 %v3814, %v3810
    %v4019 = vpack.c.b16 %v3819, %v3815
    %v4020 = vpack.c.b16 %v3820, %v3816
    %v4021 = vpack.c.b16 %v3821, %v3817
    %v4022 = vpack.c.b16 %v3822, %v3818
    %v4023 = vpack.c.b16 %v3827, %v3823
    %v4024 = vpack.c.b16 %v3828, %v3824
    %v4025 = vpack.c.b16 %v3829, %v3825
    %v4026 = vpack.c.b16 %v3830, %v3826
    %v4027 = vpack.c.b16 %v3835, %v3831
    %v4028 = vpack.c.b16 %v3836, %v3832
    %v4029 = vpack.c.b16 %v3837, %v3833
    %v4030 = vpack.c.b16 %v3838, %v3834
    %v4031 = vpack.c.b16 %v3843, %v3839
    %v4032 = vpack.c.b16 %v3844, %v3840
    %v4033 = vpack.c.b16 %v3845, %v3841
    %v4034 = vpack.c.b16 %v3846, %v3842
    %v4035 = vpack.c.b16 %v3851, %v3847
    %v4036 = vpack.c.b16 %v3852, %v3848
    %v4037 = vpack.c.b16 %v3853, %v3849
    %v4038 = vpack.c.b16 %v3854, %v3850
    %v4039 = vpack.c.b16 %v3859, %v3855
    %v4040 = vpack.c.b16 %v3860, %v3856
    %v4041 = vpack.c.b16 %v3861, %v3857
    %v4042 = vpack.c.b16 %v3862, %v3858
    %v4043 = vpack.c.b16 %v3867, %v3863
    %v4044 = vpack.c.b16 %v3868, %v3864
    %v4045 = vpack.c.b16 %v3869, %v3865
    %v4046 = vpack.c.b16 %v3870, %v3866
    %v4047 = vpack.c.b16 %v3875, %v3871
    %v4048 = vpack.c.b16 %v3876, %v3872
    %v4049 = vpack.c.b16 %v3877, %v3873
    %v4050 = vpack.c.b16 %v3878, %v3874
    %v4051 = vpack.c.b16 %v3883, %v3879
    %v4052 = vpack.c.b16 %v3884, %v3880
    %v4053 = vpack.c.b16 %v3885, %v3881
    %v4054 = vpack.c.b16 %v3886, %v3882
    %v4055 = vpack.c.b16 %v3891, %v3887
    %v4056 = vpack.c.b16 %v3892, %v3888
    %v4057 = vpack.c.b16 %v3893, %v3889
    %v4058 = vpack.c.b16 %v3894, %v3890
    %v4059 = vpack.c.b16 %v3899, %v3895
    %v4060 = vpack.c.b16 %v3900, %v3896
    %v4061 = vpack.c.b16 %v3901, %v3897
    %v4062 = vpack.c.b16 %v3902, %v3898
    %v4063 = vpack.c.b16 %v3907, %v3903
    %v4064 = vpack.c.b16 %v3908, %v3904
    %v4065 = vpack.c.b16 %v3909, %v3905
    %v4066 = vpack.c.b16 %v3910, %v3906
    %v4067 = vpack.c.b16 %v3915, %v3911
    %v4068 = vpack.c.b16 %v3916, %v3912
    %v4069 = vpack.c.b16 %v3917, %v3913
    %v4070 = vpack.c.b16 %v3918, %v3914
    %v4071 = vpack.c.b16 %v3923, %v3919
    %v4072 = vpack.c.b16 %v3924, %v3920
    %v4073 = vpack.c.b16 %v3925, %v3921
    %v4074 = vpack.c.b16 %v3926, %v3922
    %v4075 = vpack.c.b16 %v3931, %v3927
    %v4076 = vpack.c.b16 %v3932, %v3928
    %v4077 = vpack.c.b16 %v3933, %v3929
    %v4078 = vpack.c.b16 %v3934, %v3930
    %v4079 = vpack.c.b16 %v3939, %v3935
    %v4080 = vpack.c.b16 %v3940, %v3936
    %v4081 = vpack.c.b16 %v3941, %v3937
    %v4082 = vpack.c.b16 %v3942, %v3938
    %v4083 = vpack.c.b16 %v3947, %v3943
    %v4084 = vpack.c.b16 %v3948, %v3944
    %v4085 = vpack.c.b16 %v3949, %v3945
    %v4086 = vpack.c.b16 %v3950, %v3946
    %v4087 = vpack.c.b16 %v3955, %v3951
    %v4088 = vpack.c.b16 %v3956, %v3952
    %v4089 = vpack.c.b16 %v3957, %v3953
    %v4090 = vpack.c.b16 %v3958, %v3954
    %v4091 = vpack.c.b16 %v3963, %v3959
    %v4092 = vpack.c.b16 %v3964, %v3960
    %v4093 = vpack.c.b16 %v3965, %v3961
    %v4094 = vpack.c.b16 %v3966, %v3962
    %4223 = vmatprep.subr.bf16.mxu0 %v3968
    %4224 = vmatpush1.bf16.msra.mxu0 %v3967
    %4225 = vmatprep.subr.bf16.mxu0 %v3972
    %4226 = vmatpush1.bf16.msra.mxu0 %v3971
    %4227 = vmatprep.subr.bf16.mxu0 %v3976
    %4228 = vmatpush1.bf16.msra.mxu0 %v3975
    %4229 = vmatprep.subr.bf16.mxu0 %v3980
    %4230 = vmatpush1.bf16.msra.mxu0 %v3979
    %4231 = vmatprep.subr.bf16.mxu0 %v3984
    %4232 = vmatpush1.bf16.msra.mxu0 %v3983
    %4233 = vmatprep.subr.bf16.mxu0 %v3988
    %4234 = vmatpush1.bf16.msra.mxu0 %v3987
    %4235 = vmatprep.subr.bf16.mxu0 %v3992
    %4236 = vmatpush1.bf16.msra.mxu0 %v3991
    %4237 = vmatprep.subr.bf16.mxu0 %v3996
    %4238 = vmatpush1.bf16.msra.mxu0 %v3995
    %4239 = vmatprep.subr.bf16.mxu0 %v4000
    %4240 = vmatpush1.bf16.msra.mxu0 %v3999
    %4241 = vmatprep.subr.bf16.mxu0 %v4004
    %4242 = vmatpush1.bf16.msra.mxu0 %v4003
    %4243 = vmatprep.subr.bf16.mxu0 %v4008
    %4244 = vmatpush1.bf16.msra.mxu0 %v4007
    %4245 = vmatprep.subr.bf16.mxu0 %v4012
    %4246 = vmatpush1.bf16.msra.mxu0 %v4011
    %4247 = vmatprep.subr.bf16.mxu0 %v4016
    %4248 = vmatpush1.bf16.msra.mxu0 %v4015
    %4249 = vmatprep.subr.bf16.mxu0 %v4020
    %4250 = vmatpush1.bf16.msra.mxu0 %v4019
    %4251 = vmatprep.subr.bf16.mxu0 %v4024
    %4252 = vmatpush1.bf16.msra.mxu0 %v4023
    %4253 = vmatprep.subr.bf16.mxu0 %v4028
    %4254 = vmatpush1.bf16.msra.mxu0 %v4027
    %4255 = vmatprep.mubr.bf16.mxu0 %v3426
    %4256 = vmatmul.mubr.bf16.gmra.mrb[0].mxu0 %v3425
    %v4257 = vpop.f32.mrb[0].mxu0
    %v4258 = vadd.f32 %v3566, %v4257
    %v4259 = vpop.f32.mrb[0].mxu0
    %v4260 = vadd.f32 %v3570, %v4259
    %v4261 = vpop.f32.mrb[0].mxu0
    %v4262 = vadd.f32 %v3566, %v4261
    %v4263 = vpop.f32.mrb[0].mxu0
    %v4264 = vadd.f32 %v3570, %v4263
    %4265 = vmatprep.mubr.bf16.mxu0 %v3430
    %4266 = vmatmul.mubr.bf16.gmra.mrb[0].mxu0 %v3429
    %v4267 = vpop.f32.mrb[0].mxu0
    %v4268 = vadd.f32 %v3566, %v4267
    %v4269 = vpop.f32.mrb[0].mxu0
    %v4270 = vadd.f32 %v3570, %v4269
    %v4271 = vpop.f32.mrb[0].mxu0
    %v4272 = vpop.f32.mrb[0].mxu0
    %4273 = vdwg.mxu0
    %4274 = vmatprep.subr.bf16.mxu0 %v4032
    %4275 = vmatpush1.bf16.msra.mxu0 %v4031
    %4276 = vmatprep.subr.bf16.mxu0 %v4036
    %4277 = vmatpush1.bf16.msra.mxu0 %v4035
    %4278 = vmatprep.subr.bf16.mxu0 %v4040
    %4279 = vmatpush1.bf16.msra.mxu0 %v4039
    %4280 = vmatprep.subr.bf16.mxu0 %v4044
    %4281 = vmatpush1.bf16.msra.mxu0 %v4043
    %4282 = vmatprep.subr.bf16.mxu0 %v4048
    %4283 = vmatpush1.bf16.msra.mxu0 %v4047
    %4284 = vmatprep.subr.bf16.mxu0 %v4052
    %4285 = vmatpush1.bf16.msra.mxu0 %v4051
    %4286 = vmatprep.subr.bf16.mxu0 %v4056
    %4287 = vmatpush1.bf16.msra.mxu0 %v4055
    %4288 = vmatprep.subr.bf16.mxu0 %v4060
    %4289 = vmatpush1.bf16.msra.mxu0 %v4059
    %4290 = vmatprep.subr.bf16.mxu0 %v4064
    %4291 = vmatpush1.bf16.msra.mxu0 %v4063
    %4292 = vmatprep.subr.bf16.mxu0 %v4068
    %4293 = vmatpush1.bf16.msra.mxu0 %v4067
    %4294 = vmatprep.subr.bf16.mxu0 %v4072
    %4295 = vmatpush1.bf16.msra.mxu0 %v4071
    %4296 = vmatprep.subr.bf16.mxu0 %v4076
    %4297 = vmatpush1.bf16.msra.mxu0 %v4075
    %4298 = vmatprep.subr.bf16.mxu0 %v4080
    %4299 = vmatpush1.bf16.msra.mxu0 %v4079
    %4300 = vmatprep.subr.bf16.mxu0 %v4084
    %4301 = vmatpush1.bf16.msra.mxu0 %v4083
    %4302 = vmatprep.subr.bf16.mxu0 %v4088
    %4303 = vmatpush1.bf16.msra.mxu0 %v4087
    %4304 = vmatprep.subr.bf16.mxu0 %v4092
    %4305 = vmatpush1.bf16.msra.mxu0 %v4091
    %4306 = vmatprep.mubr.bf16.mxu0 %v3428
    %4307 = vmatmul.mubr.bf16.gmra.mrb[0].mxu0 %v3427
    %v4308 = vpop.f32.mrb[0].mxu0
    %v4309 = vadd.f32 %v4258, %v4308
    %v4310 = vpop.f32.mrb[0].mxu0
    %v4311 = vadd.f32 %v4260, %v4310
    %v4312 = vpop.f32.mrb[0].mxu0
    %v4313 = vadd.f32 %v4262, %v4312
    %v4314 = vpop.f32.mrb[0].mxu0
    %v4315 = vadd.f32 %v4264, %v4314
    %4316 = vmatprep.mubr.bf16.mxu0 %v3432
    %4317 = vmatmul.mubr.bf16.gmra.mrb[0].mxu0 %v3431
    %v4318 = vpop.f32.mrb[0].mxu0
    %v4319 = vadd.f32 %v4268, %v4318
    %v4320 = vpop.f32.mrb[0].mxu0
    %v4321 = vadd.f32 %v4270, %v4320
    %v4322 = vpop.f32.mrb[0].mxu0
    %v4323 = vpop.f32.mrb[0].mxu0
    %4324 = vdwg.mxu0
    %4325 = vmatprep.subr.bf16.mxu0 %v3970
    %4326 = vmatpush1.bf16.msra.mxu0 %v3969
    %4327 = vmatprep.subr.bf16.mxu0 %v3974
    %4328 = vmatpush1.bf16.msra.mxu0 %v3973
    %4329 = vmatprep.subr.bf16.mxu0 %v3978
    %4330 = vmatpush1.bf16.msra.mxu0 %v3977
    %4331 = vmatprep.subr.bf16.mxu0 %v3982
    %4332 = vmatpush1.bf16.msra.mxu0 %v3981
    %4333 = vmatprep.subr.bf16.mxu0 %v3986
    %4334 = vmatpush1.bf16.msra.mxu0 %v3985
    %4335 = vmatprep.subr.bf16.mxu0 %v3990
    %4336 = vmatpush1.bf16.msra.mxu0 %v3989
    %4337 = vmatprep.subr.bf16.mxu0 %v3994
    %4338 = vmatpush1.bf16.msra.mxu0 %v3993
    %4339 = vmatprep.subr.bf16.mxu0 %v3998
    %4340 = vmatpush1.bf16.msra.mxu0 %v3997
    %4341 = vmatprep.subr.bf16.mxu0 %v4002
    %4342 = vmatpush1.bf16.msra.mxu0 %v4001
    %4343 = vmatprep.subr.bf16.mxu0 %v4006
    %4344 = vmatpush1.bf16.msra.mxu0 %v4005
    %4345 = vmatprep.subr.bf16.mxu0 %v4010
    %4346 = vmatpush1.bf16.msra.mxu0 %v4009
    %4347 = vmatprep.subr.bf16.mxu0 %v4014
    %4348 = vmatpush1.bf16.msra.mxu0 %v4013
    %4349 = vmatprep.subr.bf16.mxu0 %v4018
    %4350 = vmatpush1.bf16.msra.mxu0 %v4017
    %4351 = vmatprep.subr.bf16.mxu0 %v4022
    %4352 = vmatpush1.bf16.msra.mxu0 %v4021
    %4353 = vmatprep.subr.bf16.mxu0 %v4026
    %4354 = vmatpush1.bf16.msra.mxu0 %v4025
    %4355 = vmatprep.subr.bf16.mxu0 %v4030
    %4356 = vmatpush1.bf16.msra.mxu0 %v4029
    %4357 = vmatprep.mubr.bf16.mxu0 %v3426
    %4358 = vmatmul.mubr.bf16.gmra.mrb[0].mxu0 %v3425
    %v4359 = vpop.f32.mrb[0].mxu0
    %v4360 = vadd.f32 %v3574, %v4359
    %v4361 = vpop.f32.mrb[0].mxu0
    %v4362 = vadd.f32 %v3578, %v4361
    %v4363 = vpop.f32.mrb[0].mxu0
    %v4364 = vadd.f32 %v3574, %v4363
    %v4365 = vpop.f32.mrb[0].mxu0
    %v4366 = vadd.f32 %v3578, %v4365
    %4367 = vmatprep.mubr.bf16.mxu0 %v3430
    %4368 = vmatmul.mubr.bf16.gmra.mrb[0].mxu0 %v3429
    %v4369 = vpop.f32.mrb[0].mxu0
    %v4370 = vadd.f32 %v3574, %v4369
    %v4371 = vpop.f32.mrb[0].mxu0
    %v4372 = vadd.f32 %v3578, %v4371
    %v4373 = vpop.f32.mrb[0].mxu0
    %v4374 = vpop.f32.mrb[0].mxu0
    %4375 = vdwg.mxu0
    %4376 = vmatprep.subr.bf16.mxu0 %v4034
    %4377 = vmatpush1.bf16.msra.mxu0 %v4033
    %4378 = vmatprep.subr.bf16.mxu0 %v4038
    %4379 = vmatpush1.bf16.msra.mxu0 %v4037
    %4380 = vmatprep.subr.bf16.mxu0 %v4042
    %4381 = vmatpush1.bf16.msra.mxu0 %v4041
    %4382 = vmatprep.subr.bf16.mxu0 %v4046
    %4383 = vmatpush1.bf16.msra.mxu0 %v4045
    %4384 = vmatprep.subr.bf16.mxu0 %v4050
    %4385 = vmatpush1.bf16.msra.mxu0 %v4049
    %4386 = vmatprep.subr.bf16.mxu0 %v4054
    %4387 = vmatpush1.bf16.msra.mxu0 %v4053
    %4388 = vmatprep.subr.bf16.mxu0 %v4058
    %4389 = vmatpush1.bf16.msra.mxu0 %v4057
    %4390 = vmatprep.subr.bf16.mxu0 %v4062
    %4391 = vmatpush1.bf16.msra.mxu0 %v4061
    %4392 = vmatprep.subr.bf16.mxu0 %v4066
    %4393 = vmatpush1.bf16.msra.mxu0 %v4065
    %4394 = vmatprep.subr.bf16.mxu0 %v4070
    %4395 = vmatpush1.bf16.msra.mxu0 %v4069
    %4396 = vmatprep.subr.bf16.mxu0 %v4074
    %4397 = vmatpush1.bf16.msra.mxu0 %v4073
    %4398 = vmatprep.subr.bf16.mxu0 %v4078
    %4399 = vmatpush1.bf16.msra.mxu0 %v4077
    %4400 = vmatprep.subr.bf16.mxu0 %v4082
    %4401 = vmatpush1.bf16.msra.mxu0 %v4081
    %4402 = vmatprep.subr.bf16.mxu0 %v4086
    %4403 = vmatpush1.bf16.msra.mxu0 %v4085
    %4404 = vmatprep.subr.bf16.mxu0 %v4090
    %4405 = vmatpush1.bf16.msra.mxu0 %v4089
    %4406 = vmatprep.subr.bf16.mxu0 %v4094
    %4407 = vmatpush1.bf16.msra.mxu0 %v4093
    %4408 = vmatprep.mubr.bf16.mxu0 %v3428
    %4409 = vmatmul.mubr.bf16.gmra.mrb[0].mxu0 %v3427
    %v4410 = vpop.f32.mrb[0].mxu0
    %v4411 = vadd.f32 %v4360, %v4410
    %v4412 = vpop.f32.mrb[0].mxu0
    %v4413 = vadd.f32 %v4362, %v4412
    %v4414 = vpop.f32.mrb[0].mxu0
    %v4415 = vadd.f32 %v4364, %v4414
    %v4416 = vpop.f32.mrb[0].mxu0
    %v4417 = vadd.f32 %v4366, %v4416
    %4418 = vmatprep.mubr.bf16.mxu0 %v3432
    %4419 = vmatmul.mubr.bf16.gmra.mrb[0].mxu0 %v3431
    %v4420 = vpop.f32.mrb[0].mxu0
    %v4421 = vadd.f32 %v4370, %v4420
    %v4422 = vpop.f32.mrb[0].mxu0
    %v4423 = vadd.f32 %v4372, %v4422
    %v4424 = vpop.f32.mrb[0].mxu0
    %v4425 = vpop.f32.mrb[0].mxu0
    %4426 = vdwg.mxu0
    %v4427 = vmax.f32 %v4309, 0.0
    %v4428 = vmax.f32 %v4311, 0.0
    %v4429 = vmax.f32 %v4411, 0.0
    %v4430 = vmax.f32 %v4413, 0.0
    %v4431 = vmax.f32 %v4313, 0.0
    %v4432 = vmax.f32 %v4315, 0.0
    %v4433 = vmax.f32 %v4415, 0.0
    %v4434 = vmax.f32 %v4417, 0.0
    %v4435 = vmax.f32 %v4319, 0.0
    %v4436 = vmax.f32 %v4321, 0.0
    %v4437 = vmax.f32 %v4421, 0.0
    %v4438 = vmax.f32 %v4423, 0.0
    %v4439 = vpack.c.bf16 %v4431, %v4427
    %v4440 = vpack.c.bf16 %v4432, %v4428
    %v4441 = vpack.c.bf16 %v4433, %v4429
    %v4442 = vpack.c.bf16 %v4434, %v4430
    %v4443 = vpack.c.bf16 %v4435, %v4435
    %v4444 = vpack.c.bf16 %v4436, %v4436
    %v4445 = vpack.c.bf16 %v4437, %v4437
    %v4446 = vpack.c.bf16 %v4438, %v4438
    %v4447 = vld [vmem:[#allocation22] sm:$0xf]
    %v4448 = vld [vmem:[#allocation22 + $0x4] sm:$0xf]
    %v4449 = vld [vmem:[#allocation22 + $0x8] sm:$0xf]
    %v4450 = vld [vmem:[#allocation22 + $0xc] sm:$0xf]
    %v4451 = vld [vmem:[#allocation22 + $0x10] sm:$0xf]
    %v4452 = vld [vmem:[#allocation22 + $0x14] sm:$0xf]
    %v4453 = vld [vmem:[#allocation22 + $0x18] sm:$0xf]
    %v4454 = vld [vmem:[#allocation22 + $0x1c] sm:$0xf]
    %v4455 = vld [vmem:[#allocation22 + $0x20] sm:$0xf]
    %v4456 = vld [vmem:[#allocation22 + $0x24] sm:$0xf]
    %v4457 = vld [vmem:[#allocation22 + $0x28] sm:$0xf]
    %v4458 = vld [vmem:[#allocation22 + $0x2c] sm:$0xf]
    %v4459 = vld [vmem:[#allocation22 + $0x30] sm:$0xf]
    %v4460 = vld [vmem:[#allocation22 + $0x34] sm:$0xf]
    %v4461 = vld [vmem:[#allocation22 + $0x38] sm:$0xf]
    %v4462 = vld [vmem:[#allocation22 + $0x3c] sm:$0xf]
    %v4463 = vld [vmem:[#allocation22 + $0x40] sm:$0xf]
    %v4464 = vld [vmem:[#allocation22 + $0x44] sm:$0xf]
    %v4465 = vld [vmem:[#allocation22 + $0x48] sm:$0xf]
    %v4466 = vld [vmem:[#allocation22 + $0x4c] sm:$0xf]
    %v4467 = vld [vmem:[#allocation22 + $0x50] sm:$0xf]
    %v4468 = vld [vmem:[#allocation22 + $0x54] sm:$0xf]
    %v4469 = vld [vmem:[#allocation22 + $0x58] sm:$0xf]
    %v4470 = vld [vmem:[#allocation22 + $0x5c] sm:$0xf]
    %v4471 = vld [vmem:[#allocation22 + $0x60] sm:$0xf]
    %v4472 = vld [vmem:[#allocation22 + $0x64] sm:$0xf]
    %v4473 = vld [vmem:[#allocation22 + $0x68] sm:$0xf]
    %v4474 = vld [vmem:[#allocation22 + $0x6c] sm:$0xf]
    %v4475 = vld [vmem:[#allocation22 + $0x70] sm:$0xf]
    %v4476 = vld [vmem:[#allocation22 + $0x74] sm:$0xf]
    %v4477 = vld [vmem:[#allocation22 + $0x78] sm:$0xf]
    %v4478 = vld [vmem:[#allocation22 + $0x7c] sm:$0xf]
    %v4479 = vld [vmem:[#allocation22 + $0x80] sm:$0xf]
    %v4480 = vld [vmem:[#allocation22 + $0x84] sm:$0xf]
    %v4481 = vld [vmem:[#allocation22 + $0x88] sm:$0xf]
    %v4482 = vld [vmem:[#allocation22 + $0x8c] sm:$0xf]
    %v4483 = vld [vmem:[#allocation22 + $0x90] sm:$0xf]
    %v4484 = vld [vmem:[#allocation22 + $0x94] sm:$0xf]
    %v4485 = vld [vmem:[#allocation22 + $0x98] sm:$0xf]
    %v4486 = vld [vmem:[#allocation22 + $0x9c] sm:$0xf]
    %v4487 = vld [vmem:[#allocation22 + $0xa0] sm:$0xf]
    %v4488 = vld [vmem:[#allocation22 + $0xa4] sm:$0xf]
    %v4489 = vld [vmem:[#allocation22 + $0xa8] sm:$0xf]
    %v4490 = vld [vmem:[#allocation22 + $0xac] sm:$0xf]
    %v4491 = vld [vmem:[#allocation22 + $0xb0] sm:$0xf]
    %v4492 = vld [vmem:[#allocation22 + $0xb4] sm:$0xf]
    %v4493 = vld [vmem:[#allocation22 + $0xb8] sm:$0xf]
    %v4494 = vld [vmem:[#allocation22 + $0xbc] sm:$0xf]
    %v4495 = vld [vmem:[#allocation22 + $0xc0] sm:$0xf]
    %v4496 = vld [vmem:[#allocation22 + $0xc4] sm:$0xf]
    %v4497 = vld [vmem:[#allocation22 + $0xc8] sm:$0xf]
    %v4498 = vld [vmem:[#allocation22 + $0xcc] sm:$0xf]
    %v4499 = vld [vmem:[#allocation22 + $0xd0] sm:$0xf]
    %v4500 = vld [vmem:[#allocation22 + $0xd4] sm:$0xf]
    %v4501 = vld [vmem:[#allocation22 + $0xd8] sm:$0xf]
    %v4502 = vld [vmem:[#allocation22 + $0xdc] sm:$0xf]
    %v4503 = vld [vmem:[#allocation22 + $0xe0] sm:$0xf]
    %v4504 = vld [vmem:[#allocation22 + $0xe4] sm:$0xf]
    %v4505 = vld [vmem:[#allocation22 + $0xe8] sm:$0xf]
    %v4506 = vld [vmem:[#allocation22 + $0xec] sm:$0xf]
    %v4507 = vld [vmem:[#allocation22 + $0xf0] sm:$0xf]
    %v4508 = vld [vmem:[#allocation22 + $0xf4] sm:$0xf]
    %v4509 = vld [vmem:[#allocation22 + $0xf8] sm:$0xf]
    %v4510 = vld [vmem:[#allocation22 + $0xfc] sm:$0xf]
    %v4511 = vld [vmem:[%s37] sm:$0x1]
    %v4513 = vlaneseq
    %v4514 = vshrl.u32 %v4513, 7
    %v4515 = vsub.s32 0, %v4514
    %v4516 = vrot.slane %v4511, %v4515
    %v4582 = vunpack.c.l.b16 %v4447
    %v4583 = vunpack.c.l.b16 %v4448
    %v4584 = vunpack.c.l.b16 %v4449
    %v4585 = vunpack.c.l.b16 %v4450
    %v4586 = vunpack.c.l.b16 %v4451
    %v4587 = vunpack.c.l.b16 %v4452
    %v4588 = vunpack.c.l.b16 %v4453
    %v4589 = vunpack.c.l.b16 %v4454
    %v4590 = vunpack.c.l.b16 %v4455
    %v4591 = vunpack.c.l.b16 %v4456
    %v4592 = vunpack.c.l.b16 %v4457
    %v4593 = vunpack.c.l.b16 %v4458
    %v4594 = vunpack.c.l.b16 %v4459
    %v4595 = vunpack.c.l.b16 %v4460
    %v4596 = vunpack.c.l.b16 %v4461
    %v4597 = vunpack.c.l.b16 %v4462
    %v4598 = vunpack.c.l.b16 %v4463
    %v4599 = vunpack.c.l.b16 %v4464
    %v4600 = vunpack.c.l.b16 %v4465
    %v4601 = vunpack.c.l.b16 %v4466
    %v4602 = vunpack.c.l.b16 %v4467
    %v4603 = vunpack.c.l.b16 %v4468
    %v4604 = vunpack.c.l.b16 %v4469
    %v4605 = vunpack.c.l.b16 %v4470
    %v4606 = vunpack.c.l.b16 %v4471
    %v4607 = vunpack.c.l.b16 %v4472
    %v4608 = vunpack.c.l.b16 %v4473
    %v4609 = vunpack.c.l.b16 %v4474
    %v4610 = vunpack.c.l.b16 %v4475
    %v4611 = vunpack.c.l.b16 %v4476
    %v4612 = vunpack.c.l.b16 %v4477
    %v4613 = vunpack.c.l.b16 %v4478
    %v4614 = vunpack.c.l.b16 %v4479
    %v4615 = vunpack.c.l.b16 %v4480
    %v4616 = vunpack.c.l.b16 %v4481
    %v4617 = vunpack.c.l.b16 %v4482
    %v4618 = vunpack.c.l.b16 %v4483
    %v4619 = vunpack.c.l.b16 %v4484
    %v4620 = vunpack.c.l.b16 %v4485
    %v4621 = vunpack.c.l.b16 %v4486
    %v4622 = vunpack.c.l.b16 %v4487
    %v4623 = vunpack.c.l.b16 %v4488
    %v4624 = vunpack.c.l.b16 %v4489
    %v4625 = vunpack.c.l.b16 %v4490
    %v4626 = vunpack.c.l.b16 %v4491
    %v4627 = vunpack.c.l.b16 %v4492
    %v4628 = vunpack.c.l.b16 %v4493
    %v4629 = vunpack.c.l.b16 %v4494
    %v4630 = vunpack.c.l.b16 %v4495
    %v4631 = vunpack.c.l.b16 %v4496
    %v4632 = vunpack.c.l.b16 %v4497
    %v4633 = vunpack.c.l.b16 %v4498
    %v4634 = vunpack.c.l.b16 %v4499
    %v4635 = vunpack.c.l.b16 %v4500
    %v4636 = vunpack.c.l.b16 %v4501
    %v4637 = vunpack.c.l.b16 %v4502
    %v4638 = vunpack.c.l.b16 %v4503
    %v4639 = vunpack.c.l.b16 %v4504
    %v4640 = vunpack.c.l.b16 %v4505
    %v4641 = vunpack.c.l.b16 %v4506
    %v4642 = vunpack.c.l.b16 %v4507
    %v4643 = vunpack.c.l.b16 %v4508
    %v4644 = vunpack.c.l.b16 %v4509
    %v4645 = vunpack.c.l.b16 %v4510
    %v4646 = vpack.c.b16 %v4583, %v4582
    %v4647 = vpack.c.b16 %v4585, %v4584
    %v4648 = vpack.c.b16 %v4587, %v4586
    %v4649 = vpack.c.b16 %v4589, %v4588
    %v4650 = vpack.c.b16 %v4591, %v4590
    %v4651 = vpack.c.b16 %v4593, %v4592
    %v4652 = vpack.c.b16 %v4595, %v4594
    %v4653 = vpack.c.b16 %v4597, %v4596
    %v4654 = vpack.c.b16 %v4599, %v4598
    %v4655 = vpack.c.b16 %v4601, %v4600
    %v4656 = vpack.c.b16 %v4603, %v4602
    %v4657 = vpack.c.b16 %v4605, %v4604
    %v4658 = vpack.c.b16 %v4607, %v4606
    %v4659 = vpack.c.b16 %v4609, %v4608
    %v4660 = vpack.c.b16 %v4611, %v4610
    %v4661 = vpack.c.b16 %v4613, %v4612
    %v4662 = vpack.c.b16 %v4615, %v4614
    %v4663 = vpack.c.b16 %v4617, %v4616
    %v4664 = vpack.c.b16 %v4619, %v4618
    %v4665 = vpack.c.b16 %v4621, %v4620
    %v4666 = vpack.c.b16 %v4623, %v4622
    %v4667 = vpack.c.b16 %v4625, %v4624
    %v4668 = vpack.c.b16 %v4627, %v4626
    %v4669 = vpack.c.b16 %v4629, %v4628
    %v4670 = vpack.c.b16 %v4631, %v4630
    %v4671 = vpack.c.b16 %v4633, %v4632
    %v4672 = vpack.c.b16 %v4635, %v4634
    %v4673 = vpack.c.b16 %v4637, %v4636
    %v4674 = vpack.c.b16 %v4639, %v4638
    %v4675 = vpack.c.b16 %v4641, %v4640
    %v4676 = vpack.c.b16 %v4643, %v4642
    %v4677 = vpack.c.b16 %v4645, %v4644
    %4710 = vmatprep.subr.bf16.mxu0 0
    %4711 = vmatpush1.bf16.msra.mxu0 %v4646
    %4712 = vmatprep.subr.bf16.mxu0 0
    %4713 = vmatpush1.bf16.msra.mxu0 %v4647
    %4714 = vmatprep.subr.bf16.mxu0 0
    %4715 = vmatpush1.bf16.msra.mxu0 %v4648
    %4716 = vmatprep.subr.bf16.mxu0 0
    %4717 = vmatpush1.bf16.msra.mxu0 %v4649
    %4718 = vmatprep.subr.bf16.mxu0 0
    %4719 = vmatpush1.bf16.msra.mxu0 %v4650
    %4720 = vmatprep.subr.bf16.mxu0 0
    %4721 = vmatpush1.bf16.msra.mxu0 %v4651
    %4722 = vmatprep.subr.bf16.mxu0 0
    %4723 = vmatpush1.bf16.msra.mxu0 %v4652
    %4724 = vmatprep.subr.bf16.mxu0 0
    %4725 = vmatpush1.bf16.msra.mxu0 %v4653
    %4726 = vmatprep.subr.bf16.mxu0 0
    %4727 = vmatpush1.bf16.msra.mxu0 %v4654
    %4728 = vmatprep.subr.bf16.mxu0 0
    %4729 = vmatpush1.bf16.msra.mxu0 %v4655
    %4730 = vmatprep.subr.bf16.mxu0 0
    %4731 = vmatpush1.bf16.msra.mxu0 %v4656
    %4732 = vmatprep.subr.bf16.mxu0 0
    %4733 = vmatpush1.bf16.msra.mxu0 %v4657
    %4734 = vmatprep.subr.bf16.mxu0 0
    %4735 = vmatpush1.bf16.msra.mxu0 %v4658
    %4736 = vmatprep.subr.bf16.mxu0 0
    %4737 = vmatpush1.bf16.msra.mxu0 %v4659
    %4738 = vmatprep.subr.bf16.mxu0 0
    %4739 = vmatpush1.bf16.msra.mxu0 %v4660
    %4740 = vmatprep.subr.bf16.mxu0 0
    %4741 = vmatpush1.bf16.msra.mxu0 %v4661
    %4742 = vmatprep.mubr.bf16.mxu0 %v4440
    %4743 = vmatmul.mubr.bf16.gmra.mrb[0].mxu0 %v4439
    %v4744 = vpop.f32.mrb[0].mxu0
    %v4745 = vadd.f32 %v4516, %v4744
    %v4746 = vpop.f32.mrb[0].mxu0
    %v4747 = vpop.f32.mrb[0].mxu0
    %v4748 = vadd.f32 %v4516, %v4747
    %v4749 = vpop.f32.mrb[0].mxu0
    %4750 = vmatprep.mubr.bf16.mxu0 %v4444
    %4751 = vmatmul.mubr.bf16.gmra.mrb[0].mxu0 %v4443
    %v4752 = vpop.f32.mrb[0].mxu0
    %v4753 = vadd.f32 %v4516, %v4752
    %v4754 = vpop.f32.mrb[0].mxu0
    %v4755 = vpop.f32.mrb[0].mxu0
    %v4756 = vpop.f32.mrb[0].mxu0
    %4757 = vdwg.mxu0
    %4758 = vmatprep.subr.bf16.mxu0 0
    %4759 = vmatpush1.bf16.msra.mxu0 %v4662
    %4760 = vmatprep.subr.bf16.mxu0 0
    %4761 = vmatpush1.bf16.msra.mxu0 %v4663
    %4762 = vmatprep.subr.bf16.mxu0 0
    %4763 = vmatpush1.bf16.msra.mxu0 %v4664
    %4764 = vmatprep.subr.bf16.mxu0 0
    %4765 = vmatpush1.bf16.msra.mxu0 %v4665
    %4766 = vmatprep.subr.bf16.mxu0 0
    %4767 = vmatpush1.bf16.msra.mxu0 %v4666
    %4768 = vmatprep.subr.bf16.mxu0 0
    %4769 = vmatpush1.bf16.msra.mxu0 %v4667
    %4770 = vmatprep.subr.bf16.mxu0 0
    %4771 = vmatpush1.bf16.msra.mxu0 %v4668
    %4772 = vmatprep.subr.bf16.mxu0 0
    %4773 = vmatpush1.bf16.msra.mxu0 %v4669
    %4774 = vmatprep.subr.bf16.mxu0 0
    %4775 = vmatpush1.bf16.msra.mxu0 %v4670
    %4776 = vmatprep.subr.bf16.mxu0 0
    %4777 = vmatpush1.bf16.msra.mxu0 %v4671
    %4778 = vmatprep.subr.bf16.mxu0 0
    %4779 = vmatpush1.bf16.msra.mxu0 %v4672
    %4780 = vmatprep.subr.bf16.mxu0 0
    %4781 = vmatpush1.bf16.msra.mxu0 %v4673
    %4782 = vmatprep.subr.bf16.mxu0 0
    %4783 = vmatpush1.bf16.msra.mxu0 %v4674
    %4784 = vmatprep.subr.bf16.mxu0 0
    %4785 = vmatpush1.bf16.msra.mxu0 %v4675
    %4786 = vmatprep.subr.bf16.mxu0 0
    %4787 = vmatpush1.bf16.msra.mxu0 %v4676
    %4788 = vmatprep.subr.bf16.mxu0 0
    %4789 = vmatpush1.bf16.msra.mxu0 %v4677
    %4790 = vmatprep.mubr.bf16.mxu0 %v4442
    %4791 = vmatmul.mubr.bf16.gmra.mrb[0].mxu0 %v4441
    %v4792 = vpop.f32.mrb[0].mxu0
    %v4793 = vadd.f32 %v4745, %v4792
    %v4794 = vpop.f32.mrb[0].mxu0
    %v4795 = vpop.f32.mrb[0].mxu0
    %v4796 = vadd.f32 %v4748, %v4795
    %v4797 = vpop.f32.mrb[0].mxu0
    %4798 = vmatprep.mubr.bf16.mxu0 %v4446
    %4799 = vmatmul.mubr.bf16.gmra.mrb[0].mxu0 %v4445
    %v4800 = vpop.f32.mrb[0].mxu0
    %v4801 = vadd.f32 %v4753, %v4800
    %v4802 = vpop.f32.mrb[0].mxu0
    %v4803 = vpop.f32.mrb[0].mxu0
    %v4804 = vpop.f32.mrb[0].mxu0
    %4805 = vdwg.mxu0
    %v4806 = vmax.f32 %v4793, 0.0
    %v4807 = vmax.f32 %v4796, 0.0
    %v4808 = vmax.f32 %v4801, 0.0
    %v4809 = vld [vmem:[#allocation8] sm:$0xff]
    %v4810 = vld [vmem:[#allocation8 + $0x8] sm:$0xff]
    %v4811 = vld [vmem:[#allocation8 + $0x10] sm:$0xff]
    %v4812 = vpack.c.bf16 %v4807, %v4806
    %v4813 = vpack.c.bf16 %v4808, %v4808
    %v4814 = vld [vmem:[#allocation23] sm:$0xff]
    %v4815 = vld [vmem:[#allocation23 + $0x8] sm:$0xff]
    %v4816 = vld [vmem:[#allocation23 + $0x10] sm:$0xff]
    %v4817 = vld [vmem:[#allocation23 + $0x18] sm:$0xff]
    %v4818 = vld [vmem:[#allocation23 + $0x20] sm:$0xff]
    %v4819 = vld [vmem:[#allocation23 + $0x28] sm:$0xff]
    %v4820 = vld [vmem:[#allocation23 + $0x30] sm:$0xff]
    %v4821 = vld [vmem:[#allocation23 + $0x38] sm:$0xff]
    %v4822 = vld [vmem:[#allocation23 + $0x40] sm:$0xff]
    %v4823 = vld [vmem:[#allocation23 + $0x48] sm:$0xff]
    %v4824 = vld [vmem:[#allocation23 + $0x50] sm:$0xff]
    %v4825 = vld [vmem:[#allocation23 + $0x58] sm:$0xff]
    %v4826 = vld [vmem:[#allocation23 + $0x60] sm:$0xff]
    %v4827 = vld [vmem:[#allocation23 + $0x68] sm:$0xff]
    %v4828 = vld [vmem:[#allocation23 + $0x70] sm:$0xff]
    %v4829 = vld [vmem:[#allocation23 + $0x78] sm:$0xff]
    %v4830 = vld [vmem:[#allocation23 + $0x80] sm:$0xff]
    %v4831 = vld [vmem:[#allocation23 + $0x88] sm:$0xff]
    %v4832 = vld [vmem:[#allocation23 + $0x90] sm:$0xff]
    %v4833 = vld [vmem:[#allocation23 + $0x98] sm:$0xff]
    %v4834 = vld [vmem:[#allocation23 + $0xa0] sm:$0xff]
    %v4835 = vld [vmem:[#allocation23 + $0xa8] sm:$0xff]
    %v4836 = vld [vmem:[#allocation23 + $0xb0] sm:$0xff]
    %v4837 = vld [vmem:[#allocation23 + $0xb8] sm:$0xff]
    %v4838 = vld [vmem:[#allocation23 + $0xc0] sm:$0xff]
    %v4839 = vld [vmem:[#allocation23 + $0xc8] sm:$0xff]
    %v4840 = vld [vmem:[#allocation23 + $0xd0] sm:$0xff]
    %v4841 = vld [vmem:[#allocation23 + $0xd8] sm:$0xff]
    %v4842 = vld [vmem:[#allocation23 + $0xe0] sm:$0xff]
    %v4843 = vld [vmem:[#allocation23 + $0xe8] sm:$0xff]
    %v4844 = vld [vmem:[#allocation23 + $0xf0] sm:$0xff]
    %v4845 = vld [vmem:[#allocation23 + $0xf8] sm:$0xff]
    %v4846 = vpack.c.bf16 %v4810, %v4809
    %v4847 = vpack.c.bf16 %v4811, %v4811
    %v4848 = vld [vmem:[#allocation25] sm:$0xff]
    %v4849 = vld [vmem:[#allocation25 + $0x8] sm:$0xff]
    %v4850 = vld [vmem:[#allocation25 + $0x10] sm:$0xff]
    %v4851 = vld [vmem:[#allocation25 + $0x18] sm:$0xff]
    %v4852 = vld [vmem:[#allocation25 + $0x20] sm:$0xff]
    %v4853 = vld [vmem:[#allocation25 + $0x28] sm:$0xff]
    %v4854 = vld [vmem:[#allocation25 + $0x30] sm:$0xff]
    %v4855 = vld [vmem:[#allocation25 + $0x38] sm:$0xff]
    %v4856 = vld [vmem:[#allocation25 + $0x40] sm:$0xff]
    %v4857 = vld [vmem:[#allocation25 + $0x48] sm:$0xff]
    %v4858 = vld [vmem:[#allocation25 + $0x50] sm:$0xff]
    %v4859 = vld [vmem:[#allocation25 + $0x58] sm:$0xff]
    %v4860 = vld [vmem:[#allocation25 + $0x60] sm:$0xff]
    %v4861 = vld [vmem:[#allocation25 + $0x68] sm:$0xff]
    %v4862 = vld [vmem:[#allocation25 + $0x70] sm:$0xff]
    %v4863 = vld [vmem:[#allocation25 + $0x78] sm:$0xff]
    %v4864 = vld [vmem:[#allocation25 + $0x80] sm:$0xff]
    %v4865 = vld [vmem:[#allocation25 + $0x88] sm:$0xff]
    %v4866 = vld [vmem:[#allocation25 + $0x90] sm:$0xff]
    %v4867 = vld [vmem:[#allocation25 + $0x98] sm:$0xff]
    %v4868 = vld [vmem:[#allocation25 + $0xa0] sm:$0xff]
    %v4869 = vld [vmem:[#allocation25 + $0xa8] sm:$0xff]
    %v4870 = vld [vmem:[#allocation25 + $0xb0] sm:$0xff]
    %v4871 = vld [vmem:[#allocation25 + $0xb8] sm:$0xff]
    %v4872 = vld [vmem:[#allocation25 + $0xc0] sm:$0xff]
    %v4873 = vld [vmem:[#allocation25 + $0xc8] sm:$0xff]
    %v4874 = vld [vmem:[#allocation25 + $0xd0] sm:$0xff]
    %v4875 = vld [vmem:[#allocation25 + $0xd8] sm:$0xff]
    %v4876 = vld [vmem:[#allocation25 + $0xe0] sm:$0xff]
    %v4877 = vld [vmem:[#allocation25 + $0xe8] sm:$0xff]
    %v4878 = vld [vmem:[#allocation25 + $0xf0] sm:$0xff]
    %v4879 = vld [vmem:[#allocation25 + $0xf8] sm:$0xff]
    %v4912 = vunpack.c.l.b16 %v4848
    %v4913 = vunpack.c.h.b16 %v4848
    %v4914 = vunpack.c.l.b16 %v4849
    %v4915 = vunpack.c.h.b16 %v4849
    %v4916 = vunpack.c.l.b16 %v4850
    %v4917 = vunpack.c.h.b16 %v4850
    %v4918 = vunpack.c.l.b16 %v4851
    %v4919 = vunpack.c.h.b16 %v4851
    %v4920 = vunpack.c.l.b16 %v4852
    %v4921 = vunpack.c.h.b16 %v4852
    %v4922 = vunpack.c.l.b16 %v4853
    %v4923 = vunpack.c.h.b16 %v4853
    %v4924 = vunpack.c.l.b16 %v4854
    %v4925 = vunpack.c.h.b16 %v4854
    %v4926 = vunpack.c.l.b16 %v4855
    %v4927 = vunpack.c.h.b16 %v4855
    %v4928 = vunpack.c.l.b16 %v4856
    %v4929 = vunpack.c.h.b16 %v4856
    %v4930 = vunpack.c.l.b16 %v4857
    %v4931 = vunpack.c.h.b16 %v4857
    %v4932 = vunpack.c.l.b16 %v4858
    %v4933 = vunpack.c.h.b16 %v4858
    %v4934 = vunpack.c.l.b16 %v4859
    %v4935 = vunpack.c.h.b16 %v4859
    %v4936 = vunpack.c.l.b16 %v4860
    %v4937 = vunpack.c.h.b16 %v4860
    %v4938 = vunpack.c.l.b16 %v4861
    %v4939 = vunpack.c.h.b16 %v4861
    %v4940 = vunpack.c.l.b16 %v4862
    %v4941 = vunpack.c.h.b16 %v4862
    %v4942 = vunpack.c.l.b16 %v4863
    %v4943 = vunpack.c.h.b16 %v4863
    %v4944 = vunpack.c.l.b16 %v4864
    %v4945 = vunpack.c.h.b16 %v4864
    %v4946 = vunpack.c.l.b16 %v4865
    %v4947 = vunpack.c.h.b16 %v4865
    %v4948 = vunpack.c.l.b16 %v4866
    %v4949 = vunpack.c.h.b16 %v4866
    %v4950 = vunpack.c.l.b16 %v4867
    %v4951 = vunpack.c.h.b16 %v4867
    %v4952 = vunpack.c.l.b16 %v4868
    %v4953 = vunpack.c.h.b16 %v4868
    %v4954 = vunpack.c.l.b16 %v4869
    %v4955 = vunpack.c.h.b16 %v4869
    %v4956 = vunpack.c.l.b16 %v4870
    %v4957 = vunpack.c.h.b16 %v4870
    %v4958 = vunpack.c.l.b16 %v4871
    %v4959 = vunpack.c.h.b16 %v4871
    %v4960 = vunpack.c.l.b16 %v4872
    %v4961 = vunpack.c.h.b16 %v4872
    %v4962 = vunpack.c.l.b16 %v4873
    %v4963 = vunpack.c.h.b16 %v4873
    %v4964 = vunpack.c.l.b16 %v4874
    %v4965 = vunpack.c.h.b16 %v4874
    %v4966 = vunpack.c.l.b16 %v4875
    %v4967 = vunpack.c.h.b16 %v4875
    %v4968 = vunpack.c.l.b16 %v4876
    %v4969 = vunpack.c.h.b16 %v4876
    %v4970 = vunpack.c.l.b16 %v4877
    %v4971 = vunpack.c.h.b16 %v4877
    %v4972 = vunpack.c.l.b16 %v4878
    %v4973 = vunpack.c.h.b16 %v4878
    %v4974 = vunpack.c.l.b16 %v4879
    %v4975 = vunpack.c.h.b16 %v4879
    %v4976 = vpack.c.b16 %v4916, %v4912
    %v4977 = vpack.c.b16 %v4917, %v4913
    %v4978 = vpack.c.b16 %v4918, %v4914
    %v4979 = vpack.c.b16 %v4919, %v4915
    %v4980 = vpack.c.b16 %v4924, %v4920
    %v4981 = vpack.c.b16 %v4925, %v4921
    %v4982 = vpack.c.b16 %v4926, %v4922
    %v4983 = vpack.c.b16 %v4927, %v4923
    %v4984 = vpack.c.b16 %v4932, %v4928
    %v4985 = vpack.c.b16 %v4933, %v4929
    %v4986 = vpack.c.b16 %v4934, %v4930
    %v4987 = vpack.c.b16 %v4935, %v4931
    %v4988 = vpack.c.b16 %v4940, %v4936
    %v4989 = vpack.c.b16 %v4941, %v4937
    %v4990 = vpack.c.b16 %v4942, %v4938
    %v4991 = vpack.c.b16 %v4943, %v4939
    %v4992 = vpack.c.b16 %v4948, %v4944
    %v4993 = vpack.c.b16 %v4949, %v4945
    %v4994 = vpack.c.b16 %v4950, %v4946
    %v4995 = vpack.c.b16 %v4951, %v4947
    %v4996 = vpack.c.b16 %v4956, %v4952
    %v4997 = vpack.c.b16 %v4957, %v4953
    %v4998 = vpack.c.b16 %v4958, %v4954
    %v4999 = vpack.c.b16 %v4959, %v4955
    %v5000 = vpack.c.b16 %v4964, %v4960
    %v5001 = vpack.c.b16 %v4965, %v4961
    %v5002 = vpack.c.b16 %v4966, %v4962
    %v5003 = vpack.c.b16 %v4967, %v4963
    %v5004 = vpack.c.b16 %v4972, %v4968
    %v5005 = vpack.c.b16 %v4973, %v4969
    %v5006 = vpack.c.b16 %v4974, %v4970
    %v5007 = vpack.c.b16 %v4975, %v4971
    %5040 = vmatprep.subr.bf16.mxu0 %v4977
    %5041 = vmatpush1.bf16.msra.mxu0 %v4976
    %5042 = vmatprep.subr.bf16.mxu0 %v4981
    %5043 = vmatpush1.bf16.msra.mxu0 %v4980
    %5044 = vmatprep.subr.bf16.mxu0 %v4985
    %5045 = vmatpush1.bf16.msra.mxu0 %v4984
    %5046 = vmatprep.subr.bf16.mxu0 %v4989
    %5047 = vmatpush1.bf16.msra.mxu0 %v4988
    %5048 = vmatprep.subr.bf16.mxu0 %v4993
    %5049 = vmatpush1.bf16.msra.mxu0 %v4992
    %5050 = vmatprep.subr.bf16.mxu0 %v4997
    %5051 = vmatpush1.bf16.msra.mxu0 %v4996
    %5052 = vmatprep.subr.bf16.mxu0 %v5001
    %5053 = vmatpush1.bf16.msra.mxu0 %v5000
    %5054 = vmatprep.subr.bf16.mxu0 %v5005
    %5055 = vmatpush1.bf16.msra.mxu0 %v5004
    %5056 = vmatprep.subr.bf16.mxu0 0
    %5057 = vmatpush1.bf16.msra.mxu0 0
    %5058 = vmatprep.subr.bf16.mxu0 0
    %5059 = vmatpush1.bf16.msra.mxu0 0
    %5060 = vmatprep.subr.bf16.mxu0 0
    %5061 = vmatpush1.bf16.msra.mxu0 0
    %5062 = vmatprep.subr.bf16.mxu0 0
    %5063 = vmatpush1.bf16.msra.mxu0 0
    %5064 = vmatprep.subr.bf16.mxu0 0
    %5065 = vmatpush1.bf16.msra.mxu0 0
    %5066 = vmatprep.subr.bf16.mxu0 0
    %5067 = vmatpush1.bf16.msra.mxu0 0
    %5068 = vmatprep.subr.bf16.mxu0 0
    %5069 = vmatpush1.bf16.msra.mxu0 0
    %5070 = vmatprep.subr.bf16.mxu0 0
    %5071 = vmatpush1.bf16.msra.mxu0 0
    %5072 = vmatprep.mubr.bf16.mxu0 0
    %5073 = vmatmul.mubr.bf16.gmra.mrb[0].mxu0 %v4846
    %v5074 = vpop.f32.mrb[0].mxu0
    %v5075 = vadd.f32 0.0, %v5074
    %v5076 = vpop.f32.mrb[0].mxu0
    %v5077 = vadd.f32 0.0, %v5076
    %v5078 = vpop.f32.mrb[0].mxu0
    %v5079 = vadd.f32 0.0, %v5078
    %v5080 = vpop.f32.mrb[0].mxu0
    %v5081 = vadd.f32 0.0, %v5080
    %5082 = vmatprep.mubr.bf16.mxu0 0
    %5083 = vmatmul.mubr.bf16.gmra.mrb[0].mxu0 %v4847
    %v5084 = vpop.f32.mrb[0].mxu0
    %v5085 = vadd.f32 0.0, %v5084
    %v5086 = vpop.f32.mrb[0].mxu0
    %v5087 = vadd.f32 0.0, %v5086
    %v5088 = vpop.f32.mrb[0].mxu0
    %v5089 = vpop.f32.mrb[0].mxu0
    %5090 = vdwg.mxu0
    %5091 = vmatprep.subr.bf16.mxu0 %v4979
    %5092 = vmatpush1.bf16.msra.mxu0 %v4978
    %5093 = vmatprep.subr.bf16.mxu0 %v4983
    %5094 = vmatpush1.bf16.msra.mxu0 %v4982
    %5095 = vmatprep.subr.bf16.mxu0 %v4987
    %5096 = vmatpush1.bf16.msra.mxu0 %v4986
    %5097 = vmatprep.subr.bf16.mxu0 %v4991
    %5098 = vmatpush1.bf16.msra.mxu0 %v4990
    %5099 = vmatprep.subr.bf16.mxu0 %v4995
    %5100 = vmatpush1.bf16.msra.mxu0 %v4994
    %5101 = vmatprep.subr.bf16.mxu0 %v4999
    %5102 = vmatpush1.bf16.msra.mxu0 %v4998
    %5103 = vmatprep.subr.bf16.mxu0 %v5003
    %5104 = vmatpush1.bf16.msra.mxu0 %v5002
    %5105 = vmatprep.subr.bf16.mxu0 %v5007
    %5106 = vmatpush1.bf16.msra.mxu0 %v5006
    %5107 = vmatprep.subr.bf16.mxu0 0
    %5108 = vmatpush1.bf16.msra.mxu0 0
    %5109 = vmatprep.subr.bf16.mxu0 0
    %5110 = vmatpush1.bf16.msra.mxu0 0
    %5111 = vmatprep.subr.bf16.mxu0 0
    %5112 = vmatpush1.bf16.msra.mxu0 0
    %5113 = vmatprep.subr.bf16.mxu0 0
    %5114 = vmatpush1.bf16.msra.mxu0 0
    %5115 = vmatprep.subr.bf16.mxu0 0
    %5116 = vmatpush1.bf16.msra.mxu0 0
    %5117 = vmatprep.subr.bf16.mxu0 0
    %5118 = vmatpush1.bf16.msra.mxu0 0
    %5119 = vmatprep.subr.bf16.mxu0 0
    %5120 = vmatpush1.bf16.msra.mxu0 0
    %5121 = vmatprep.subr.bf16.mxu0 0
    %5122 = vmatpush1.bf16.msra.mxu0 0
    %5123 = vmatprep.mubr.bf16.mxu0 0
    %5124 = vmatmul.mubr.bf16.gmra.mrb[0].mxu0 %v4846
    %v5125 = vpop.f32.mrb[0].mxu0
    %v5126 = vadd.f32 0.0, %v5125
    %v5127 = vpop.f32.mrb[0].mxu0
    %v5128 = vadd.f32 0.0, %v5127
    %v5129 = vpop.f32.mrb[0].mxu0
    %v5130 = vadd.f32 0.0, %v5129
    %v5131 = vpop.f32.mrb[0].mxu0
    %v5132 = vadd.f32 0.0, %v5131
    %5133 = vmatprep.mubr.bf16.mxu0 0
    %5134 = vmatmul.mubr.bf16.gmra.mrb[0].mxu0 %v4847
    %v5135 = vpop.f32.mrb[0].mxu0
    %v5136 = vadd.f32 0.0, %v5135
    %v5137 = vpop.f32.mrb[0].mxu0
    %v5138 = vadd.f32 0.0, %v5137
    %v5139 = vpop.f32.mrb[0].mxu0
    %v5140 = vpop.f32.mrb[0].mxu0
    %5141 = vdwg.mxu0
    %v5174 = vunpack.c.l.b16 %v4814
    %v5175 = vunpack.c.h.b16 %v4814
    %v5176 = vunpack.c.l.b16 %v4815
    %v5177 = vunpack.c.h.b16 %v4815
    %v5178 = vunpack.c.l.b16 %v4816
    %v5179 = vunpack.c.h.b16 %v4816
    %v5180 = vunpack.c.l.b16 %v4817
    %v5181 = vunpack.c.h.b16 %v4817
    %v5182 = vunpack.c.l.b16 %v4818
    %v5183 = vunpack.c.h.b16 %v4818
    %v5184 = vunpack.c.l.b16 %v4819
    %v5185 = vunpack.c.h.b16 %v4819
    %v5186 = vunpack.c.l.b16 %v4820
    %v5187 = vunpack.c.h.b16 %v4820
    %v5188 = vunpack.c.l.b16 %v4821
    %v5189 = vunpack.c.h.b16 %v4821
    %v5190 = vunpack.c.l.b16 %v4822
    %v5191 = vunpack.c.h.b16 %v4822
    %v5192 = vunpack.c.l.b16 %v4823
    %v5193 = vunpack.c.h.b16 %v4823
    %v5194 = vunpack.c.l.b16 %v4824
    %v5195 = vunpack.c.h.b16 %v4824
    %v5196 = vunpack.c.l.b16 %v4825
    %v5197 = vunpack.c.h.b16 %v4825
    %v5198 = vunpack.c.l.b16 %v4826
    %v5199 = vunpack.c.h.b16 %v4826
    %v5200 = vunpack.c.l.b16 %v4827
    %v5201 = vunpack.c.h.b16 %v4827
    %v5202 = vunpack.c.l.b16 %v4828
    %v5203 = vunpack.c.h.b16 %v4828
    %v5204 = vunpack.c.l.b16 %v4829
    %v5205 = vunpack.c.h.b16 %v4829
    %v5206 = vunpack.c.l.b16 %v4830
    %v5207 = vunpack.c.h.b16 %v4830
    %v5208 = vunpack.c.l.b16 %v4831
    %v5209 = vunpack.c.h.b16 %v4831
    %v5210 = vunpack.c.l.b16 %v4832
    %v5211 = vunpack.c.h.b16 %v4832
    %v5212 = vunpack.c.l.b16 %v4833
    %v5213 = vunpack.c.h.b16 %v4833
    %v5214 = vunpack.c.l.b16 %v4834
    %v5215 = vunpack.c.h.b16 %v4834
    %v5216 = vunpack.c.l.b16 %v4835
    %v5217 = vunpack.c.h.b16 %v4835
    %v5218 = vunpack.c.l.b16 %v4836
    %v5219 = vunpack.c.h.b16 %v4836
    %v5220 = vunpack.c.l.b16 %v4837
    %v5221 = vunpack.c.h.b16 %v4837
    %v5222 = vunpack.c.l.b16 %v4838
    %v5223 = vunpack.c.h.b16 %v4838
    %v5224 = vunpack.c.l.b16 %v4839
    %v5225 = vunpack.c.h.b16 %v4839
    %v5226 = vunpack.c.l.b16 %v4840
    %v5227 = vunpack.c.h.b16 %v4840
    %v5228 = vunpack.c.l.b16 %v4841
    %v5229 = vunpack.c.h.b16 %v4841
    %v5230 = vunpack.c.l.b16 %v4842
    %v5231 = vunpack.c.h.b16 %v4842
    %v5232 = vunpack.c.l.b16 %v4843
    %v5233 = vunpack.c.h.b16 %v4843
    %v5234 = vunpack.c.l.b16 %v4844
    %v5235 = vunpack.c.h.b16 %v4844
    %v5236 = vunpack.c.l.b16 %v4845
    %v5237 = vunpack.c.h.b16 %v4845
    %v5238 = vpack.c.b16 %v5178, %v5174
    %v5239 = vpack.c.b16 %v5179, %v5175
    %v5240 = vpack.c.b16 %v5180, %v5176
    %v5241 = vpack.c.b16 %v5181, %v5177
    %v5242 = vpack.c.b16 %v5186, %v5182
    %v5243 = vpack.c.b16 %v5187, %v5183
    %v5244 = vpack.c.b16 %v5188, %v5184
    %v5245 = vpack.c.b16 %v5189, %v5185
    %v5246 = vpack.c.b16 %v5194, %v5190
    %v5247 = vpack.c.b16 %v5195, %v5191
    %v5248 = vpack.c.b16 %v5196, %v5192
    %v5249 = vpack.c.b16 %v5197, %v5193
    %v5250 = vpack.c.b16 %v5202, %v5198
    %v5251 = vpack.c.b16 %v5203, %v5199
    %v5252 = vpack.c.b16 %v5204, %v5200
    %v5253 = vpack.c.b16 %v5205, %v5201
    %v5254 = vpack.c.b16 %v5210, %v5206
    %v5255 = vpack.c.b16 %v5211, %v5207
    %v5256 = vpack.c.b16 %v5212, %v5208
    %v5257 = vpack.c.b16 %v5213, %v5209
    %v5258 = vpack.c.b16 %v5218, %v5214
    %v5259 = vpack.c.b16 %v5219, %v5215
    %v5260 = vpack.c.b16 %v5220, %v5216
    %v5261 = vpack.c.b16 %v5221, %v5217
    %v5262 = vpack.c.b16 %v5226, %v5222
    %v5263 = vpack.c.b16 %v5227, %v5223
    %v5264 = vpack.c.b16 %v5228, %v5224
    %v5265 = vpack.c.b16 %v5229, %v5225
    %v5266 = vpack.c.b16 %v5234, %v5230
    %v5267 = vpack.c.b16 %v5235, %v5231
    %v5268 = vpack.c.b16 %v5236, %v5232
    %v5269 = vpack.c.b16 %v5237, %v5233
    %5302 = vmatprep.subr.bf16.mxu0 %v5239
    %5303 = vmatpush1.bf16.msra.mxu0 %v5238
    %5304 = vmatprep.subr.bf16.mxu0 %v5243
    %5305 = vmatpush1.bf16.msra.mxu0 %v5242
    %5306 = vmatprep.subr.bf16.mxu0 %v5247
    %5307 = vmatpush1.bf16.msra.mxu0 %v5246
    %5308 = vmatprep.subr.bf16.mxu0 %v5251
    %5309 = vmatpush1.bf16.msra.mxu0 %v5250
    %5310 = vmatprep.subr.bf16.mxu0 %v5255
    %5311 = vmatpush1.bf16.msra.mxu0 %v5254
    %5312 = vmatprep.subr.bf16.mxu0 %v5259
    %5313 = vmatpush1.bf16.msra.mxu0 %v5258
    %5314 = vmatprep.subr.bf16.mxu0 %v5263
    %5315 = vmatpush1.bf16.msra.mxu0 %v5262
    %5316 = vmatprep.subr.bf16.mxu0 %v5267
    %5317 = vmatpush1.bf16.msra.mxu0 %v5266
    %5318 = vmatprep.subr.bf16.mxu0 0
    %5319 = vmatpush1.bf16.msra.mxu0 0
    %5320 = vmatprep.subr.bf16.mxu0 0
    %5321 = vmatpush1.bf16.msra.mxu0 0
    %5322 = vmatprep.subr.bf16.mxu0 0
    %5323 = vmatpush1.bf16.msra.mxu0 0
    %5324 = vmatprep.subr.bf16.mxu0 0
    %5325 = vmatpush1.bf16.msra.mxu0 0
    %5326 = vmatprep.subr.bf16.mxu0 0
    %5327 = vmatpush1.bf16.msra.mxu0 0
    %5328 = vmatprep.subr.bf16.mxu0 0
    %5329 = vmatpush1.bf16.msra.mxu0 0
    %5330 = vmatprep.subr.bf16.mxu0 0
    %5331 = vmatpush1.bf16.msra.mxu0 0
    %5332 = vmatprep.subr.bf16.mxu0 0
    %5333 = vmatpush1.bf16.msra.mxu0 0
    %5334 = vmatprep.mubr.bf16.mxu0 0
    %5335 = vmatmul.mubr.bf16.gmra.mrb[0].mxu0 %v4812
    %v5336 = vpop.f32.mrb[0].mxu0
    %v5337 = vadd.f32 %v5075, %v5336
    %v5338 = vpop.f32.mrb[0].mxu0
    %v5339 = vadd.f32 %v5077, %v5338
    %v5340 = vpop.f32.mrb[0].mxu0
    %v5341 = vadd.f32 %v5079, %v5340
    %v5342 = vpop.f32.mrb[0].mxu0
    %v5343 = vadd.f32 %v5081, %v5342
    %5344 = vmatprep.mubr.bf16.mxu0 0
    %5345 = vmatmul.mubr.bf16.gmra.mrb[0].mxu0 %v4813
    %v5346 = vpop.f32.mrb[0].mxu0
    %v5347 = vadd.f32 %v5085, %v5346
    %v5348 = vpop.f32.mrb[0].mxu0
    %v5349 = vadd.f32 %v5087, %v5348
    %v5350 = vpop.f32.mrb[0].mxu0
    %v5351 = vpop.f32.mrb[0].mxu0
    %5352 = vdwg.mxu0
    %5353 = vmatprep.subr.bf16.mxu0 %v5241
    %5354 = vmatpush1.bf16.msra.mxu0 %v5240
    %5355 = vmatprep.subr.bf16.mxu0 %v5245
    %5356 = vmatpush1.bf16.msra.mxu0 %v5244
    %5357 = vmatprep.subr.bf16.mxu0 %v5249
    %5358 = vmatpush1.bf16.msra.mxu0 %v5248
    %5359 = vmatprep.subr.bf16.mxu0 %v5253
    %5360 = vmatpush1.bf16.msra.mxu0 %v5252
    %5361 = vmatprep.subr.bf16.mxu0 %v5257
    %5362 = vmatpush1.bf16.msra.mxu0 %v5256
    %5363 = vmatprep.subr.bf16.mxu0 %v5261
    %5364 = vmatpush1.bf16.msra.mxu0 %v5260
    %5365 = vmatprep.subr.bf16.mxu0 %v5265
    %5366 = vmatpush1.bf16.msra.mxu0 %v5264
    %5367 = vmatprep.subr.bf16.mxu0 %v5269
    %5368 = vmatpush1.bf16.msra.mxu0 %v5268
    %5369 = vmatprep.subr.bf16.mxu0 0
    %5370 = vmatpush1.bf16.msra.mxu0 0
    %5371 = vmatprep.subr.bf16.mxu0 0
    %5372 = vmatpush1.bf16.msra.mxu0 0
    %5373 = vmatprep.subr.bf16.mxu0 0
    %5374 = vmatpush1.bf16.msra.mxu0 0
    %5375 = vmatprep.subr.bf16.mxu0 0
    %5376 = vmatpush1.bf16.msra.mxu0 0
    %5377 = vmatprep.subr.bf16.mxu0 0
    %5378 = vmatpush1.bf16.msra.mxu0 0
    %5379 = vmatprep.subr.bf16.mxu0 0
    %5380 = vmatpush1.bf16.msra.mxu0 0
    %5381 = vmatprep.subr.bf16.mxu0 0
    %5382 = vmatpush1.bf16.msra.mxu0 0
    %5383 = vmatprep.subr.bf16.mxu0 0
    %5384 = vmatpush1.bf16.msra.mxu0 0
    %5385 = vmatprep.mubr.bf16.mxu0 0
    %5386 = vmatmul.mubr.bf16.gmra.mrb[0].mxu0 %v4812
    %v5387 = vpop.f32.mrb[0].mxu0
    %v5388 = vadd.f32 %v5126, %v5387
    %v5389 = vpop.f32.mrb[0].mxu0
    %v5390 = vadd.f32 %v5128, %v5389
    %v5391 = vpop.f32.mrb[0].mxu0
    %v5392 = vadd.f32 %v5130, %v5391
    %v5393 = vpop.f32.mrb[0].mxu0
    %v5394 = vadd.f32 %v5132, %v5393
    %5395 = vmatprep.mubr.bf16.mxu0 0
    %5396 = vmatmul.mubr.bf16.gmra.mrb[0].mxu0 %v4813
    %v5397 = vpop.f32.mrb[0].mxu0
    %v5398 = vadd.f32 %v5136, %v5397
    %v5399 = vpop.f32.mrb[0].mxu0
    %v5400 = vadd.f32 %v5138, %v5399
    %v5401 = vpop.f32.mrb[0].mxu0
    %v5402 = vpop.f32.mrb[0].mxu0
    %5403 = vdwg.mxu0
    %v5404 = vld [vmem:[#allocation26] sm:$0xff]
    %v5405 = vld [vmem:[#allocation26 + $0x8] sm:$0xff]
    %v5406 = vld [vmem:[#allocation26 + $0x10] sm:$0xff]
    %v5407 = vld [vmem:[#allocation26 + $0x18] sm:$0xff]
    %v5408 = vld [vmem:[#allocation26 + $0x20] sm:$0xff]
    %v5409 = vld [vmem:[#allocation26 + $0x28] sm:$0xff]
    %v5410 = vld [vmem:[#allocation26 + $0x30] sm:$0xff]
    %v5411 = vld [vmem:[#allocation26 + $0x38] sm:$0xff]
    %v5412 = vld [vmem:[#allocation26 + $0x40] sm:$0xff]
    %v5413 = vld [vmem:[#allocation26 + $0x48] sm:$0xff]
    %v5414 = vld [vmem:[#allocation26 + $0x50] sm:$0xff]
    %v5415 = vld [vmem:[#allocation26 + $0x58] sm:$0xff]
    %v5416 = vld [vmem:[#allocation26 + $0x60] sm:$0xff]
    %v5417 = vld [vmem:[#allocation26 + $0x68] sm:$0xff]
    %v5418 = vld [vmem:[#allocation26 + $0x70] sm:$0xff]
    %v5419 = vld [vmem:[#allocation26 + $0x78] sm:$0xff]
    %v5420 = vld [vmem:[#allocation26 + $0x80] sm:$0xff]
    %v5421 = vld [vmem:[#allocation26 + $0x88] sm:$0xff]
    %v5422 = vld [vmem:[#allocation26 + $0x90] sm:$0xff]
    %v5423 = vld [vmem:[#allocation26 + $0x98] sm:$0xff]
    %v5424 = vld [vmem:[#allocation26 + $0xa0] sm:$0xff]
    %v5425 = vld [vmem:[#allocation26 + $0xa8] sm:$0xff]
    %v5426 = vld [vmem:[#allocation26 + $0xb0] sm:$0xff]
    %v5427 = vld [vmem:[#allocation26 + $0xb8] sm:$0xff]
    %v5428 = vld [vmem:[#allocation26 + $0xc0] sm:$0xff]
    %v5429 = vld [vmem:[#allocation26 + $0xc8] sm:$0xff]
    %v5430 = vld [vmem:[#allocation26 + $0xd0] sm:$0xff]
    %v5431 = vld [vmem:[#allocation26 + $0xd8] sm:$0xff]
    %v5432 = vld [vmem:[#allocation26 + $0xe0] sm:$0xff]
    %v5433 = vld [vmem:[#allocation26 + $0xe8] sm:$0xff]
    %v5434 = vld [vmem:[#allocation26 + $0xf0] sm:$0xff]
    %v5435 = vld [vmem:[#allocation26 + $0xf8] sm:$0xff]
    %v5468 = vunpack.c.l.b16 %v5404
    %v5469 = vunpack.c.h.b16 %v5404
    %v5470 = vunpack.c.l.b16 %v5405
    %v5471 = vunpack.c.h.b16 %v5405
    %v5472 = vunpack.c.l.b16 %v5406
    %v5473 = vunpack.c.h.b16 %v5406
    %v5474 = vunpack.c.l.b16 %v5407
    %v5475 = vunpack.c.h.b16 %v5407
    %v5476 = vunpack.c.l.b16 %v5408
    %v5477 = vunpack.c.h.b16 %v5408
    %v5478 = vunpack.c.l.b16 %v5409
    %v5479 = vunpack.c.h.b16 %v5409
    %v5480 = vunpack.c.l.b16 %v5410
    %v5481 = vunpack.c.h.b16 %v5410
    %v5482 = vunpack.c.l.b16 %v5411
    %v5483 = vunpack.c.h.b16 %v5411
    %v5484 = vunpack.c.l.b16 %v5412
    %v5485 = vunpack.c.h.b16 %v5412
    %v5486 = vunpack.c.l.b16 %v5413
    %v5487 = vunpack.c.h.b16 %v5413
    %v5488 = vunpack.c.l.b16 %v5414
    %v5489 = vunpack.c.h.b16 %v5414
    %v5490 = vunpack.c.l.b16 %v5415
    %v5491 = vunpack.c.h.b16 %v5415
    %v5492 = vunpack.c.l.b16 %v5416
    %v5493 = vunpack.c.h.b16 %v5416
    %v5494 = vunpack.c.l.b16 %v5417
    %v5495 = vunpack.c.h.b16 %v5417
    %v5496 = vunpack.c.l.b16 %v5418
    %v5497 = vunpack.c.h.b16 %v5418
    %v5498 = vunpack.c.l.b16 %v5419
    %v5499 = vunpack.c.h.b16 %v5419
    %v5500 = vunpack.c.l.b16 %v5420
    %v5501 = vunpack.c.h.b16 %v5420
    %v5502 = vunpack.c.l.b16 %v5421
    %v5503 = vunpack.c.h.b16 %v5421
    %v5504 = vunpack.c.l.b16 %v5422
    %v5505 = vunpack.c.h.b16 %v5422
    %v5506 = vunpack.c.l.b16 %v5423
    %v5507 = vunpack.c.h.b16 %v5423
    %v5508 = vunpack.c.l.b16 %v5424
    %v5509 = vunpack.c.h.b16 %v5424
    %v5510 = vunpack.c.l.b16 %v5425
    %v5511 = vunpack.c.h.b16 %v5425
    %v5512 = vunpack.c.l.b16 %v5426
    %v5513 = vunpack.c.h.b16 %v5426
    %v5514 = vunpack.c.l.b16 %v5427
    %v5515 = vunpack.c.h.b16 %v5427
    %v5516 = vunpack.c.l.b16 %v5428
    %v5517 = vunpack.c.h.b16 %v5428
    %v5518 = vunpack.c.l.b16 %v5429
    %v5519 = vunpack.c.h.b16 %v5429
    %v5520 = vunpack.c.l.b16 %v5430
    %v5521 = vunpack.c.h.b16 %v5430
    %v5522 = vunpack.c.l.b16 %v5431
    %v5523 = vunpack.c.h.b16 %v5431
    %v5524 = vunpack.c.l.b16 %v5432
    %v5525 = vunpack.c.h.b16 %v5432
    %v5526 = vunpack.c.l.b16 %v5433
    %v5527 = vunpack.c.h.b16 %v5433
    %v5528 = vunpack.c.l.b16 %v5434
    %v5529 = vunpack.c.h.b16 %v5434
    %v5530 = vunpack.c.l.b16 %v5435
    %v5531 = vunpack.c.h.b16 %v5435
    %v5532 = vpack.c.b16 %v5472, %v5468
    %v5533 = vpack.c.b16 %v5473, %v5469
    %v5534 = vpack.c.b16 %v5474, %v5470
    %v5535 = vpack.c.b16 %v5475, %v5471
    %v5536 = vpack.c.b16 %v5480, %v5476
    %v5537 = vpack.c.b16 %v5481, %v5477
    %v5538 = vpack.c.b16 %v5482, %v5478
    %v5539 = vpack.c.b16 %v5483, %v5479
    %v5540 = vpack.c.b16 %v5488, %v5484
    %v5541 = vpack.c.b16 %v5489, %v5485
    %v5542 = vpack.c.b16 %v5490, %v5486
    %v5543 = vpack.c.b16 %v5491, %v5487
    %v5544 = vpack.c.b16 %v5496, %v5492
    %v5545 = vpack.c.b16 %v5497, %v5493
    %v5546 = vpack.c.b16 %v5498, %v5494
    %v5547 = vpack.c.b16 %v5499, %v5495
    %v5548 = vpack.c.b16 %v5504, %v5500
    %v5549 = vpack.c.b16 %v5505, %v5501
    %v5550 = vpack.c.b16 %v5506, %v5502
    %v5551 = vpack.c.b16 %v5507, %v5503
    %v5552 = vpack.c.b16 %v5512, %v5508
    %v5553 = vpack.c.b16 %v5513, %v5509
    %v5554 = vpack.c.b16 %v5514, %v5510
    %v5555 = vpack.c.b16 %v5515, %v5511
    %v5556 = vpack.c.b16 %v5520, %v5516
    %v5557 = vpack.c.b16 %v5521, %v5517
    %v5558 = vpack.c.b16 %v5522, %v5518
    %v5559 = vpack.c.b16 %v5523, %v5519
    %v5560 = vpack.c.b16 %v5528, %v5524
    %v5561 = vpack.c.b16 %v5529, %v5525
    %v5562 = vpack.c.b16 %v5530, %v5526
    %v5563 = vpack.c.b16 %v5531, %v5527
    %5596 = vmatprep.subr.bf16.mxu0 %v5533
    %5597 = vmatpush1.bf16.msra.mxu0 %v5532
    %5598 = vmatprep.subr.bf16.mxu0 %v5537
    %5599 = vmatpush1.bf16.msra.mxu0 %v5536
    %5600 = vmatprep.subr.bf16.mxu0 %v5541
    %5601 = vmatpush1.bf16.msra.mxu0 %v5540
    %5602 = vmatprep.subr.bf16.mxu0 %v5545
    %5603 = vmatpush1.bf16.msra.mxu0 %v5544
    %5604 = vmatprep.subr.bf16.mxu0 %v5549
    %5605 = vmatpush1.bf16.msra.mxu0 %v5548
    %5606 = vmatprep.subr.bf16.mxu0 %v5553
    %5607 = vmatpush1.bf16.msra.mxu0 %v5552
    %5608 = vmatprep.subr.bf16.mxu0 %v5557
    %5609 = vmatpush1.bf16.msra.mxu0 %v5556
    %5610 = vmatprep.subr.bf16.mxu0 %v5561
    %5611 = vmatpush1.bf16.msra.mxu0 %v5560
    %5612 = vmatprep.subr.bf16.mxu0 0
    %5613 = vmatpush1.bf16.msra.mxu0 0
    %5614 = vmatprep.subr.bf16.mxu0 0
    %5615 = vmatpush1.bf16.msra.mxu0 0
    %5616 = vmatprep.subr.bf16.mxu0 0
    %5617 = vmatpush1.bf16.msra.mxu0 0
    %5618 = vmatprep.subr.bf16.mxu0 0
    %5619 = vmatpush1.bf16.msra.mxu0 0
    %5620 = vmatprep.subr.bf16.mxu0 0
    %5621 = vmatpush1.bf16.msra.mxu0 0
    %5622 = vmatprep.subr.bf16.mxu0 0
    %5623 = vmatpush1.bf16.msra.mxu0 0
    %5624 = vmatprep.subr.bf16.mxu0 0
    %5625 = vmatpush1.bf16.msra.mxu0 0
    %5626 = vmatprep.subr.bf16.mxu0 0
    %5627 = vmatpush1.bf16.msra.mxu0 0
    %5628 = vmatprep.mubr.bf16.mxu0 0
    %5629 = vmatmul.mubr.bf16.gmra.mrb[0].mxu0 %v453
    %v5630 = vpop.f32.mrb[0].mxu0
    %v5631 = vadd.f32 0.0, %v5630
    %v5632 = vpop.f32.mrb[0].mxu0
    %v5633 = vadd.f32 0.0, %v5632
    %v5634 = vpop.f32.mrb[0].mxu0
    %v5635 = vadd.f32 0.0, %v5634
    %v5636 = vpop.f32.mrb[0].mxu0
    %v5637 = vadd.f32 0.0, %v5636
    %5638 = vmatprep.mubr.bf16.mxu0 0
    %5639 = vmatmul.mubr.bf16.gmra.mrb[0].mxu0 %v454
    %v5640 = vpop.f32.mrb[0].mxu0
    %v5641 = vadd.f32 0.0, %v5640
    %v5642 = vpop.f32.mrb[0].mxu0
    %v5643 = vadd.f32 0.0, %v5642
    %v5644 = vpop.f32.mrb[0].mxu0
    %v5645 = vpop.f32.mrb[0].mxu0
    %5646 = vdwg.mxu0
    %5647 = vmatprep.subr.bf16.mxu0 %v5535
    %5648 = vmatpush1.bf16.msra.mxu0 %v5534
    %5649 = vmatprep.subr.bf16.mxu0 %v5539
    %5650 = vmatpush1.bf16.msra.mxu0 %v5538
    %5651 = vmatprep.subr.bf16.mxu0 %v5543
    %5652 = vmatpush1.bf16.msra.mxu0 %v5542
    %5653 = vmatprep.subr.bf16.mxu0 %v5547
    %5654 = vmatpush1.bf16.msra.mxu0 %v5546
    %5655 = vmatprep.subr.bf16.mxu0 %v5551
    %5656 = vmatpush1.bf16.msra.mxu0 %v5550
    %5657 = vmatprep.subr.bf16.mxu0 %v5555
    %5658 = vmatpush1.bf16.msra.mxu0 %v5554
    %5659 = vmatprep.subr.bf16.mxu0 %v5559
    %5660 = vmatpush1.bf16.msra.mxu0 %v5558
    %5661 = vmatprep.subr.bf16.mxu0 %v5563
    %5662 = vmatpush1.bf16.msra.mxu0 %v5562
    %5663 = vmatprep.subr.bf16.mxu0 0
    %5664 = vmatpush1.bf16.msra.mxu0 0
    %5665 = vmatprep.subr.bf16.mxu0 0
    %5666 = vmatpush1.bf16.msra.mxu0 0
    %5667 = vmatprep.subr.bf16.mxu0 0
    %5668 = vmatpush1.bf16.msra.mxu0 0
    %5669 = vmatprep.subr.bf16.mxu0 0
    %5670 = vmatpush1.bf16.msra.mxu0 0
    %5671 = vmatprep.subr.bf16.mxu0 0
    %5672 = vmatpush1.bf16.msra.mxu0 0
    %5673 = vmatprep.subr.bf16.mxu0 0
    %5674 = vmatpush1.bf16.msra.mxu0 0
    %5675 = vmatprep.subr.bf16.mxu0 0
    %5676 = vmatpush1.bf16.msra.mxu0 0
    %5677 = vmatprep.subr.bf16.mxu0 0
    %5678 = vmatpush1.bf16.msra.mxu0 0
    %5679 = vmatprep.mubr.bf16.mxu0 0
    %5680 = vmatmul.mubr.bf16.gmra.mrb[0].mxu0 %v453
    %v5681 = vpop.f32.mrb[0].mxu0
    %v5682 = vadd.f32 0.0, %v5681
    %v5683 = vpop.f32.mrb[0].mxu0
    %v5684 = vadd.f32 0.0, %v5683
    %v5685 = vpop.f32.mrb[0].mxu0
    %v5686 = vadd.f32 0.0, %v5685
    %v5687 = vpop.f32.mrb[0].mxu0
    %v5688 = vadd.f32 0.0, %v5687
    %5689 = vmatprep.mubr.bf16.mxu0 0
    %5690 = vmatmul.mubr.bf16.gmra.mrb[0].mxu0 %v454
    %v5691 = vpop.f32.mrb[0].mxu0
    %v5692 = vadd.f32 0.0, %v5691
    %v5693 = vpop.f32.mrb[0].mxu0
    %v5694 = vadd.f32 0.0, %v5693
    %v5695 = vpop.f32.mrb[0].mxu0
    %v5696 = vpop.f32.mrb[0].mxu0
    %5697 = vdwg.mxu0
    %v5698 = vadd.f32 %v5337, %v5631
    %v5699 = vadd.f32 %v5339, %v5633
    %v5700 = vadd.f32 %v5388, %v5682
    %v5701 = vadd.f32 %v5390, %v5684
    %v5702 = vadd.f32 %v5341, %v5635
    %v5703 = vadd.f32 %v5343, %v5637
    %v5704 = vadd.f32 %v5392, %v5686
    %v5705 = vadd.f32 %v5394, %v5688
    %v5706 = vadd.f32 %v5347, %v5641
    %v5707 = vadd.f32 %v5349, %v5643
    %v5708 = vadd.f32 %v5398, %v5692
    %v5709 = vadd.f32 %v5400, %v5694
    %v5710 = vld [vmem:[%s45] sm:$0xf]
    %v5712 = vlaneseq
    %v5713 = vshrl.u32 %v5712, 7
    %v5714 = vsub.s32 0, %v5713
    %v5715 = vrot.slane %v5710, %v5714
    %v5716 = vlaneseq
    %v5717 = vshrl.u32 %v5716, 7
    %v5718 = vsub.s32 1, %v5717
    %v5719 = vrot.slane %v5710, %v5718
    %v5720 = vlaneseq
    %v5721 = vshrl.u32 %v5720, 7
    %v5722 = vsub.s32 2, %v5721
    %v5723 = vrot.slane %v5710, %v5722
    %v5724 = vlaneseq
    %v5725 = vshrl.u32 %v5724, 7
    %v5726 = vsub.s32 3, %v5725
    %v5727 = vrot.slane %v5710, %v5726
    %v5732 = vadd.f32 %v5698, %v5715
    %v5733 = vadd.f32 %v5699, %v5719
    %v5734 = vadd.f32 %v5700, %v5723
    %v5735 = vadd.f32 %v5701, %v5727
    %v5736 = vadd.f32 %v5702, %v5715
    %v5737 = vadd.f32 %v5703, %v5719
    %v5738 = vadd.f32 %v5704, %v5723
    %v5739 = vadd.f32 %v5705, %v5727
    %v5740 = vadd.f32 %v5706, %v5715
    %v5741 = vadd.f32 %v5707, %v5719
    %v5742 = vadd.f32 %v5708, %v5723
    %v5743 = vadd.f32 %v5709, %v5727
    %v5744 = vmax.f32 %v5732, 0.0
    %v5745 = vmax.f32 %v5733, 0.0
    %v5746 = vmax.f32 %v5734, 0.0
    %v5747 = vmax.f32 %v5735, 0.0
    %v5748 = vmax.f32 %v5736, 0.0
    %v5749 = vmax.f32 %v5737, 0.0
    %v5750 = vmax.f32 %v5738, 0.0
    %v5751 = vmax.f32 %v5739, 0.0
    %v5752 = vmax.f32 %v5740, 0.0
    %v5753 = vmax.f32 %v5741, 0.0
    %v5754 = vmax.f32 %v5742, 0.0
    %v5755 = vmax.f32 %v5743, 0.0
    %v5756 = vpack.c.bf16 %v5748, %v5744
    %v5757 = vpack.c.bf16 %v5749, %v5745
    %v5758 = vpack.c.bf16 %v5750, %v5746
    %v5759 = vpack.c.bf16 %v5751, %v5747
    %v5760 = vpack.c.bf16 %v5752, %v5752
    %v5761 = vpack.c.bf16 %v5753, %v5753
    %v5762 = vpack.c.bf16 %v5754, %v5754
    %v5763 = vpack.c.bf16 %v5755, %v5755
    %v5764 = vld [vmem:[#allocation28] sm:$0xff]
    %v5765 = vld [vmem:[#allocation28 + $0x8] sm:$0xff]
    %v5766 = vld [vmem:[#allocation28 + $0x10] sm:$0xff]
    %v5767 = vld [vmem:[#allocation28 + $0x18] sm:$0xff]
    %v5768 = vld [vmem:[#allocation28 + $0x20] sm:$0xff]
    %v5769 = vld [vmem:[#allocation28 + $0x28] sm:$0xff]
    %v5770 = vld [vmem:[#allocation28 + $0x30] sm:$0xff]
    %v5771 = vld [vmem:[#allocation28 + $0x38] sm:$0xff]
    %v5772 = vld [vmem:[#allocation28 + $0x40] sm:$0xff]
    %v5773 = vld [vmem:[#allocation28 + $0x48] sm:$0xff]
    %v5774 = vld [vmem:[#allocation28 + $0x50] sm:$0xff]
    %v5775 = vld [vmem:[#allocation28 + $0x58] sm:$0xff]
    %v5776 = vld [vmem:[#allocation28 + $0x60] sm:$0xff]
    %v5777 = vld [vmem:[#allocation28 + $0x68] sm:$0xff]
    %v5778 = vld [vmem:[#allocation28 + $0x70] sm:$0xff]
    %v5779 = vld [vmem:[#allocation28 + $0x78] sm:$0xff]
    %v5780 = vld [vmem:[#allocation28 + $0x80] sm:$0xff]
    %v5781 = vld [vmem:[#allocation28 + $0x88] sm:$0xff]
    %v5782 = vld [vmem:[#allocation28 + $0x90] sm:$0xff]
    %v5783 = vld [vmem:[#allocation28 + $0x98] sm:$0xff]
    %v5784 = vld [vmem:[#allocation28 + $0xa0] sm:$0xff]
    %v5785 = vld [vmem:[#allocation28 + $0xa8] sm:$0xff]
    %v5786 = vld [vmem:[#allocation28 + $0xb0] sm:$0xff]
    %v5787 = vld [vmem:[#allocation28 + $0xb8] sm:$0xff]
    %v5788 = vld [vmem:[#allocation28 + $0xc0] sm:$0xff]
    %v5789 = vld [vmem:[#allocation28 + $0xc8] sm:$0xff]
    %v5790 = vld [vmem:[#allocation28 + $0xd0] sm:$0xff]
    %v5791 = vld [vmem:[#allocation28 + $0xd8] sm:$0xff]
    %v5792 = vld [vmem:[#allocation28 + $0xe0] sm:$0xff]
    %v5793 = vld [vmem:[#allocation28 + $0xe8] sm:$0xff]
    %v5794 = vld [vmem:[#allocation28 + $0xf0] sm:$0xff]
    %v5795 = vld [vmem:[#allocation28 + $0xf8] sm:$0xff]
    %v5796 = vld [vmem:[#allocation28 + $0x100] sm:$0xff]
    %v5797 = vld [vmem:[#allocation28 + $0x108] sm:$0xff]
    %v5798 = vld [vmem:[#allocation28 + $0x110] sm:$0xff]
    %v5799 = vld [vmem:[#allocation28 + $0x118] sm:$0xff]
    %v5800 = vld [vmem:[#allocation28 + $0x120] sm:$0xff]
    %v5801 = vld [vmem:[#allocation28 + $0x128] sm:$0xff]
    %v5802 = vld [vmem:[#allocation28 + $0x130] sm:$0xff]
    %v5803 = vld [vmem:[#allocation28 + $0x138] sm:$0xff]
    %v5804 = vld [vmem:[#allocation28 + $0x140] sm:$0xff]
    %v5805 = vld [vmem:[#allocation28 + $0x148] sm:$0xff]
    %v5806 = vld [vmem:[#allocation28 + $0x150] sm:$0xff]
    %v5807 = vld [vmem:[#allocation28 + $0x158] sm:$0xff]
    %v5808 = vld [vmem:[#allocation28 + $0x160] sm:$0xff]
    %v5809 = vld [vmem:[#allocation28 + $0x168] sm:$0xff]
    %v5810 = vld [vmem:[#allocation28 + $0x170] sm:$0xff]
    %v5811 = vld [vmem:[#allocation28 + $0x178] sm:$0xff]
    %v5812 = vld [vmem:[#allocation28 + $0x180] sm:$0xff]
    %v5813 = vld [vmem:[#allocation28 + $0x188] sm:$0xff]
    %v5814 = vld [vmem:[#allocation28 + $0x190] sm:$0xff]
    %v5815 = vld [vmem:[#allocation28 + $0x198] sm:$0xff]
    %v5816 = vld [vmem:[#allocation28 + $0x1a0] sm:$0xff]
    %v5817 = vld [vmem:[#allocation28 + $0x1a8] sm:$0xff]
    %v5818 = vld [vmem:[#allocation28 + $0x1b0] sm:$0xff]
    %v5819 = vld [vmem:[#allocation28 + $0x1b8] sm:$0xff]
    %v5820 = vld [vmem:[#allocation28 + $0x1c0] sm:$0xff]
    %v5821 = vld [vmem:[#allocation28 + $0x1c8] sm:$0xff]
    %v5822 = vld [vmem:[#allocation28 + $0x1d0] sm:$0xff]
    %v5823 = vld [vmem:[#allocation28 + $0x1d8] sm:$0xff]
    %v5824 = vld [vmem:[#allocation28 + $0x1e0] sm:$0xff]
    %v5825 = vld [vmem:[#allocation28 + $0x1e8] sm:$0xff]
    %v5826 = vld [vmem:[#allocation28 + $0x1f0] sm:$0xff]
    %v5827 = vld [vmem:[#allocation28 + $0x1f8] sm:$0xff]
    %v5828 = vld [vmem:[#allocation28 + $0x200] sm:$0xff]
    %v5829 = vld [vmem:[#allocation28 + $0x208] sm:$0xff]
    %v5830 = vld [vmem:[#allocation28 + $0x210] sm:$0xff]
    %v5831 = vld [vmem:[#allocation28 + $0x218] sm:$0xff]
    %v5832 = vld [vmem:[#allocation28 + $0x220] sm:$0xff]
    %v5833 = vld [vmem:[#allocation28 + $0x228] sm:$0xff]
    %v5834 = vld [vmem:[#allocation28 + $0x230] sm:$0xff]
    %v5835 = vld [vmem:[#allocation28 + $0x238] sm:$0xff]
    %v5836 = vld [vmem:[#allocation28 + $0x240] sm:$0xff]
    %v5837 = vld [vmem:[#allocation28 + $0x248] sm:$0xff]
    %v5838 = vld [vmem:[#allocation28 + $0x250] sm:$0xff]
    %v5839 = vld [vmem:[#allocation28 + $0x258] sm:$0xff]
    %v5840 = vld [vmem:[#allocation28 + $0x260] sm:$0xff]
    %v5841 = vld [vmem:[#allocation28 + $0x268] sm:$0xff]
    %v5842 = vld [vmem:[#allocation28 + $0x270] sm:$0xff]
    %v5843 = vld [vmem:[#allocation28 + $0x278] sm:$0xff]
    %v5844 = vld [vmem:[#allocation28 + $0x280] sm:$0xff]
    %v5845 = vld [vmem:[#allocation28 + $0x288] sm:$0xff]
    %v5846 = vld [vmem:[#allocation28 + $0x290] sm:$0xff]
    %v5847 = vld [vmem:[#allocation28 + $0x298] sm:$0xff]
    %v5848 = vld [vmem:[#allocation28 + $0x2a0] sm:$0xff]
    %v5849 = vld [vmem:[#allocation28 + $0x2a8] sm:$0xff]
    %v5850 = vld [vmem:[#allocation28 + $0x2b0] sm:$0xff]
    %v5851 = vld [vmem:[#allocation28 + $0x2b8] sm:$0xff]
    %v5852 = vld [vmem:[#allocation28 + $0x2c0] sm:$0xff]
    %v5853 = vld [vmem:[#allocation28 + $0x2c8] sm:$0xff]
    %v5854 = vld [vmem:[#allocation28 + $0x2d0] sm:$0xff]
    %v5855 = vld [vmem:[#allocation28 + $0x2d8] sm:$0xff]
    %v5856 = vld [vmem:[#allocation28 + $0x2e0] sm:$0xff]
    %v5857 = vld [vmem:[#allocation28 + $0x2e8] sm:$0xff]
    %v5858 = vld [vmem:[#allocation28 + $0x2f0] sm:$0xff]
    %v5859 = vld [vmem:[#allocation28 + $0x2f8] sm:$0xff]
    %v5860 = vld [vmem:[#allocation28 + $0x300] sm:$0xff]
    %v5861 = vld [vmem:[#allocation28 + $0x308] sm:$0xff]
    %v5862 = vld [vmem:[#allocation28 + $0x310] sm:$0xff]
    %v5863 = vld [vmem:[#allocation28 + $0x318] sm:$0xff]
    %v5864 = vld [vmem:[#allocation28 + $0x320] sm:$0xff]
    %v5865 = vld [vmem:[#allocation28 + $0x328] sm:$0xff]
    %v5866 = vld [vmem:[#allocation28 + $0x330] sm:$0xff]
    %v5867 = vld [vmem:[#allocation28 + $0x338] sm:$0xff]
    %v5868 = vld [vmem:[#allocation28 + $0x340] sm:$0xff]
    %v5869 = vld [vmem:[#allocation28 + $0x348] sm:$0xff]
    %v5870 = vld [vmem:[#allocation28 + $0x350] sm:$0xff]
    %v5871 = vld [vmem:[#allocation28 + $0x358] sm:$0xff]
    %v5872 = vld [vmem:[#allocation28 + $0x360] sm:$0xff]
    %v5873 = vld [vmem:[#allocation28 + $0x368] sm:$0xff]
    %v5874 = vld [vmem:[#allocation28 + $0x370] sm:$0xff]
    %v5875 = vld [vmem:[#allocation28 + $0x378] sm:$0xff]
    %v5876 = vld [vmem:[#allocation28 + $0x380] sm:$0xff]
    %v5877 = vld [vmem:[#allocation28 + $0x388] sm:$0xff]
    %v5878 = vld [vmem:[#allocation28 + $0x390] sm:$0xff]
    %v5879 = vld [vmem:[#allocation28 + $0x398] sm:$0xff]
    %v5880 = vld [vmem:[#allocation28 + $0x3a0] sm:$0xff]
    %v5881 = vld [vmem:[#allocation28 + $0x3a8] sm:$0xff]
    %v5882 = vld [vmem:[#allocation28 + $0x3b0] sm:$0xff]
    %v5883 = vld [vmem:[#allocation28 + $0x3b8] sm:$0xff]
    %v5884 = vld [vmem:[#allocation28 + $0x3c0] sm:$0xff]
    %v5885 = vld [vmem:[#allocation28 + $0x3c8] sm:$0xff]
    %v5886 = vld [vmem:[#allocation28 + $0x3d0] sm:$0xff]
    %v5887 = vld [vmem:[#allocation28 + $0x3d8] sm:$0xff]
    %v5888 = vld [vmem:[#allocation28 + $0x3e0] sm:$0xff]
    %v5889 = vld [vmem:[#allocation28 + $0x3e8] sm:$0xff]
    %v5890 = vld [vmem:[#allocation28 + $0x3f0] sm:$0xff]
    %v5891 = vld [vmem:[#allocation28 + $0x3f8] sm:$0xff]
    %v5892 = vld [vmem:[%s49] sm:$0xf]
    %v5894 = vlaneseq
    %v5895 = vshrl.u32 %v5894, 7
    %v5896 = vsub.s32 0, %v5895
    %v5897 = vrot.slane %v5892, %v5896
    %v5898 = vlaneseq
    %v5899 = vshrl.u32 %v5898, 7
    %v5900 = vsub.s32 1, %v5899
    %v5901 = vrot.slane %v5892, %v5900
    %v5902 = vlaneseq
    %v5903 = vshrl.u32 %v5902, 7
    %v5904 = vsub.s32 2, %v5903
    %v5905 = vrot.slane %v5892, %v5904
    %v5906 = vlaneseq
    %v5907 = vshrl.u32 %v5906, 7
    %v5908 = vsub.s32 3, %v5907
    %v5909 = vrot.slane %v5892, %v5908
    %v6042 = vunpack.c.l.b16 %v5764
    %v6043 = vunpack.c.h.b16 %v5764
    %v6044 = vunpack.c.l.b16 %v5765
    %v6045 = vunpack.c.h.b16 %v5765
    %v6046 = vunpack.c.l.b16 %v5766
    %v6047 = vunpack.c.h.b16 %v5766
    %v6048 = vunpack.c.l.b16 %v5767
    %v6049 = vunpack.c.h.b16 %v5767
    %v6050 = vunpack.c.l.b16 %v5768
    %v6051 = vunpack.c.h.b16 %v5768
    %v6052 = vunpack.c.l.b16 %v5769
    %v6053 = vunpack.c.h.b16 %v5769
    %v6054 = vunpack.c.l.b16 %v5770
    %v6055 = vunpack.c.h.b16 %v5770
    %v6056 = vunpack.c.l.b16 %v5771
    %v6057 = vunpack.c.h.b16 %v5771
    %v6058 = vunpack.c.l.b16 %v5772
    %v6059 = vunpack.c.h.b16 %v5772
    %v6060 = vunpack.c.l.b16 %v5773
    %v6061 = vunpack.c.h.b16 %v5773
    %v6062 = vunpack.c.l.b16 %v5774
    %v6063 = vunpack.c.h.b16 %v5774
    %v6064 = vunpack.c.l.b16 %v5775
    %v6065 = vunpack.c.h.b16 %v5775
    %v6066 = vunpack.c.l.b16 %v5776
    %v6067 = vunpack.c.h.b16 %v5776
    %v6068 = vunpack.c.l.b16 %v5777
    %v6069 = vunpack.c.h.b16 %v5777
    %v6070 = vunpack.c.l.b16 %v5778
    %v6071 = vunpack.c.h.b16 %v5778
    %v6072 = vunpack.c.l.b16 %v5779
    %v6073 = vunpack.c.h.b16 %v5779
    %v6074 = vunpack.c.l.b16 %v5780
    %v6075 = vunpack.c.h.b16 %v5780
    %v6076 = vunpack.c.l.b16 %v5781
    %v6077 = vunpack.c.h.b16 %v5781
    %v6078 = vunpack.c.l.b16 %v5782
    %v6079 = vunpack.c.h.b16 %v5782
    %v6080 = vunpack.c.l.b16 %v5783
    %v6081 = vunpack.c.h.b16 %v5783
    %v6082 = vunpack.c.l.b16 %v5784
    %v6083 = vunpack.c.h.b16 %v5784
    %v6084 = vunpack.c.l.b16 %v5785
    %v6085 = vunpack.c.h.b16 %v5785
    %v6086 = vunpack.c.l.b16 %v5786
    %v6087 = vunpack.c.h.b16 %v5786
    %v6088 = vunpack.c.l.b16 %v5787
    %v6089 = vunpack.c.h.b16 %v5787
    %v6090 = vunpack.c.l.b16 %v5788
    %v6091 = vunpack.c.h.b16 %v5788
    %v6092 = vunpack.c.l.b16 %v5789
    %v6093 = vunpack.c.h.b16 %v5789
    %v6094 = vunpack.c.l.b16 %v5790
    %v6095 = vunpack.c.h.b16 %v5790
    %v6096 = vunpack.c.l.b16 %v5791
    %v6097 = vunpack.c.h.b16 %v5791
    %v6098 = vunpack.c.l.b16 %v5792
    %v6099 = vunpack.c.h.b16 %v5792
    %v6100 = vunpack.c.l.b16 %v5793
    %v6101 = vunpack.c.h.b16 %v5793
    %v6102 = vunpack.c.l.b16 %v5794
    %v6103 = vunpack.c.h.b16 %v5794
    %v6104 = vunpack.c.l.b16 %v5795
    %v6105 = vunpack.c.h.b16 %v5795
    %v6106 = vunpack.c.l.b16 %v5796
    %v6107 = vunpack.c.h.b16 %v5796
    %v6108 = vunpack.c.l.b16 %v5797
    %v6109 = vunpack.c.h.b16 %v5797
    %v6110 = vunpack.c.l.b16 %v5798
    %v6111 = vunpack.c.h.b16 %v5798
    %v6112 = vunpack.c.l.b16 %v5799
    %v6113 = vunpack.c.h.b16 %v5799
    %v6114 = vunpack.c.l.b16 %v5800
    %v6115 = vunpack.c.h.b16 %v5800
    %v6116 = vunpack.c.l.b16 %v5801
    %v6117 = vunpack.c.h.b16 %v5801
    %v6118 = vunpack.c.l.b16 %v5802
    %v6119 = vunpack.c.h.b16 %v5802
    %v6120 = vunpack.c.l.b16 %v5803
    %v6121 = vunpack.c.h.b16 %v5803
    %v6122 = vunpack.c.l.b16 %v5804
    %v6123 = vunpack.c.h.b16 %v5804
    %v6124 = vunpack.c.l.b16 %v5805
    %v6125 = vunpack.c.h.b16 %v5805
    %v6126 = vunpack.c.l.b16 %v5806
    %v6127 = vunpack.c.h.b16 %v5806
    %v6128 = vunpack.c.l.b16 %v5807
    %v6129 = vunpack.c.h.b16 %v5807
    %v6130 = vunpack.c.l.b16 %v5808
    %v6131 = vunpack.c.h.b16 %v5808
    %v6132 = vunpack.c.l.b16 %v5809
    %v6133 = vunpack.c.h.b16 %v5809
    %v6134 = vunpack.c.l.b16 %v5810
    %v6135 = vunpack.c.h.b16 %v5810
    %v6136 = vunpack.c.l.b16 %v5811
    %v6137 = vunpack.c.h.b16 %v5811
    %v6138 = vunpack.c.l.b16 %v5812
    %v6139 = vunpack.c.h.b16 %v5812
    %v6140 = vunpack.c.l.b16 %v5813
    %v6141 = vunpack.c.h.b16 %v5813
    %v6142 = vunpack.c.l.b16 %v5814
    %v6143 = vunpack.c.h.b16 %v5814
    %v6144 = vunpack.c.l.b16 %v5815
    %v6145 = vunpack.c.h.b16 %v5815
    %v6146 = vunpack.c.l.b16 %v5816
    %v6147 = vunpack.c.h.b16 %v5816
    %v6148 = vunpack.c.l.b16 %v5817
    %v6149 = vunpack.c.h.b16 %v5817
    %v6150 = vunpack.c.l.b16 %v5818
    %v6151 = vunpack.c.h.b16 %v5818
    %v6152 = vunpack.c.l.b16 %v5819
    %v6153 = vunpack.c.h.b16 %v5819
    %v6154 = vunpack.c.l.b16 %v5820
    %v6155 = vunpack.c.h.b16 %v5820
    %v6156 = vunpack.c.l.b16 %v5821
    %v6157 = vunpack.c.h.b16 %v5821
    %v6158 = vunpack.c.l.b16 %v5822
    %v6159 = vunpack.c.h.b16 %v5822
    %v6160 = vunpack.c.l.b16 %v5823
    %v6161 = vunpack.c.h.b16 %v5823
    %v6162 = vunpack.c.l.b16 %v5824
    %v6163 = vunpack.c.h.b16 %v5824
    %v6164 = vunpack.c.l.b16 %v5825
    %v6165 = vunpack.c.h.b16 %v5825
    %v6166 = vunpack.c.l.b16 %v5826
    %v6167 = vunpack.c.h.b16 %v5826
    %v6168 = vunpack.c.l.b16 %v5827
    %v6169 = vunpack.c.h.b16 %v5827
    %v6170 = vunpack.c.l.b16 %v5828
    %v6171 = vunpack.c.h.b16 %v5828
    %v6172 = vunpack.c.l.b16 %v5829
    %v6173 = vunpack.c.h.b16 %v5829
    %v6174 = vunpack.c.l.b16 %v5830
    %v6175 = vunpack.c.h.b16 %v5830
    %v6176 = vunpack.c.l.b16 %v5831
    %v6177 = vunpack.c.h.b16 %v5831
    %v6178 = vunpack.c.l.b16 %v5832
    %v6179 = vunpack.c.h.b16 %v5832
    %v6180 = vunpack.c.l.b16 %v5833
    %v6181 = vunpack.c.h.b16 %v5833
    %v6182 = vunpack.c.l.b16 %v5834
    %v6183 = vunpack.c.h.b16 %v5834
    %v6184 = vunpack.c.l.b16 %v5835
    %v6185 = vunpack.c.h.b16 %v5835
    %v6186 = vunpack.c.l.b16 %v5836
    %v6187 = vunpack.c.h.b16 %v5836
    %v6188 = vunpack.c.l.b16 %v5837
    %v6189 = vunpack.c.h.b16 %v5837
    %v6190 = vunpack.c.l.b16 %v5838
    %v6191 = vunpack.c.h.b16 %v5838
    %v6192 = vunpack.c.l.b16 %v5839
    %v6193 = vunpack.c.h.b16 %v5839
    %v6194 = vunpack.c.l.b16 %v5840
    %v6195 = vunpack.c.h.b16 %v5840
    %v6196 = vunpack.c.l.b16 %v5841
    %v6197 = vunpack.c.h.b16 %v5841
    %v6198 = vunpack.c.l.b16 %v5842
    %v6199 = vunpack.c.h.b16 %v5842
    %v6200 = vunpack.c.l.b16 %v5843
    %v6201 = vunpack.c.h.b16 %v5843
    %v6202 = vunpack.c.l.b16 %v5844
    %v6203 = vunpack.c.h.b16 %v5844
    %v6204 = vunpack.c.l.b16 %v5845
    %v6205 = vunpack.c.h.b16 %v5845
    %v6206 = vunpack.c.l.b16 %v5846
    %v6207 = vunpack.c.h.b16 %v5846
    %v6208 = vunpack.c.l.b16 %v5847
    %v6209 = vunpack.c.h.b16 %v5847
    %v6210 = vunpack.c.l.b16 %v5848
    %v6211 = vunpack.c.h.b16 %v5848
    %v6212 = vunpack.c.l.b16 %v5849
    %v6213 = vunpack.c.h.b16 %v5849
    %v6214 = vunpack.c.l.b16 %v5850
    %v6215 = vunpack.c.h.b16 %v5850
    %v6216 = vunpack.c.l.b16 %v5851
    %v6217 = vunpack.c.h.b16 %v5851
    %v6218 = vunpack.c.l.b16 %v5852
    %v6219 = vunpack.c.h.b16 %v5852
    %v6220 = vunpack.c.l.b16 %v5853
    %v6221 = vunpack.c.h.b16 %v5853
    %v6222 = vunpack.c.l.b16 %v5854
    %v6223 = vunpack.c.h.b16 %v5854
    %v6224 = vunpack.c.l.b16 %v5855
    %v6225 = vunpack.c.h.b16 %v5855
    %v6226 = vunpack.c.l.b16 %v5856
    %v6227 = vunpack.c.h.b16 %v5856
    %v6228 = vunpack.c.l.b16 %v5857
    %v6229 = vunpack.c.h.b16 %v5857
    %v6230 = vunpack.c.l.b16 %v5858
    %v6231 = vunpack.c.h.b16 %v5858
    %v6232 = vunpack.c.l.b16 %v5859
    %v6233 = vunpack.c.h.b16 %v5859
    %v6234 = vunpack.c.l.b16 %v5860
    %v6235 = vunpack.c.h.b16 %v5860
    %v6236 = vunpack.c.l.b16 %v5861
    %v6237 = vunpack.c.h.b16 %v5861
    %v6238 = vunpack.c.l.b16 %v5862
    %v6239 = vunpack.c.h.b16 %v5862
    %v6240 = vunpack.c.l.b16 %v5863
    %v6241 = vunpack.c.h.b16 %v5863
    %v6242 = vunpack.c.l.b16 %v5864
    %v6243 = vunpack.c.h.b16 %v5864
    %v6244 = vunpack.c.l.b16 %v5865
    %v6245 = vunpack.c.h.b16 %v5865
    %v6246 = vunpack.c.l.b16 %v5866
    %v6247 = vunpack.c.h.b16 %v5866
    %v6248 = vunpack.c.l.b16 %v5867
    %v6249 = vunpack.c.h.b16 %v5867
    %v6250 = vunpack.c.l.b16 %v5868
    %v6251 = vunpack.c.h.b16 %v5868
    %v6252 = vunpack.c.l.b16 %v5869
    %v6253 = vunpack.c.h.b16 %v5869
    %v6254 = vunpack.c.l.b16 %v5870
    %v6255 = vunpack.c.h.b16 %v5870
    %v6256 = vunpack.c.l.b16 %v5871
    %v6257 = vunpack.c.h.b16 %v5871
    %v6258 = vunpack.c.l.b16 %v5872
    %v6259 = vunpack.c.h.b16 %v5872
    %v6260 = vunpack.c.l.b16 %v5873
    %v6261 = vunpack.c.h.b16 %v5873
    %v6262 = vunpack.c.l.b16 %v5874
    %v6263 = vunpack.c.h.b16 %v5874
    %v6264 = vunpack.c.l.b16 %v5875
    %v6265 = vunpack.c.h.b16 %v5875
    %v6266 = vunpack.c.l.b16 %v5876
    %v6267 = vunpack.c.h.b16 %v5876
    %v6268 = vunpack.c.l.b16 %v5877
    %v6269 = vunpack.c.h.b16 %v5877
    %v6270 = vunpack.c.l.b16 %v5878
    %v6271 = vunpack.c.h.b16 %v5878
    %v6272 = vunpack.c.l.b16 %v5879
    %v6273 = vunpack.c.h.b16 %v5879
    %v6274 = vunpack.c.l.b16 %v5880
    %v6275 = vunpack.c.h.b16 %v5880
    %v6276 = vunpack.c.l.b16 %v5881
    %v6277 = vunpack.c.h.b16 %v5881
    %v6278 = vunpack.c.l.b16 %v5882
    %v6279 = vunpack.c.h.b16 %v5882
    %v6280 = vunpack.c.l.b16 %v5883
    %v6281 = vunpack.c.h.b16 %v5883
    %v6282 = vunpack.c.l.b16 %v5884
    %v6283 = vunpack.c.h.b16 %v5884
    %v6284 = vunpack.c.l.b16 %v5885
    %v6285 = vunpack.c.h.b16 %v5885
    %v6286 = vunpack.c.l.b16 %v5886
    %v6287 = vunpack.c.h.b16 %v5886
    %v6288 = vunpack.c.l.b16 %v5887
    %v6289 = vunpack.c.h.b16 %v5887
    %v6290 = vunpack.c.l.b16 %v5888
    %v6291 = vunpack.c.h.b16 %v5888
    %v6292 = vunpack.c.l.b16 %v5889
    %v6293 = vunpack.c.h.b16 %v5889
    %v6294 = vunpack.c.l.b16 %v5890
    %v6295 = vunpack.c.h.b16 %v5890
    %v6296 = vunpack.c.l.b16 %v5891
    %v6297 = vunpack.c.h.b16 %v5891
    %v6298 = vpack.c.b16 %v6046, %v6042
    %v6299 = vpack.c.b16 %v6047, %v6043
    %v6300 = vpack.c.b16 %v6048, %v6044
    %v6301 = vpack.c.b16 %v6049, %v6045
    %v6302 = vpack.c.b16 %v6054, %v6050
    %v6303 = vpack.c.b16 %v6055, %v6051
    %v6304 = vpack.c.b16 %v6056, %v6052
    %v6305 = vpack.c.b16 %v6057, %v6053
    %v6306 = vpack.c.b16 %v6062, %v6058
    %v6307 = vpack.c.b16 %v6063, %v6059
    %v6308 = vpack.c.b16 %v6064, %v6060
    %v6309 = vpack.c.b16 %v6065, %v6061
    %v6310 = vpack.c.b16 %v6070, %v6066
    %v6311 = vpack.c.b16 %v6071, %v6067
    %v6312 = vpack.c.b16 %v6072, %v6068
    %v6313 = vpack.c.b16 %v6073, %v6069
    %v6314 = vpack.c.b16 %v6078, %v6074
    %v6315 = vpack.c.b16 %v6079, %v6075
    %v6316 = vpack.c.b16 %v6080, %v6076
    %v6317 = vpack.c.b16 %v6081, %v6077
    %v6318 = vpack.c.b16 %v6086, %v6082
    %v6319 = vpack.c.b16 %v6087, %v6083
    %v6320 = vpack.c.b16 %v6088, %v6084
    %v6321 = vpack.c.b16 %v6089, %v6085
    %v6322 = vpack.c.b16 %v6094, %v6090
    %v6323 = vpack.c.b16 %v6095, %v6091
    %v6324 = vpack.c.b16 %v6096, %v6092
    %v6325 = vpack.c.b16 %v6097, %v6093
    %v6326 = vpack.c.b16 %v6102, %v6098
    %v6327 = vpack.c.b16 %v6103, %v6099
    %v6328 = vpack.c.b16 %v6104, %v6100
    %v6329 = vpack.c.b16 %v6105, %v6101
    %v6330 = vpack.c.b16 %v6110, %v6106
    %v6331 = vpack.c.b16 %v6111, %v6107
    %v6332 = vpack.c.b16 %v6112, %v6108
    %v6333 = vpack.c.b16 %v6113, %v6109
    %v6334 = vpack.c.b16 %v6118, %v6114
    %v6335 = vpack.c.b16 %v6119, %v6115
    %v6336 = vpack.c.b16 %v6120, %v6116
    %v6337 = vpack.c.b16 %v6121, %v6117
    %v6338 = vpack.c.b16 %v6126, %v6122
    %v6339 = vpack.c.b16 %v6127, %v6123
    %v6340 = vpack.c.b16 %v6128, %v6124
    %v6341 = vpack.c.b16 %v6129, %v6125
    %v6342 = vpack.c.b16 %v6134, %v6130
    %v6343 = vpack.c.b16 %v6135, %v6131
    %v6344 = vpack.c.b16 %v6136, %v6132
    %v6345 = vpack.c.b16 %v6137, %v6133
    %v6346 = vpack.c.b16 %v6142, %v6138
    %v6347 = vpack.c.b16 %v6143, %v6139
    %v6348 = vpack.c.b16 %v6144, %v6140
    %v6349 = vpack.c.b16 %v6145, %v6141
    %v6350 = vpack.c.b16 %v6150, %v6146
    %v6351 = vpack.c.b16 %v6151, %v6147
    %v6352 = vpack.c.b16 %v6152, %v6148
    %v6353 = vpack.c.b16 %v6153, %v6149
    %v6354 = vpack.c.b16 %v6158, %v6154
    %v6355 = vpack.c.b16 %v6159, %v6155
    %v6356 = vpack.c.b16 %v6160, %v6156
    %v6357 = vpack.c.b16 %v6161, %v6157
    %v6358 = vpack.c.b16 %v6166, %v6162
    %v6359 = vpack.c.b16 %v6167, %v6163
    %v6360 = vpack.c.b16 %v6168, %v6164
    %v6361 = vpack.c.b16 %v6169, %v6165
    %v6362 = vpack.c.b16 %v6174, %v6170
    %v6363 = vpack.c.b16 %v6175, %v6171
    %v6364 = vpack.c.b16 %v6176, %v6172
    %v6365 = vpack.c.b16 %v6177, %v6173
    %v6366 = vpack.c.b16 %v6182, %v6178
    %v6367 = vpack.c.b16 %v6183, %v6179
    %v6368 = vpack.c.b16 %v6184, %v6180
    %v6369 = vpack.c.b16 %v6185, %v6181
    %v6370 = vpack.c.b16 %v6190, %v6186
    %v6371 = vpack.c.b16 %v6191, %v6187
    %v6372 = vpack.c.b16 %v6192, %v6188
    %v6373 = vpack.c.b16 %v6193, %v6189
    %v6374 = vpack.c.b16 %v6198, %v6194
    %v6375 = vpack.c.b16 %v6199, %v6195
    %v6376 = vpack.c.b16 %v6200, %v6196
    %v6377 = vpack.c.b16 %v6201, %v6197
    %v6378 = vpack.c.b16 %v6206, %v6202
    %v6379 = vpack.c.b16 %v6207, %v6203
    %v6380 = vpack.c.b16 %v6208, %v6204
    %v6381 = vpack.c.b16 %v6209, %v6205
    %v6382 = vpack.c.b16 %v6214, %v6210
    %v6383 = vpack.c.b16 %v6215, %v6211
    %v6384 = vpack.c.b16 %v6216, %v6212
    %v6385 = vpack.c.b16 %v6217, %v6213
    %v6386 = vpack.c.b16 %v6222, %v6218
    %v6387 = vpack.c.b16 %v6223, %v6219
    %v6388 = vpack.c.b16 %v6224, %v6220
    %v6389 = vpack.c.b16 %v6225, %v6221
    %v6390 = vpack.c.b16 %v6230, %v6226
    %v6391 = vpack.c.b16 %v6231, %v6227
    %v6392 = vpack.c.b16 %v6232, %v6228
    %v6393 = vpack.c.b16 %v6233, %v6229
    %v6394 = vpack.c.b16 %v6238, %v6234
    %v6395 = vpack.c.b16 %v6239, %v6235
    %v6396 = vpack.c.b16 %v6240, %v6236
    %v6397 = vpack.c.b16 %v6241, %v6237
    %v6398 = vpack.c.b16 %v6246, %v6242
    %v6399 = vpack.c.b16 %v6247, %v6243
    %v6400 = vpack.c.b16 %v6248, %v6244
    %v6401 = vpack.c.b16 %v6249, %v6245
    %v6402 = vpack.c.b16 %v6254, %v6250
    %v6403 = vpack.c.b16 %v6255, %v6251
    %v6404 = vpack.c.b16 %v6256, %v6252
    %v6405 = vpack.c.b16 %v6257, %v6253
    %v6406 = vpack.c.b16 %v6262, %v6258
    %v6407 = vpack.c.b16 %v6263, %v6259
    %v6408 = vpack.c.b16 %v6264, %v6260
    %v6409 = vpack.c.b16 %v6265, %v6261
    %v6410 = vpack.c.b16 %v6270, %v6266
    %v6411 = vpack.c.b16 %v6271, %v6267
    %v6412 = vpack.c.b16 %v6272, %v6268
    %v6413 = vpack.c.b16 %v6273, %v6269
    %v6414 = vpack.c.b16 %v6278, %v6274
    %v6415 = vpack.c.b16 %v6279, %v6275
    %v6416 = vpack.c.b16 %v6280, %v6276
    %v6417 = vpack.c.b16 %v6281, %v6277
    %v6418 = vpack.c.b16 %v6286, %v6282
    %v6419 = vpack.c.b16 %v6287, %v6283
    %v6420 = vpack.c.b16 %v6288, %v6284
    %v6421 = vpack.c.b16 %v6289, %v6285
    %v6422 = vpack.c.b16 %v6294, %v6290
    %v6423 = vpack.c.b16 %v6295, %v6291
    %v6424 = vpack.c.b16 %v6296, %v6292
    %v6425 = vpack.c.b16 %v6297, %v6293
    %6554 = vmatprep.subr.bf16.mxu0 %v6299
    %6555 = vmatpush1.bf16.msra.mxu0 %v6298
    %6556 = vmatprep.subr.bf16.mxu0 %v6303
    %6557 = vmatpush1.bf16.msra.mxu0 %v6302
    %6558 = vmatprep.subr.bf16.mxu0 %v6307
    %6559 = vmatpush1.bf16.msra.mxu0 %v6306
    %6560 = vmatprep.subr.bf16.mxu0 %v6311
    %6561 = vmatpush1.bf16.msra.mxu0 %v6310
    %6562 = vmatprep.subr.bf16.mxu0 %v6315
    %6563 = vmatpush1.bf16.msra.mxu0 %v6314
    %6564 = vmatprep.subr.bf16.mxu0 %v6319
    %6565 = vmatpush1.bf16.msra.mxu0 %v6318
    %6566 = vmatprep.subr.bf16.mxu0 %v6323
    %6567 = vmatpush1.bf16.msra.mxu0 %v6322
    %6568 = vmatprep.subr.bf16.mxu0 %v6327
    %6569 = vmatpush1.bf16.msra.mxu0 %v6326
    %6570 = vmatprep.subr.bf16.mxu0 %v6331
    %6571 = vmatpush1.bf16.msra.mxu0 %v6330
    %6572 = vmatprep.subr.bf16.mxu0 %v6335
    %6573 = vmatpush1.bf16.msra.mxu0 %v6334
    %6574 = vmatprep.subr.bf16.mxu0 %v6339
    %6575 = vmatpush1.bf16.msra.mxu0 %v6338
    %6576 = vmatprep.subr.bf16.mxu0 %v6343
    %6577 = vmatpush1.bf16.msra.mxu0 %v6342
    %6578 = vmatprep.subr.bf16.mxu0 %v6347
    %6579 = vmatpush1.bf16.msra.mxu0 %v6346
    %6580 = vmatprep.subr.bf16.mxu0 %v6351
    %6581 = vmatpush1.bf16.msra.mxu0 %v6350
    %6582 = vmatprep.subr.bf16.mxu0 %v6355
    %6583 = vmatpush1.bf16.msra.mxu0 %v6354
    %6584 = vmatprep.subr.bf16.mxu0 %v6359
    %6585 = vmatpush1.bf16.msra.mxu0 %v6358
    %6586 = vmatprep.mubr.bf16.mxu0 %v5757
    %6587 = vmatmul.mubr.bf16.gmra.mrb[0].mxu0 %v5756
    %v6588 = vpop.f32.mrb[0].mxu0
    %v6589 = vadd.f32 %v5897, %v6588
    %v6590 = vpop.f32.mrb[0].mxu0
    %v6591 = vadd.f32 %v5901, %v6590
    %v6592 = vpop.f32.mrb[0].mxu0
    %v6593 = vadd.f32 %v5897, %v6592
    %v6594 = vpop.f32.mrb[0].mxu0
    %v6595 = vadd.f32 %v5901, %v6594
    %6596 = vmatprep.mubr.bf16.mxu0 %v5761
    %6597 = vmatmul.mubr.bf16.gmra.mrb[0].mxu0 %v5760
    %v6598 = vpop.f32.mrb[0].mxu0
    %v6599 = vadd.f32 %v5897, %v6598
    %v6600 = vpop.f32.mrb[0].mxu0
    %v6601 = vadd.f32 %v5901, %v6600
    %v6602 = vpop.f32.mrb[0].mxu0
    %v6603 = vpop.f32.mrb[0].mxu0
    %6604 = vdwg.mxu0
    %6605 = vmatprep.subr.bf16.mxu0 %v6363
    %6606 = vmatpush1.bf16.msra.mxu0 %v6362
    %6607 = vmatprep.subr.bf16.mxu0 %v6367
    %6608 = vmatpush1.bf16.msra.mxu0 %v6366
    %6609 = vmatprep.subr.bf16.mxu0 %v6371
    %6610 = vmatpush1.bf16.msra.mxu0 %v6370
    %6611 = vmatprep.subr.bf16.mxu0 %v6375
    %6612 = vmatpush1.bf16.msra.mxu0 %v6374
    %6613 = vmatprep.subr.bf16.mxu0 %v6379
    %6614 = vmatpush1.bf16.msra.mxu0 %v6378
    %6615 = vmatprep.subr.bf16.mxu0 %v6383
    %6616 = vmatpush1.bf16.msra.mxu0 %v6382
    %6617 = vmatprep.subr.bf16.mxu0 %v6387
    %6618 = vmatpush1.bf16.msra.mxu0 %v6386
    %6619 = vmatprep.subr.bf16.mxu0 %v6391
    %6620 = vmatpush1.bf16.msra.mxu0 %v6390
    %6621 = vmatprep.subr.bf16.mxu0 %v6395
    %6622 = vmatpush1.bf16.msra.mxu0 %v6394
    %6623 = vmatprep.subr.bf16.mxu0 %v6399
    %6624 = vmatpush1.bf16.msra.mxu0 %v6398
    %6625 = vmatprep.subr.bf16.mxu0 %v6403
    %6626 = vmatpush1.bf16.msra.mxu0 %v6402
    %6627 = vmatprep.subr.bf16.mxu0 %v6407
    %6628 = vmatpush1.bf16.msra.mxu0 %v6406
    %6629 = vmatprep.subr.bf16.mxu0 %v6411
    %6630 = vmatpush1.bf16.msra.mxu0 %v6410
    %6631 = vmatprep.subr.bf16.mxu0 %v6415
    %6632 = vmatpush1.bf16.msra.mxu0 %v6414
    %6633 = vmatprep.subr.bf16.mxu0 %v6419
    %6634 = vmatpush1.bf16.msra.mxu0 %v6418
    %6635 = vmatprep.subr.bf16.mxu0 %v6423
    %6636 = vmatpush1.bf16.msra.mxu0 %v6422
    %6637 = vmatprep.mubr.bf16.mxu0 %v5759
    %6638 = vmatmul.mubr.bf16.gmra.mrb[0].mxu0 %v5758
    %v6639 = vpop.f32.mrb[0].mxu0
    %v6640 = vadd.f32 %v6589, %v6639
    %v6641 = vpop.f32.mrb[0].mxu0
    %v6642 = vadd.f32 %v6591, %v6641
    %v6643 = vpop.f32.mrb[0].mxu0
    %v6644 = vadd.f32 %v6593, %v6643
    %v6645 = vpop.f32.mrb[0].mxu0
    %v6646 = vadd.f32 %v6595, %v6645
    %6647 = vmatprep.mubr.bf16.mxu0 %v5763
    %6648 = vmatmul.mubr.bf16.gmra.mrb[0].mxu0 %v5762
    %v6649 = vpop.f32.mrb[0].mxu0
    %v6650 = vadd.f32 %v6599, %v6649
    %v6651 = vpop.f32.mrb[0].mxu0
    %v6652 = vadd.f32 %v6601, %v6651
    %v6653 = vpop.f32.mrb[0].mxu0
    %v6654 = vpop.f32.mrb[0].mxu0
    %6655 = vdwg.mxu0
    %6656 = vmatprep.subr.bf16.mxu0 %v6301
    %6657 = vmatpush1.bf16.msra.mxu0 %v6300
    %6658 = vmatprep.subr.bf16.mxu0 %v6305
    %6659 = vmatpush1.bf16.msra.mxu0 %v6304
    %6660 = vmatprep.subr.bf16.mxu0 %v6309
    %6661 = vmatpush1.bf16.msra.mxu0 %v6308
    %6662 = vmatprep.subr.bf16.mxu0 %v6313
    %6663 = vmatpush1.bf16.msra.mxu0 %v6312
    %6664 = vmatprep.subr.bf16.mxu0 %v6317
    %6665 = vmatpush1.bf16.msra.mxu0 %v6316
    %6666 = vmatprep.subr.bf16.mxu0 %v6321
    %6667 = vmatpush1.bf16.msra.mxu0 %v6320
    %6668 = vmatprep.subr.bf16.mxu0 %v6325
    %6669 = vmatpush1.bf16.msra.mxu0 %v6324
    %6670 = vmatprep.subr.bf16.mxu0 %v6329
    %6671 = vmatpush1.bf16.msra.mxu0 %v6328
    %6672 = vmatprep.subr.bf16.mxu0 %v6333
    %6673 = vmatpush1.bf16.msra.mxu0 %v6332
    %6674 = vmatprep.subr.bf16.mxu0 %v6337
    %6675 = vmatpush1.bf16.msra.mxu0 %v6336
    %6676 = vmatprep.subr.bf16.mxu0 %v6341
    %6677 = vmatpush1.bf16.msra.mxu0 %v6340
    %6678 = vmatprep.subr.bf16.mxu0 %v6345
    %6679 = vmatpush1.bf16.msra.mxu0 %v6344
    %6680 = vmatprep.subr.bf16.mxu0 %v6349
    %6681 = vmatpush1.bf16.msra.mxu0 %v6348
    %6682 = vmatprep.subr.bf16.mxu0 %v6353
    %6683 = vmatpush1.bf16.msra.mxu0 %v6352
    %6684 = vmatprep.subr.bf16.mxu0 %v6357
    %6685 = vmatpush1.bf16.msra.mxu0 %v6356
    %6686 = vmatprep.subr.bf16.mxu0 %v6361
    %6687 = vmatpush1.bf16.msra.mxu0 %v6360
    %6688 = vmatprep.mubr.bf16.mxu0 %v5757
    %6689 = vmatmul.mubr.bf16.gmra.mrb[0].mxu0 %v5756
    %v6690 = vpop.f32.mrb[0].mxu0
    %v6691 = vadd.f32 %v5905, %v6690
    %v6692 = vpop.f32.mrb[0].mxu0
    %v6693 = vadd.f32 %v5909, %v6692
    %v6694 = vpop.f32.mrb[0].mxu0
    %v6695 = vadd.f32 %v5905, %v6694
    %v6696 = vpop.f32.mrb[0].mxu0
    %v6697 = vadd.f32 %v5909, %v6696
    %6698 = vmatprep.mubr.bf16.mxu0 %v5761
    %6699 = vmatmul.mubr.bf16.gmra.mrb[0].mxu0 %v5760
    %v6700 = vpop.f32.mrb[0].mxu0
    %v6701 = vadd.f32 %v5905, %v6700
    %v6702 = vpop.f32.mrb[0].mxu0
    %v6703 = vadd.f32 %v5909, %v6702
    %v6704 = vpop.f32.mrb[0].mxu0
    %v6705 = vpop.f32.mrb[0].mxu0
    %6706 = vdwg.mxu0
    %6707 = vmatprep.subr.bf16.mxu0 %v6365
    %6708 = vmatpush1.bf16.msra.mxu0 %v6364
    %6709 = vmatprep.subr.bf16.mxu0 %v6369
    %6710 = vmatpush1.bf16.msra.mxu0 %v6368
    %6711 = vmatprep.subr.bf16.mxu0 %v6373
    %6712 = vmatpush1.bf16.msra.mxu0 %v6372
    %6713 = vmatprep.subr.bf16.mxu0 %v6377
    %6714 = vmatpush1.bf16.msra.mxu0 %v6376
    %6715 = vmatprep.subr.bf16.mxu0 %v6381
    %6716 = vmatpush1.bf16.msra.mxu0 %v6380
    %6717 = vmatprep.subr.bf16.mxu0 %v6385
    %6718 = vmatpush1.bf16.msra.mxu0 %v6384
    %6719 = vmatprep.subr.bf16.mxu0 %v6389
    %6720 = vmatpush1.bf16.msra.mxu0 %v6388
    %6721 = vmatprep.subr.bf16.mxu0 %v6393
    %6722 = vmatpush1.bf16.msra.mxu0 %v6392
    %6723 = vmatprep.subr.bf16.mxu0 %v6397
    %6724 = vmatpush1.bf16.msra.mxu0 %v6396
    %6725 = vmatprep.subr.bf16.mxu0 %v6401
    %6726 = vmatpush1.bf16.msra.mxu0 %v6400
    %6727 = vmatprep.subr.bf16.mxu0 %v6405
    %6728 = vmatpush1.bf16.msra.mxu0 %v6404
    %6729 = vmatprep.subr.bf16.mxu0 %v6409
    %6730 = vmatpush1.bf16.msra.mxu0 %v6408
    %6731 = vmatprep.subr.bf16.mxu0 %v6413
    %6732 = vmatpush1.bf16.msra.mxu0 %v6412
    %6733 = vmatprep.subr.bf16.mxu0 %v6417
    %6734 = vmatpush1.bf16.msra.mxu0 %v6416
    %6735 = vmatprep.subr.bf16.mxu0 %v6421
    %6736 = vmatpush1.bf16.msra.mxu0 %v6420
    %6737 = vmatprep.subr.bf16.mxu0 %v6425
    %6738 = vmatpush1.bf16.msra.mxu0 %v6424
    %6739 = vmatprep.mubr.bf16.mxu0 %v5759
    %6740 = vmatmul.mubr.bf16.gmra.mrb[0].mxu0 %v5758
    %v6741 = vpop.f32.mrb[0].mxu0
    %v6742 = vadd.f32 %v6691, %v6741
    %v6743 = vpop.f32.mrb[0].mxu0
    %v6744 = vadd.f32 %v6693, %v6743
    %v6745 = vpop.f32.mrb[0].mxu0
    %v6746 = vadd.f32 %v6695, %v6745
    %v6747 = vpop.f32.mrb[0].mxu0
    %v6748 = vadd.f32 %v6697, %v6747
    %6749 = vmatprep.mubr.bf16.mxu0 %v5763
    %6750 = vmatmul.mubr.bf16.gmra.mrb[0].mxu0 %v5762
    %v6751 = vpop.f32.mrb[0].mxu0
    %v6752 = vadd.f32 %v6701, %v6751
    %v6753 = vpop.f32.mrb[0].mxu0
    %v6754 = vadd.f32 %v6703, %v6753
    %v6755 = vpop.f32.mrb[0].mxu0
    %v6756 = vpop.f32.mrb[0].mxu0
    %6757 = vdwg.mxu0
    %v6758 = vmax.f32 %v6640, 0.0
    %v6759 = vmax.f32 %v6642, 0.0
    %v6760 = vmax.f32 %v6742, 0.0
    %v6761 = vmax.f32 %v6744, 0.0
    %v6762 = vmax.f32 %v6644, 0.0
    %v6763 = vmax.f32 %v6646, 0.0
    %v6764 = vmax.f32 %v6746, 0.0
    %v6765 = vmax.f32 %v6748, 0.0
    %v6766 = vmax.f32 %v6650, 0.0
    %v6767 = vmax.f32 %v6652, 0.0
    %v6768 = vmax.f32 %v6752, 0.0
    %v6769 = vmax.f32 %v6754, 0.0
    %v6770 = vpack.c.bf16 %v6762, %v6758
    %v6771 = vpack.c.bf16 %v6763, %v6759
    %v6772 = vpack.c.bf16 %v6764, %v6760
    %v6773 = vpack.c.bf16 %v6765, %v6761
    %v6774 = vpack.c.bf16 %v6766, %v6766
    %v6775 = vpack.c.bf16 %v6767, %v6767
    %v6776 = vpack.c.bf16 %v6768, %v6768
    %v6777 = vpack.c.bf16 %v6769, %v6769
    %v6778 = vld [vmem:[#allocation29] sm:$0xff]
    %v6779 = vld [vmem:[#allocation29 + $0x8] sm:$0xff]
    %v6780 = vld [vmem:[#allocation29 + $0x10] sm:$0xff]
    %v6781 = vld [vmem:[#allocation29 + $0x18] sm:$0xff]
    %v6782 = vld [vmem:[#allocation29 + $0x20] sm:$0xff]
    %v6783 = vld [vmem:[#allocation29 + $0x28] sm:$0xff]
    %v6784 = vld [vmem:[#allocation29 + $0x30] sm:$0xff]
    %v6785 = vld [vmem:[#allocation29 + $0x38] sm:$0xff]
    %v6786 = vld [vmem:[#allocation29 + $0x40] sm:$0xff]
    %v6787 = vld [vmem:[#allocation29 + $0x48] sm:$0xff]
    %v6788 = vld [vmem:[#allocation29 + $0x50] sm:$0xff]
    %v6789 = vld [vmem:[#allocation29 + $0x58] sm:$0xff]
    %v6790 = vld [vmem:[#allocation29 + $0x60] sm:$0xff]
    %v6791 = vld [vmem:[#allocation29 + $0x68] sm:$0xff]
    %v6792 = vld [vmem:[#allocation29 + $0x70] sm:$0xff]
    %v6793 = vld [vmem:[#allocation29 + $0x78] sm:$0xff]
    %v6794 = vld [vmem:[#allocation29 + $0x80] sm:$0xff]
    %v6795 = vld [vmem:[#allocation29 + $0x88] sm:$0xff]
    %v6796 = vld [vmem:[#allocation29 + $0x90] sm:$0xff]
    %v6797 = vld [vmem:[#allocation29 + $0x98] sm:$0xff]
    %v6798 = vld [vmem:[#allocation29 + $0xa0] sm:$0xff]
    %v6799 = vld [vmem:[#allocation29 + $0xa8] sm:$0xff]
    %v6800 = vld [vmem:[#allocation29 + $0xb0] sm:$0xff]
    %v6801 = vld [vmem:[#allocation29 + $0xb8] sm:$0xff]
    %v6802 = vld [vmem:[#allocation29 + $0xc0] sm:$0xff]
    %v6803 = vld [vmem:[#allocation29 + $0xc8] sm:$0xff]
    %v6804 = vld [vmem:[#allocation29 + $0xd0] sm:$0xff]
    %v6805 = vld [vmem:[#allocation29 + $0xd8] sm:$0xff]
    %v6806 = vld [vmem:[#allocation29 + $0xe0] sm:$0xff]
    %v6807 = vld [vmem:[#allocation29 + $0xe8] sm:$0xff]
    %v6808 = vld [vmem:[#allocation29 + $0xf0] sm:$0xff]
    %v6809 = vld [vmem:[#allocation29 + $0xf8] sm:$0xff]
    %v6810 = vld [vmem:[#allocation29 + $0x100] sm:$0xff]
    %v6811 = vld [vmem:[#allocation29 + $0x108] sm:$0xff]
    %v6812 = vld [vmem:[#allocation29 + $0x110] sm:$0xff]
    %v6813 = vld [vmem:[#allocation29 + $0x118] sm:$0xff]
    %v6814 = vld [vmem:[#allocation29 + $0x120] sm:$0xff]
    %v6815 = vld [vmem:[#allocation29 + $0x128] sm:$0xff]
    %v6816 = vld [vmem:[#allocation29 + $0x130] sm:$0xff]
    %v6817 = vld [vmem:[#allocation29 + $0x138] sm:$0xff]
    %v6818 = vld [vmem:[#allocation29 + $0x140] sm:$0xff]
    %v6819 = vld [vmem:[#allocation29 + $0x148] sm:$0xff]
    %v6820 = vld [vmem:[#allocation29 + $0x150] sm:$0xff]
    %v6821 = vld [vmem:[#allocation29 + $0x158] sm:$0xff]
    %v6822 = vld [vmem:[#allocation29 + $0x160] sm:$0xff]
    %v6823 = vld [vmem:[#allocation29 + $0x168] sm:$0xff]
    %v6824 = vld [vmem:[#allocation29 + $0x170] sm:$0xff]
    %v6825 = vld [vmem:[#allocation29 + $0x178] sm:$0xff]
    %v6826 = vld [vmem:[#allocation29 + $0x180] sm:$0xff]
    %v6827 = vld [vmem:[#allocation29 + $0x188] sm:$0xff]
    %v6828 = vld [vmem:[#allocation29 + $0x190] sm:$0xff]
    %v6829 = vld [vmem:[#allocation29 + $0x198] sm:$0xff]
    %v6830 = vld [vmem:[#allocation29 + $0x1a0] sm:$0xff]
    %v6831 = vld [vmem:[#allocation29 + $0x1a8] sm:$0xff]
    %v6832 = vld [vmem:[#allocation29 + $0x1b0] sm:$0xff]
    %v6833 = vld [vmem:[#allocation29 + $0x1b8] sm:$0xff]
    %v6834 = vld [vmem:[#allocation29 + $0x1c0] sm:$0xff]
    %v6835 = vld [vmem:[#allocation29 + $0x1c8] sm:$0xff]
    %v6836 = vld [vmem:[#allocation29 + $0x1d0] sm:$0xff]
    %v6837 = vld [vmem:[#allocation29 + $0x1d8] sm:$0xff]
    %v6838 = vld [vmem:[#allocation29 + $0x1e0] sm:$0xff]
    %v6839 = vld [vmem:[#allocation29 + $0x1e8] sm:$0xff]
    %v6840 = vld [vmem:[#allocation29 + $0x1f0] sm:$0xff]
    %v6841 = vld [vmem:[#allocation29 + $0x1f8] sm:$0xff]
    %v6842 = vld [vmem:[#allocation29 + $0x200] sm:$0xff]
    %v6843 = vld [vmem:[#allocation29 + $0x208] sm:$0xff]
    %v6844 = vld [vmem:[#allocation29 + $0x210] sm:$0xff]
    %v6845 = vld [vmem:[#allocation29 + $0x218] sm:$0xff]
    %v6846 = vld [vmem:[#allocation29 + $0x220] sm:$0xff]
    %v6847 = vld [vmem:[#allocation29 + $0x228] sm:$0xff]
    %v6848 = vld [vmem:[#allocation29 + $0x230] sm:$0xff]
    %v6849 = vld [vmem:[#allocation29 + $0x238] sm:$0xff]
    %v6850 = vld [vmem:[#allocation29 + $0x240] sm:$0xff]
    %v6851 = vld [vmem:[#allocation29 + $0x248] sm:$0xff]
    %v6852 = vld [vmem:[#allocation29 + $0x250] sm:$0xff]
    %v6853 = vld [vmem:[#allocation29 + $0x258] sm:$0xff]
    %v6854 = vld [vmem:[#allocation29 + $0x260] sm:$0xff]
    %v6855 = vld [vmem:[#allocation29 + $0x268] sm:$0xff]
    %v6856 = vld [vmem:[#allocation29 + $0x270] sm:$0xff]
    %v6857 = vld [vmem:[#allocation29 + $0x278] sm:$0xff]
    %v6858 = vld [vmem:[#allocation29 + $0x280] sm:$0xff]
    %v6859 = vld [vmem:[#allocation29 + $0x288] sm:$0xff]
    %v6860 = vld [vmem:[#allocation29 + $0x290] sm:$0xff]
    %v6861 = vld [vmem:[#allocation29 + $0x298] sm:$0xff]
    %v6862 = vld [vmem:[#allocation29 + $0x2a0] sm:$0xff]
    %v6863 = vld [vmem:[#allocation29 + $0x2a8] sm:$0xff]
    %v6864 = vld [vmem:[#allocation29 + $0x2b0] sm:$0xff]
    %v6865 = vld [vmem:[#allocation29 + $0x2b8] sm:$0xff]
    %v6866 = vld [vmem:[#allocation29 + $0x2c0] sm:$0xff]
    %v6867 = vld [vmem:[#allocation29 + $0x2c8] sm:$0xff]
    %v6868 = vld [vmem:[#allocation29 + $0x2d0] sm:$0xff]
    %v6869 = vld [vmem:[#allocation29 + $0x2d8] sm:$0xff]
    %v6870 = vld [vmem:[#allocation29 + $0x2e0] sm:$0xff]
    %v6871 = vld [vmem:[#allocation29 + $0x2e8] sm:$0xff]
    %v6872 = vld [vmem:[#allocation29 + $0x2f0] sm:$0xff]
    %v6873 = vld [vmem:[#allocation29 + $0x2f8] sm:$0xff]
    %v6874 = vld [vmem:[#allocation29 + $0x300] sm:$0xff]
    %v6875 = vld [vmem:[#allocation29 + $0x308] sm:$0xff]
    %v6876 = vld [vmem:[#allocation29 + $0x310] sm:$0xff]
    %v6877 = vld [vmem:[#allocation29 + $0x318] sm:$0xff]
    %v6878 = vld [vmem:[#allocation29 + $0x320] sm:$0xff]
    %v6879 = vld [vmem:[#allocation29 + $0x328] sm:$0xff]
    %v6880 = vld [vmem:[#allocation29 + $0x330] sm:$0xff]
    %v6881 = vld [vmem:[#allocation29 + $0x338] sm:$0xff]
    %v6882 = vld [vmem:[#allocation29 + $0x340] sm:$0xff]
    %v6883 = vld [vmem:[#allocation29 + $0x348] sm:$0xff]
    %v6884 = vld [vmem:[#allocation29 + $0x350] sm:$0xff]
    %v6885 = vld [vmem:[#allocation29 + $0x358] sm:$0xff]
    %v6886 = vld [vmem:[#allocation29 + $0x360] sm:$0xff]
    %v6887 = vld [vmem:[#allocation29 + $0x368] sm:$0xff]
    %v6888 = vld [vmem:[#allocation29 + $0x370] sm:$0xff]
    %v6889 = vld [vmem:[#allocation29 + $0x378] sm:$0xff]
    %v6890 = vld [vmem:[#allocation29 + $0x380] sm:$0xff]
    %v6891 = vld [vmem:[#allocation29 + $0x388] sm:$0xff]
    %v6892 = vld [vmem:[#allocation29 + $0x390] sm:$0xff]
    %v6893 = vld [vmem:[#allocation29 + $0x398] sm:$0xff]
    %v6894 = vld [vmem:[#allocation29 + $0x3a0] sm:$0xff]
    %v6895 = vld [vmem:[#allocation29 + $0x3a8] sm:$0xff]
    %v6896 = vld [vmem:[#allocation29 + $0x3b0] sm:$0xff]
    %v6897 = vld [vmem:[#allocation29 + $0x3b8] sm:$0xff]
    %v6898 = vld [vmem:[#allocation29 + $0x3c0] sm:$0xff]
    %v6899 = vld [vmem:[#allocation29 + $0x3c8] sm:$0xff]
    %v6900 = vld [vmem:[#allocation29 + $0x3d0] sm:$0xff]
    %v6901 = vld [vmem:[#allocation29 + $0x3d8] sm:$0xff]
    %v6902 = vld [vmem:[#allocation29 + $0x3e0] sm:$0xff]
    %v6903 = vld [vmem:[#allocation29 + $0x3e8] sm:$0xff]
    %v6904 = vld [vmem:[#allocation29 + $0x3f0] sm:$0xff]
    %v6905 = vld [vmem:[#allocation29 + $0x3f8] sm:$0xff]
    %v6906 = vld [vmem:[%s53] sm:$0xf]
    %v6908 = vlaneseq
    %v6909 = vshrl.u32 %v6908, 7
    %v6910 = vsub.s32 0, %v6909
    %v6911 = vrot.slane %v6906, %v6910
    %v6912 = vlaneseq
    %v6913 = vshrl.u32 %v6912, 7
    %v6914 = vsub.s32 1, %v6913
    %v6915 = vrot.slane %v6906, %v6914
    %v6916 = vlaneseq
    %v6917 = vshrl.u32 %v6916, 7
    %v6918 = vsub.s32 2, %v6917
    %v6919 = vrot.slane %v6906, %v6918
    %v6920 = vlaneseq
    %v6921 = vshrl.u32 %v6920, 7
    %v6922 = vsub.s32 3, %v6921
    %v6923 = vrot.slane %v6906, %v6922
    %v7056 = vunpack.c.l.b16 %v6778
    %v7057 = vunpack.c.h.b16 %v6778
    %v7058 = vunpack.c.l.b16 %v6779
    %v7059 = vunpack.c.h.b16 %v6779
    %v7060 = vunpack.c.l.b16 %v6780
    %v7061 = vunpack.c.h.b16 %v6780
    %v7062 = vunpack.c.l.b16 %v6781
    %v7063 = vunpack.c.h.b16 %v6781
    %v7064 = vunpack.c.l.b16 %v6782
    %v7065 = vunpack.c.h.b16 %v6782
    %v7066 = vunpack.c.l.b16 %v6783
    %v7067 = vunpack.c.h.b16 %v6783
    %v7068 = vunpack.c.l.b16 %v6784
    %v7069 = vunpack.c.h.b16 %v6784
    %v7070 = vunpack.c.l.b16 %v6785
    %v7071 = vunpack.c.h.b16 %v6785
    %v7072 = vunpack.c.l.b16 %v6786
    %v7073 = vunpack.c.h.b16 %v6786
    %v7074 = vunpack.c.l.b16 %v6787
    %v7075 = vunpack.c.h.b16 %v6787
    %v7076 = vunpack.c.l.b16 %v6788
    %v7077 = vunpack.c.h.b16 %v6788
    %v7078 = vunpack.c.l.b16 %v6789
    %v7079 = vunpack.c.h.b16 %v6789
    %v7080 = vunpack.c.l.b16 %v6790
    %v7081 = vunpack.c.h.b16 %v6790
    %v7082 = vunpack.c.l.b16 %v6791
    %v7083 = vunpack.c.h.b16 %v6791
    %v7084 = vunpack.c.l.b16 %v6792
    %v7085 = vunpack.c.h.b16 %v6792
    %v7086 = vunpack.c.l.b16 %v6793
    %v7087 = vunpack.c.h.b16 %v6793
    %v7088 = vunpack.c.l.b16 %v6794
    %v7089 = vunpack.c.h.b16 %v6794
    %v7090 = vunpack.c.l.b16 %v6795
    %v7091 = vunpack.c.h.b16 %v6795
    %v7092 = vunpack.c.l.b16 %v6796
    %v7093 = vunpack.c.h.b16 %v6796
    %v7094 = vunpack.c.l.b16 %v6797
    %v7095 = vunpack.c.h.b16 %v6797
    %v7096 = vunpack.c.l.b16 %v6798
    %v7097 = vunpack.c.h.b16 %v6798
    %v7098 = vunpack.c.l.b16 %v6799
    %v7099 = vunpack.c.h.b16 %v6799
    %v7100 = vunpack.c.l.b16 %v6800
    %v7101 = vunpack.c.h.b16 %v6800
    %v7102 = vunpack.c.l.b16 %v6801
    %v7103 = vunpack.c.h.b16 %v6801
    %v7104 = vunpack.c.l.b16 %v6802
    %v7105 = vunpack.c.h.b16 %v6802
    %v7106 = vunpack.c.l.b16 %v6803
    %v7107 = vunpack.c.h.b16 %v6803
    %v7108 = vunpack.c.l.b16 %v6804
    %v7109 = vunpack.c.h.b16 %v6804
    %v7110 = vunpack.c.l.b16 %v6805
    %v7111 = vunpack.c.h.b16 %v6805
    %v7112 = vunpack.c.l.b16 %v6806
    %v7113 = vunpack.c.h.b16 %v6806
    %v7114 = vunpack.c.l.b16 %v6807
    %v7115 = vunpack.c.h.b16 %v6807
    %v7116 = vunpack.c.l.b16 %v6808
    %v7117 = vunpack.c.h.b16 %v6808
    %v7118 = vunpack.c.l.b16 %v6809
    %v7119 = vunpack.c.h.b16 %v6809
    %v7120 = vunpack.c.l.b16 %v6810
    %v7121 = vunpack.c.h.b16 %v6810
    %v7122 = vunpack.c.l.b16 %v6811
    %v7123 = vunpack.c.h.b16 %v6811
    %v7124 = vunpack.c.l.b16 %v6812
    %v7125 = vunpack.c.h.b16 %v6812
    %v7126 = vunpack.c.l.b16 %v6813
    %v7127 = vunpack.c.h.b16 %v6813
    %v7128 = vunpack.c.l.b16 %v6814
    %v7129 = vunpack.c.h.b16 %v6814
    %v7130 = vunpack.c.l.b16 %v6815
    %v7131 = vunpack.c.h.b16 %v6815
    %v7132 = vunpack.c.l.b16 %v6816
    %v7133 = vunpack.c.h.b16 %v6816
    %v7134 = vunpack.c.l.b16 %v6817
    %v7135 = vunpack.c.h.b16 %v6817
    %v7136 = vunpack.c.l.b16 %v6818
    %v7137 = vunpack.c.h.b16 %v6818
    %v7138 = vunpack.c.l.b16 %v6819
    %v7139 = vunpack.c.h.b16 %v6819
    %v7140 = vunpack.c.l.b16 %v6820
    %v7141 = vunpack.c.h.b16 %v6820
    %v7142 = vunpack.c.l.b16 %v6821
    %v7143 = vunpack.c.h.b16 %v6821
    %v7144 = vunpack.c.l.b16 %v6822
    %v7145 = vunpack.c.h.b16 %v6822
    %v7146 = vunpack.c.l.b16 %v6823
    %v7147 = vunpack.c.h.b16 %v6823
    %v7148 = vunpack.c.l.b16 %v6824
    %v7149 = vunpack.c.h.b16 %v6824
    %v7150 = vunpack.c.l.b16 %v6825
    %v7151 = vunpack.c.h.b16 %v6825
    %v7152 = vunpack.c.l.b16 %v6826
    %v7153 = vunpack.c.h.b16 %v6826
    %v7154 = vunpack.c.l.b16 %v6827
    %v7155 = vunpack.c.h.b16 %v6827
    %v7156 = vunpack.c.l.b16 %v6828
    %v7157 = vunpack.c.h.b16 %v6828
    %v7158 = vunpack.c.l.b16 %v6829
    %v7159 = vunpack.c.h.b16 %v6829
    %v7160 = vunpack.c.l.b16 %v6830
    %v7161 = vunpack.c.h.b16 %v6830
    %v7162 = vunpack.c.l.b16 %v6831
    %v7163 = vunpack.c.h.b16 %v6831
    %v7164 = vunpack.c.l.b16 %v6832
    %v7165 = vunpack.c.h.b16 %v6832
    %v7166 = vunpack.c.l.b16 %v6833
    %v7167 = vunpack.c.h.b16 %v6833
    %v7168 = vunpack.c.l.b16 %v6834
    %v7169 = vunpack.c.h.b16 %v6834
    %v7170 = vunpack.c.l.b16 %v6835
    %v7171 = vunpack.c.h.b16 %v6835
    %v7172 = vunpack.c.l.b16 %v6836
    %v7173 = vunpack.c.h.b16 %v6836
    %v7174 = vunpack.c.l.b16 %v6837
    %v7175 = vunpack.c.h.b16 %v6837
    %v7176 = vunpack.c.l.b16 %v6838
    %v7177 = vunpack.c.h.b16 %v6838
    %v7178 = vunpack.c.l.b16 %v6839
    %v7179 = vunpack.c.h.b16 %v6839
    %v7180 = vunpack.c.l.b16 %v6840
    %v7181 = vunpack.c.h.b16 %v6840
    %v7182 = vunpack.c.l.b16 %v6841
    %v7183 = vunpack.c.h.b16 %v6841
    %v7184 = vunpack.c.l.b16 %v6842
    %v7185 = vunpack.c.h.b16 %v6842
    %v7186 = vunpack.c.l.b16 %v6843
    %v7187 = vunpack.c.h.b16 %v6843
    %v7188 = vunpack.c.l.b16 %v6844
    %v7189 = vunpack.c.h.b16 %v6844
    %v7190 = vunpack.c.l.b16 %v6845
    %v7191 = vunpack.c.h.b16 %v6845
    %v7192 = vunpack.c.l.b16 %v6846
    %v7193 = vunpack.c.h.b16 %v6846
    %v7194 = vunpack.c.l.b16 %v6847
    %v7195 = vunpack.c.h.b16 %v6847
    %v7196 = vunpack.c.l.b16 %v6848
    %v7197 = vunpack.c.h.b16 %v6848
    %v7198 = vunpack.c.l.b16 %v6849
    %v7199 = vunpack.c.h.b16 %v6849
    %v7200 = vunpack.c.l.b16 %v6850
    %v7201 = vunpack.c.h.b16 %v6850
    %v7202 = vunpack.c.l.b16 %v6851
    %v7203 = vunpack.c.h.b16 %v6851
    %v7204 = vunpack.c.l.b16 %v6852
    %v7205 = vunpack.c.h.b16 %v6852
    %v7206 = vunpack.c.l.b16 %v6853
    %v7207 = vunpack.c.h.b16 %v6853
    %v7208 = vunpack.c.l.b16 %v6854
    %v7209 = vunpack.c.h.b16 %v6854
    %v7210 = vunpack.c.l.b16 %v6855
    %v7211 = vunpack.c.h.b16 %v6855
    %v7212 = vunpack.c.l.b16 %v6856
    %v7213 = vunpack.c.h.b16 %v6856
    %v7214 = vunpack.c.l.b16 %v6857
    %v7215 = vunpack.c.h.b16 %v6857
    %v7216 = vunpack.c.l.b16 %v6858
    %v7217 = vunpack.c.h.b16 %v6858
    %v7218 = vunpack.c.l.b16 %v6859
    %v7219 = vunpack.c.h.b16 %v6859
    %v7220 = vunpack.c.l.b16 %v6860
    %v7221 = vunpack.c.h.b16 %v6860
    %v7222 = vunpack.c.l.b16 %v6861
    %v7223 = vunpack.c.h.b16 %v6861
    %v7224 = vunpack.c.l.b16 %v6862
    %v7225 = vunpack.c.h.b16 %v6862
    %v7226 = vunpack.c.l.b16 %v6863
    %v7227 = vunpack.c.h.b16 %v6863
    %v7228 = vunpack.c.l.b16 %v6864
    %v7229 = vunpack.c.h.b16 %v6864
    %v7230 = vunpack.c.l.b16 %v6865
    %v7231 = vunpack.c.h.b16 %v6865
    %v7232 = vunpack.c.l.b16 %v6866
    %v7233 = vunpack.c.h.b16 %v6866
    %v7234 = vunpack.c.l.b16 %v6867
    %v7235 = vunpack.c.h.b16 %v6867
    %v7236 = vunpack.c.l.b16 %v6868
    %v7237 = vunpack.c.h.b16 %v6868
    %v7238 = vunpack.c.l.b16 %v6869
    %v7239 = vunpack.c.h.b16 %v6869
    %v7240 = vunpack.c.l.b16 %v6870
    %v7241 = vunpack.c.h.b16 %v6870
    %v7242 = vunpack.c.l.b16 %v6871
    %v7243 = vunpack.c.h.b16 %v6871
    %v7244 = vunpack.c.l.b16 %v6872
    %v7245 = vunpack.c.h.b16 %v6872
    %v7246 = vunpack.c.l.b16 %v6873
    %v7247 = vunpack.c.h.b16 %v6873
    %v7248 = vunpack.c.l.b16 %v6874
    %v7249 = vunpack.c.h.b16 %v6874
    %v7250 = vunpack.c.l.b16 %v6875
    %v7251 = vunpack.c.h.b16 %v6875
    %v7252 = vunpack.c.l.b16 %v6876
    %v7253 = vunpack.c.h.b16 %v6876
    %v7254 = vunpack.c.l.b16 %v6877
    %v7255 = vunpack.c.h.b16 %v6877
    %v7256 = vunpack.c.l.b16 %v6878
    %v7257 = vunpack.c.h.b16 %v6878
    %v7258 = vunpack.c.l.b16 %v6879
    %v7259 = vunpack.c.h.b16 %v6879
    %v7260 = vunpack.c.l.b16 %v6880
    %v7261 = vunpack.c.h.b16 %v6880
    %v7262 = vunpack.c.l.b16 %v6881
    %v7263 = vunpack.c.h.b16 %v6881
    %v7264 = vunpack.c.l.b16 %v6882
    %v7265 = vunpack.c.h.b16 %v6882
    %v7266 = vunpack.c.l.b16 %v6883
    %v7267 = vunpack.c.h.b16 %v6883
    %v7268 = vunpack.c.l.b16 %v6884
    %v7269 = vunpack.c.h.b16 %v6884
    %v7270 = vunpack.c.l.b16 %v6885
    %v7271 = vunpack.c.h.b16 %v6885
    %v7272 = vunpack.c.l.b16 %v6886
    %v7273 = vunpack.c.h.b16 %v6886
    %v7274 = vunpack.c.l.b16 %v6887
    %v7275 = vunpack.c.h.b16 %v6887
    %v7276 = vunpack.c.l.b16 %v6888
    %v7277 = vunpack.c.h.b16 %v6888
    %v7278 = vunpack.c.l.b16 %v6889
    %v7279 = vunpack.c.h.b16 %v6889
    %v7280 = vunpack.c.l.b16 %v6890
    %v7281 = vunpack.c.h.b16 %v6890
    %v7282 = vunpack.c.l.b16 %v6891
    %v7283 = vunpack.c.h.b16 %v6891
    %v7284 = vunpack.c.l.b16 %v6892
    %v7285 = vunpack.c.h.b16 %v6892
    %v7286 = vunpack.c.l.b16 %v6893
    %v7287 = vunpack.c.h.b16 %v6893
    %v7288 = vunpack.c.l.b16 %v6894
    %v7289 = vunpack.c.h.b16 %v6894
    %v7290 = vunpack.c.l.b16 %v6895
    %v7291 = vunpack.c.h.b16 %v6895
    %v7292 = vunpack.c.l.b16 %v6896
    %v7293 = vunpack.c.h.b16 %v6896
    %v7294 = vunpack.c.l.b16 %v6897
    %v7295 = vunpack.c.h.b16 %v6897
    %v7296 = vunpack.c.l.b16 %v6898
    %v7297 = vunpack.c.h.b16 %v6898
    %v7298 = vunpack.c.l.b16 %v6899
    %v7299 = vunpack.c.h.b16 %v6899
    %v7300 = vunpack.c.l.b16 %v6900
    %v7301 = vunpack.c.h.b16 %v6900
    %v7302 = vunpack.c.l.b16 %v6901
    %v7303 = vunpack.c.h.b16 %v6901
    %v7304 = vunpack.c.l.b16 %v6902
    %v7305 = vunpack.c.h.b16 %v6902
    %v7306 = vunpack.c.l.b16 %v6903
    %v7307 = vunpack.c.h.b16 %v6903
    %v7308 = vunpack.c.l.b16 %v6904
    %v7309 = vunpack.c.h.b16 %v6904
    %v7310 = vunpack.c.l.b16 %v6905
    %v7311 = vunpack.c.h.b16 %v6905
    %v7312 = vpack.c.b16 %v7060, %v7056
    %v7313 = vpack.c.b16 %v7061, %v7057
    %v7314 = vpack.c.b16 %v7062, %v7058
    %v7315 = vpack.c.b16 %v7063, %v7059
    %v7316 = vpack.c.b16 %v7068, %v7064
    %v7317 = vpack.c.b16 %v7069, %v7065
    %v7318 = vpack.c.b16 %v7070, %v7066
    %v7319 = vpack.c.b16 %v7071, %v7067
    %v7320 = vpack.c.b16 %v7076, %v7072
    %v7321 = vpack.c.b16 %v7077, %v7073
    %v7322 = vpack.c.b16 %v7078, %v7074
    %v7323 = vpack.c.b16 %v7079, %v7075
    %v7324 = vpack.c.b16 %v7084, %v7080
    %v7325 = vpack.c.b16 %v7085, %v7081
    %v7326 = vpack.c.b16 %v7086, %v7082
    %v7327 = vpack.c.b16 %v7087, %v7083
    %v7328 = vpack.c.b16 %v7092, %v7088
    %v7329 = vpack.c.b16 %v7093, %v7089
    %v7330 = vpack.c.b16 %v7094, %v7090
    %v7331 = vpack.c.b16 %v7095, %v7091
    %v7332 = vpack.c.b16 %v7100, %v7096
    %v7333 = vpack.c.b16 %v7101, %v7097
    %v7334 = vpack.c.b16 %v7102, %v7098
    %v7335 = vpack.c.b16 %v7103, %v7099
    %v7336 = vpack.c.b16 %v7108, %v7104
    %v7337 = vpack.c.b16 %v7109, %v7105
    %v7338 = vpack.c.b16 %v7110, %v7106
    %v7339 = vpack.c.b16 %v7111, %v7107
    %v7340 = vpack.c.b16 %v7116, %v7112
    %v7341 = vpack.c.b16 %v7117, %v7113
    %v7342 = vpack.c.b16 %v7118, %v7114
    %v7343 = vpack.c.b16 %v7119, %v7115
    %v7344 = vpack.c.b16 %v7124, %v7120
    %v7345 = vpack.c.b16 %v7125, %v7121
    %v7346 = vpack.c.b16 %v7126, %v7122
    %v7347 = vpack.c.b16 %v7127, %v7123
    %v7348 = vpack.c.b16 %v7132, %v7128
    %v7349 = vpack.c.b16 %v7133, %v7129
    %v7350 = vpack.c.b16 %v7134, %v7130
    %v7351 = vpack.c.b16 %v7135, %v7131
    %v7352 = vpack.c.b16 %v7140, %v7136
    %v7353 = vpack.c.b16 %v7141, %v7137
    %v7354 = vpack.c.b16 %v7142, %v7138
    %v7355 = vpack.c.b16 %v7143, %v7139
    %v7356 = vpack.c.b16 %v7148, %v7144
    %v7357 = vpack.c.b16 %v7149, %v7145
    %v7358 = vpack.c.b16 %v7150, %v7146
    %v7359 = vpack.c.b16 %v7151, %v7147
    %v7360 = vpack.c.b16 %v7156, %v7152
    %v7361 = vpack.c.b16 %v7157, %v7153
    %v7362 = vpack.c.b16 %v7158, %v7154
    %v7363 = vpack.c.b16 %v7159, %v7155
    %v7364 = vpack.c.b16 %v7164, %v7160
    %v7365 = vpack.c.b16 %v7165, %v7161
    %v7366 = vpack.c.b16 %v7166, %v7162
    %v7367 = vpack.c.b16 %v7167, %v7163
    %v7368 = vpack.c.b16 %v7172, %v7168
    %v7369 = vpack.c.b16 %v7173, %v7169
    %v7370 = vpack.c.b16 %v7174, %v7170
    %v7371 = vpack.c.b16 %v7175, %v7171
    %v7372 = vpack.c.b16 %v7180, %v7176
    %v7373 = vpack.c.b16 %v7181, %v7177
    %v7374 = vpack.c.b16 %v7182, %v7178
    %v7375 = vpack.c.b16 %v7183, %v7179
    %v7376 = vpack.c.b16 %v7188, %v7184
    %v7377 = vpack.c.b16 %v7189, %v7185
    %v7378 = vpack.c.b16 %v7190, %v7186
    %v7379 = vpack.c.b16 %v7191, %v7187
    %v7380 = vpack.c.b16 %v7196, %v7192
    %v7381 = vpack.c.b16 %v7197, %v7193
    %v7382 = vpack.c.b16 %v7198, %v7194
    %v7383 = vpack.c.b16 %v7199, %v7195
    %v7384 = vpack.c.b16 %v7204, %v7200
    %v7385 = vpack.c.b16 %v7205, %v7201
    %v7386 = vpack.c.b16 %v7206, %v7202
    %v7387 = vpack.c.b16 %v7207, %v7203
    %v7388 = vpack.c.b16 %v7212, %v7208
    %v7389 = vpack.c.b16 %v7213, %v7209
    %v7390 = vpack.c.b16 %v7214, %v7210
    %v7391 = vpack.c.b16 %v7215, %v7211
    %v7392 = vpack.c.b16 %v7220, %v7216
    %v7393 = vpack.c.b16 %v7221, %v7217
    %v7394 = vpack.c.b16 %v7222, %v7218
    %v7395 = vpack.c.b16 %v7223, %v7219
    %v7396 = vpack.c.b16 %v7228, %v7224
    %v7397 = vpack.c.b16 %v7229, %v7225
    %v7398 = vpack.c.b16 %v7230, %v7226
    %v7399 = vpack.c.b16 %v7231, %v7227
    %v7400 = vpack.c.b16 %v7236, %v7232
    %v7401 = vpack.c.b16 %v7237, %v7233
    %v7402 = vpack.c.b16 %v7238, %v7234
    %v7403 = vpack.c.b16 %v7239, %v7235
    %v7404 = vpack.c.b16 %v7244, %v7240
    %v7405 = vpack.c.b16 %v7245, %v7241
    %v7406 = vpack.c.b16 %v7246, %v7242
    %v7407 = vpack.c.b16 %v7247, %v7243
    %v7408 = vpack.c.b16 %v7252, %v7248
    %v7409 = vpack.c.b16 %v7253, %v7249
    %v7410 = vpack.c.b16 %v7254, %v7250
    %v7411 = vpack.c.b16 %v7255, %v7251
    %v7412 = vpack.c.b16 %v7260, %v7256
    %v7413 = vpack.c.b16 %v7261, %v7257
    %v7414 = vpack.c.b16 %v7262, %v7258
    %v7415 = vpack.c.b16 %v7263, %v7259
    %v7416 = vpack.c.b16 %v7268, %v7264
    %v7417 = vpack.c.b16 %v7269, %v7265
    %v7418 = vpack.c.b16 %v7270, %v7266
    %v7419 = vpack.c.b16 %v7271, %v7267
    %v7420 = vpack.c.b16 %v7276, %v7272
    %v7421 = vpack.c.b16 %v7277, %v7273
    %v7422 = vpack.c.b16 %v7278, %v7274
    %v7423 = vpack.c.b16 %v7279, %v7275
    %v7424 = vpack.c.b16 %v7284, %v7280
    %v7425 = vpack.c.b16 %v7285, %v7281
    %v7426 = vpack.c.b16 %v7286, %v7282
    %v7427 = vpack.c.b16 %v7287, %v7283
    %v7428 = vpack.c.b16 %v7292, %v7288
    %v7429 = vpack.c.b16 %v7293, %v7289
    %v7430 = vpack.c.b16 %v7294, %v7290
    %v7431 = vpack.c.b16 %v7295, %v7291
    %v7432 = vpack.c.b16 %v7300, %v7296
    %v7433 = vpack.c.b16 %v7301, %v7297
    %v7434 = vpack.c.b16 %v7302, %v7298
    %v7435 = vpack.c.b16 %v7303, %v7299
    %v7436 = vpack.c.b16 %v7308, %v7304
    %v7437 = vpack.c.b16 %v7309, %v7305
    %v7438 = vpack.c.b16 %v7310, %v7306
    %v7439 = vpack.c.b16 %v7311, %v7307
    %7568 = vmatprep.subr.bf16.mxu0 %v7313
    %7569 = vmatpush1.bf16.msra.mxu0 %v7312
    %7570 = vmatprep.subr.bf16.mxu0 %v7317
    %7571 = vmatpush1.bf16.msra.mxu0 %v7316
    %7572 = vmatprep.subr.bf16.mxu0 %v7321
    %7573 = vmatpush1.bf16.msra.mxu0 %v7320
    %7574 = vmatprep.subr.bf16.mxu0 %v7325
    %7575 = vmatpush1.bf16.msra.mxu0 %v7324
    %7576 = vmatprep.subr.bf16.mxu0 %v7329
    %7577 = vmatpush1.bf16.msra.mxu0 %v7328
    %7578 = vmatprep.subr.bf16.mxu0 %v7333
    %7579 = vmatpush1.bf16.msra.mxu0 %v7332
    %7580 = vmatprep.subr.bf16.mxu0 %v7337
    %7581 = vmatpush1.bf16.msra.mxu0 %v7336
    %7582 = vmatprep.subr.bf16.mxu0 %v7341
    %7583 = vmatpush1.bf16.msra.mxu0 %v7340
    %7584 = vmatprep.subr.bf16.mxu0 %v7345
    %7585 = vmatpush1.bf16.msra.mxu0 %v7344
    %7586 = vmatprep.subr.bf16.mxu0 %v7349
    %7587 = vmatpush1.bf16.msra.mxu0 %v7348
    %7588 = vmatprep.subr.bf16.mxu0 %v7353
    %7589 = vmatpush1.bf16.msra.mxu0 %v7352
    %7590 = vmatprep.subr.bf16.mxu0 %v7357
    %7591 = vmatpush1.bf16.msra.mxu0 %v7356
    %7592 = vmatprep.subr.bf16.mxu0 %v7361
    %7593 = vmatpush1.bf16.msra.mxu0 %v7360
    %7594 = vmatprep.subr.bf16.mxu0 %v7365
    %7595 = vmatpush1.bf16.msra.mxu0 %v7364
    %7596 = vmatprep.subr.bf16.mxu0 %v7369
    %7597 = vmatpush1.bf16.msra.mxu0 %v7368
    %7598 = vmatprep.subr.bf16.mxu0 %v7373
    %7599 = vmatpush1.bf16.msra.mxu0 %v7372
    %7600 = vmatprep.mubr.bf16.mxu0 %v6771
    %7601 = vmatmul.mubr.bf16.gmra.mrb[0].mxu0 %v6770
    %v7602 = vpop.f32.mrb[0].mxu0
    %v7603 = vadd.f32 %v6911, %v7602
    %v7604 = vpop.f32.mrb[0].mxu0
    %v7605 = vadd.f32 %v6915, %v7604
    %v7606 = vpop.f32.mrb[0].mxu0
    %v7607 = vadd.f32 %v6911, %v7606
    %v7608 = vpop.f32.mrb[0].mxu0
    %v7609 = vadd.f32 %v6915, %v7608
    %7610 = vmatprep.mubr.bf16.mxu0 %v6775
    %7611 = vmatmul.mubr.bf16.gmra.mrb[0].mxu0 %v6774
    %v7612 = vpop.f32.mrb[0].mxu0
    %v7613 = vadd.f32 %v6911, %v7612
    %v7614 = vpop.f32.mrb[0].mxu0
    %v7615 = vadd.f32 %v6915, %v7614
    %v7616 = vpop.f32.mrb[0].mxu0
    %v7617 = vpop.f32.mrb[0].mxu0
    %7618 = vdwg.mxu0
    %7619 = vmatprep.subr.bf16.mxu0 %v7377
    %7620 = vmatpush1.bf16.msra.mxu0 %v7376
    %7621 = vmatprep.subr.bf16.mxu0 %v7381
    %7622 = vmatpush1.bf16.msra.mxu0 %v7380
    %7623 = vmatprep.subr.bf16.mxu0 %v7385
    %7624 = vmatpush1.bf16.msra.mxu0 %v7384
    %7625 = vmatprep.subr.bf16.mxu0 %v7389
    %7626 = vmatpush1.bf16.msra.mxu0 %v7388
    %7627 = vmatprep.subr.bf16.mxu0 %v7393
    %7628 = vmatpush1.bf16.msra.mxu0 %v7392
    %7629 = vmatprep.subr.bf16.mxu0 %v7397
    %7630 = vmatpush1.bf16.msra.mxu0 %v7396
    %7631 = vmatprep.subr.bf16.mxu0 %v7401
    %7632 = vmatpush1.bf16.msra.mxu0 %v7400
    %7633 = vmatprep.subr.bf16.mxu0 %v7405
    %7634 = vmatpush1.bf16.msra.mxu0 %v7404
    %7635 = vmatprep.subr.bf16.mxu0 %v7409
    %7636 = vmatpush1.bf16.msra.mxu0 %v7408
    %7637 = vmatprep.subr.bf16.mxu0 %v7413
    %7638 = vmatpush1.bf16.msra.mxu0 %v7412
    %7639 = vmatprep.subr.bf16.mxu0 %v7417
    %7640 = vmatpush1.bf16.msra.mxu0 %v7416
    %7641 = vmatprep.subr.bf16.mxu0 %v7421
    %7642 = vmatpush1.bf16.msra.mxu0 %v7420
    %7643 = vmatprep.subr.bf16.mxu0 %v7425
    %7644 = vmatpush1.bf16.msra.mxu0 %v7424
    %7645 = vmatprep.subr.bf16.mxu0 %v7429
    %7646 = vmatpush1.bf16.msra.mxu0 %v7428
    %7647 = vmatprep.subr.bf16.mxu0 %v7433
    %7648 = vmatpush1.bf16.msra.mxu0 %v7432
    %7649 = vmatprep.subr.bf16.mxu0 %v7437
    %7650 = vmatpush1.bf16.msra.mxu0 %v7436
    %7651 = vmatprep.mubr.bf16.mxu0 %v6773
    %7652 = vmatmul.mubr.bf16.gmra.mrb[0].mxu0 %v6772
    %v7653 = vpop.f32.mrb[0].mxu0
    %v7654 = vadd.f32 %v7603, %v7653
    %v7655 = vpop.f32.mrb[0].mxu0
    %v7656 = vadd.f32 %v7605, %v7655
    %v7657 = vpop.f32.mrb[0].mxu0
    %v7658 = vadd.f32 %v7607, %v7657
    %v7659 = vpop.f32.mrb[0].mxu0
    %v7660 = vadd.f32 %v7609, %v7659
    %7661 = vmatprep.mubr.bf16.mxu0 %v6777
    %7662 = vmatmul.mubr.bf16.gmra.mrb[0].mxu0 %v6776
    %v7663 = vpop.f32.mrb[0].mxu0
    %v7664 = vadd.f32 %v7613, %v7663
    %v7665 = vpop.f32.mrb[0].mxu0
    %v7666 = vadd.f32 %v7615, %v7665
    %v7667 = vpop.f32.mrb[0].mxu0
    %v7668 = vpop.f32.mrb[0].mxu0
    %7669 = vdwg.mxu0
    %7670 = vmatprep.subr.bf16.mxu0 %v7315
    %7671 = vmatpush1.bf16.msra.mxu0 %v7314
    %7672 = vmatprep.subr.bf16.mxu0 %v7319
    %7673 = vmatpush1.bf16.msra.mxu0 %v7318
    %7674 = vmatprep.subr.bf16.mxu0 %v7323
    %7675 = vmatpush1.bf16.msra.mxu0 %v7322
    %7676 = vmatprep.subr.bf16.mxu0 %v7327
    %7677 = vmatpush1.bf16.msra.mxu0 %v7326
    %7678 = vmatprep.subr.bf16.mxu0 %v7331
    %7679 = vmatpush1.bf16.msra.mxu0 %v7330
    %7680 = vmatprep.subr.bf16.mxu0 %v7335
    %7681 = vmatpush1.bf16.msra.mxu0 %v7334
    %7682 = vmatprep.subr.bf16.mxu0 %v7339
    %7683 = vmatpush1.bf16.msra.mxu0 %v7338
    %7684 = vmatprep.subr.bf16.mxu0 %v7343
    %7685 = vmatpush1.bf16.msra.mxu0 %v7342
    %7686 = vmatprep.subr.bf16.mxu0 %v7347
    %7687 = vmatpush1.bf16.msra.mxu0 %v7346
    %7688 = vmatprep.subr.bf16.mxu0 %v7351
    %7689 = vmatpush1.bf16.msra.mxu0 %v7350
    %7690 = vmatprep.subr.bf16.mxu0 %v7355
    %7691 = vmatpush1.bf16.msra.mxu0 %v7354
    %7692 = vmatprep.subr.bf16.mxu0 %v7359
    %7693 = vmatpush1.bf16.msra.mxu0 %v7358
    %7694 = vmatprep.subr.bf16.mxu0 %v7363
    %7695 = vmatpush1.bf16.msra.mxu0 %v7362
    %7696 = vmatprep.subr.bf16.mxu0 %v7367
    %7697 = vmatpush1.bf16.msra.mxu0 %v7366
    %7698 = vmatprep.subr.bf16.mxu0 %v7371
    %7699 = vmatpush1.bf16.msra.mxu0 %v7370
    %7700 = vmatprep.subr.bf16.mxu0 %v7375
    %7701 = vmatpush1.bf16.msra.mxu0 %v7374
    %7702 = vmatprep.mubr.bf16.mxu0 %v6771
    %7703 = vmatmul.mubr.bf16.gmra.mrb[0].mxu0 %v6770
    %v7704 = vpop.f32.mrb[0].mxu0
    %v7705 = vadd.f32 %v6919, %v7704
    %v7706 = vpop.f32.mrb[0].mxu0
    %v7707 = vadd.f32 %v6923, %v7706
    %v7708 = vpop.f32.mrb[0].mxu0
    %v7709 = vadd.f32 %v6919, %v7708
    %v7710 = vpop.f32.mrb[0].mxu0
    %v7711 = vadd.f32 %v6923, %v7710
    %7712 = vmatprep.mubr.bf16.mxu0 %v6775
    %7713 = vmatmul.mubr.bf16.gmra.mrb[0].mxu0 %v6774
    %v7714 = vpop.f32.mrb[0].mxu0
    %v7715 = vadd.f32 %v6919, %v7714
    %v7716 = vpop.f32.mrb[0].mxu0
    %v7717 = vadd.f32 %v6923, %v7716
    %v7718 = vpop.f32.mrb[0].mxu0
    %v7719 = vpop.f32.mrb[0].mxu0
    %7720 = vdwg.mxu0
    %7721 = vmatprep.subr.bf16.mxu0 %v7379
    %7722 = vmatpush1.bf16.msra.mxu0 %v7378
    %7723 = vmatprep.subr.bf16.mxu0 %v7383
    %7724 = vmatpush1.bf16.msra.mxu0 %v7382
    %7725 = vmatprep.subr.bf16.mxu0 %v7387
    %7726 = vmatpush1.bf16.msra.mxu0 %v7386
    %7727 = vmatprep.subr.bf16.mxu0 %v7391
    %7728 = vmatpush1.bf16.msra.mxu0 %v7390
    %7729 = vmatprep.subr.bf16.mxu0 %v7395
    %7730 = vmatpush1.bf16.msra.mxu0 %v7394
    %7731 = vmatprep.subr.bf16.mxu0 %v7399
    %7732 = vmatpush1.bf16.msra.mxu0 %v7398
    %7733 = vmatprep.subr.bf16.mxu0 %v7403
    %7734 = vmatpush1.bf16.msra.mxu0 %v7402
    %7735 = vmatprep.subr.bf16.mxu0 %v7407
    %7736 = vmatpush1.bf16.msra.mxu0 %v7406
    %7737 = vmatprep.subr.bf16.mxu0 %v7411
    %7738 = vmatpush1.bf16.msra.mxu0 %v7410
    %7739 = vmatprep.subr.bf16.mxu0 %v7415
    %7740 = vmatpush1.bf16.msra.mxu0 %v7414
    %7741 = vmatprep.subr.bf16.mxu0 %v7419
    %7742 = vmatpush1.bf16.msra.mxu0 %v7418
    %7743 = vmatprep.subr.bf16.mxu0 %v7423
    %7744 = vmatpush1.bf16.msra.mxu0 %v7422
    %7745 = vmatprep.subr.bf16.mxu0 %v7427
    %7746 = vmatpush1.bf16.msra.mxu0 %v7426
    %7747 = vmatprep.subr.bf16.mxu0 %v7431
    %7748 = vmatpush1.bf16.msra.mxu0 %v7430
    %7749 = vmatprep.subr.bf16.mxu0 %v7435
    %7750 = vmatpush1.bf16.msra.mxu0 %v7434
    %7751 = vmatprep.subr.bf16.mxu0 %v7439
    %7752 = vmatpush1.bf16.msra.mxu0 %v7438
    %7753 = vmatprep.mubr.bf16.mxu0 %v6773
    %7754 = vmatmul.mubr.bf16.gmra.mrb[0].mxu0 %v6772
    %v7755 = vpop.f32.mrb[0].mxu0
    %v7756 = vadd.f32 %v7705, %v7755
    %v7757 = vpop.f32.mrb[0].mxu0
    %v7758 = vadd.f32 %v7707, %v7757
    %v7759 = vpop.f32.mrb[0].mxu0
    %v7760 = vadd.f32 %v7709, %v7759
    %v7761 = vpop.f32.mrb[0].mxu0
    %v7762 = vadd.f32 %v7711, %v7761
    %7763 = vmatprep.mubr.bf16.mxu0 %v6777
    %7764 = vmatmul.mubr.bf16.gmra.mrb[0].mxu0 %v6776
    %v7765 = vpop.f32.mrb[0].mxu0
    %v7766 = vadd.f32 %v7715, %v7765
    %v7767 = vpop.f32.mrb[0].mxu0
    %v7768 = vadd.f32 %v7717, %v7767
    %v7769 = vpop.f32.mrb[0].mxu0
    %v7770 = vpop.f32.mrb[0].mxu0
    %7771 = vdwg.mxu0
    %v7772 = vmax.f32 %v7654, 0.0
    %v7773 = vmax.f32 %v7656, 0.0
    %v7774 = vmax.f32 %v7756, 0.0
    %v7775 = vmax.f32 %v7758, 0.0
    %v7776 = vmax.f32 %v7658, 0.0
    %v7777 = vmax.f32 %v7660, 0.0
    %v7778 = vmax.f32 %v7760, 0.0
    %v7779 = vmax.f32 %v7762, 0.0
    %v7780 = vmax.f32 %v7664, 0.0
    %v7781 = vmax.f32 %v7666, 0.0
    %v7782 = vmax.f32 %v7766, 0.0
    %v7783 = vmax.f32 %v7768, 0.0
    %v7784 = vpack.c.bf16 %v7776, %v7772
    %v7785 = vpack.c.bf16 %v7777, %v7773
    %v7786 = vpack.c.bf16 %v7778, %v7774
    %v7787 = vpack.c.bf16 %v7779, %v7775
    %v7788 = vpack.c.bf16 %v7780, %v7780
    %v7789 = vpack.c.bf16 %v7781, %v7781
    %v7790 = vpack.c.bf16 %v7782, %v7782
    %v7791 = vpack.c.bf16 %v7783, %v7783
    %v7792 = vld [vmem:[#allocation31] sm:$0xf]
    %v7793 = vld [vmem:[#allocation31 + $0x4] sm:$0xf]
    %v7794 = vld [vmem:[#allocation31 + $0x8] sm:$0xf]
    %v7795 = vld [vmem:[#allocation31 + $0xc] sm:$0xf]
    %v7796 = vld [vmem:[#allocation31 + $0x10] sm:$0xf]
    %v7797 = vld [vmem:[#allocation31 + $0x14] sm:$0xf]
    %v7798 = vld [vmem:[#allocation31 + $0x18] sm:$0xf]
    %v7799 = vld [vmem:[#allocation31 + $0x1c] sm:$0xf]
    %v7800 = vld [vmem:[#allocation31 + $0x20] sm:$0xf]
    %v7801 = vld [vmem:[#allocation31 + $0x24] sm:$0xf]
    %v7802 = vld [vmem:[#allocation31 + $0x28] sm:$0xf]
    %v7803 = vld [vmem:[#allocation31 + $0x2c] sm:$0xf]
    %v7804 = vld [vmem:[#allocation31 + $0x30] sm:$0xf]
    %v7805 = vld [vmem:[#allocation31 + $0x34] sm:$0xf]
    %v7806 = vld [vmem:[#allocation31 + $0x38] sm:$0xf]
    %v7807 = vld [vmem:[#allocation31 + $0x3c] sm:$0xf]
    %v7808 = vld [vmem:[#allocation31 + $0x40] sm:$0xf]
    %v7809 = vld [vmem:[#allocation31 + $0x44] sm:$0xf]
    %v7810 = vld [vmem:[#allocation31 + $0x48] sm:$0xf]
    %v7811 = vld [vmem:[#allocation31 + $0x4c] sm:$0xf]
    %v7812 = vld [vmem:[#allocation31 + $0x50] sm:$0xf]
    %v7813 = vld [vmem:[#allocation31 + $0x54] sm:$0xf]
    %v7814 = vld [vmem:[#allocation31 + $0x58] sm:$0xf]
    %v7815 = vld [vmem:[#allocation31 + $0x5c] sm:$0xf]
    %v7816 = vld [vmem:[#allocation31 + $0x60] sm:$0xf]
    %v7817 = vld [vmem:[#allocation31 + $0x64] sm:$0xf]
    %v7818 = vld [vmem:[#allocation31 + $0x68] sm:$0xf]
    %v7819 = vld [vmem:[#allocation31 + $0x6c] sm:$0xf]
    %v7820 = vld [vmem:[#allocation31 + $0x70] sm:$0xf]
    %v7821 = vld [vmem:[#allocation31 + $0x74] sm:$0xf]
    %v7822 = vld [vmem:[#allocation31 + $0x78] sm:$0xf]
    %v7823 = vld [vmem:[#allocation31 + $0x7c] sm:$0xf]
    %v7824 = vld [vmem:[#allocation31 + $0x80] sm:$0xf]
    %v7825 = vld [vmem:[#allocation31 + $0x84] sm:$0xf]
    %v7826 = vld [vmem:[#allocation31 + $0x88] sm:$0xf]
    %v7827 = vld [vmem:[#allocation31 + $0x8c] sm:$0xf]
    %v7828 = vld [vmem:[#allocation31 + $0x90] sm:$0xf]
    %v7829 = vld [vmem:[#allocation31 + $0x94] sm:$0xf]
    %v7830 = vld [vmem:[#allocation31 + $0x98] sm:$0xf]
    %v7831 = vld [vmem:[#allocation31 + $0x9c] sm:$0xf]
    %v7832 = vld [vmem:[#allocation31 + $0xa0] sm:$0xf]
    %v7833 = vld [vmem:[#allocation31 + $0xa4] sm:$0xf]
    %v7834 = vld [vmem:[#allocation31 + $0xa8] sm:$0xf]
    %v7835 = vld [vmem:[#allocation31 + $0xac] sm:$0xf]
    %v7836 = vld [vmem:[#allocation31 + $0xb0] sm:$0xf]
    %v7837 = vld [vmem:[#allocation31 + $0xb4] sm:$0xf]
    %v7838 = vld [vmem:[#allocation31 + $0xb8] sm:$0xf]
    %v7839 = vld [vmem:[#allocation31 + $0xbc] sm:$0xf]
    %v7840 = vld [vmem:[#allocation31 + $0xc0] sm:$0xf]
    %v7841 = vld [vmem:[#allocation31 + $0xc4] sm:$0xf]
    %v7842 = vld [vmem:[#allocation31 + $0xc8] sm:$0xf]
    %v7843 = vld [vmem:[#allocation31 + $0xcc] sm:$0xf]
    %v7844 = vld [vmem:[#allocation31 + $0xd0] sm:$0xf]
    %v7845 = vld [vmem:[#allocation31 + $0xd4] sm:$0xf]
    %v7846 = vld [vmem:[#allocation31 + $0xd8] sm:$0xf]
    %v7847 = vld [vmem:[#allocation31 + $0xdc] sm:$0xf]
    %v7848 = vld [vmem:[#allocation31 + $0xe0] sm:$0xf]
    %v7849 = vld [vmem:[#allocation31 + $0xe4] sm:$0xf]
    %v7850 = vld [vmem:[#allocation31 + $0xe8] sm:$0xf]
    %v7851 = vld [vmem:[#allocation31 + $0xec] sm:$0xf]
    %v7852 = vld [vmem:[#allocation31 + $0xf0] sm:$0xf]
    %v7853 = vld [vmem:[#allocation31 + $0xf4] sm:$0xf]
    %v7854 = vld [vmem:[#allocation31 + $0xf8] sm:$0xf]
    %v7855 = vld [vmem:[#allocation31 + $0xfc] sm:$0xf]
    %v7856 = vld [vmem:[%s57] sm:$0x1]
    %v7858 = vlaneseq
    %v7859 = vshrl.u32 %v7858, 7
    %v7860 = vsub.s32 0, %v7859
    %v7861 = vrot.slane %v7856, %v7860
    %v7927 = vunpack.c.l.b16 %v7792
    %v7928 = vunpack.c.l.b16 %v7793
    %v7929 = vunpack.c.l.b16 %v7794
    %v7930 = vunpack.c.l.b16 %v7795
    %v7931 = vunpack.c.l.b16 %v7796
    %v7932 = vunpack.c.l.b16 %v7797
    %v7933 = vunpack.c.l.b16 %v7798
    %v7934 = vunpack.c.l.b16 %v7799
    %v7935 = vunpack.c.l.b16 %v7800
    %v7936 = vunpack.c.l.b16 %v7801
    %v7937 = vunpack.c.l.b16 %v7802
    %v7938 = vunpack.c.l.b16 %v7803
    %v7939 = vunpack.c.l.b16 %v7804
    %v7940 = vunpack.c.l.b16 %v7805
    %v7941 = vunpack.c.l.b16 %v7806
    %v7942 = vunpack.c.l.b16 %v7807
    %v7943 = vunpack.c.l.b16 %v7808
    %v7944 = vunpack.c.l.b16 %v7809
    %v7945 = vunpack.c.l.b16 %v7810
    %v7946 = vunpack.c.l.b16 %v7811
    %v7947 = vunpack.c.l.b16 %v7812
    %v7948 = vunpack.c.l.b16 %v7813
    %v7949 = vunpack.c.l.b16 %v7814
    %v7950 = vunpack.c.l.b16 %v7815
    %v7951 = vunpack.c.l.b16 %v7816
    %v7952 = vunpack.c.l.b16 %v7817
    %v7953 = vunpack.c.l.b16 %v7818
    %v7954 = vunpack.c.l.b16 %v7819
    %v7955 = vunpack.c.l.b16 %v7820
    %v7956 = vunpack.c.l.b16 %v7821
    %v7957 = vunpack.c.l.b16 %v7822
    %v7958 = vunpack.c.l.b16 %v7823
    %v7959 = vunpack.c.l.b16 %v7824
    %v7960 = vunpack.c.l.b16 %v7825
    %v7961 = vunpack.c.l.b16 %v7826
    %v7962 = vunpack.c.l.b16 %v7827
    %v7963 = vunpack.c.l.b16 %v7828
    %v7964 = vunpack.c.l.b16 %v7829
    %v7965 = vunpack.c.l.b16 %v7830
    %v7966 = vunpack.c.l.b16 %v7831
    %v7967 = vunpack.c.l.b16 %v7832
    %v7968 = vunpack.c.l.b16 %v7833
    %v7969 = vunpack.c.l.b16 %v7834
    %v7970 = vunpack.c.l.b16 %v7835
    %v7971 = vunpack.c.l.b16 %v7836
    %v7972 = vunpack.c.l.b16 %v7837
    %v7973 = vunpack.c.l.b16 %v7838
    %v7974 = vunpack.c.l.b16 %v7839
    %v7975 = vunpack.c.l.b16 %v7840
    %v7976 = vunpack.c.l.b16 %v7841
    %v7977 = vunpack.c.l.b16 %v7842
    %v7978 = vunpack.c.l.b16 %v7843
    %v7979 = vunpack.c.l.b16 %v7844
    %v7980 = vunpack.c.l.b16 %v7845
    %v7981 = vunpack.c.l.b16 %v7846
    %v7982 = vunpack.c.l.b16 %v7847
    %v7983 = vunpack.c.l.b16 %v7848
    %v7984 = vunpack.c.l.b16 %v7849
    %v7985 = vunpack.c.l.b16 %v7850
    %v7986 = vunpack.c.l.b16 %v7851
    %v7987 = vunpack.c.l.b16 %v7852
    %v7988 = vunpack.c.l.b16 %v7853
    %v7989 = vunpack.c.l.b16 %v7854
    %v7990 = vunpack.c.l.b16 %v7855
    %v7991 = vpack.c.b16 %v7928, %v7927
    %v7992 = vpack.c.b16 %v7930, %v7929
    %v7993 = vpack.c.b16 %v7932, %v7931
    %v7994 = vpack.c.b16 %v7934, %v7933
    %v7995 = vpack.c.b16 %v7936, %v7935
    %v7996 = vpack.c.b16 %v7938, %v7937
    %v7997 = vpack.c.b16 %v7940, %v7939
    %v7998 = vpack.c.b16 %v7942, %v7941
    %v7999 = vpack.c.b16 %v7944, %v7943
    %v8000 = vpack.c.b16 %v7946, %v7945
    %v8001 = vpack.c.b16 %v7948, %v7947
    %v8002 = vpack.c.b16 %v7950, %v7949
    %v8003 = vpack.c.b16 %v7952, %v7951
    %v8004 = vpack.c.b16 %v7954, %v7953
    %v8005 = vpack.c.b16 %v7956, %v7955
    %v8006 = vpack.c.b16 %v7958, %v7957
    %v8007 = vpack.c.b16 %v7960, %v7959
    %v8008 = vpack.c.b16 %v7962, %v7961
    %v8009 = vpack.c.b16 %v7964, %v7963
    %v8010 = vpack.c.b16 %v7966, %v7965
    %v8011 = vpack.c.b16 %v7968, %v7967
    %v8012 = vpack.c.b16 %v7970, %v7969
    %v8013 = vpack.c.b16 %v7972, %v7971
    %v8014 = vpack.c.b16 %v7974, %v7973
    %v8015 = vpack.c.b16 %v7976, %v7975
    %v8016 = vpack.c.b16 %v7978, %v7977
    %v8017 = vpack.c.b16 %v7980, %v7979
    %v8018 = vpack.c.b16 %v7982, %v7981
    %v8019 = vpack.c.b16 %v7984, %v7983
    %v8020 = vpack.c.b16 %v7986, %v7985
    %v8021 = vpack.c.b16 %v7988, %v7987
    %v8022 = vpack.c.b16 %v7990, %v7989
    %8055 = vmatprep.subr.bf16.mxu0 0
    %8056 = vmatpush1.bf16.msra.mxu0 %v7991
    %8057 = vmatprep.subr.bf16.mxu0 0
    %8058 = vmatpush1.bf16.msra.mxu0 %v7992
    %8059 = vmatprep.subr.bf16.mxu0 0
    %8060 = vmatpush1.bf16.msra.mxu0 %v7993
    %8061 = vmatprep.subr.bf16.mxu0 0
    %8062 = vmatpush1.bf16.msra.mxu0 %v7994
    %8063 = vmatprep.subr.bf16.mxu0 0
    %8064 = vmatpush1.bf16.msra.mxu0 %v7995
    %8065 = vmatprep.subr.bf16.mxu0 0
    %8066 = vmatpush1.bf16.msra.mxu0 %v7996
    %8067 = vmatprep.subr.bf16.mxu0 0
    %8068 = vmatpush1.bf16.msra.mxu0 %v7997
    %8069 = vmatprep.subr.bf16.mxu0 0
    %8070 = vmatpush1.bf16.msra.mxu0 %v7998
    %8071 = vmatprep.subr.bf16.mxu0 0
    %8072 = vmatpush1.bf16.msra.mxu0 %v7999
    %8073 = vmatprep.subr.bf16.mxu0 0
    %8074 = vmatpush1.bf16.msra.mxu0 %v8000
    %8075 = vmatprep.subr.bf16.mxu0 0
    %8076 = vmatpush1.bf16.msra.mxu0 %v8001
    %8077 = vmatprep.subr.bf16.mxu0 0
    %8078 = vmatpush1.bf16.msra.mxu0 %v8002
    %8079 = vmatprep.subr.bf16.mxu0 0
    %8080 = vmatpush1.bf16.msra.mxu0 %v8003
    %8081 = vmatprep.subr.bf16.mxu0 0
    %8082 = vmatpush1.bf16.msra.mxu0 %v8004
    %8083 = vmatprep.subr.bf16.mxu0 0
    %8084 = vmatpush1.bf16.msra.mxu0 %v8005
    %8085 = vmatprep.subr.bf16.mxu0 0
    %8086 = vmatpush1.bf16.msra.mxu0 %v8006
    %8087 = vmatprep.mubr.bf16.mxu0 %v7785
    %8088 = vmatmul.mubr.bf16.gmra.mrb[0].mxu0 %v7784
    %v8089 = vpop.f32.mrb[0].mxu0
    %v8090 = vadd.f32 %v7861, %v8089
    %v8091 = vpop.f32.mrb[0].mxu0
    %v8092 = vpop.f32.mrb[0].mxu0
    %v8093 = vadd.f32 %v7861, %v8092
    %v8094 = vpop.f32.mrb[0].mxu0
    %8095 = vmatprep.mubr.bf16.mxu0 %v7789
    %8096 = vmatmul.mubr.bf16.gmra.mrb[0].mxu0 %v7788
    %v8097 = vpop.f32.mrb[0].mxu0
    %v8098 = vadd.f32 %v7861, %v8097
    %v8099 = vpop.f32.mrb[0].mxu0
    %v8100 = vpop.f32.mrb[0].mxu0
    %v8101 = vpop.f32.mrb[0].mxu0
    %8102 = vdwg.mxu0
    %8103 = vmatprep.subr.bf16.mxu0 0
    %8104 = vmatpush1.bf16.msra.mxu0 %v8007
    %8105 = vmatprep.subr.bf16.mxu0 0
    %8106 = vmatpush1.bf16.msra.mxu0 %v8008
    %8107 = vmatprep.subr.bf16.mxu0 0
    %8108 = vmatpush1.bf16.msra.mxu0 %v8009
    %8109 = vmatprep.subr.bf16.mxu0 0
    %8110 = vmatpush1.bf16.msra.mxu0 %v8010
    %8111 = vmatprep.subr.bf16.mxu0 0
    %8112 = vmatpush1.bf16.msra.mxu0 %v8011
    %8113 = vmatprep.subr.bf16.mxu0 0
    %8114 = vmatpush1.bf16.msra.mxu0 %v8012
    %8115 = vmatprep.subr.bf16.mxu0 0
    %8116 = vmatpush1.bf16.msra.mxu0 %v8013
    %8117 = vmatprep.subr.bf16.mxu0 0
    %8118 = vmatpush1.bf16.msra.mxu0 %v8014
    %8119 = vmatprep.subr.bf16.mxu0 0
    %8120 = vmatpush1.bf16.msra.mxu0 %v8015
    %8121 = vmatprep.subr.bf16.mxu0 0
    %8122 = vmatpush1.bf16.msra.mxu0 %v8016
    %8123 = vmatprep.subr.bf16.mxu0 0
    %8124 = vmatpush1.bf16.msra.mxu0 %v8017
    %8125 = vmatprep.subr.bf16.mxu0 0
    %8126 = vmatpush1.bf16.msra.mxu0 %v8018
    %8127 = vmatprep.subr.bf16.mxu0 0
    %8128 = vmatpush1.bf16.msra.mxu0 %v8019
    %8129 = vmatprep.subr.bf16.mxu0 0
    %8130 = vmatpush1.bf16.msra.mxu0 %v8020
    %8131 = vmatprep.subr.bf16.mxu0 0
    %8132 = vmatpush1.bf16.msra.mxu0 %v8021
    %8133 = vmatprep.subr.bf16.mxu0 0
    %8134 = vmatpush1.bf16.msra.mxu0 %v8022
    %8135 = vmatprep.mubr.bf16.mxu0 %v7787
    %8136 = vmatmul.mubr.bf16.gmra.mrb[0].mxu0 %v7786
    %v8137 = vpop.f32.mrb[0].mxu0
    %v8138 = vadd.f32 %v8090, %v8137
    %v8139 = vpop.f32.mrb[0].mxu0
    %v8140 = vpop.f32.mrb[0].mxu0
    %v8141 = vadd.f32 %v8093, %v8140
    %v8142 = vpop.f32.mrb[0].mxu0
    %8143 = vmatprep.mubr.bf16.mxu0 %v7791
    %8144 = vmatmul.mubr.bf16.gmra.mrb[0].mxu0 %v7790
    %v8145 = vpop.f32.mrb[0].mxu0
    %v8146 = vadd.f32 %v8098, %v8145
    %v8147 = vpop.f32.mrb[0].mxu0
    %v8148 = vpop.f32.mrb[0].mxu0
    %v8149 = vpop.f32.mrb[0].mxu0
    %8150 = vdwg.mxu0
    %8151 = vst [vmem:[#allocation37] sm:$0xff] %v8138
    %8152 = vst [vmem:[#allocation37 + $0x8] sm:$0xff] %v8141
    %8153 = vst [vmem:[#allocation37 + $0x10] sm:$0xff] %v8146
    %v8154 = vld [vmem:[#allocation32] sm:$0xff]
    %v8155 = vld [vmem:[#allocation32 + $0x8] sm:$0xff]
    %v8156 = vld [vmem:[#allocation32 + $0x10] sm:$0xff]
    %v8157 = vld [vmem:[#allocation32 + $0x18] sm:$0xff]
    %v8158 = vld [vmem:[#allocation32 + $0x20] sm:$0xff]
    %v8159 = vld [vmem:[#allocation32 + $0x28] sm:$0xff]
    %v8160 = vld [vmem:[#allocation32 + $0x30] sm:$0xff]
    %v8161 = vld [vmem:[#allocation32 + $0x38] sm:$0xff]
    %v8162 = vld [vmem:[#allocation32 + $0x40] sm:$0xff]
    %v8163 = vld [vmem:[#allocation32 + $0x48] sm:$0xff]
    %v8164 = vld [vmem:[#allocation32 + $0x50] sm:$0xff]
    %v8165 = vld [vmem:[#allocation32 + $0x58] sm:$0xff]
    %v8166 = vld [vmem:[#allocation32 + $0x60] sm:$0xff]
    %v8167 = vld [vmem:[#allocation32 + $0x68] sm:$0xff]
    %v8168 = vld [vmem:[#allocation32 + $0x70] sm:$0xff]
    %v8169 = vld [vmem:[#allocation32 + $0x78] sm:$0xff]
    %v8170 = vld [vmem:[#allocation32 + $0x80] sm:$0xff]
    %v8171 = vld [vmem:[#allocation32 + $0x88] sm:$0xff]
    %v8172 = vld [vmem:[#allocation32 + $0x90] sm:$0xff]
    %v8173 = vld [vmem:[#allocation32 + $0x98] sm:$0xff]
    %v8174 = vld [vmem:[#allocation32 + $0xa0] sm:$0xff]
    %v8175 = vld [vmem:[#allocation32 + $0xa8] sm:$0xff]
    %v8176 = vld [vmem:[#allocation32 + $0xb0] sm:$0xff]
    %v8177 = vld [vmem:[#allocation32 + $0xb8] sm:$0xff]
    %v8178 = vld [vmem:[#allocation32 + $0xc0] sm:$0xff]
    %v8179 = vld [vmem:[#allocation32 + $0xc8] sm:$0xff]
    %v8180 = vld [vmem:[#allocation32 + $0xd0] sm:$0xff]
    %v8181 = vld [vmem:[#allocation32 + $0xd8] sm:$0xff]
    %v8182 = vld [vmem:[#allocation32 + $0xe0] sm:$0xff]
    %v8183 = vld [vmem:[#allocation32 + $0xe8] sm:$0xff]
    %v8184 = vld [vmem:[#allocation32 + $0xf0] sm:$0xff]
    %v8185 = vld [vmem:[#allocation32 + $0xf8] sm:$0xff]
    %v8186 = vld [vmem:[%s61] sm:$0xf]
    %v8188 = vlaneseq
    %v8189 = vshrl.u32 %v8188, 7
    %v8190 = vsub.s32 0, %v8189
    %v8191 = vrot.slane %v8186, %v8190
    %v8192 = vlaneseq
    %v8193 = vshrl.u32 %v8192, 7
    %v8194 = vsub.s32 1, %v8193
    %v8195 = vrot.slane %v8186, %v8194
    %v8196 = vlaneseq
    %v8197 = vshrl.u32 %v8196, 7
    %v8198 = vsub.s32 2, %v8197
    %v8199 = vrot.slane %v8186, %v8198
    %v8200 = vlaneseq
    %v8201 = vshrl.u32 %v8200, 7
    %v8202 = vsub.s32 3, %v8201
    %v8203 = vrot.slane %v8186, %v8202
    %v8240 = vunpack.c.l.b16 %v8154
    %v8241 = vunpack.c.h.b16 %v8154
    %v8242 = vunpack.c.l.b16 %v8155
    %v8243 = vunpack.c.h.b16 %v8155
    %v8244 = vunpack.c.l.b16 %v8156
    %v8245 = vunpack.c.h.b16 %v8156
    %v8246 = vunpack.c.l.b16 %v8157
    %v8247 = vunpack.c.h.b16 %v8157
    %v8248 = vunpack.c.l.b16 %v8158
    %v8249 = vunpack.c.h.b16 %v8158
    %v8250 = vunpack.c.l.b16 %v8159
    %v8251 = vunpack.c.h.b16 %v8159
    %v8252 = vunpack.c.l.b16 %v8160
    %v8253 = vunpack.c.h.b16 %v8160
    %v8254 = vunpack.c.l.b16 %v8161
    %v8255 = vunpack.c.h.b16 %v8161
    %v8256 = vunpack.c.l.b16 %v8162
    %v8257 = vunpack.c.h.b16 %v8162
    %v8258 = vunpack.c.l.b16 %v8163
    %v8259 = vunpack.c.h.b16 %v8163
    %v8260 = vunpack.c.l.b16 %v8164
    %v8261 = vunpack.c.h.b16 %v8164
    %v8262 = vunpack.c.l.b16 %v8165
    %v8263 = vunpack.c.h.b16 %v8165
    %v8264 = vunpack.c.l.b16 %v8166
    %v8265 = vunpack.c.h.b16 %v8166
    %v8266 = vunpack.c.l.b16 %v8167
    %v8267 = vunpack.c.h.b16 %v8167
    %v8268 = vunpack.c.l.b16 %v8168
    %v8269 = vunpack.c.h.b16 %v8168
    %v8270 = vunpack.c.l.b16 %v8169
    %v8271 = vunpack.c.h.b16 %v8169
    %v8272 = vunpack.c.l.b16 %v8170
    %v8273 = vunpack.c.h.b16 %v8170
    %v8274 = vunpack.c.l.b16 %v8171
    %v8275 = vunpack.c.h.b16 %v8171
    %v8276 = vunpack.c.l.b16 %v8172
    %v8277 = vunpack.c.h.b16 %v8172
    %v8278 = vunpack.c.l.b16 %v8173
    %v8279 = vunpack.c.h.b16 %v8173
    %v8280 = vunpack.c.l.b16 %v8174
    %v8281 = vunpack.c.h.b16 %v8174
    %v8282 = vunpack.c.l.b16 %v8175
    %v8283 = vunpack.c.h.b16 %v8175
    %v8284 = vunpack.c.l.b16 %v8176
    %v8285 = vunpack.c.h.b16 %v8176
    %v8286 = vunpack.c.l.b16 %v8177
    %v8287 = vunpack.c.h.b16 %v8177
    %v8288 = vunpack.c.l.b16 %v8178
    %v8289 = vunpack.c.h.b16 %v8178
    %v8290 = vunpack.c.l.b16 %v8179
    %v8291 = vunpack.c.h.b16 %v8179
    %v8292 = vunpack.c.l.b16 %v8180
    %v8293 = vunpack.c.h.b16 %v8180
    %v8294 = vunpack.c.l.b16 %v8181
    %v8295 = vunpack.c.h.b16 %v8181
    %v8296 = vunpack.c.l.b16 %v8182
    %v8297 = vunpack.c.h.b16 %v8182
    %v8298 = vunpack.c.l.b16 %v8183
    %v8299 = vunpack.c.h.b16 %v8183
    %v8300 = vunpack.c.l.b16 %v8184
    %v8301 = vunpack.c.h.b16 %v8184
    %v8302 = vunpack.c.l.b16 %v8185
    %v8303 = vunpack.c.h.b16 %v8185
    %v8304 = vpack.c.b16 %v8244, %v8240
    %v8305 = vpack.c.b16 %v8245, %v8241
    %v8306 = vpack.c.b16 %v8246, %v8242
    %v8307 = vpack.c.b16 %v8247, %v8243
    %v8308 = vpack.c.b16 %v8252, %v8248
    %v8309 = vpack.c.b16 %v8253, %v8249
    %v8310 = vpack.c.b16 %v8254, %v8250
    %v8311 = vpack.c.b16 %v8255, %v8251
    %v8312 = vpack.c.b16 %v8260, %v8256
    %v8313 = vpack.c.b16 %v8261, %v8257
    %v8314 = vpack.c.b16 %v8262, %v8258
    %v8315 = vpack.c.b16 %v8263, %v8259
    %v8316 = vpack.c.b16 %v8268, %v8264
    %v8317 = vpack.c.b16 %v8269, %v8265
    %v8318 = vpack.c.b16 %v8270, %v8266
    %v8319 = vpack.c.b16 %v8271, %v8267
    %v8320 = vpack.c.b16 %v8276, %v8272
    %v8321 = vpack.c.b16 %v8277, %v8273
    %v8322 = vpack.c.b16 %v8278, %v8274
    %v8323 = vpack.c.b16 %v8279, %v8275
    %v8324 = vpack.c.b16 %v8284, %v8280
    %v8325 = vpack.c.b16 %v8285, %v8281
    %v8326 = vpack.c.b16 %v8286, %v8282
    %v8327 = vpack.c.b16 %v8287, %v8283
    %v8328 = vpack.c.b16 %v8292, %v8288
    %v8329 = vpack.c.b16 %v8293, %v8289
    %v8330 = vpack.c.b16 %v8294, %v8290
    %v8331 = vpack.c.b16 %v8295, %v8291
    %v8332 = vpack.c.b16 %v8300, %v8296
    %v8333 = vpack.c.b16 %v8301, %v8297
    %v8334 = vpack.c.b16 %v8302, %v8298
    %v8335 = vpack.c.b16 %v8303, %v8299
    %8368 = vmatprep.subr.bf16.mxu0 %v8305
    %8369 = vmatpush1.bf16.msra.mxu0 %v8304
    %8370 = vmatprep.subr.bf16.mxu0 %v8309
    %8371 = vmatpush1.bf16.msra.mxu0 %v8308
    %8372 = vmatprep.subr.bf16.mxu0 %v8313
    %8373 = vmatpush1.bf16.msra.mxu0 %v8312
    %8374 = vmatprep.subr.bf16.mxu0 %v8317
    %8375 = vmatpush1.bf16.msra.mxu0 %v8316
    %8376 = vmatprep.subr.bf16.mxu0 %v8321
    %8377 = vmatpush1.bf16.msra.mxu0 %v8320
    %8378 = vmatprep.subr.bf16.mxu0 %v8325
    %8379 = vmatpush1.bf16.msra.mxu0 %v8324
    %8380 = vmatprep.subr.bf16.mxu0 %v8329
    %8381 = vmatpush1.bf16.msra.mxu0 %v8328
    %8382 = vmatprep.subr.bf16.mxu0 %v8333
    %8383 = vmatpush1.bf16.msra.mxu0 %v8332
    %8384 = vmatprep.subr.bf16.mxu0 0
    %8385 = vmatpush1.bf16.msra.mxu0 0
    %8386 = vmatprep.subr.bf16.mxu0 0
    %8387 = vmatpush1.bf16.msra.mxu0 0
    %8388 = vmatprep.subr.bf16.mxu0 0
    %8389 = vmatpush1.bf16.msra.mxu0 0
    %8390 = vmatprep.subr.bf16.mxu0 0
    %8391 = vmatpush1.bf16.msra.mxu0 0
    %8392 = vmatprep.subr.bf16.mxu0 0
    %8393 = vmatpush1.bf16.msra.mxu0 0
    %8394 = vmatprep.subr.bf16.mxu0 0
    %8395 = vmatpush1.bf16.msra.mxu0 0
    %8396 = vmatprep.subr.bf16.mxu0 0
    %8397 = vmatpush1.bf16.msra.mxu0 0
    %8398 = vmatprep.subr.bf16.mxu0 0
    %8399 = vmatpush1.bf16.msra.mxu0 0
    %8400 = vmatprep.mubr.bf16.mxu0 0
    %8401 = vmatmul.mubr.bf16.gmra.mrb[0].mxu0 %v453
    %v8402 = vpop.f32.mrb[0].mxu0
    %v8403 = vadd.f32 %v8191, %v8402
    %v8404 = vpop.f32.mrb[0].mxu0
    %v8405 = vadd.f32 %v8195, %v8404
    %v8406 = vpop.f32.mrb[0].mxu0
    %v8407 = vadd.f32 %v8191, %v8406
    %v8408 = vpop.f32.mrb[0].mxu0
    %v8409 = vadd.f32 %v8195, %v8408
    %8410 = vmatprep.mubr.bf16.mxu0 0
    %8411 = vmatmul.mubr.bf16.gmra.mrb[0].mxu0 %v454
    %v8412 = vpop.f32.mrb[0].mxu0
    %v8413 = vadd.f32 %v8191, %v8412
    %v8414 = vpop.f32.mrb[0].mxu0
    %v8415 = vadd.f32 %v8195, %v8414
    %v8416 = vpop.f32.mrb[0].mxu0
    %v8417 = vpop.f32.mrb[0].mxu0
    %8418 = vdwg.mxu0
    %8419 = vmatprep.subr.bf16.mxu0 %v8307
    %8420 = vmatpush1.bf16.msra.mxu0 %v8306
    %8421 = vmatprep.subr.bf16.mxu0 %v8311
    %8422 = vmatpush1.bf16.msra.mxu0 %v8310
    %8423 = vmatprep.subr.bf16.mxu0 %v8315
    %8424 = vmatpush1.bf16.msra.mxu0 %v8314
    %8425 = vmatprep.subr.bf16.mxu0 %v8319
    %8426 = vmatpush1.bf16.msra.mxu0 %v8318
    %8427 = vmatprep.subr.bf16.mxu0 %v8323
    %8428 = vmatpush1.bf16.msra.mxu0 %v8322
    %8429 = vmatprep.subr.bf16.mxu0 %v8327
    %8430 = vmatpush1.bf16.msra.mxu0 %v8326
    %8431 = vmatprep.subr.bf16.mxu0 %v8331
    %8432 = vmatpush1.bf16.msra.mxu0 %v8330
    %8433 = vmatprep.subr.bf16.mxu0 %v8335
    %8434 = vmatpush1.bf16.msra.mxu0 %v8334
    %8435 = vmatprep.subr.bf16.mxu0 0
    %8436 = vmatpush1.bf16.msra.mxu0 0
    %8437 = vmatprep.subr.bf16.mxu0 0
    %8438 = vmatpush1.bf16.msra.mxu0 0
    %8439 = vmatprep.subr.bf16.mxu0 0
    %8440 = vmatpush1.bf16.msra.mxu0 0
    %8441 = vmatprep.subr.bf16.mxu0 0
    %8442 = vmatpush1.bf16.msra.mxu0 0
    %8443 = vmatprep.subr.bf16.mxu0 0
    %8444 = vmatpush1.bf16.msra.mxu0 0
    %8445 = vmatprep.subr.bf16.mxu0 0
    %8446 = vmatpush1.bf16.msra.mxu0 0
    %8447 = vmatprep.subr.bf16.mxu0 0
    %8448 = vmatpush1.bf16.msra.mxu0 0
    %8449 = vmatprep.subr.bf16.mxu0 0
    %8450 = vmatpush1.bf16.msra.mxu0 0
    %8451 = vmatprep.mubr.bf16.mxu0 0
    %8452 = vmatmul.mubr.bf16.gmra.mrb[0].mxu0 %v453
    %v8453 = vpop.f32.mrb[0].mxu0
    %v8454 = vadd.f32 %v8199, %v8453
    %v8455 = vpop.f32.mrb[0].mxu0
    %v8456 = vadd.f32 %v8203, %v8455
    %v8457 = vpop.f32.mrb[0].mxu0
    %v8458 = vadd.f32 %v8199, %v8457
    %v8459 = vpop.f32.mrb[0].mxu0
    %v8460 = vadd.f32 %v8203, %v8459
    %8461 = vmatprep.mubr.bf16.mxu0 0
    %8462 = vmatmul.mubr.bf16.gmra.mrb[0].mxu0 %v454
    %v8463 = vpop.f32.mrb[0].mxu0
    %v8464 = vadd.f32 %v8199, %v8463
    %v8465 = vpop.f32.mrb[0].mxu0
    %v8466 = vadd.f32 %v8203, %v8465
    %v8467 = vpop.f32.mrb[0].mxu0
    %v8468 = vpop.f32.mrb[0].mxu0
    %8469 = vdwg.mxu0
    %v8470 = vmax.f32 %v8403, 0.0
    %v8471 = vmax.f32 %v8405, 0.0
    %v8472 = vmax.f32 %v8454, 0.0
    %v8473 = vmax.f32 %v8456, 0.0
    %v8474 = vmax.f32 %v8407, 0.0
    %v8475 = vmax.f32 %v8409, 0.0
    %v8476 = vmax.f32 %v8458, 0.0
    %v8477 = vmax.f32 %v8460, 0.0
    %v8478 = vmax.f32 %v8413, 0.0
    %v8479 = vmax.f32 %v8415, 0.0
    %v8480 = vmax.f32 %v8464, 0.0
    %v8481 = vmax.f32 %v8466, 0.0
    %v8482 = vpack.c.bf16 %v8474, %v8470
    %v8483 = vpack.c.bf16 %v8475, %v8471
    %v8484 = vpack.c.bf16 %v8476, %v8472
    %v8485 = vpack.c.bf16 %v8477, %v8473
    %v8486 = vpack.c.bf16 %v8478, %v8478
    %v8487 = vpack.c.bf16 %v8479, %v8479
    %v8488 = vpack.c.bf16 %v8480, %v8480
    %v8489 = vpack.c.bf16 %v8481, %v8481
    %v8490 = vld [vmem:[#allocation34] sm:$0xff]
    %v8491 = vld [vmem:[#allocation34 + $0x8] sm:$0xff]
    %v8492 = vld [vmem:[#allocation34 + $0x10] sm:$0xff]
    %v8493 = vld [vmem:[#allocation34 + $0x18] sm:$0xff]
    %v8494 = vld [vmem:[#allocation34 + $0x20] sm:$0xff]
    %v8495 = vld [vmem:[#allocation34 + $0x28] sm:$0xff]
    %v8496 = vld [vmem:[#allocation34 + $0x30] sm:$0xff]
    %v8497 = vld [vmem:[#allocation34 + $0x38] sm:$0xff]
    %v8498 = vld [vmem:[#allocation34 + $0x40] sm:$0xff]
    %v8499 = vld [vmem:[#allocation34 + $0x48] sm:$0xff]
    %v8500 = vld [vmem:[#allocation34 + $0x50] sm:$0xff]
    %v8501 = vld [vmem:[#allocation34 + $0x58] sm:$0xff]
    %v8502 = vld [vmem:[#allocation34 + $0x60] sm:$0xff]
    %v8503 = vld [vmem:[#allocation34 + $0x68] sm:$0xff]
    %v8504 = vld [vmem:[#allocation34 + $0x70] sm:$0xff]
    %v8505 = vld [vmem:[#allocation34 + $0x78] sm:$0xff]
    %v8506 = vld [vmem:[#allocation34 + $0x80] sm:$0xff]
    %v8507 = vld [vmem:[#allocation34 + $0x88] sm:$0xff]
    %v8508 = vld [vmem:[#allocation34 + $0x90] sm:$0xff]
    %v8509 = vld [vmem:[#allocation34 + $0x98] sm:$0xff]
    %v8510 = vld [vmem:[#allocation34 + $0xa0] sm:$0xff]
    %v8511 = vld [vmem:[#allocation34 + $0xa8] sm:$0xff]
    %v8512 = vld [vmem:[#allocation34 + $0xb0] sm:$0xff]
    %v8513 = vld [vmem:[#allocation34 + $0xb8] sm:$0xff]
    %v8514 = vld [vmem:[#allocation34 + $0xc0] sm:$0xff]
    %v8515 = vld [vmem:[#allocation34 + $0xc8] sm:$0xff]
    %v8516 = vld [vmem:[#allocation34 + $0xd0] sm:$0xff]
    %v8517 = vld [vmem:[#allocation34 + $0xd8] sm:$0xff]
    %v8518 = vld [vmem:[#allocation34 + $0xe0] sm:$0xff]
    %v8519 = vld [vmem:[#allocation34 + $0xe8] sm:$0xff]
    %v8520 = vld [vmem:[#allocation34 + $0xf0] sm:$0xff]
    %v8521 = vld [vmem:[#allocation34 + $0xf8] sm:$0xff]
    %v8522 = vld [vmem:[#allocation34 + $0x100] sm:$0xff]
    %v8523 = vld [vmem:[#allocation34 + $0x108] sm:$0xff]
    %v8524 = vld [vmem:[#allocation34 + $0x110] sm:$0xff]
    %v8525 = vld [vmem:[#allocation34 + $0x118] sm:$0xff]
    %v8526 = vld [vmem:[#allocation34 + $0x120] sm:$0xff]
    %v8527 = vld [vmem:[#allocation34 + $0x128] sm:$0xff]
    %v8528 = vld [vmem:[#allocation34 + $0x130] sm:$0xff]
    %v8529 = vld [vmem:[#allocation34 + $0x138] sm:$0xff]
    %v8530 = vld [vmem:[#allocation34 + $0x140] sm:$0xff]
    %v8531 = vld [vmem:[#allocation34 + $0x148] sm:$0xff]
    %v8532 = vld [vmem:[#allocation34 + $0x150] sm:$0xff]
    %v8533 = vld [vmem:[#allocation34 + $0x158] sm:$0xff]
    %v8534 = vld [vmem:[#allocation34 + $0x160] sm:$0xff]
    %v8535 = vld [vmem:[#allocation34 + $0x168] sm:$0xff]
    %v8536 = vld [vmem:[#allocation34 + $0x170] sm:$0xff]
    %v8537 = vld [vmem:[#allocation34 + $0x178] sm:$0xff]
    %v8538 = vld [vmem:[#allocation34 + $0x180] sm:$0xff]
    %v8539 = vld [vmem:[#allocation34 + $0x188] sm:$0xff]
    %v8540 = vld [vmem:[#allocation34 + $0x190] sm:$0xff]
    %v8541 = vld [vmem:[#allocation34 + $0x198] sm:$0xff]
    %v8542 = vld [vmem:[#allocation34 + $0x1a0] sm:$0xff]
    %v8543 = vld [vmem:[#allocation34 + $0x1a8] sm:$0xff]
    %v8544 = vld [vmem:[#allocation34 + $0x1b0] sm:$0xff]
    %v8545 = vld [vmem:[#allocation34 + $0x1b8] sm:$0xff]
    %v8546 = vld [vmem:[#allocation34 + $0x1c0] sm:$0xff]
    %v8547 = vld [vmem:[#allocation34 + $0x1c8] sm:$0xff]
    %v8548 = vld [vmem:[#allocation34 + $0x1d0] sm:$0xff]
    %v8549 = vld [vmem:[#allocation34 + $0x1d8] sm:$0xff]
    %v8550 = vld [vmem:[#allocation34 + $0x1e0] sm:$0xff]
    %v8551 = vld [vmem:[#allocation34 + $0x1e8] sm:$0xff]
    %v8552 = vld [vmem:[#allocation34 + $0x1f0] sm:$0xff]
    %v8553 = vld [vmem:[#allocation34 + $0x1f8] sm:$0xff]
    %v8554 = vld [vmem:[#allocation34 + $0x200] sm:$0xff]
    %v8555 = vld [vmem:[#allocation34 + $0x208] sm:$0xff]
    %v8556 = vld [vmem:[#allocation34 + $0x210] sm:$0xff]
    %v8557 = vld [vmem:[#allocation34 + $0x218] sm:$0xff]
    %v8558 = vld [vmem:[#allocation34 + $0x220] sm:$0xff]
    %v8559 = vld [vmem:[#allocation34 + $0x228] sm:$0xff]
    %v8560 = vld [vmem:[#allocation34 + $0x230] sm:$0xff]
    %v8561 = vld [vmem:[#allocation34 + $0x238] sm:$0xff]
    %v8562 = vld [vmem:[#allocation34 + $0x240] sm:$0xff]
    %v8563 = vld [vmem:[#allocation34 + $0x248] sm:$0xff]
    %v8564 = vld [vmem:[#allocation34 + $0x250] sm:$0xff]
    %v8565 = vld [vmem:[#allocation34 + $0x258] sm:$0xff]
    %v8566 = vld [vmem:[#allocation34 + $0x260] sm:$0xff]
    %v8567 = vld [vmem:[#allocation34 + $0x268] sm:$0xff]
    %v8568 = vld [vmem:[#allocation34 + $0x270] sm:$0xff]
    %v8569 = vld [vmem:[#allocation34 + $0x278] sm:$0xff]
    %v8570 = vld [vmem:[#allocation34 + $0x280] sm:$0xff]
    %v8571 = vld [vmem:[#allocation34 + $0x288] sm:$0xff]
    %v8572 = vld [vmem:[#allocation34 + $0x290] sm:$0xff]
    %v8573 = vld [vmem:[#allocation34 + $0x298] sm:$0xff]
    %v8574 = vld [vmem:[#allocation34 + $0x2a0] sm:$0xff]
    %v8575 = vld [vmem:[#allocation34 + $0x2a8] sm:$0xff]
    %v8576 = vld [vmem:[#allocation34 + $0x2b0] sm:$0xff]
    %v8577 = vld [vmem:[#allocation34 + $0x2b8] sm:$0xff]
    %v8578 = vld [vmem:[#allocation34 + $0x2c0] sm:$0xff]
    %v8579 = vld [vmem:[#allocation34 + $0x2c8] sm:$0xff]
    %v8580 = vld [vmem:[#allocation34 + $0x2d0] sm:$0xff]
    %v8581 = vld [vmem:[#allocation34 + $0x2d8] sm:$0xff]
    %v8582 = vld [vmem:[#allocation34 + $0x2e0] sm:$0xff]
    %v8583 = vld [vmem:[#allocation34 + $0x2e8] sm:$0xff]
    %v8584 = vld [vmem:[#allocation34 + $0x2f0] sm:$0xff]
    %v8585 = vld [vmem:[#allocation34 + $0x2f8] sm:$0xff]
    %v8586 = vld [vmem:[#allocation34 + $0x300] sm:$0xff]
    %v8587 = vld [vmem:[#allocation34 + $0x308] sm:$0xff]
    %v8588 = vld [vmem:[#allocation34 + $0x310] sm:$0xff]
    %v8589 = vld [vmem:[#allocation34 + $0x318] sm:$0xff]
    %v8590 = vld [vmem:[#allocation34 + $0x320] sm:$0xff]
    %v8591 = vld [vmem:[#allocation34 + $0x328] sm:$0xff]
    %v8592 = vld [vmem:[#allocation34 + $0x330] sm:$0xff]
    %v8593 = vld [vmem:[#allocation34 + $0x338] sm:$0xff]
    %v8594 = vld [vmem:[#allocation34 + $0x340] sm:$0xff]
    %v8595 = vld [vmem:[#allocation34 + $0x348] sm:$0xff]
    %v8596 = vld [vmem:[#allocation34 + $0x350] sm:$0xff]
    %v8597 = vld [vmem:[#allocation34 + $0x358] sm:$0xff]
    %v8598 = vld [vmem:[#allocation34 + $0x360] sm:$0xff]
    %v8599 = vld [vmem:[#allocation34 + $0x368] sm:$0xff]
    %v8600 = vld [vmem:[#allocation34 + $0x370] sm:$0xff]
    %v8601 = vld [vmem:[#allocation34 + $0x378] sm:$0xff]
    %v8602 = vld [vmem:[#allocation34 + $0x380] sm:$0xff]
    %v8603 = vld [vmem:[#allocation34 + $0x388] sm:$0xff]
    %v8604 = vld [vmem:[#allocation34 + $0x390] sm:$0xff]
    %v8605 = vld [vmem:[#allocation34 + $0x398] sm:$0xff]
    %v8606 = vld [vmem:[#allocation34 + $0x3a0] sm:$0xff]
    %v8607 = vld [vmem:[#allocation34 + $0x3a8] sm:$0xff]
    %v8608 = vld [vmem:[#allocation34 + $0x3b0] sm:$0xff]
    %v8609 = vld [vmem:[#allocation34 + $0x3b8] sm:$0xff]
    %v8610 = vld [vmem:[#allocation34 + $0x3c0] sm:$0xff]
    %v8611 = vld [vmem:[#allocation34 + $0x3c8] sm:$0xff]
    %v8612 = vld [vmem:[#allocation34 + $0x3d0] sm:$0xff]
    %v8613 = vld [vmem:[#allocation34 + $0x3d8] sm:$0xff]
    %v8614 = vld [vmem:[#allocation34 + $0x3e0] sm:$0xff]
    %v8615 = vld [vmem:[#allocation34 + $0x3e8] sm:$0xff]
    %v8616 = vld [vmem:[#allocation34 + $0x3f0] sm:$0xff]
    %v8617 = vld [vmem:[#allocation34 + $0x3f8] sm:$0xff]
    %v8618 = vld [vmem:[%s65] sm:$0xf]
    %v8620 = vlaneseq
    %v8621 = vshrl.u32 %v8620, 7
    %v8622 = vsub.s32 0, %v8621
    %v8623 = vrot.slane %v8618, %v8622
    %v8624 = vlaneseq
    %v8625 = vshrl.u32 %v8624, 7
    %v8626 = vsub.s32 1, %v8625
    %v8627 = vrot.slane %v8618, %v8626
    %v8628 = vlaneseq
    %v8629 = vshrl.u32 %v8628, 7
    %v8630 = vsub.s32 2, %v8629
    %v8631 = vrot.slane %v8618, %v8630
    %v8632 = vlaneseq
    %v8633 = vshrl.u32 %v8632, 7
    %v8634 = vsub.s32 3, %v8633
    %v8635 = vrot.slane %v8618, %v8634
    %v8768 = vunpack.c.l.b16 %v8490
    %v8769 = vunpack.c.h.b16 %v8490
    %v8770 = vunpack.c.l.b16 %v8491
    %v8771 = vunpack.c.h.b16 %v8491
    %v8772 = vunpack.c.l.b16 %v8492
    %v8773 = vunpack.c.h.b16 %v8492
    %v8774 = vunpack.c.l.b16 %v8493
    %v8775 = vunpack.c.h.b16 %v8493
    %v8776 = vunpack.c.l.b16 %v8494
    %v8777 = vunpack.c.h.b16 %v8494
    %v8778 = vunpack.c.l.b16 %v8495
    %v8779 = vunpack.c.h.b16 %v8495
    %v8780 = vunpack.c.l.b16 %v8496
    %v8781 = vunpack.c.h.b16 %v8496
    %v8782 = vunpack.c.l.b16 %v8497
    %v8783 = vunpack.c.h.b16 %v8497
    %v8784 = vunpack.c.l.b16 %v8498
    %v8785 = vunpack.c.h.b16 %v8498
    %v8786 = vunpack.c.l.b16 %v8499
    %v8787 = vunpack.c.h.b16 %v8499
    %v8788 = vunpack.c.l.b16 %v8500
    %v8789 = vunpack.c.h.b16 %v8500
    %v8790 = vunpack.c.l.b16 %v8501
    %v8791 = vunpack.c.h.b16 %v8501
    %v8792 = vunpack.c.l.b16 %v8502
    %v8793 = vunpack.c.h.b16 %v8502
    %v8794 = vunpack.c.l.b16 %v8503
    %v8795 = vunpack.c.h.b16 %v8503
    %v8796 = vunpack.c.l.b16 %v8504
    %v8797 = vunpack.c.h.b16 %v8504
    %v8798 = vunpack.c.l.b16 %v8505
    %v8799 = vunpack.c.h.b16 %v8505
    %v8800 = vunpack.c.l.b16 %v8506
    %v8801 = vunpack.c.h.b16 %v8506
    %v8802 = vunpack.c.l.b16 %v8507
    %v8803 = vunpack.c.h.b16 %v8507
    %v8804 = vunpack.c.l.b16 %v8508
    %v8805 = vunpack.c.h.b16 %v8508
    %v8806 = vunpack.c.l.b16 %v8509
    %v8807 = vunpack.c.h.b16 %v8509
    %v8808 = vunpack.c.l.b16 %v8510
    %v8809 = vunpack.c.h.b16 %v8510
    %v8810 = vunpack.c.l.b16 %v8511
    %v8811 = vunpack.c.h.b16 %v8511
    %v8812 = vunpack.c.l.b16 %v8512
    %v8813 = vunpack.c.h.b16 %v8512
    %v8814 = vunpack.c.l.b16 %v8513
    %v8815 = vunpack.c.h.b16 %v8513
    %v8816 = vunpack.c.l.b16 %v8514
    %v8817 = vunpack.c.h.b16 %v8514
    %v8818 = vunpack.c.l.b16 %v8515
    %v8819 = vunpack.c.h.b16 %v8515
    %v8820 = vunpack.c.l.b16 %v8516
    %v8821 = vunpack.c.h.b16 %v8516
    %v8822 = vunpack.c.l.b16 %v8517
    %v8823 = vunpack.c.h.b16 %v8517
    %v8824 = vunpack.c.l.b16 %v8518
    %v8825 = vunpack.c.h.b16 %v8518
    %v8826 = vunpack.c.l.b16 %v8519
    %v8827 = vunpack.c.h.b16 %v8519
    %v8828 = vunpack.c.l.b16 %v8520
    %v8829 = vunpack.c.h.b16 %v8520
    %v8830 = vunpack.c.l.b16 %v8521
    %v8831 = vunpack.c.h.b16 %v8521
    %v8832 = vunpack.c.l.b16 %v8522
    %v8833 = vunpack.c.h.b16 %v8522
    %v8834 = vunpack.c.l.b16 %v8523
    %v8835 = vunpack.c.h.b16 %v8523
    %v8836 = vunpack.c.l.b16 %v8524
    %v8837 = vunpack.c.h.b16 %v8524
    %v8838 = vunpack.c.l.b16 %v8525
    %v8839 = vunpack.c.h.b16 %v8525
    %v8840 = vunpack.c.l.b16 %v8526
    %v8841 = vunpack.c.h.b16 %v8526
    %v8842 = vunpack.c.l.b16 %v8527
    %v8843 = vunpack.c.h.b16 %v8527
    %v8844 = vunpack.c.l.b16 %v8528
    %v8845 = vunpack.c.h.b16 %v8528
    %v8846 = vunpack.c.l.b16 %v8529
    %v8847 = vunpack.c.h.b16 %v8529
    %v8848 = vunpack.c.l.b16 %v8530
    %v8849 = vunpack.c.h.b16 %v8530
    %v8850 = vunpack.c.l.b16 %v8531
    %v8851 = vunpack.c.h.b16 %v8531
    %v8852 = vunpack.c.l.b16 %v8532
    %v8853 = vunpack.c.h.b16 %v8532
    %v8854 = vunpack.c.l.b16 %v8533
    %v8855 = vunpack.c.h.b16 %v8533
    %v8856 = vunpack.c.l.b16 %v8534
    %v8857 = vunpack.c.h.b16 %v8534
    %v8858 = vunpack.c.l.b16 %v8535
    %v8859 = vunpack.c.h.b16 %v8535
    %v8860 = vunpack.c.l.b16 %v8536
    %v8861 = vunpack.c.h.b16 %v8536
    %v8862 = vunpack.c.l.b16 %v8537
    %v8863 = vunpack.c.h.b16 %v8537
    %v8864 = vunpack.c.l.b16 %v8538
    %v8865 = vunpack.c.h.b16 %v8538
    %v8866 = vunpack.c.l.b16 %v8539
    %v8867 = vunpack.c.h.b16 %v8539
    %v8868 = vunpack.c.l.b16 %v8540
    %v8869 = vunpack.c.h.b16 %v8540
    %v8870 = vunpack.c.l.b16 %v8541
    %v8871 = vunpack.c.h.b16 %v8541
    %v8872 = vunpack.c.l.b16 %v8542
    %v8873 = vunpack.c.h.b16 %v8542
    %v8874 = vunpack.c.l.b16 %v8543
    %v8875 = vunpack.c.h.b16 %v8543
    %v8876 = vunpack.c.l.b16 %v8544
    %v8877 = vunpack.c.h.b16 %v8544
    %v8878 = vunpack.c.l.b16 %v8545
    %v8879 = vunpack.c.h.b16 %v8545
    %v8880 = vunpack.c.l.b16 %v8546
    %v8881 = vunpack.c.h.b16 %v8546
    %v8882 = vunpack.c.l.b16 %v8547
    %v8883 = vunpack.c.h.b16 %v8547
    %v8884 = vunpack.c.l.b16 %v8548
    %v8885 = vunpack.c.h.b16 %v8548
    %v8886 = vunpack.c.l.b16 %v8549
    %v8887 = vunpack.c.h.b16 %v8549
    %v8888 = vunpack.c.l.b16 %v8550
    %v8889 = vunpack.c.h.b16 %v8550
    %v8890 = vunpack.c.l.b16 %v8551
    %v8891 = vunpack.c.h.b16 %v8551
    %v8892 = vunpack.c.l.b16 %v8552
    %v8893 = vunpack.c.h.b16 %v8552
    %v8894 = vunpack.c.l.b16 %v8553
    %v8895 = vunpack.c.h.b16 %v8553
    %v8896 = vunpack.c.l.b16 %v8554
    %v8897 = vunpack.c.h.b16 %v8554
    %v8898 = vunpack.c.l.b16 %v8555
    %v8899 = vunpack.c.h.b16 %v8555
    %v8900 = vunpack.c.l.b16 %v8556
    %v8901 = vunpack.c.h.b16 %v8556
    %v8902 = vunpack.c.l.b16 %v8557
    %v8903 = vunpack.c.h.b16 %v8557
    %v8904 = vunpack.c.l.b16 %v8558
    %v8905 = vunpack.c.h.b16 %v8558
    %v8906 = vunpack.c.l.b16 %v8559
    %v8907 = vunpack.c.h.b16 %v8559
    %v8908 = vunpack.c.l.b16 %v8560
    %v8909 = vunpack.c.h.b16 %v8560
    %v8910 = vunpack.c.l.b16 %v8561
    %v8911 = vunpack.c.h.b16 %v8561
    %v8912 = vunpack.c.l.b16 %v8562
    %v8913 = vunpack.c.h.b16 %v8562
    %v8914 = vunpack.c.l.b16 %v8563
    %v8915 = vunpack.c.h.b16 %v8563
    %v8916 = vunpack.c.l.b16 %v8564
    %v8917 = vunpack.c.h.b16 %v8564
    %v8918 = vunpack.c.l.b16 %v8565
    %v8919 = vunpack.c.h.b16 %v8565
    %v8920 = vunpack.c.l.b16 %v8566
    %v8921 = vunpack.c.h.b16 %v8566
    %v8922 = vunpack.c.l.b16 %v8567
    %v8923 = vunpack.c.h.b16 %v8567
    %v8924 = vunpack.c.l.b16 %v8568
    %v8925 = vunpack.c.h.b16 %v8568
    %v8926 = vunpack.c.l.b16 %v8569
    %v8927 = vunpack.c.h.b16 %v8569
    %v8928 = vunpack.c.l.b16 %v8570
    %v8929 = vunpack.c.h.b16 %v8570
    %v8930 = vunpack.c.l.b16 %v8571
    %v8931 = vunpack.c.h.b16 %v8571
    %v8932 = vunpack.c.l.b16 %v8572
    %v8933 = vunpack.c.h.b16 %v8572
    %v8934 = vunpack.c.l.b16 %v8573
    %v8935 = vunpack.c.h.b16 %v8573
    %v8936 = vunpack.c.l.b16 %v8574
    %v8937 = vunpack.c.h.b16 %v8574
    %v8938 = vunpack.c.l.b16 %v8575
    %v8939 = vunpack.c.h.b16 %v8575
    %v8940 = vunpack.c.l.b16 %v8576
    %v8941 = vunpack.c.h.b16 %v8576
    %v8942 = vunpack.c.l.b16 %v8577
    %v8943 = vunpack.c.h.b16 %v8577
    %v8944 = vunpack.c.l.b16 %v8578
    %v8945 = vunpack.c.h.b16 %v8578
    %v8946 = vunpack.c.l.b16 %v8579
    %v8947 = vunpack.c.h.b16 %v8579
    %v8948 = vunpack.c.l.b16 %v8580
    %v8949 = vunpack.c.h.b16 %v8580
    %v8950 = vunpack.c.l.b16 %v8581
    %v8951 = vunpack.c.h.b16 %v8581
    %v8952 = vunpack.c.l.b16 %v8582
    %v8953 = vunpack.c.h.b16 %v8582
    %v8954 = vunpack.c.l.b16 %v8583
    %v8955 = vunpack.c.h.b16 %v8583
    %v8956 = vunpack.c.l.b16 %v8584
    %v8957 = vunpack.c.h.b16 %v8584
    %v8958 = vunpack.c.l.b16 %v8585
    %v8959 = vunpack.c.h.b16 %v8585
    %v8960 = vunpack.c.l.b16 %v8586
    %v8961 = vunpack.c.h.b16 %v8586
    %v8962 = vunpack.c.l.b16 %v8587
    %v8963 = vunpack.c.h.b16 %v8587
    %v8964 = vunpack.c.l.b16 %v8588
    %v8965 = vunpack.c.h.b16 %v8588
    %v8966 = vunpack.c.l.b16 %v8589
    %v8967 = vunpack.c.h.b16 %v8589
    %v8968 = vunpack.c.l.b16 %v8590
    %v8969 = vunpack.c.h.b16 %v8590
    %v8970 = vunpack.c.l.b16 %v8591
    %v8971 = vunpack.c.h.b16 %v8591
    %v8972 = vunpack.c.l.b16 %v8592
    %v8973 = vunpack.c.h.b16 %v8592
    %v8974 = vunpack.c.l.b16 %v8593
    %v8975 = vunpack.c.h.b16 %v8593
    %v8976 = vunpack.c.l.b16 %v8594
    %v8977 = vunpack.c.h.b16 %v8594
    %v8978 = vunpack.c.l.b16 %v8595
    %v8979 = vunpack.c.h.b16 %v8595
    %v8980 = vunpack.c.l.b16 %v8596
    %v8981 = vunpack.c.h.b16 %v8596
    %v8982 = vunpack.c.l.b16 %v8597
    %v8983 = vunpack.c.h.b16 %v8597
    %v8984 = vunpack.c.l.b16 %v8598
    %v8985 = vunpack.c.h.b16 %v8598
    %v8986 = vunpack.c.l.b16 %v8599
    %v8987 = vunpack.c.h.b16 %v8599
    %v8988 = vunpack.c.l.b16 %v8600
    %v8989 = vunpack.c.h.b16 %v8600
    %v8990 = vunpack.c.l.b16 %v8601
    %v8991 = vunpack.c.h.b16 %v8601
    %v8992 = vunpack.c.l.b16 %v8602
    %v8993 = vunpack.c.h.b16 %v8602
    %v8994 = vunpack.c.l.b16 %v8603
    %v8995 = vunpack.c.h.b16 %v8603
    %v8996 = vunpack.c.l.b16 %v8604
    %v8997 = vunpack.c.h.b16 %v8604
    %v8998 = vunpack.c.l.b16 %v8605
    %v8999 = vunpack.c.h.b16 %v8605
    %v9000 = vunpack.c.l.b16 %v8606
    %v9001 = vunpack.c.h.b16 %v8606
    %v9002 = vunpack.c.l.b16 %v8607
    %v9003 = vunpack.c.h.b16 %v8607
    %v9004 = vunpack.c.l.b16 %v8608
    %v9005 = vunpack.c.h.b16 %v8608
    %v9006 = vunpack.c.l.b16 %v8609
    %v9007 = vunpack.c.h.b16 %v8609
    %v9008 = vunpack.c.l.b16 %v8610
    %v9009 = vunpack.c.h.b16 %v8610
    %v9010 = vunpack.c.l.b16 %v8611
    %v9011 = vunpack.c.h.b16 %v8611
    %v9012 = vunpack.c.l.b16 %v8612
    %v9013 = vunpack.c.h.b16 %v8612
    %v9014 = vunpack.c.l.b16 %v8613
    %v9015 = vunpack.c.h.b16 %v8613
    %v9016 = vunpack.c.l.b16 %v8614
    %v9017 = vunpack.c.h.b16 %v8614
    %v9018 = vunpack.c.l.b16 %v8615
    %v9019 = vunpack.c.h.b16 %v8615
    %v9020 = vunpack.c.l.b16 %v8616
    %v9021 = vunpack.c.h.b16 %v8616
    %v9022 = vunpack.c.l.b16 %v8617
    %v9023 = vunpack.c.h.b16 %v8617
    %v9024 = vpack.c.b16 %v8772, %v8768
    %v9025 = vpack.c.b16 %v8773, %v8769
    %v9026 = vpack.c.b16 %v8774, %v8770
    %v9027 = vpack.c.b16 %v8775, %v8771
    %v9028 = vpack.c.b16 %v8780, %v8776
    %v9029 = vpack.c.b16 %v8781, %v8777
    %v9030 = vpack.c.b16 %v8782, %v8778
    %v9031 = vpack.c.b16 %v8783, %v8779
    %v9032 = vpack.c.b16 %v8788, %v8784
    %v9033 = vpack.c.b16 %v8789, %v8785
    %v9034 = vpack.c.b16 %v8790, %v8786
    %v9035 = vpack.c.b16 %v8791, %v8787
    %v9036 = vpack.c.b16 %v8796, %v8792
    %v9037 = vpack.c.b16 %v8797, %v8793
    %v9038 = vpack.c.b16 %v8798, %v8794
    %v9039 = vpack.c.b16 %v8799, %v8795
    %v9040 = vpack.c.b16 %v8804, %v8800
    %v9041 = vpack.c.b16 %v8805, %v8801
    %v9042 = vpack.c.b16 %v8806, %v8802
    %v9043 = vpack.c.b16 %v8807, %v8803
    %v9044 = vpack.c.b16 %v8812, %v8808
    %v9045 = vpack.c.b16 %v8813, %v8809
    %v9046 = vpack.c.b16 %v8814, %v8810
    %v9047 = vpack.c.b16 %v8815, %v8811
    %v9048 = vpack.c.b16 %v8820, %v8816
    %v9049 = vpack.c.b16 %v8821, %v8817
    %v9050 = vpack.c.b16 %v8822, %v8818
    %v9051 = vpack.c.b16 %v8823, %v8819
    %v9052 = vpack.c.b16 %v8828, %v8824
    %v9053 = vpack.c.b16 %v8829, %v8825
    %v9054 = vpack.c.b16 %v8830, %v8826
    %v9055 = vpack.c.b16 %v8831, %v8827
    %v9056 = vpack.c.b16 %v8836, %v8832
    %v9057 = vpack.c.b16 %v8837, %v8833
    %v9058 = vpack.c.b16 %v8838, %v8834
    %v9059 = vpack.c.b16 %v8839, %v8835
    %v9060 = vpack.c.b16 %v8844, %v8840
    %v9061 = vpack.c.b16 %v8845, %v8841
    %v9062 = vpack.c.b16 %v8846, %v8842
    %v9063 = vpack.c.b16 %v8847, %v8843
    %v9064 = vpack.c.b16 %v8852, %v8848
    %v9065 = vpack.c.b16 %v8853, %v8849
    %v9066 = vpack.c.b16 %v8854, %v8850
    %v9067 = vpack.c.b16 %v8855, %v8851
    %v9068 = vpack.c.b16 %v8860, %v8856
    %v9069 = vpack.c.b16 %v8861, %v8857
    %v9070 = vpack.c.b16 %v8862, %v8858
    %v9071 = vpack.c.b16 %v8863, %v8859
    %v9072 = vpack.c.b16 %v8868, %v8864
    %v9073 = vpack.c.b16 %v8869, %v8865
    %v9074 = vpack.c.b16 %v8870, %v8866
    %v9075 = vpack.c.b16 %v8871, %v8867
    %v9076 = vpack.c.b16 %v8876, %v8872
    %v9077 = vpack.c.b16 %v8877, %v8873
    %v9078 = vpack.c.b16 %v8878, %v8874
    %v9079 = vpack.c.b16 %v8879, %v8875
    %v9080 = vpack.c.b16 %v8884, %v8880
    %v9081 = vpack.c.b16 %v8885, %v8881
    %v9082 = vpack.c.b16 %v8886, %v8882
    %v9083 = vpack.c.b16 %v8887, %v8883
    %v9084 = vpack.c.b16 %v8892, %v8888
    %v9085 = vpack.c.b16 %v8893, %v8889
    %v9086 = vpack.c.b16 %v8894, %v8890
    %v9087 = vpack.c.b16 %v8895, %v8891
    %v9088 = vpack.c.b16 %v8900, %v8896
    %v9089 = vpack.c.b16 %v8901, %v8897
    %v9090 = vpack.c.b16 %v8902, %v8898
    %v9091 = vpack.c.b16 %v8903, %v8899
    %v9092 = vpack.c.b16 %v8908, %v8904
    %v9093 = vpack.c.b16 %v8909, %v8905
    %v9094 = vpack.c.b16 %v8910, %v8906
    %v9095 = vpack.c.b16 %v8911, %v8907
    %v9096 = vpack.c.b16 %v8916, %v8912
    %v9097 = vpack.c.b16 %v8917, %v8913
    %v9098 = vpack.c.b16 %v8918, %v8914
    %v9099 = vpack.c.b16 %v8919, %v8915
    %v9100 = vpack.c.b16 %v8924, %v8920
    %v9101 = vpack.c.b16 %v8925, %v8921
    %v9102 = vpack.c.b16 %v8926, %v8922
    %v9103 = vpack.c.b16 %v8927, %v8923
    %v9104 = vpack.c.b16 %v8932, %v8928
    %v9105 = vpack.c.b16 %v8933, %v8929
    %v9106 = vpack.c.b16 %v8934, %v8930
    %v9107 = vpack.c.b16 %v8935, %v8931
    %v9108 = vpack.c.b16 %v8940, %v8936
    %v9109 = vpack.c.b16 %v8941, %v8937
    %v9110 = vpack.c.b16 %v8942, %v8938
    %v9111 = vpack.c.b16 %v8943, %v8939
    %v9112 = vpack.c.b16 %v8948, %v8944
    %v9113 = vpack.c.b16 %v8949, %v8945
    %v9114 = vpack.c.b16 %v8950, %v8946
    %v9115 = vpack.c.b16 %v8951, %v8947
    %v9116 = vpack.c.b16 %v8956, %v8952
    %v9117 = vpack.c.b16 %v8957, %v8953
    %v9118 = vpack.c.b16 %v8958, %v8954
    %v9119 = vpack.c.b16 %v8959, %v8955
    %v9120 = vpack.c.b16 %v8964, %v8960
    %v9121 = vpack.c.b16 %v8965, %v8961
    %v9122 = vpack.c.b16 %v8966, %v8962
    %v9123 = vpack.c.b16 %v8967, %v8963
    %v9124 = vpack.c.b16 %v8972, %v8968
    %v9125 = vpack.c.b16 %v8973, %v8969
    %v9126 = vpack.c.b16 %v8974, %v8970
    %v9127 = vpack.c.b16 %v8975, %v8971
    %v9128 = vpack.c.b16 %v8980, %v8976
    %v9129 = vpack.c.b16 %v8981, %v8977
    %v9130 = vpack.c.b16 %v8982, %v8978
    %v9131 = vpack.c.b16 %v8983, %v8979
    %v9132 = vpack.c.b16 %v8988, %v8984
    %v9133 = vpack.c.b16 %v8989, %v8985
    %v9134 = vpack.c.b16 %v8990, %v8986
    %v9135 = vpack.c.b16 %v8991, %v8987
    %v9136 = vpack.c.b16 %v8996, %v8992
    %v9137 = vpack.c.b16 %v8997, %v8993
    %v9138 = vpack.c.b16 %v8998, %v8994
    %v9139 = vpack.c.b16 %v8999, %v8995
    %v9140 = vpack.c.b16 %v9004, %v9000
    %v9141 = vpack.c.b16 %v9005, %v9001
    %v9142 = vpack.c.b16 %v9006, %v9002
    %v9143 = vpack.c.b16 %v9007, %v9003
    %v9144 = vpack.c.b16 %v9012, %v9008
    %v9145 = vpack.c.b16 %v9013, %v9009
    %v9146 = vpack.c.b16 %v9014, %v9010
    %v9147 = vpack.c.b16 %v9015, %v9011
    %v9148 = vpack.c.b16 %v9020, %v9016
    %v9149 = vpack.c.b16 %v9021, %v9017
    %v9150 = vpack.c.b16 %v9022, %v9018
    %v9151 = vpack.c.b16 %v9023, %v9019
    %9280 = vmatprep.subr.bf16.mxu0 %v9025
    %9281 = vmatpush1.bf16.msra.mxu0 %v9024
    %9282 = vmatprep.subr.bf16.mxu0 %v9029
    %9283 = vmatpush1.bf16.msra.mxu0 %v9028
    %9284 = vmatprep.subr.bf16.mxu0 %v9033
    %9285 = vmatpush1.bf16.msra.mxu0 %v9032
    %9286 = vmatprep.subr.bf16.mxu0 %v9037
    %9287 = vmatpush1.bf16.msra.mxu0 %v9036
    %9288 = vmatprep.subr.bf16.mxu0 %v9041
    %9289 = vmatpush1.bf16.msra.mxu0 %v9040
    %9290 = vmatprep.subr.bf16.mxu0 %v9045
    %9291 = vmatpush1.bf16.msra.mxu0 %v9044
    %9292 = vmatprep.subr.bf16.mxu0 %v9049
    %9293 = vmatpush1.bf16.msra.mxu0 %v9048
    %9294 = vmatprep.subr.bf16.mxu0 %v9053
    %9295 = vmatpush1.bf16.msra.mxu0 %v9052
    %9296 = vmatprep.subr.bf16.mxu0 %v9057
    %9297 = vmatpush1.bf16.msra.mxu0 %v9056
    %9298 = vmatprep.subr.bf16.mxu0 %v9061
    %9299 = vmatpush1.bf16.msra.mxu0 %v9060
    %9300 = vmatprep.subr.bf16.mxu0 %v9065
    %9301 = vmatpush1.bf16.msra.mxu0 %v9064
    %9302 = vmatprep.subr.bf16.mxu0 %v9069
    %9303 = vmatpush1.bf16.msra.mxu0 %v9068
    %9304 = vmatprep.subr.bf16.mxu0 %v9073
    %9305 = vmatpush1.bf16.msra.mxu0 %v9072
    %9306 = vmatprep.subr.bf16.mxu0 %v9077
    %9307 = vmatpush1.bf16.msra.mxu0 %v9076
    %9308 = vmatprep.subr.bf16.mxu0 %v9081
    %9309 = vmatpush1.bf16.msra.mxu0 %v9080
    %9310 = vmatprep.subr.bf16.mxu0 %v9085
    %9311 = vmatpush1.bf16.msra.mxu0 %v9084
    %9312 = vmatprep.mubr.bf16.mxu0 %v8483
    %9313 = vmatmul.mubr.bf16.gmra.mrb[0].mxu0 %v8482
    %v9314 = vpop.f32.mrb[0].mxu0
    %v9315 = vadd.f32 %v8623, %v9314
    %v9316 = vpop.f32.mrb[0].mxu0
    %v9317 = vadd.f32 %v8627, %v9316
    %v9318 = vpop.f32.mrb[0].mxu0
    %v9319 = vadd.f32 %v8623, %v9318
    %v9320 = vpop.f32.mrb[0].mxu0
    %v9321 = vadd.f32 %v8627, %v9320
    %9322 = vmatprep.mubr.bf16.mxu0 %v8487
    %9323 = vmatmul.mubr.bf16.gmra.mrb[0].mxu0 %v8486
    %v9324 = vpop.f32.mrb[0].mxu0
    %v9325 = vadd.f32 %v8623, %v9324
    %v9326 = vpop.f32.mrb[0].mxu0
    %v9327 = vadd.f32 %v8627, %v9326
    %v9328 = vpop.f32.mrb[0].mxu0
    %v9329 = vpop.f32.mrb[0].mxu0
    %9330 = vdwg.mxu0
    %9331 = vmatprep.subr.bf16.mxu0 %v9089
    %9332 = vmatpush1.bf16.msra.mxu0 %v9088
    %9333 = vmatprep.subr.bf16.mxu0 %v9093
    %9334 = vmatpush1.bf16.msra.mxu0 %v9092
    %9335 = vmatprep.subr.bf16.mxu0 %v9097
    %9336 = vmatpush1.bf16.msra.mxu0 %v9096
    %9337 = vmatprep.subr.bf16.mxu0 %v9101
    %9338 = vmatpush1.bf16.msra.mxu0 %v9100
    %9339 = vmatprep.subr.bf16.mxu0 %v9105
    %9340 = vmatpush1.bf16.msra.mxu0 %v9104
    %9341 = vmatprep.subr.bf16.mxu0 %v9109
    %9342 = vmatpush1.bf16.msra.mxu0 %v9108
    %9343 = vmatprep.subr.bf16.mxu0 %v9113
    %9344 = vmatpush1.bf16.msra.mxu0 %v9112
    %9345 = vmatprep.subr.bf16.mxu0 %v9117
    %9346 = vmatpush1.bf16.msra.mxu0 %v9116
    %9347 = vmatprep.subr.bf16.mxu0 %v9121
    %9348 = vmatpush1.bf16.msra.mxu0 %v9120
    %9349 = vmatprep.subr.bf16.mxu0 %v9125
    %9350 = vmatpush1.bf16.msra.mxu0 %v9124
    %9351 = vmatprep.subr.bf16.mxu0 %v9129
    %9352 = vmatpush1.bf16.msra.mxu0 %v9128
    %9353 = vmatprep.subr.bf16.mxu0 %v9133
    %9354 = vmatpush1.bf16.msra.mxu0 %v9132
    %9355 = vmatprep.subr.bf16.mxu0 %v9137
    %9356 = vmatpush1.bf16.msra.mxu0 %v9136
    %9357 = vmatprep.subr.bf16.mxu0 %v9141
    %9358 = vmatpush1.bf16.msra.mxu0 %v9140
    %9359 = vmatprep.subr.bf16.mxu0 %v9145
    %9360 = vmatpush1.bf16.msra.mxu0 %v9144
    %9361 = vmatprep.subr.bf16.mxu0 %v9149
    %9362 = vmatpush1.bf16.msra.mxu0 %v9148
    %9363 = vmatprep.mubr.bf16.mxu0 %v8485
    %9364 = vmatmul.mubr.bf16.gmra.mrb[0].mxu0 %v8484
    %v9365 = vpop.f32.mrb[0].mxu0
    %v9366 = vadd.f32 %v9315, %v9365
    %v9367 = vpop.f32.mrb[0].mxu0
    %v9368 = vadd.f32 %v9317, %v9367
    %v9369 = vpop.f32.mrb[0].mxu0
    %v9370 = vadd.f32 %v9319, %v9369
    %v9371 = vpop.f32.mrb[0].mxu0
    %v9372 = vadd.f32 %v9321, %v9371
    %9373 = vmatprep.mubr.bf16.mxu0 %v8489
    %9374 = vmatmul.mubr.bf16.gmra.mrb[0].mxu0 %v8488
    %v9375 = vpop.f32.mrb[0].mxu0
    %v9376 = vadd.f32 %v9325, %v9375
    %v9377 = vpop.f32.mrb[0].mxu0
    %v9378 = vadd.f32 %v9327, %v9377
    %v9379 = vpop.f32.mrb[0].mxu0
    %v9380 = vpop.f32.mrb[0].mxu0
    %9381 = vdwg.mxu0
    %9382 = vmatprep.subr.bf16.mxu0 %v9027
    %9383 = vmatpush1.bf16.msra.mxu0 %v9026
    %9384 = vmatprep.subr.bf16.mxu0 %v9031
    %9385 = vmatpush1.bf16.msra.mxu0 %v9030
    %9386 = vmatprep.subr.bf16.mxu0 %v9035
    %9387 = vmatpush1.bf16.msra.mxu0 %v9034
    %9388 = vmatprep.subr.bf16.mxu0 %v9039
    %9389 = vmatpush1.bf16.msra.mxu0 %v9038
    %9390 = vmatprep.subr.bf16.mxu0 %v9043
    %9391 = vmatpush1.bf16.msra.mxu0 %v9042
    %9392 = vmatprep.subr.bf16.mxu0 %v9047
    %9393 = vmatpush1.bf16.msra.mxu0 %v9046
    %9394 = vmatprep.subr.bf16.mxu0 %v9051
    %9395 = vmatpush1.bf16.msra.mxu0 %v9050
    %9396 = vmatprep.subr.bf16.mxu0 %v9055
    %9397 = vmatpush1.bf16.msra.mxu0 %v9054
    %9398 = vmatprep.subr.bf16.mxu0 %v9059
    %9399 = vmatpush1.bf16.msra.mxu0 %v9058
    %9400 = vmatprep.subr.bf16.mxu0 %v9063
    %9401 = vmatpush1.bf16.msra.mxu0 %v9062
    %9402 = vmatprep.subr.bf16.mxu0 %v9067
    %9403 = vmatpush1.bf16.msra.mxu0 %v9066
    %9404 = vmatprep.subr.bf16.mxu0 %v9071
    %9405 = vmatpush1.bf16.msra.mxu0 %v9070
    %9406 = vmatprep.subr.bf16.mxu0 %v9075
    %9407 = vmatpush1.bf16.msra.mxu0 %v9074
    %9408 = vmatprep.subr.bf16.mxu0 %v9079
    %9409 = vmatpush1.bf16.msra.mxu0 %v9078
    %9410 = vmatprep.subr.bf16.mxu0 %v9083
    %9411 = vmatpush1.bf16.msra.mxu0 %v9082
    %9412 = vmatprep.subr.bf16.mxu0 %v9087
    %9413 = vmatpush1.bf16.msra.mxu0 %v9086
    %9414 = vmatprep.mubr.bf16.mxu0 %v8483
    %9415 = vmatmul.mubr.bf16.gmra.mrb[0].mxu0 %v8482
    %v9416 = vpop.f32.mrb[0].mxu0
    %v9417 = vadd.f32 %v8631, %v9416
    %v9418 = vpop.f32.mrb[0].mxu0
    %v9419 = vadd.f32 %v8635, %v9418
    %v9420 = vpop.f32.mrb[0].mxu0
    %v9421 = vadd.f32 %v8631, %v9420
    %v9422 = vpop.f32.mrb[0].mxu0
    %v9423 = vadd.f32 %v8635, %v9422
    %9424 = vmatprep.mubr.bf16.mxu0 %v8487
    %9425 = vmatmul.mubr.bf16.gmra.mrb[0].mxu0 %v8486
    %v9426 = vpop.f32.mrb[0].mxu0
    %v9427 = vadd.f32 %v8631, %v9426
    %v9428 = vpop.f32.mrb[0].mxu0
    %v9429 = vadd.f32 %v8635, %v9428
    %v9430 = vpop.f32.mrb[0].mxu0
    %v9431 = vpop.f32.mrb[0].mxu0
    %9432 = vdwg.mxu0
    %9433 = vmatprep.subr.bf16.mxu0 %v9091
    %9434 = vmatpush1.bf16.msra.mxu0 %v9090
    %9435 = vmatprep.subr.bf16.mxu0 %v9095
    %9436 = vmatpush1.bf16.msra.mxu0 %v9094
    %9437 = vmatprep.subr.bf16.mxu0 %v9099
    %9438 = vmatpush1.bf16.msra.mxu0 %v9098
    %9439 = vmatprep.subr.bf16.mxu0 %v9103
    %9440 = vmatpush1.bf16.msra.mxu0 %v9102
    %9441 = vmatprep.subr.bf16.mxu0 %v9107
    %9442 = vmatpush1.bf16.msra.mxu0 %v9106
    %9443 = vmatprep.subr.bf16.mxu0 %v9111
    %9444 = vmatpush1.bf16.msra.mxu0 %v9110
    %9445 = vmatprep.subr.bf16.mxu0 %v9115
    %9446 = vmatpush1.bf16.msra.mxu0 %v9114
    %9447 = vmatprep.subr.bf16.mxu0 %v9119
    %9448 = vmatpush1.bf16.msra.mxu0 %v9118
    %9449 = vmatprep.subr.bf16.mxu0 %v9123
    %9450 = vmatpush1.bf16.msra.mxu0 %v9122
    %9451 = vmatprep.subr.bf16.mxu0 %v9127
    %9452 = vmatpush1.bf16.msra.mxu0 %v9126
    %9453 = vmatprep.subr.bf16.mxu0 %v9131
    %9454 = vmatpush1.bf16.msra.mxu0 %v9130
    %9455 = vmatprep.subr.bf16.mxu0 %v9135
    %9456 = vmatpush1.bf16.msra.mxu0 %v9134
    %9457 = vmatprep.subr.bf16.mxu0 %v9139
    %9458 = vmatpush1.bf16.msra.mxu0 %v9138
    %9459 = vmatprep.subr.bf16.mxu0 %v9143
    %9460 = vmatpush1.bf16.msra.mxu0 %v9142
    %9461 = vmatprep.subr.bf16.mxu0 %v9147
    %9462 = vmatpush1.bf16.msra.mxu0 %v9146
    %9463 = vmatprep.subr.bf16.mxu0 %v9151
    %9464 = vmatpush1.bf16.msra.mxu0 %v9150
    %9465 = vmatprep.mubr.bf16.mxu0 %v8485
    %9466 = vmatmul.mubr.bf16.gmra.mrb[0].mxu0 %v8484
    %v9467 = vpop.f32.mrb[0].mxu0
    %v9468 = vadd.f32 %v9417, %v9467
    %v9469 = vpop.f32.mrb[0].mxu0
    %v9470 = vadd.f32 %v9419, %v9469
    %v9471 = vpop.f32.mrb[0].mxu0
    %v9472 = vadd.f32 %v9421, %v9471
    %v9473 = vpop.f32.mrb[0].mxu0
    %v9474 = vadd.f32 %v9423, %v9473
    %9475 = vmatprep.mubr.bf16.mxu0 %v8489
    %9476 = vmatmul.mubr.bf16.gmra.mrb[0].mxu0 %v8488
    %v9477 = vpop.f32.mrb[0].mxu0
    %v9478 = vadd.f32 %v9427, %v9477
    %v9479 = vpop.f32.mrb[0].mxu0
    %v9480 = vadd.f32 %v9429, %v9479
    %v9481 = vpop.f32.mrb[0].mxu0
    %v9482 = vpop.f32.mrb[0].mxu0
    %9483 = vdwg.mxu0
    %v9484 = vmax.f32 %v9366, 0.0
    %v9485 = vmax.f32 %v9368, 0.0
    %v9486 = vmax.f32 %v9468, 0.0
    %v9487 = vmax.f32 %v9470, 0.0
    %v9488 = vmax.f32 %v9370, 0.0
    %v9489 = vmax.f32 %v9372, 0.0
    %v9490 = vmax.f32 %v9472, 0.0
    %v9491 = vmax.f32 %v9474, 0.0
    %v9492 = vmax.f32 %v9376, 0.0
    %v9493 = vmax.f32 %v9378, 0.0
    %v9494 = vmax.f32 %v9478, 0.0
    %v9495 = vmax.f32 %v9480, 0.0
    %v9496 = vpack.c.bf16 %v9488, %v9484
    %v9497 = vpack.c.bf16 %v9489, %v9485
    %v9498 = vpack.c.bf16 %v9490, %v9486
    %v9499 = vpack.c.bf16 %v9491, %v9487
    %v9500 = vpack.c.bf16 %v9492, %v9492
    %v9501 = vpack.c.bf16 %v9493, %v9493
    %v9502 = vpack.c.bf16 %v9494, %v9494
    %v9503 = vpack.c.bf16 %v9495, %v9495
    %v9504 = vld [vmem:[#allocation35] sm:$0xf]
    %v9505 = vld [vmem:[#allocation35 + $0x4] sm:$0xf]
    %v9506 = vld [vmem:[#allocation35 + $0x8] sm:$0xf]
    %v9507 = vld [vmem:[#allocation35 + $0xc] sm:$0xf]
    %v9508 = vld [vmem:[#allocation35 + $0x10] sm:$0xf]
    %v9509 = vld [vmem:[#allocation35 + $0x14] sm:$0xf]
    %v9510 = vld [vmem:[#allocation35 + $0x18] sm:$0xf]
    %v9511 = vld [vmem:[#allocation35 + $0x1c] sm:$0xf]
    %v9512 = vld [vmem:[#allocation35 + $0x20] sm:$0xf]
    %v9513 = vld [vmem:[#allocation35 + $0x24] sm:$0xf]
    %v9514 = vld [vmem:[#allocation35 + $0x28] sm:$0xf]
    %v9515 = vld [vmem:[#allocation35 + $0x2c] sm:$0xf]
    %v9516 = vld [vmem:[#allocation35 + $0x30] sm:$0xf]
    %v9517 = vld [vmem:[#allocation35 + $0x34] sm:$0xf]
    %v9518 = vld [vmem:[#allocation35 + $0x38] sm:$0xf]
    %v9519 = vld [vmem:[#allocation35 + $0x3c] sm:$0xf]
    %v9520 = vld [vmem:[#allocation35 + $0x40] sm:$0xf]
    %v9521 = vld [vmem:[#allocation35 + $0x44] sm:$0xf]
    %v9522 = vld [vmem:[#allocation35 + $0x48] sm:$0xf]
    %v9523 = vld [vmem:[#allocation35 + $0x4c] sm:$0xf]
    %v9524 = vld [vmem:[#allocation35 + $0x50] sm:$0xf]
    %v9525 = vld [vmem:[#allocation35 + $0x54] sm:$0xf]
    %v9526 = vld [vmem:[#allocation35 + $0x58] sm:$0xf]
    %v9527 = vld [vmem:[#allocation35 + $0x5c] sm:$0xf]
    %v9528 = vld [vmem:[#allocation35 + $0x60] sm:$0xf]
    %v9529 = vld [vmem:[#allocation35 + $0x64] sm:$0xf]
    %v9530 = vld [vmem:[#allocation35 + $0x68] sm:$0xf]
    %v9531 = vld [vmem:[#allocation35 + $0x6c] sm:$0xf]
    %v9532 = vld [vmem:[#allocation35 + $0x70] sm:$0xf]
    %v9533 = vld [vmem:[#allocation35 + $0x74] sm:$0xf]
    %v9534 = vld [vmem:[#allocation35 + $0x78] sm:$0xf]
    %v9535 = vld [vmem:[#allocation35 + $0x7c] sm:$0xf]
    %v9536 = vld [vmem:[#allocation35 + $0x80] sm:$0xf]
    %v9537 = vld [vmem:[#allocation35 + $0x84] sm:$0xf]
    %v9538 = vld [vmem:[#allocation35 + $0x88] sm:$0xf]
    %v9539 = vld [vmem:[#allocation35 + $0x8c] sm:$0xf]
    %v9540 = vld [vmem:[#allocation35 + $0x90] sm:$0xf]
    %v9541 = vld [vmem:[#allocation35 + $0x94] sm:$0xf]
    %v9542 = vld [vmem:[#allocation35 + $0x98] sm:$0xf]
    %v9543 = vld [vmem:[#allocation35 + $0x9c] sm:$0xf]
    %v9544 = vld [vmem:[#allocation35 + $0xa0] sm:$0xf]
    %v9545 = vld [vmem:[#allocation35 + $0xa4] sm:$0xf]
    %v9546 = vld [vmem:[#allocation35 + $0xa8] sm:$0xf]
    %v9547 = vld [vmem:[#allocation35 + $0xac] sm:$0xf]
    %v9548 = vld [vmem:[#allocation35 + $0xb0] sm:$0xf]
    %v9549 = vld [vmem:[#allocation35 + $0xb4] sm:$0xf]
    %v9550 = vld [vmem:[#allocation35 + $0xb8] sm:$0xf]
    %v9551 = vld [vmem:[#allocation35 + $0xbc] sm:$0xf]
    %v9552 = vld [vmem:[#allocation35 + $0xc0] sm:$0xf]
    %v9553 = vld [vmem:[#allocation35 + $0xc4] sm:$0xf]
    %v9554 = vld [vmem:[#allocation35 + $0xc8] sm:$0xf]
    %v9555 = vld [vmem:[#allocation35 + $0xcc] sm:$0xf]
    %v9556 = vld [vmem:[#allocation35 + $0xd0] sm:$0xf]
    %v9557 = vld [vmem:[#allocation35 + $0xd4] sm:$0xf]
    %v9558 = vld [vmem:[#allocation35 + $0xd8] sm:$0xf]
    %v9559 = vld [vmem:[#allocation35 + $0xdc] sm:$0xf]
    %v9560 = vld [vmem:[#allocation35 + $0xe0] sm:$0xf]
    %v9561 = vld [vmem:[#allocation35 + $0xe4] sm:$0xf]
    %v9562 = vld [vmem:[#allocation35 + $0xe8] sm:$0xf]
    %v9563 = vld [vmem:[#allocation35 + $0xec] sm:$0xf]
    %v9564 = vld [vmem:[#allocation35 + $0xf0] sm:$0xf]
    %v9565 = vld [vmem:[#allocation35 + $0xf4] sm:$0xf]
    %v9566 = vld [vmem:[#allocation35 + $0xf8] sm:$0xf]
    %v9567 = vld [vmem:[#allocation35 + $0xfc] sm:$0xf]
    %v9568 = vld [vmem:[%s69] sm:$0x1]
    %v9570 = vlaneseq
    %v9571 = vshrl.u32 %v9570, 7
    %v9572 = vsub.s32 0, %v9571
    %v9573 = vrot.slane %v9568, %v9572
    %v9639 = vunpack.c.l.b16 %v9504
    %v9640 = vunpack.c.l.b16 %v9505
    %v9641 = vunpack.c.l.b16 %v9506
    %v9642 = vunpack.c.l.b16 %v9507
    %v9643 = vunpack.c.l.b16 %v9508
    %v9644 = vunpack.c.l.b16 %v9509
    %v9645 = vunpack.c.l.b16 %v9510
    %v9646 = vunpack.c.l.b16 %v9511
    %v9647 = vunpack.c.l.b16 %v9512
    %v9648 = vunpack.c.l.b16 %v9513
    %v9649 = vunpack.c.l.b16 %v9514
    %v9650 = vunpack.c.l.b16 %v9515
    %v9651 = vunpack.c.l.b16 %v9516
    %v9652 = vunpack.c.l.b16 %v9517
    %v9653 = vunpack.c.l.b16 %v9518
    %v9654 = vunpack.c.l.b16 %v9519
    %v9655 = vunpack.c.l.b16 %v9520
    %v9656 = vunpack.c.l.b16 %v9521
    %v9657 = vunpack.c.l.b16 %v9522
    %v9658 = vunpack.c.l.b16 %v9523
    %v9659 = vunpack.c.l.b16 %v9524
    %v9660 = vunpack.c.l.b16 %v9525
    %v9661 = vunpack.c.l.b16 %v9526
    %v9662 = vunpack.c.l.b16 %v9527
    %v9663 = vunpack.c.l.b16 %v9528
    %v9664 = vunpack.c.l.b16 %v9529
    %v9665 = vunpack.c.l.b16 %v9530
    %v9666 = vunpack.c.l.b16 %v9531
    %v9667 = vunpack.c.l.b16 %v9532
    %v9668 = vunpack.c.l.b16 %v9533
    %v9669 = vunpack.c.l.b16 %v9534
    %v9670 = vunpack.c.l.b16 %v9535
    %v9671 = vunpack.c.l.b16 %v9536
    %v9672 = vunpack.c.l.b16 %v9537
    %v9673 = vunpack.c.l.b16 %v9538
    %v9674 = vunpack.c.l.b16 %v9539
    %v9675 = vunpack.c.l.b16 %v9540
    %v9676 = vunpack.c.l.b16 %v9541
    %v9677 = vunpack.c.l.b16 %v9542
    %v9678 = vunpack.c.l.b16 %v9543
    %v9679 = vunpack.c.l.b16 %v9544
    %v9680 = vunpack.c.l.b16 %v9545
    %v9681 = vunpack.c.l.b16 %v9546
    %v9682 = vunpack.c.l.b16 %v9547
    %v9683 = vunpack.c.l.b16 %v9548
    %v9684 = vunpack.c.l.b16 %v9549
    %v9685 = vunpack.c.l.b16 %v9550
    %v9686 = vunpack.c.l.b16 %v9551
    %v9687 = vunpack.c.l.b16 %v9552
    %v9688 = vunpack.c.l.b16 %v9553
    %v9689 = vunpack.c.l.b16 %v9554
    %v9690 = vunpack.c.l.b16 %v9555
    %v9691 = vunpack.c.l.b16 %v9556
    %v9692 = vunpack.c.l.b16 %v9557
    %v9693 = vunpack.c.l.b16 %v9558
    %v9694 = vunpack.c.l.b16 %v9559
    %v9695 = vunpack.c.l.b16 %v9560
    %v9696 = vunpack.c.l.b16 %v9561
    %v9697 = vunpack.c.l.b16 %v9562
    %v9698 = vunpack.c.l.b16 %v9563
    %v9699 = vunpack.c.l.b16 %v9564
    %v9700 = vunpack.c.l.b16 %v9565
    %v9701 = vunpack.c.l.b16 %v9566
    %v9702 = vunpack.c.l.b16 %v9567
    %v9703 = vpack.c.b16 %v9640, %v9639
    %v9704 = vpack.c.b16 %v9642, %v9641
    %v9705 = vpack.c.b16 %v9644, %v9643
    %v9706 = vpack.c.b16 %v9646, %v9645
    %v9707 = vpack.c.b16 %v9648, %v9647
    %v9708 = vpack.c.b16 %v9650, %v9649
    %v9709 = vpack.c.b16 %v9652, %v9651
    %v9710 = vpack.c.b16 %v9654, %v9653
    %v9711 = vpack.c.b16 %v9656, %v9655
    %v9712 = vpack.c.b16 %v9658, %v9657
    %v9713 = vpack.c.b16 %v9660, %v9659
    %v9714 = vpack.c.b16 %v9662, %v9661
    %v9715 = vpack.c.b16 %v9664, %v9663
    %v9716 = vpack.c.b16 %v9666, %v9665
    %v9717 = vpack.c.b16 %v9668, %v9667
    %v9718 = vpack.c.b16 %v9670, %v9669
    %v9719 = vpack.c.b16 %v9672, %v9671
    %v9720 = vpack.c.b16 %v9674, %v9673
    %v9721 = vpack.c.b16 %v9676, %v9675
    %v9722 = vpack.c.b16 %v9678, %v9677
    %v9723 = vpack.c.b16 %v9680, %v9679
    %v9724 = vpack.c.b16 %v9682, %v9681
    %v9725 = vpack.c.b16 %v9684, %v9683
    %v9726 = vpack.c.b16 %v9686, %v9685
    %v9727 = vpack.c.b16 %v9688, %v9687
    %v9728 = vpack.c.b16 %v9690, %v9689
    %v9729 = vpack.c.b16 %v9692, %v9691
    %v9730 = vpack.c.b16 %v9694, %v9693
    %v9731 = vpack.c.b16 %v9696, %v9695
    %v9732 = vpack.c.b16 %v9698, %v9697
    %v9733 = vpack.c.b16 %v9700, %v9699
    %v9734 = vpack.c.b16 %v9702, %v9701
    %9767 = vmatprep.subr.bf16.mxu0 0
    %9768 = vmatpush1.bf16.msra.mxu0 %v9703
    %9769 = vmatprep.subr.bf16.mxu0 0
    %9770 = vmatpush1.bf16.msra.mxu0 %v9704
    %9771 = vmatprep.subr.bf16.mxu0 0
    %9772 = vmatpush1.bf16.msra.mxu0 %v9705
    %9773 = vmatprep.subr.bf16.mxu0 0
    %9774 = vmatpush1.bf16.msra.mxu0 %v9706
    %9775 = vmatprep.subr.bf16.mxu0 0
    %9776 = vmatpush1.bf16.msra.mxu0 %v9707
    %9777 = vmatprep.subr.bf16.mxu0 0
    %9778 = vmatpush1.bf16.msra.mxu0 %v9708
    %9779 = vmatprep.subr.bf16.mxu0 0
    %9780 = vmatpush1.bf16.msra.mxu0 %v9709
    %9781 = vmatprep.subr.bf16.mxu0 0
    %9782 = vmatpush1.bf16.msra.mxu0 %v9710
    %9783 = vmatprep.subr.bf16.mxu0 0
    %9784 = vmatpush1.bf16.msra.mxu0 %v9711
    %9785 = vmatprep.subr.bf16.mxu0 0
    %9786 = vmatpush1.bf16.msra.mxu0 %v9712
    %9787 = vmatprep.subr.bf16.mxu0 0
    %9788 = vmatpush1.bf16.msra.mxu0 %v9713
    %9789 = vmatprep.subr.bf16.mxu0 0
    %9790 = vmatpush1.bf16.msra.mxu0 %v9714
    %9791 = vmatprep.subr.bf16.mxu0 0
    %9792 = vmatpush1.bf16.msra.mxu0 %v9715
    %9793 = vmatprep.subr.bf16.mxu0 0
    %9794 = vmatpush1.bf16.msra.mxu0 %v9716
    %9795 = vmatprep.subr.bf16.mxu0 0
    %9796 = vmatpush1.bf16.msra.mxu0 %v9717
    %9797 = vmatprep.subr.bf16.mxu0 0
    %9798 = vmatpush1.bf16.msra.mxu0 %v9718
    %9799 = vmatprep.mubr.bf16.mxu0 %v9497
    %9800 = vmatmul.mubr.bf16.gmra.mrb[0].mxu0 %v9496
    %v9801 = vpop.f32.mrb[0].mxu0
    %v9802 = vadd.f32 %v9573, %v9801
    %v9803 = vpop.f32.mrb[0].mxu0
    %v9804 = vpop.f32.mrb[0].mxu0
    %v9805 = vadd.f32 %v9573, %v9804
    %v9806 = vpop.f32.mrb[0].mxu0
    %9807 = vmatprep.mubr.bf16.mxu0 %v9501
    %9808 = vmatmul.mubr.bf16.gmra.mrb[0].mxu0 %v9500
    %v9809 = vpop.f32.mrb[0].mxu0
    %v9810 = vadd.f32 %v9573, %v9809
    %v9811 = vpop.f32.mrb[0].mxu0
    %v9812 = vpop.f32.mrb[0].mxu0
    %v9813 = vpop.f32.mrb[0].mxu0
    %9814 = vdwg.mxu0
    %9815 = vmatprep.subr.bf16.mxu0 0
    %9816 = vmatpush1.bf16.msra.mxu0 %v9719
    %9817 = vmatprep.subr.bf16.mxu0 0
    %9818 = vmatpush1.bf16.msra.mxu0 %v9720
    %9819 = vmatprep.subr.bf16.mxu0 0
    %9820 = vmatpush1.bf16.msra.mxu0 %v9721
    %9821 = vmatprep.subr.bf16.mxu0 0
    %9822 = vmatpush1.bf16.msra.mxu0 %v9722
    %9823 = vmatprep.subr.bf16.mxu0 0
    %9824 = vmatpush1.bf16.msra.mxu0 %v9723
    %9825 = vmatprep.subr.bf16.mxu0 0
    %9826 = vmatpush1.bf16.msra.mxu0 %v9724
    %9827 = vmatprep.subr.bf16.mxu0 0
    %9828 = vmatpush1.bf16.msra.mxu0 %v9725
    %9829 = vmatprep.subr.bf16.mxu0 0
    %9830 = vmatpush1.bf16.msra.mxu0 %v9726
    %9831 = vmatprep.subr.bf16.mxu0 0
    %9832 = vmatpush1.bf16.msra.mxu0 %v9727
    %9833 = vmatprep.subr.bf16.mxu0 0
    %9834 = vmatpush1.bf16.msra.mxu0 %v9728
    %9835 = vmatprep.subr.bf16.mxu0 0
    %9836 = vmatpush1.bf16.msra.mxu0 %v9729
    %9837 = vmatprep.subr.bf16.mxu0 0
    %9838 = vmatpush1.bf16.msra.mxu0 %v9730
    %9839 = vmatprep.subr.bf16.mxu0 0
    %9840 = vmatpush1.bf16.msra.mxu0 %v9731
    %9841 = vmatprep.subr.bf16.mxu0 0
    %9842 = vmatpush1.bf16.msra.mxu0 %v9732
    %9843 = vmatprep.subr.bf16.mxu0 0
    %9844 = vmatpush1.bf16.msra.mxu0 %v9733
    %9845 = vmatprep.subr.bf16.mxu0 0
    %9846 = vmatpush1.bf16.msra.mxu0 %v9734
    %9847 = vmatprep.mubr.bf16.mxu0 %v9499
    %9848 = vmatmul.mubr.bf16.gmra.mrb[0].mxu0 %v9498
    %v9849 = vpop.f32.mrb[0].mxu0
    %v9850 = vadd.f32 %v9802, %v9849
    %v9851 = vpop.f32.mrb[0].mxu0
    %v9852 = vpop.f32.mrb[0].mxu0
    %v9853 = vadd.f32 %v9805, %v9852
    %v9854 = vpop.f32.mrb[0].mxu0
    %9855 = vmatprep.mubr.bf16.mxu0 %v9503
    %9856 = vmatmul.mubr.bf16.gmra.mrb[0].mxu0 %v9502
    %v9857 = vpop.f32.mrb[0].mxu0
    %v9858 = vadd.f32 %v9810, %v9857
    %v9859 = vpop.f32.mrb[0].mxu0
    %v9860 = vpop.f32.mrb[0].mxu0
    %v9861 = vpop.f32.mrb[0].mxu0
    %9862 = vdwg.mxu0
    %9863 = vst [vmem:[#allocation38] sm:$0xff] %v9850
    %9864 = vst [vmem:[#allocation38 + $0x8] sm:$0xff] %v9853
    %9865 = vst [vmem:[#allocation38 + $0x10] sm:$0xff] %v9858
    // Predicated region
    $region230: #{tpu_custom_call.1} parent=1 // pred_check
      _
    $region231: #{tpu_custom_call.1} parent=1 // pred_check_branch
      %9867 = sbr.rel (0) target = $region233
    $region232: #{tpu_custom_call.1} parent=1 // pred_region
      %s9869 = ssub.s32 384, 384
      %9870 = vsyncadd [#allocation4], %s9869
      %s9871 = sshll.u32 [#allocation37], 4
      %s9872 = int_to_ptr.vmem [resolvable:$true] %s9871
      %9877 = dma.vmem_to_hbm [thread:$0]  %s9872, 384, %s71, [#allocation4], 128, 128, 8
    $region233: #{tpu_custom_call.1} parent=1 // pred_fallthru
      _
    // Predicated region
    $region234: #{tpu_custom_call.1} parent=1 // pred_check
      _
    $region235: #{tpu_custom_call.1} parent=1 // pred_check_branch
      %9879 = sbr.rel (0) target = $region237
    $region236: #{tpu_custom_call.1} parent=1 // pred_region
      %s9881 = ssub.s32 384, 384
      %9882 = vsyncadd [#allocation39], %s9881
      %s9883 = sshll.u32 [#allocation38], 4
      %s9884 = int_to_ptr.vmem [resolvable:$true] %s9883
      %9889 = dma.vmem_to_hbm [thread:$0]  %s9884, 384, %s73, [#allocation39], 128, 128, 8
    $region237: #{tpu_custom_call.1} parent=1 // pred_fallthru
      _
    // Predicated region
    $region238: #{tpu_custom_call.1} parent=1 // pred_check
      _
    $region239: #{tpu_custom_call.1} parent=1 // pred_check_branch
      %9891 = sbr.rel (0) target = $region241
    $region240: #{tpu_custom_call.1} parent=1 // pred_region
      %9892 = dma.done [#allocation4], 384
    $region241: #{tpu_custom_call.1} parent=1 // pred_fallthru
      _
    // Predicated region
    $region242: #{tpu_custom_call.1} parent=1 // pred_check
      _
    $region243: #{tpu_custom_call.1} parent=1 // pred_check_branch
      %9894 = sbr.rel (0) target = $region245
    $region244: #{tpu_custom_call.1} parent=1 // pred_region
      %9895 = dma.done [#allocation39], 384
    $region245: #{tpu_custom_call.1} parent=1 // pred_fallthru
      _
    %9896 = vsyncpa [#allocation3], 1
    %9897 = vsyncpa [#allocation6], 1
    %9898 = vsyncpa [#allocation9], 1
    %9899 = vsyncpa [#allocation12], 1
    %9900 = vsyncpa [#allocation15], 1
    %9901 = vsyncpa [#allocation18], 1
    %9902 = vsyncpa [#allocation21], 1
    %9903 = vsyncpa [#allocation24], 1
    %9904 = vsyncpa [#allocation27], 1
    %9905 = vsyncpa [#allocation30], 1
    %9906 = vsyncpa [#allocation33], 1
    %9907 = vsyncpa [#allocation36], 1
    %9908 = vsyncpa [#allocation4], 1
    %9909 = vsyncpa [#allocation39], 1

</llo_original>
